<compile_context>
chip_gen: v7x
topology: tpu7x:2x2x1
jax: 0.10.0
libtpu: 0.0.40
codegen_flags: <defaults>
</compile_context>

<pallas_src>
import math
import functools

import jax
import jax.numpy as jnp
from jax.experimental import pallas as pl
from jax.experimental.pallas import tpu as pltpu

HIDDEN = 768
N_HEADS = 8
D_HEAD = 64
INNER = N_HEADS * D_HEAD          # 512
MAX_POSITION = 303                # fixed by LayerNorm(303) / Linear(303, hidden)
KP_LEN = MAX_POSITION + 2         # 305 keypoint frames -> 303 after two temporal diffs
AUDIO_DIM = 10                    # fixed by LayerNorm(10)
LN_EPS = 1e-5

STRING_TO_TOKEN = {'*': 5, '@': 7}   # synthetic token ids for the placeholder strings


def _full_spec(shape):
    # whole-array block (grid of size 1)
    return pl.BlockSpec(shape, lambda i, _s=shape: (0,) * len(_s))


# ----------------------------- fused Pallas kernel -----------------------------

def _fused_forward_kernel(
        tok_ref, emb_ref,
        x_ref, gp_ref, bp_ref,
        w1p_ref, b1p_ref, w2p_ref, b2p_ref,
        wvf_ref, wof_ref, bof_ref,
        netw_ref, netb_ref,
        ax_ref, ga_ref, ba_ref,
        w1a_ref, b1a_ref, w2a_ref, b2a_ref,
        o_ref, *, pose_token, audio_token):
    """PoseEncoder MLP + fused attention chain, AudioEncoder MLP, and placeholder
    substitution, all fused.  Weights arrive in bf16; accumulation and elementwise
    math in f32."""

    def layer_norm(x, g, b):
        mu = jnp.mean(x, axis=-1, keepdims=True)
        var = jnp.mean((x - mu) ** 2, axis=-1, keepdims=True)   # biased, like torch LN
        return (x - mu) * jax.lax.rsqrt(var + LN_EPS) * g + b

    def dot_bf16(a, w_ref):
        # bf16 x bf16 MXU matmul with f32 accumulation.
        return jnp.dot(a.astype(jnp.bfloat16), w_ref[...],
                       preferred_element_type=jnp.float32)

    # ---- PoseEncoder.input_projection: LN(303) -> Linear -> (Dropout) -> SiLU -> Linear
    xp = layer_norm(x_ref[...].astype(jnp.float32), gp_ref[...], bp_ref[...])   # (1, 303)
    h = dot_bf16(xp, w1p_ref) + b1p_ref[...]                                    # (1, 768)
    h = h * jax.nn.sigmoid(h)                                                   # SiLU
    y = dot_bf16(h, w2p_ref) + b2p_ref[...]                                     # (1, 768)

    # ---- Attentions ("rembed"), fused.  Query/context length == 1, so softmax over the
    #      single key is exactly 1.0 and the result is independent of Wq/Wk:
    #        x2 = y + (y @ [Wv1|Wv2]) @ [[Wo1];[Wo2]] + (bo1 + bo2)
    att = dot_bf16(dot_bf16(y, wvf_ref), wof_ref) + bof_ref[...]        # (1, 768)
    x2 = y + att
    pose_vec = dot_bf16(x2, netw_ref) + netb_ref[...]                   # net: Dropout->Linear

    # ---- AudioEncoder.projector: LN(10) -> Linear -> SiLU -> Linear
    xa = layer_norm(ax_ref[...].astype(jnp.float32), ga_ref[...], ba_ref[...])  # (1, 10)
    ha = dot_bf16(xa, w1a_ref) + b1a_ref[...]
    ha = ha * jax.nn.sigmoid(ha)
    audio_vec = dot_bf16(ha, w2a_ref) + b2a_ref[...]                            # (1, 768)

    # ---- placeholder substitution for both tokens in one pass (lane-dense (R,768) store)
    tok = tok_ref[...]                                   # (R, 1) int32
    emb = emb_ref[...]                                   # (R, D) f32
    out = jnp.where(tok == pose_token, pose_vec, emb)    # embedded_text[tok == '*'] = pose
    out = jnp.where(tok == audio_token, audio_vec, out)  # embedded_text[tok == '@'] = audio
    o_ref[...] = out.astype(o_ref.dtype)


# ----------------------- RhythmEncoder (plain-JAX glue) -----------------------

def _unfold_windows(x, w):
    # torch.Tensor.unfold(1, w, 1): (bs, n) -> (bs, n-w+1, w)
    n = x.shape[1]
    return jnp.stack([x[:, i:n - w + 1 + i] for i in range(w)], axis=-1)


def pick_peak(rhy_env, win_mean=4, win_max=6):
    bs, n = rhy_env.shape
    local_mean = jnp.mean(_unfold_windows(rhy_env, win_mean), axis=-1)
    local_mean = jnp.pad(local_mean, ((0, 0), (0, n - local_mean.shape[1])))
    local_max = jnp.max(_unfold_windows(rhy_env, win_max), axis=-1)
    local_max = jnp.pad(local_max, ((0, 0), (0, n - local_max.shape[1])))
    global_max = jnp.mean(rhy_env, axis=1, keepdims=True)
    peak = ((local_max - local_mean) > 0.1 * global_max) & (local_max == rhy_env)
    peak = peak.astype(jnp.int32)
    peak_mask = jnp.pad(peak[:, 1:] - peak[:, :-1], ((0, 0), (0, 1))) != 0
    return peak * peak_mask.astype(jnp.int32)


def rhythm_encoder(pose, nbins=10):
    motion = pose[:, 1:] - pose[:, :-1]                       # (b, n-1, 17, 3)
    gxy = motion[..., :2]                                     # (b, t, 17, 2)
    magnitude = jnp.sqrt(jnp.sum(gxy * gxy, axis=-1))         # (b, t, 17)
    phase = jnp.arctan2(gxy[..., 1], gxy[..., 0])
    phase_int = (phase * (180.0 / math.pi)) % 180.0
    phase_bin = jnp.floor(phase_int).astype(jnp.int32) % nbins
    onehot = (phase_bin[..., None] == jnp.arange(nbins)[None, None, None, :]).astype(jnp.float32)
    directo = jnp.sum(magnitude[..., None] * onehot, axis=2)  # (b, t, nbins) == scatter+sum(j)
    sf = directo[:, 1:] - directo[:, :-1]                     # (b, t-1, nbins)
    sf_abs = (sf + jnp.abs(sf)) / 2.0
    rhy_env = jnp.sum(sf_abs, axis=2)                         # (b, n-2)
    # NOTE: matches PyTorch reference (no epsilon); zero-motion clips would divide by 0.
    rhy_env = rhy_env / jnp.max(rhy_env, axis=1, keepdims=True)
    rhy_peak = pick_peak(rhy_env)
    return rhy_peak, rhy_env[..., None]


# ----------------------------- module forward -----------------------------

def embedding_manager_forward(params, tokenized_text, embedded_text, keypoints, audio_embed):
    pp, pa = params['pose'], params['audio']

    # RhythmEncoder + positional embedding add (cheap plain-JAX glue).
    rhy_peak, _ = rhythm_encoder(keypoints)                   # (1, 303) int
    nctx = rhy_peak.shape[1]
    pos_row = pp['pos_emb'][:nctx, 0]                         # nn.Embedding(303, 1) lookup
    x_in = rhy_peak.astype(jnp.float32) + pos_row[None, :]    # (1, 303)

    b, l = tokenized_text.shape
    d = embedded_text.shape[-1]
    r = b * l
    tok2 = tokenized_text.reshape(r, 1).astype(jnp.int32)
    emb2 = embedded_text.reshape(r, d).astype(jnp.float32)
    ax = audio_embed.reshape(1, AUDIO_DIM).astype(jnp.float32)

    kern = functools.partial(_fused_forward_kernel,
                             pose_token=STRING_TO_TOKEN['*'],
                             audio_token=STRING_TO_TOKEN['@'])

    operands = (
        tok2, emb2,
        x_in, pp['ln_g'].reshape(1, -1), pp['ln_b'].reshape(1, -1),
        pp['w1'], pp['b1'].reshape(1, -1), pp['w2'], pp['b2'].reshape(1, -1),
        pp['attn_wv'], pp['attn_wo'], pp['attn_bo'].reshape(1, -1),
        pp['net_w'], pp['net_b'].reshape(1, -1),
        ax, pa['ln_g'].reshape(1, -1), pa['ln_b'].reshape(1, -1),
        pa['w1'], pa['b1'].reshape(1, -1), pa['w2'], pa['b2'].reshape(1, -1),
    )

    out = pl.pallas_call(
        kern,
        out_shape=jax.ShapeDtypeStruct((r, d), jnp.float32),
        grid=(1,),
        in_specs=[_full_spec(op.shape) for op in operands],
        out_specs=_full_spec((r, d)),
        input_output_aliases={1: 0},        # embedded_text buffer reused for the output
        compiler_params=pltpu.CompilerParams(
            dimension_semantics=("arbitrary",),
            vmem_limit_bytes=40 * 1024 * 1024),
    )(*operands)
    return out.reshape(b, l, d)


# ----------------------------- parameter init -----------------------------

def init_params(key):
    ks = iter(jax.random.split(key, 32))

    def nrm(shape, scale=0.02, dtype=jnp.bfloat16):
        return (scale * jax.random.normal(next(ks), shape, jnp.float32)).astype(dtype)

    def attn_params():
        # wq/wk kept for parameter parity with the PyTorch module, but with seq length 1
        # the attention output is mathematically independent of them, so the fused kernel
        # never loads them (saves ~6 MB of HBM weight traffic).
        return dict(wq=nrm((HIDDEN, INNER)), wk=nrm((HIDDEN, INNER)),
                    wv=nrm((HIDDEN, INNER)), wo=nrm((INNER, HIDDEN)),
                    bo=jnp.zeros((HIDDEN,), jnp.float32))

    attn1 = attn_params()
    attn2 = attn_params()

    pose = dict(
        pos_emb=nrm((MAX_POSITION, 1), 1.0, jnp.float32),
        ln_g=jnp.ones((MAX_POSITION,), jnp.float32),
        ln_b=jnp.zeros((MAX_POSITION,), jnp.float32),
        w1=nrm((MAX_POSITION, HIDDEN)), b1=jnp.zeros((HIDDEN,), jnp.float32),
        w2=nrm((HIDDEN, HIDDEN)), b2=jnp.zeros((HIDDEN,), jnp.float32),
        attn1=attn1, attn2=attn2,
        net_w=nrm((HIDDEN, HIDDEN)), net_b=jnp.zeros((HIDDEN,), jnp.float32),
    )
    # Pre-fused attention weights consumed by the kernel (one-time init-side concat):
    #   x2 = y + (y @ [Wv1|Wv2]) @ [[Wo1];[Wo2]] + (bo1 + bo2)
    pose['attn_wv'] = jnp.concatenate([attn1['wv'], attn2['wv']], axis=1)  # (768, 1024) bf16
    pose['attn_wo'] = jnp.concatenate([attn1['wo'], attn2['wo']], axis=0)  # (1024, 768) bf16
    pose['attn_bo'] = attn1['bo'] + attn2['bo']                            # (768,)      f32

    return dict(
        pose=pose,
        audio=dict(
            ln_g=jnp.ones((AUDIO_DIM,), jnp.float32),
            ln_b=jnp.zeros((AUDIO_DIM,), jnp.float32),
            w1=nrm((AUDIO_DIM, HIDDEN)), b1=jnp.zeros((HIDDEN,), jnp.float32),
            w2=nrm((HIDDEN, HIDDEN)), b2=jnp.zeros((HIDDEN,), jnp.float32),
        ),
    )


if __name__ == "__main__":
    key = jax.random.PRNGKey(0)
    kp_key, au_key, emb_key, p_key = jax.random.split(key, 4)

    params = init_params(p_key)
    keypoints = jax.random.normal(kp_key, (1, KP_LEN, 17, 3), jnp.float32)   # synthetic pose clip
    audio_embed = jax.random.normal(au_key, (AUDIO_DIM,), jnp.float32)       # synthetic genre embed
    tokenized_text = jnp.array([[1, 2, 5, 3, 4, 7, 6, 8],
                                [5, 9, 10, 7, 11, 12, 13, 5]], dtype=jnp.int32)  # has 5 ('*'), 7 ('@')
    embedded_text = jax.random.normal(emb_key, (2, 8, HIDDEN), jnp.float32)

    fwd = jax.jit(embedding_manager_forward)
    out = fwd(params, tokenized_text, embedded_text, keypoints, audio_embed)
    out = jax.block_until_ready(out)

    assert out.shape == embedded_text.shape and out.dtype == jnp.float32

    # exact sanity checks on the substitution logic (no numerical tolerance involved):
    tok = tokenized_text
    passthrough = (tok != 5) & (tok != 7)
    assert bool(jnp.all(jnp.where(passthrough[..., None], out == embedded_text, True)))
    pose_rows = out[tok == 5]            # every '*' position got the same pose vector
    audio_rows = out[tok == 7]           # every '@' position got the same audio vector
    assert bool(jnp.all(pose_rows == pose_rows[0]))
    assert bool(jnp.all(audio_rows == audio_rows[0]))
    assert not bool(jnp.all(pose_rows[0] == audio_rows[0]))

    print("KERNEL_OK")
</pallas_src>

<mosaic_0001>
module attributes {stable_mosaic.version = 11 : i64} {
  func.func @_fused_forward_kernel(%arg0: i32, %arg1: memref<16x1xi32, #tpu.memory_space<vmem>>, %arg2: memref<16x768xf32, #tpu.memory_space<vmem>>, %arg3: memref<1x303xf32, #tpu.memory_space<vmem>>, %arg4: memref<1x303xf32, #tpu.memory_space<vmem>>, %arg5: memref<1x303xf32, #tpu.memory_space<vmem>>, %arg6: memref<303x768xbf16, #tpu.memory_space<vmem>>, %arg7: memref<1x768xf32, #tpu.memory_space<vmem>>, %arg8: memref<768x768xbf16, #tpu.memory_space<vmem>>, %arg9: memref<1x768xf32, #tpu.memory_space<vmem>>, %arg10: memref<768x1024xbf16, #tpu.memory_space<vmem>>, %arg11: memref<1024x768xbf16, #tpu.memory_space<vmem>>, %arg12: memref<1x768xf32, #tpu.memory_space<vmem>>, %arg13: memref<768x768xbf16, #tpu.memory_space<vmem>>, %arg14: memref<1x768xf32, #tpu.memory_space<vmem>>, %arg15: memref<1x10xf32, #tpu.memory_space<vmem>>, %arg16: memref<1x10xf32, #tpu.memory_space<vmem>>, %arg17: memref<1x10xf32, #tpu.memory_space<vmem>>, %arg18: memref<10x768xbf16, #tpu.memory_space<vmem>>, %arg19: memref<1x768xf32, #tpu.memory_space<vmem>>, %arg20: memref<768x768xbf16, #tpu.memory_space<vmem>>, %arg21: memref<1x768xf32, #tpu.memory_space<vmem>>, %arg22: memref<16x768xf32, #tpu.memory_space<vmem>>) attributes {dimension_semantics = [#tpu.dimension_semantics<arbitrary>], iteration_bounds = array<i64: 1>, scalar_prefetch = 0 : i64, scratch_operands = 0 : i64, tpu.core_type = #tpu.core_type<tc>, window_params = [{pipeline_mode = #tpu.pipeline_mode<synchronous>, transform_indices = @transform_0, window_bounds = array<i64: 16, 1>}, {pipeline_mode = #tpu.pipeline_mode<synchronous>, transform_indices = @transform_1, window_bounds = array<i64: 16, 768>}, {pipeline_mode = #tpu.pipeline_mode<synchronous>, transform_indices = @transform_2, window_bounds = array<i64: 1, 303>}, {pipeline_mode = #tpu.pipeline_mode<synchronous>, transform_indices = @transform_3, window_bounds = array<i64: 1, 303>}, {pipeline_mode = #tpu.pipeline_mode<synchronous>, transform_indices = @transform_4, window_bounds = array<i64: 1, 303>}, {pipeline_mode = #tpu.pipeline_mode<synchronous>, transform_indices = @transform_5, window_bounds = array<i64: 303, 768>}, {pipeline_mode = #tpu.pipeline_mode<synchronous>, transform_indices = @transform_6, window_bounds = array<i64: 1, 768>}, {pipeline_mode = #tpu.pipeline_mode<synchronous>, transform_indices = @transform_7, window_bounds = array<i64: 768, 768>}, {pipeline_mode = #tpu.pipeline_mode<synchronous>, transform_indices = @transform_8, window_bounds = array<i64: 1, 768>}, {pipeline_mode = #tpu.pipeline_mode<synchronous>, transform_indices = @transform_9, window_bounds = array<i64: 768, 1024>}, {pipeline_mode = #tpu.pipeline_mode<synchronous>, transform_indices = @transform_10, window_bounds = array<i64: 1024, 768>}, {pipeline_mode = #tpu.pipeline_mode<synchronous>, transform_indices = @transform_11, window_bounds = array<i64: 1, 768>}, {pipeline_mode = #tpu.pipeline_mode<synchronous>, transform_indices = @transform_12, window_bounds = array<i64: 768, 768>}, {pipeline_mode = #tpu.pipeline_mode<synchronous>, transform_indices = @transform_13, window_bounds = array<i64: 1, 768>}, {pipeline_mode = #tpu.pipeline_mode<synchronous>, transform_indices = @transform_14, window_bounds = array<i64: 1, 10>}, {pipeline_mode = #tpu.pipeline_mode<synchronous>, transform_indices = @transform_15, window_bounds = array<i64: 1, 10>}, {pipeline_mode = #tpu.pipeline_mode<synchronous>, transform_indices = @transform_16, window_bounds = array<i64: 1, 10>}, {pipeline_mode = #tpu.pipeline_mode<synchronous>, transform_indices = @transform_17, window_bounds = array<i64: 10, 768>}, {pipeline_mode = #tpu.pipeline_mode<synchronous>, transform_indices = @transform_18, window_bounds = array<i64: 1, 768>}, {pipeline_mode = #tpu.pipeline_mode<synchronous>, transform_indices = @transform_19, window_bounds = array<i64: 768, 768>}, {pipeline_mode = #tpu.pipeline_mode<synchronous>, transform_indices = @transform_20, window_bounds = array<i64: 1, 768>}, {pipeline_mode = #tpu.pipeline_mode<synchronous>, transform_indices = @transform_21, window_bounds = array<i64: 16, 768>}]} {
    %c0 = arith.constant 0 : index
    %c0_0 = arith.constant 0 : index
    %0 = vector.load %arg3[%c0, %c0_0] : memref<1x303xf32, #tpu.memory_space<vmem>>, vector<1x303xf32>
    %c0_1 = arith.constant 0 : index
    %c0_2 = arith.constant 0 : index
    %1 = vector.load %arg4[%c0_1, %c0_2] : memref<1x303xf32, #tpu.memory_space<vmem>>, vector<1x303xf32>
    %c0_3 = arith.constant 0 : index
    %c0_4 = arith.constant 0 : index
    %2 = vector.load %arg5[%c0_3, %c0_4] : memref<1x303xf32, #tpu.memory_space<vmem>>, vector<1x303xf32>
    %cst = arith.constant dense<0.000000e+00> : vector<1xf32>
    %3 = vector.multi_reduction <add>, %0, %cst [1] : vector<1x303xf32> to vector<1xf32>
    %4 = vector.shape_cast %3 : vector<1xf32> to vector<1x1xf32>
    %cst_5 = arith.constant 3.030000e+02 : f32
    %5 = vector.broadcast %cst_5 : f32 to vector<1x1xf32>
    %6 = arith.divf %4, %5 : vector<1x1xf32>
    %7 = vector.broadcast %6 : vector<1x1xf32> to vector<1x303xf32>
    %8 = arith.subf %0, %7 : vector<1x303xf32>
    %9 = arith.mulf %8, %8 : vector<1x303xf32>
    %cst_6 = arith.constant dense<0.000000e+00> : vector<1xf32>
    %10 = vector.multi_reduction <add>, %9, %cst_6 [1] : vector<1x303xf32> to vector<1xf32>
    %11 = vector.shape_cast %10 : vector<1xf32> to vector<1x1xf32>
    %cst_7 = arith.constant 3.030000e+02 : f32
    %12 = vector.broadcast %cst_7 : f32 to vector<1x1xf32>
    %13 = arith.divf %11, %12 : vector<1x1xf32>
    %14 = vector.broadcast %6 : vector<1x1xf32> to vector<1x303xf32>
    %15 = arith.subf %0, %14 : vector<1x303xf32>
    %cst_8 = arith.constant 9.99999974E-6 : f32
    %16 = vector.broadcast %cst_8 : f32 to vector<1x1xf32>
    %17 = arith.addf %13, %16 : vector<1x1xf32>
    %18 = math.rsqrt %17 : vector<1x1xf32>
    %19 = vector.broadcast %18 : vector<1x1xf32> to vector<1x303xf32>
    %20 = arith.mulf %15, %19 : vector<1x303xf32>
    %21 = arith.mulf %20, %1 : vector<1x303xf32>
    %22 = arith.addf %21, %2 : vector<1x303xf32>
    %23 = arith.truncf %22 : vector<1x303xf32> to vector<1x303xbf16>
    %c0_9 = arith.constant 0 : index
    %c0_10 = arith.constant 0 : index
    %24 = vector.load %arg6[%c0_9, %c0_10] : memref<303x768xbf16, #tpu.memory_space<vmem>>, vector<303x768xbf16>
    %cst_11 = arith.constant dense<0.000000e+00> : vector<1x768xf32>
    %25 = tpu.matmul %23, %24, %cst_11 {dimension_numbers = #tpu.dot_dimension_numbers<[1], [0], [0], [1], [0, 0, 1, 1], [], []>} : vector<1x303xbf16>, vector<303x768xbf16>, vector<1x768xf32> -> vector<1x768xf32>
    %c0_12 = arith.constant 0 : index
    %c0_13 = arith.constant 0 : index
    %26 = vector.load %arg7[%c0_12, %c0_13] : memref<1x768xf32, #tpu.memory_space<vmem>>, vector<1x768xf32>
    %27 = arith.addf %25, %26 : vector<1x768xf32>
    %28 = arith.negf %27 : vector<1x768xf32>
    %29 = math.exp %28 : vector<1x768xf32>
    %cst_14 = arith.constant 1.000000e+00 : f32
    %30 = vector.broadcast %cst_14 : f32 to vector<1x768xf32>
    %31 = arith.addf %30, %29 : vector<1x768xf32>
    %32 = arith.divf %30, %31 : vector<1x768xf32>
    %33 = arith.mulf %27, %32 : vector<1x768xf32>
    %34 = arith.truncf %33 : vector<1x768xf32> to vector<1x768xbf16>
    %c0_15 = arith.constant 0 : index
    %c0_16 = arith.constant 0 : index
    %35 = vector.load %arg8[%c0_15, %c0_16] : memref<768x768xbf16, #tpu.memory_space<vmem>>, vector<768x768xbf16>
    %cst_17 = arith.constant dense<0.000000e+00> : vector<1x768xf32>
    %36 = tpu.matmul %34, %35, %cst_17 {dimension_numbers = #tpu.dot_dimension_numbers<[1], [0], [0], [1], [0, 0, 1, 1], [], []>} : vector<1x768xbf16>, vector<768x768xbf16>, vector<1x768xf32> -> vector<1x768xf32>
    %c0_18 = arith.constant 0 : index
    %c0_19 = arith.constant 0 : index
    %37 = vector.load %arg9[%c0_18, %c0_19] : memref<1x768xf32, #tpu.memory_space<vmem>>, vector<1x768xf32>
    %38 = arith.addf %36, %37 : vector<1x768xf32>
    %39 = arith.truncf %38 : vector<1x768xf32> to vector<1x768xbf16>
    %c0_20 = arith.constant 0 : index
    %c0_21 = arith.constant 0 : index
    %40 = vector.load %arg10[%c0_20, %c0_21] : memref<768x1024xbf16, #tpu.memory_space<vmem>>, vector<768x1024xbf16>
    %cst_22 = arith.constant dense<0.000000e+00> : vector<1x1024xf32>
    %41 = tpu.matmul %39, %40, %cst_22 {dimension_numbers = #tpu.dot_dimension_numbers<[1], [0], [0], [1], [0, 0, 1, 1], [], []>} : vector<1x768xbf16>, vector<768x1024xbf16>, vector<1x1024xf32> -> vector<1x1024xf32>
    %42 = arith.truncf %41 : vector<1x1024xf32> to vector<1x1024xbf16>
    %c0_23 = arith.constant 0 : index
    %c0_24 = arith.constant 0 : index
    %43 = vector.load %arg11[%c0_23, %c0_24] : memref<1024x768xbf16, #tpu.memory_space<vmem>>, vector<1024x768xbf16>
    %cst_25 = arith.constant dense<0.000000e+00> : vector<1x768xf32>
    %44 = tpu.matmul %42, %43, %cst_25 {dimension_numbers = #tpu.dot_dimension_numbers<[1], [0], [0], [1], [0, 0, 1, 1], [], []>} : vector<1x1024xbf16>, vector<1024x768xbf16>, vector<1x768xf32> -> vector<1x768xf32>
    %c0_26 = arith.constant 0 : index
    %c0_27 = arith.constant 0 : index
    %45 = vector.load %arg12[%c0_26, %c0_27] : memref<1x768xf32, #tpu.memory_space<vmem>>, vector<1x768xf32>
    %46 = arith.addf %44, %45 : vector<1x768xf32>
    %47 = arith.addf %38, %46 : vector<1x768xf32>
    %48 = arith.truncf %47 : vector<1x768xf32> to vector<1x768xbf16>
    %c0_28 = arith.constant 0 : index
    %c0_29 = arith.constant 0 : index
    %49 = vector.load %arg13[%c0_28, %c0_29] : memref<768x768xbf16, #tpu.memory_space<vmem>>, vector<768x768xbf16>
    %cst_30 = arith.constant dense<0.000000e+00> : vector<1x768xf32>
    %50 = tpu.matmul %48, %49, %cst_30 {dimension_numbers = #tpu.dot_dimension_numbers<[1], [0], [0], [1], [0, 0, 1, 1], [], []>} : vector<1x768xbf16>, vector<768x768xbf16>, vector<1x768xf32> -> vector<1x768xf32>
    %c0_31 = arith.constant 0 : index
    %c0_32 = arith.constant 0 : index
    %51 = vector.load %arg14[%c0_31, %c0_32] : memref<1x768xf32, #tpu.memory_space<vmem>>, vector<1x768xf32>
    %52 = arith.addf %50, %51 : vector<1x768xf32>
    %c0_33 = arith.constant 0 : index
    %c0_34 = arith.constant 0 : index
    %53 = vector.load %arg15[%c0_33, %c0_34] : memref<1x10xf32, #tpu.memory_space<vmem>>, vector<1x10xf32>
    %c0_35 = arith.constant 0 : index
    %c0_36 = arith.constant 0 : index
    %54 = vector.load %arg16[%c0_35, %c0_36] : memref<1x10xf32, #tpu.memory_space<vmem>>, vector<1x10xf32>
    %c0_37 = arith.constant 0 : index
    %c0_38 = arith.constant 0 : index
    %55 = vector.load %arg17[%c0_37, %c0_38] : memref<1x10xf32, #tpu.memory_space<vmem>>, vector<1x10xf32>
    %cst_39 = arith.constant dense<0.000000e+00> : vector<1xf32>
    %56 = vector.multi_reduction <add>, %53, %cst_39 [1] : vector<1x10xf32> to vector<1xf32>
    %57 = vector.shape_cast %56 : vector<1xf32> to vector<1x1xf32>
    %cst_40 = arith.constant 1.000000e+01 : f32
    %58 = vector.broadcast %cst_40 : f32 to vector<1x1xf32>
    %59 = arith.divf %57, %58 : vector<1x1xf32>
    %60 = vector.broadcast %59 : vector<1x1xf32> to vector<1x10xf32>
    %61 = arith.subf %53, %60 : vector<1x10xf32>
    %62 = arith.mulf %61, %61 : vector<1x10xf32>
    %cst_41 = arith.constant dense<0.000000e+00> : vector<1xf32>
    %63 = vector.multi_reduction <add>, %62, %cst_41 [1] : vector<1x10xf32> to vector<1xf32>
    %64 = vector.shape_cast %63 : vector<1xf32> to vector<1x1xf32>
    %cst_42 = arith.constant 1.000000e+01 : f32
    %65 = vector.broadcast %cst_42 : f32 to vector<1x1xf32>
    %66 = arith.divf %64, %65 : vector<1x1xf32>
    %67 = vector.broadcast %59 : vector<1x1xf32> to vector<1x10xf32>
    %68 = arith.subf %53, %67 : vector<1x10xf32>
    %cst_43 = arith.constant 9.99999974E-6 : f32
    %69 = vector.broadcast %cst_43 : f32 to vector<1x1xf32>
    %70 = arith.addf %66, %69 : vector<1x1xf32>
    %71 = math.rsqrt %70 : vector<1x1xf32>
    %72 = vector.broadcast %71 : vector<1x1xf32> to vector<1x10xf32>
    %73 = arith.mulf %68, %72 : vector<1x10xf32>
    %74 = arith.mulf %73, %54 : vector<1x10xf32>
    %75 = arith.addf %74, %55 : vector<1x10xf32>
    %76 = arith.truncf %75 : vector<1x10xf32> to vector<1x10xbf16>
    %c0_44 = arith.constant 0 : index
    %c0_45 = arith.constant 0 : index
    %77 = vector.load %arg18[%c0_44, %c0_45] : memref<10x768xbf16, #tpu.memory_space<vmem>>, vector<10x768xbf16>
    %cst_46 = arith.constant dense<0.000000e+00> : vector<1x768xf32>
    %78 = tpu.matmul %76, %77, %cst_46 {dimension_numbers = #tpu.dot_dimension_numbers<[1], [0], [0], [1], [0, 0, 1, 1], [], []>} : vector<1x10xbf16>, vector<10x768xbf16>, vector<1x768xf32> -> vector<1x768xf32>
    %c0_47 = arith.constant 0 : index
    %c0_48 = arith.constant 0 : index
    %79 = vector.load %arg19[%c0_47, %c0_48] : memref<1x768xf32, #tpu.memory_space<vmem>>, vector<1x768xf32>
    %80 = arith.addf %78, %79 : vector<1x768xf32>
    %81 = arith.negf %80 : vector<1x768xf32>
    %82 = math.exp %81 : vector<1x768xf32>
    %cst_49 = arith.constant 1.000000e+00 : f32
    %83 = vector.broadcast %cst_49 : f32 to vector<1x768xf32>
    %84 = arith.addf %83, %82 : vector<1x768xf32>
    %85 = arith.divf %83, %84 : vector<1x768xf32>
    %86 = arith.mulf %80, %85 : vector<1x768xf32>
    %87 = arith.truncf %86 : vector<1x768xf32> to vector<1x768xbf16>
    %c0_50 = arith.constant 0 : index
    %c0_51 = arith.constant 0 : index
    %88 = vector.load %arg20[%c0_50, %c0_51] : memref<768x768xbf16, #tpu.memory_space<vmem>>, vector<768x768xbf16>
    %cst_52 = arith.constant dense<0.000000e+00> : vector<1x768xf32>
    %89 = tpu.matmul %87, %88, %cst_52 {dimension_numbers = #tpu.dot_dimension_numbers<[1], [0], [0], [1], [0, 0, 1, 1], [], []>} : vector<1x768xbf16>, vector<768x768xbf16>, vector<1x768xf32> -> vector<1x768xf32>
    %c0_53 = arith.constant 0 : index
    %c0_54 = arith.constant 0 : index
    %90 = vector.load %arg21[%c0_53, %c0_54] : memref<1x768xf32, #tpu.memory_space<vmem>>, vector<1x768xf32>
    %91 = arith.addf %89, %90 : vector<1x768xf32>
    %c0_55 = arith.constant 0 : index
    %c0_56 = arith.constant 0 : index
    %92 = vector.load %arg1[%c0_55, %c0_56] : memref<16x1xi32, #tpu.memory_space<vmem>>, vector<16x1xi32>
    %c0_57 = arith.constant 0 : index
    %c0_58 = arith.constant 0 : index
    %93 = vector.load %arg2[%c0_57, %c0_58] : memref<16x768xf32, #tpu.memory_space<vmem>>, vector<16x768xf32>
    %c5_i32 = arith.constant 5 : i32
    %94 = vector.broadcast %c5_i32 : i32 to vector<16x1xi32>
    %95 = arith.cmpi eq, %92, %94 : vector<16x1xi32>
    %96 = vector.shape_cast %95 : vector<16x1xi1> to vector<16x1xi1>
    %97 = vector.broadcast %96 : vector<16x1xi1> to vector<16x768xi1>
    %98 = vector.shape_cast %52 : vector<1x768xf32> to vector<1x768xf32>
    %99 = vector.broadcast %98 : vector<1x768xf32> to vector<16x768xf32>
    %100 = arith.select %97, %99, %93 : vector<16x768xi1>, vector<16x768xf32>
    %c7_i32 = arith.constant 7 : i32
    %101 = vector.broadcast %c7_i32 : i32 to vector<16x1xi32>
    %102 = arith.cmpi eq, %92, %101 : vector<16x1xi32>
    %103 = vector.shape_cast %102 : vector<16x1xi1> to vector<16x1xi1>
    %104 = vector.broadcast %103 : vector<16x1xi1> to vector<16x768xi1>
    %105 = vector.shape_cast %91 : vector<1x768xf32> to vector<1x768xf32>
    %106 = vector.broadcast %105 : vector<1x768xf32> to vector<16x768xf32>
    %107 = arith.select %104, %106, %100 : vector<16x768xi1>, vector<16x768xf32>
    %c0_59 = arith.constant 0 : index
    %c0_60 = arith.constant 0 : index
    %108 = vector.load %arg22[%c0_59, %c0_60] : memref<16x768xf32, #tpu.memory_space<vmem>>, vector<16x768xf32>
    tpu.vector_store %arg22[%c0_59, %c0_60], %107 {strides = array<i32>} : memref<16x768xf32, #tpu.memory_space<vmem>>, vector<16x768xf32>,
    return
  }
  func.func @transform_0(%arg0: i32) -> (i32, i32) {
    %c0_i32 = arith.constant 0 : i32
    %c0_i32_0 = arith.constant 0 : i32
    %c0_i32_1 = arith.constant 0 : i32
    return %c0_i32, %c0_i32_0 : i32, i32
  }
  func.func @transform_1(%arg0: i32) -> (i32, i32) {
    %c0_i32 = arith.constant 0 : i32
    %c0_i32_0 = arith.constant 0 : i32
    %c0_i32_1 = arith.constant 0 : i32
    return %c0_i32, %c0_i32_0 : i32, i32
  }
  func.func @transform_2(%arg0: i32) -> (i32, i32) {
    %c0_i32 = arith.constant 0 : i32
    %c0_i32_0 = arith.constant 0 : i32
    %c0_i32_1 = arith.constant 0 : i32
    return %c0_i32, %c0_i32_0 : i32, i32
  }
  func.func @transform_3(%arg0: i32) -> (i32, i32) {
    %c0_i32 = arith.constant 0 : i32
    %c0_i32_0 = arith.constant 0 : i32
    %c0_i32_1 = arith.constant 0 : i32
    return %c0_i32, %c0_i32_0 : i32, i32
  }
  func.func @transform_4(%arg0: i32) -> (i32, i32) {
    %c0_i32 = arith.constant 0 : i32
    %c0_i32_0 = arith.constant 0 : i32
    %c0_i32_1 = arith.constant 0 : i32
    return %c0_i32, %c0_i32_0 : i32, i32
  }
  func.func @transform_5(%arg0: i32) -> (i32, i32) {
    %c0_i32 = arith.constant 0 : i32
    %c0_i32_0 = arith.constant 0 : i32
    %c0_i32_1 = arith.constant 0 : i32
    return %c0_i32, %c0_i32_0 : i32, i32
  }
  func.func @transform_6(%arg0: i32) -> (i32, i32) {
    %c0_i32 = arith.constant 0 : i32
    %c0_i32_0 = arith.constant 0 : i32
    %c0_i32_1 = arith.constant 0 : i32
    return %c0_i32, %c0_i32_0 : i32, i32
  }
  func.func @transform_7(%arg0: i32) -> (i32, i32) {
    %c0_i32 = arith.constant 0 : i32
    %c0_i32_0 = arith.constant 0 : i32
    %c0_i32_1 = arith.constant 0 : i32
    return %c0_i32, %c0_i32_0 : i32, i32
  }
  func.func @transform_8(%arg0: i32) -> (i32, i32) {
    %c0_i32 = arith.constant 0 : i32
    %c0_i32_0 = arith.constant 0 : i32
    %c0_i32_1 = arith.constant 0 : i32
    return %c0_i32, %c0_i32_0 : i32, i32
  }
  func.func @transform_9(%arg0: i32) -> (i32, i32) {
    %c0_i32 = arith.constant 0 : i32
    %c0_i32_0 = arith.constant 0 : i32
    %c0_i32_1 = arith.constant 0 : i32
    return %c0_i32, %c0_i32_0 : i32, i32
  }
  func.func @transform_10(%arg0: i32) -> (i32, i32) {
    %c0_i32 = arith.constant 0 : i32
    %c0_i32_0 = arith.constant 0 : i32
    %c0_i32_1 = arith.constant 0 : i32
    return %c0_i32, %c0_i32_0 : i32, i32
  }
  func.func @transform_11(%arg0: i32) -> (i32, i32) {
    %c0_i32 = arith.constant 0 : i32
    %c0_i32_0 = arith.constant 0 : i32
    %c0_i32_1 = arith.constant 0 : i32
    return %c0_i32, %c0_i32_0 : i32, i32
  }
  func.func @transform_12(%arg0: i32) -> (i32, i32) {
    %c0_i32 = arith.constant 0 : i32
    %c0_i32_0 = arith.constant 0 : i32
    %c0_i32_1 = arith.constant 0 : i32
    return %c0_i32, %c0_i32_0 : i32, i32
  }
  func.func @transform_13(%arg0: i32) -> (i32, i32) {
    %c0_i32 = arith.constant 0 : i32
    %c0_i32_0 = arith.constant 0 : i32
    %c0_i32_1 = arith.constant 0 : i32
    return %c0_i32, %c0_i32_0 : i32, i32
  }
  func.func @transform_14(%arg0: i32) -> (i32, i32) {
    %c0_i32 = arith.constant 0 : i32
    %c0_i32_0 = arith.constant 0 : i32
    %c0_i32_1 = arith.constant 0 : i32
    return %c0_i32, %c0_i32_0 : i32, i32
  }
  func.func @transform_15(%arg0: i32) -> (i32, i32) {
    %c0_i32 = arith.constant 0 : i32
    %c0_i32_0 = arith.constant 0 : i32
    %c0_i32_1 = arith.constant 0 : i32
    return %c0_i32, %c0_i32_0 : i32, i32
  }
  func.func @transform_16(%arg0: i32) -> (i32, i32) {
    %c0_i32 = arith.constant 0 : i32
    %c0_i32_0 = arith.constant 0 : i32
    %c0_i32_1 = arith.constant 0 : i32
    return %c0_i32, %c0_i32_0 : i32, i32
  }
  func.func @transform_17(%arg0: i32) -> (i32, i32) {
    %c0_i32 = arith.constant 0 : i32
    %c0_i32_0 = arith.constant 0 : i32
    %c0_i32_1 = arith.constant 0 : i32
    return %c0_i32, %c0_i32_0 : i32, i32
  }
  func.func @transform_18(%arg0: i32) -> (i32, i32) {
    %c0_i32 = arith.constant 0 : i32
    %c0_i32_0 = arith.constant 0 : i32
    %c0_i32_1 = arith.constant 0 : i32
    return %c0_i32, %c0_i32_0 : i32, i32
  }
  func.func @transform_19(%arg0: i32) -> (i32, i32) {
    %c0_i32 = arith.constant 0 : i32
    %c0_i32_0 = arith.constant 0 : i32
    %c0_i32_1 = arith.constant 0 : i32
    return %c0_i32, %c0_i32_0 : i32, i32
  }
  func.func @transform_20(%arg0: i32) -> (i32, i32) {
    %c0_i32 = arith.constant 0 : i32
    %c0_i32_0 = arith.constant 0 : i32
    %c0_i32_1 = arith.constant 0 : i32
    return %c0_i32, %c0_i32_0 : i32, i32
  }
  func.func @transform_21(%arg0: i32) -> (i32, i32) {
    %c0_i32 = arith.constant 0 : i32
    %c0_i32_0 = arith.constant 0 : i32
    %c0_i32_1 = arith.constant 0 : i32
    return %c0_i32, %c0_i32_0 : i32, i32
  }
}

</mosaic_0001>

<llo_original>
// kernel: embedding_manager_forward.1
$region0: #{embedding_manager_forward.1}
  #allocation0 [shape = 'u32[]', space=smem, size = 0x4, offset = 0x4, fixed_abs, tag = 'smem constant byte address 0x4 - core index']
  #allocation1 [shape = 'u32[144,128]{1,0:T(1,128)}', space=vmem, size = 0x12000, scoped, tag = 'internal scratch']
  %s0 = inlined_call_operand.vmem [shape: s32[16,1], index: 0, kind: input, shape index: {}]
  %s1 = inlined_call_operand.vmem [shape: f32[16,768], index: 1, kind: input, shape index: {}, may-alias: {1,21}]
  %s2 = inlined_call_operand.vmem [shape: f32[1,303], index: 2, kind: input, shape index: {}]
  %s3 = inlined_call_operand.vmem [shape: f32[1,303], index: 3, kind: input, shape index: {}]
  %s4 = inlined_call_operand.vmem [shape: f32[1,303], index: 4, kind: input, shape index: {}]
  %s5 = inlined_call_operand.vmem [shape: bf16[303,768], index: 5, kind: input, shape index: {}]
  %s6 = inlined_call_operand.vmem [shape: f32[1,768], index: 6, kind: input, shape index: {}]
  %s7 = inlined_call_operand.hbm [shape: bf16[768,768], index: 7, kind: input, shape index: {}]
  %s8 = inlined_call_operand.vmem [shape: f32[1,768], index: 8, kind: input, shape index: {}]
  %s9 = inlined_call_operand.hbm [shape: bf16[768,1024], index: 9, kind: input, shape index: {}]
  %s10 = inlined_call_operand.hbm [shape: bf16[1024,768], index: 10, kind: input, shape index: {}]
  %s11 = inlined_call_operand.vmem [shape: f32[1,768], index: 11, kind: input, shape index: {}]
  %s12 = inlined_call_operand.hbm [shape: bf16[768,768], index: 12, kind: input, shape index: {}]
  %s13 = inlined_call_operand.vmem [shape: f32[1,768], index: 13, kind: input, shape index: {}]
  %s14 = inlined_call_operand.hbm [shape: f32[1,10], index: 14, kind: input, shape index: {}]
  %s15 = inlined_call_operand.hbm [shape: f32[1,10], index: 15, kind: input, shape index: {}]
  %s16 = inlined_call_operand.hbm [shape: f32[1,10], index: 16, kind: input, shape index: {}]
  %s17 = inlined_call_operand.hbm [shape: bf16[10,768], index: 17, kind: input, shape index: {}]
  %s18 = inlined_call_operand.vmem [shape: f32[1,768], index: 18, kind: input, shape index: {}]
  %s19 = inlined_call_operand.hbm [shape: bf16[768,768], index: 19, kind: input, shape index: {}]
  %s20 = inlined_call_operand.vmem [shape: f32[1,768], index: 20, kind: input, shape index: {}]
  %s21 = inlined_call_operand.vmem [shape: f32[16,768], index: 21, kind: output, shape index: {}, may-alias: {1,21}]
  %s22 = sld [smem:[#allocation0]]
  $region130: #{embedding_manager_forward.1} parent=0
    _
  %s24 = ssub.s32 1, %s22
  %s25 = scalar_select 0, %s24, %s22
  $region1: #{embedding_manager_forward.1} parent=0
    #allocation2 [shape = 'u8[1179648]{0}', space=vmem, size = 0x120000, scoped, tag = 'input window, operand 7, single buffered']
    #allocation3 [shape = 's32[1]{0}', space=sflag, size = 0x4, scoped, tag = 'scoped memory for embedding_manager_forward.1']
    #allocation4 [shape = 'u8[1572864]{0}', space=vmem, size = 0x180000, scoped, tag = 'input window, operand 9, single buffered']
    #allocation5 [shape = 's32[1]{0}', space=sflag, size = 0x4, scoped, tag = 'scoped memory for embedding_manager_forward.1']
    #allocation6 [shape = 'u8[1572864]{0}', space=vmem, size = 0x180000, scoped, tag = 'input window, operand 10, single buffered']
    #allocation7 [shape = 'u8[1179648]{0}', space=vmem, size = 0x120000, scoped, tag = 'input window, operand 12, single buffered']
    #allocation8 [shape = 's32[1]{0}', space=sflag, size = 0x4, scoped, tag = 'scoped memory for embedding_manager_forward.1']
    #allocation9 [shape = 'u8[512]{0}', space=vmem, size = 0x400, scoped, tag = 'input window, operand 14, single buffered']
    #allocation10 [shape = 'u8[512]{0}', space=vmem, size = 0x400, scoped, tag = 'input window, operand 15, single buffered']
    #allocation11 [shape = 's32[1]{0}', space=sflag, size = 0x4, scoped, tag = 'scoped memory for embedding_manager_forward.1']
    #allocation12 [shape = 'u8[512]{0}', space=vmem, size = 0x400, scoped, tag = 'input window, operand 16, single buffered']
    #allocation13 [shape = 'u8[24576]{0}', space=vmem, size = 0x6000, scoped, tag = 'input window, operand 17, single buffered']
    #allocation14 [shape = 's32[1]{0}', space=sflag, size = 0x4, scoped, tag = 'scoped memory for embedding_manager_forward.1']
    #allocation15 [shape = 'u8[1179648]{0}', space=vmem, size = 0x120000, scoped, tag = 'input window, operand 19, single buffered']
    %26 = vsyncpa [#allocation3], 0
    %27 = vsyncpa [#allocation5], 0
    %28 = vsyncpa [#allocation8], 0
    %29 = vsyncpa [#allocation11], 0
    %30 = vsyncpa [#allocation14], 0
    // Predicated region
    $region2: #{embedding_manager_forward.1} parent=1 // pred_check
      _
    $region3: #{embedding_manager_forward.1} parent=1 // pred_check_branch
      %32 = sbr.rel (0) target = $region5
    $region4: #{embedding_manager_forward.1} parent=1 // pred_region
      _
    $region5: #{embedding_manager_forward.1} parent=1 // pred_fallthru
      _
    // Predicated region
    $region6: #{embedding_manager_forward.1} parent=1 // pred_check
      _
    $region7: #{embedding_manager_forward.1} parent=1 // pred_check_branch
      %34 = sbr.rel (0) target = $region9
    $region8: #{embedding_manager_forward.1} parent=1 // pred_region
      _
    $region9: #{embedding_manager_forward.1} parent=1 // pred_fallthru
      _
    // Predicated region
    $region10: #{embedding_manager_forward.1} parent=1 // pred_check
      _
    $region11: #{embedding_manager_forward.1} parent=1 // pred_check_branch
      %36 = sbr.rel (0) target = $region13
    $region12: #{embedding_manager_forward.1} parent=1 // pred_region
      _
    $region13: #{embedding_manager_forward.1} parent=1 // pred_fallthru
      _
    // Predicated region
    $region14: #{embedding_manager_forward.1} parent=1 // pred_check
      _
    $region15: #{embedding_manager_forward.1} parent=1 // pred_check_branch
      %38 = sbr.rel (0) target = $region17
    $region16: #{embedding_manager_forward.1} parent=1 // pred_region
      _
    $region17: #{embedding_manager_forward.1} parent=1 // pred_fallthru
      _
    // Predicated region
    $region18: #{embedding_manager_forward.1} parent=1 // pred_check
      _
    $region19: #{embedding_manager_forward.1} parent=1 // pred_check_branch
      %40 = sbr.rel (0) target = $region21
    $region20: #{embedding_manager_forward.1} parent=1 // pred_region
      _
    $region21: #{embedding_manager_forward.1} parent=1 // pred_fallthru
      _
    // Predicated region
    $region22: #{embedding_manager_forward.1} parent=1 // pred_check
      _
    $region23: #{embedding_manager_forward.1} parent=1 // pred_check_branch
      %42 = sbr.rel (0) target = $region25
    $region24: #{embedding_manager_forward.1} parent=1 // pred_region
      _
    $region25: #{embedding_manager_forward.1} parent=1 // pred_fallthru
      _
    // Predicated region
    $region26: #{embedding_manager_forward.1} parent=1 // pred_check
      _
    $region27: #{embedding_manager_forward.1} parent=1 // pred_check_branch
      %44 = sbr.rel (0) target = $region29
    $region28: #{embedding_manager_forward.1} parent=1 // pred_region
      _
    $region29: #{embedding_manager_forward.1} parent=1 // pred_fallthru
      _
    // Predicated region
    $region30: #{embedding_manager_forward.1} parent=1 // pred_check
      _
    $region31: #{embedding_manager_forward.1} parent=1 // pred_check_branch
      %46 = sbr.rel (0) target = $region33
    $region32: #{embedding_manager_forward.1} parent=1 // pred_region
      %s48 = ssub.s32 36864, 36864
      %49 = vsyncadd [#allocation3], %s48
      %s50 = sshll.u32 [#allocation2], 4
      %s51 = int_to_ptr.vmem [resolvable:$true] %s50
      %56 = dma.hbm_to_vmem [thread:$0]  %s7, 36864, %s51, [#allocation3], 384, 384, 24
    $region33: #{embedding_manager_forward.1} parent=1 // pred_fallthru
      _
    // Predicated region
    $region34: #{embedding_manager_forward.1} parent=1 // pred_check
      _
    $region35: #{embedding_manager_forward.1} parent=1 // pred_check_branch
      %58 = sbr.rel (0) target = $region37
    $region36: #{embedding_manager_forward.1} parent=1 // pred_region
      _
    $region37: #{embedding_manager_forward.1} parent=1 // pred_fallthru
      _
    // Predicated region
    $region38: #{embedding_manager_forward.1} parent=1 // pred_check
      _
    $region39: #{embedding_manager_forward.1} parent=1 // pred_check_branch
      %60 = sbr.rel (0) target = $region41
    $region40: #{embedding_manager_forward.1} parent=1 // pred_region
      %s62 = ssub.s32 49152, 49152
      %63 = vsyncadd [#allocation5], %s62
      %s64 = sshll.u32 [#allocation4], 4
      %s65 = int_to_ptr.vmem [resolvable:$true] %s64
      %70 = dma.hbm_to_vmem [thread:$0]  %s9, 49152, %s65, [#allocation5], 512, 512, 32
    $region41: #{embedding_manager_forward.1} parent=1 // pred_fallthru
      _
    // Predicated region
    $region42: #{embedding_manager_forward.1} parent=1 // pred_check
      _
    $region43: #{embedding_manager_forward.1} parent=1 // pred_check_branch
      %72 = sbr.rel (0) target = $region45
    $region44: #{embedding_manager_forward.1} parent=1 // pred_region
      %s74 = ssub.s32 49152, 49152
      %75 = vsyncadd [#allocation5], %s74
      %s76 = sshll.u32 [#allocation6], 4
      %s77 = int_to_ptr.vmem [resolvable:$true] %s76
      %82 = dma.hbm_to_vmem [thread:$0]  %s10, 49152, %s77, [#allocation5], 384, 384, 24
    $region45: #{embedding_manager_forward.1} parent=1 // pred_fallthru
      _
    // Predicated region
    $region46: #{embedding_manager_forward.1} parent=1 // pred_check
      _
    $region47: #{embedding_manager_forward.1} parent=1 // pred_check_branch
      %84 = sbr.rel (0) target = $region49
    $region48: #{embedding_manager_forward.1} parent=1 // pred_region
      _
    $region49: #{embedding_manager_forward.1} parent=1 // pred_fallthru
      _
    // Predicated region
    $region50: #{embedding_manager_forward.1} parent=1 // pred_check
      _
    $region51: #{embedding_manager_forward.1} parent=1 // pred_check_branch
      %86 = sbr.rel (0) target = $region53
    $region52: #{embedding_manager_forward.1} parent=1 // pred_region
      %s88 = ssub.s32 36864, 36864
      %89 = vsyncadd [#allocation8], %s88
      %s90 = sshll.u32 [#allocation7], 4
      %s91 = int_to_ptr.vmem [resolvable:$true] %s90
      %96 = dma.hbm_to_vmem [thread:$0]  %s12, 36864, %s91, [#allocation8], 384, 384, 24
    $region53: #{embedding_manager_forward.1} parent=1 // pred_fallthru
      _
    // Predicated region
    $region54: #{embedding_manager_forward.1} parent=1 // pred_check
      _
    $region55: #{embedding_manager_forward.1} parent=1 // pred_check_branch
      %98 = sbr.rel (0) target = $region57
    $region56: #{embedding_manager_forward.1} parent=1 // pred_region
      _
    $region57: #{embedding_manager_forward.1} parent=1 // pred_fallthru
      _
    // Predicated region
    $region58: #{embedding_manager_forward.1} parent=1 // pred_check
      _
    $region59: #{embedding_manager_forward.1} parent=1 // pred_check_branch
      %100 = sbr.rel (0) target = $region61
    $region60: #{embedding_manager_forward.1} parent=1 // pred_region
      %s102 = ssub.s32 16, 16
      %103 = vsyncadd [#allocation8], %s102
      %s105 = sshll.u32 [#allocation9], 4
      %s106 = int_to_ptr.vmem [resolvable:$true] %s105
      %108 = dma.hbm_to_vmem [thread:$0]  %s14, 16, %s106, [#allocation8]
    $region61: #{embedding_manager_forward.1} parent=1 // pred_fallthru
      _
    // Predicated region
    $region62: #{embedding_manager_forward.1} parent=1 // pred_check
      _
    $region63: #{embedding_manager_forward.1} parent=1 // pred_check_branch
      %110 = sbr.rel (0) target = $region65
    $region64: #{embedding_manager_forward.1} parent=1 // pred_region
      %s112 = ssub.s32 16, 16
      %113 = vsyncadd [#allocation11], %s112
      %s115 = sshll.u32 [#allocation10], 4
      %s116 = int_to_ptr.vmem [resolvable:$true] %s115
      %118 = dma.hbm_to_vmem [thread:$0]  %s15, 16, %s116, [#allocation11]
    $region65: #{embedding_manager_forward.1} parent=1 // pred_fallthru
      _
    // Predicated region
    $region66: #{embedding_manager_forward.1} parent=1 // pred_check
      _
    $region67: #{embedding_manager_forward.1} parent=1 // pred_check_branch
      %120 = sbr.rel (0) target = $region69
    $region68: #{embedding_manager_forward.1} parent=1 // pred_region
      %s122 = ssub.s32 16, 16
      %123 = vsyncadd [#allocation11], %s122
      %s125 = sshll.u32 [#allocation12], 4
      %s126 = int_to_ptr.vmem [resolvable:$true] %s125
      %128 = dma.hbm_to_vmem [thread:$0]  %s16, 16, %s126, [#allocation11]
    $region69: #{embedding_manager_forward.1} parent=1 // pred_fallthru
      _
    // Predicated region
    $region70: #{embedding_manager_forward.1} parent=1 // pred_check
      _
    $region71: #{embedding_manager_forward.1} parent=1 // pred_check_branch
      %130 = sbr.rel (0) target = $region73
    $region72: #{embedding_manager_forward.1} parent=1 // pred_region
      %s132 = ssub.s32 768, 768
      %133 = vsyncadd [#allocation14], %s132
      %s134 = sshll.u32 [#allocation13], 4
      %s135 = int_to_ptr.vmem [resolvable:$true] %s134
      %140 = dma.hbm_to_vmem [thread:$0]  %s17, 768, %s135, [#allocation14], 384, 384, 24
    $region73: #{embedding_manager_forward.1} parent=1 // pred_fallthru
      _
    // Predicated region
    $region74: #{embedding_manager_forward.1} parent=1 // pred_check
      _
    $region75: #{embedding_manager_forward.1} parent=1 // pred_check_branch
      %142 = sbr.rel (0) target = $region77
    $region76: #{embedding_manager_forward.1} parent=1 // pred_region
      _
    $region77: #{embedding_manager_forward.1} parent=1 // pred_fallthru
      _
    // Predicated region
    $region78: #{embedding_manager_forward.1} parent=1 // pred_check
      _
    $region79: #{embedding_manager_forward.1} parent=1 // pred_check_branch
      %144 = sbr.rel (0) target = $region81
    $region80: #{embedding_manager_forward.1} parent=1 // pred_region
      %s146 = ssub.s32 36864, 36864
      %147 = vsyncadd [#allocation14], %s146
      %s148 = sshll.u32 [#allocation15], 4
      %s149 = int_to_ptr.vmem [resolvable:$true] %s148
      %154 = dma.hbm_to_vmem [thread:$0]  %s19, 36864, %s149, [#allocation14], 384, 384, 24
    $region81: #{embedding_manager_forward.1} parent=1 // pred_fallthru
      _
    // Predicated region
    $region82: #{embedding_manager_forward.1} parent=1 // pred_check
      _
    $region83: #{embedding_manager_forward.1} parent=1 // pred_check_branch
      %156 = sbr.rel (0) target = $region85
    $region84: #{embedding_manager_forward.1} parent=1 // pred_region
      _
    $region85: #{embedding_manager_forward.1} parent=1 // pred_fallthru
      _
    // Predicated region
    $region86: #{embedding_manager_forward.1} parent=1 // pred_check
      _
    $region87: #{embedding_manager_forward.1} parent=1 // pred_check_branch
      %158 = sbr.rel (0) target = $region89
    $region88: #{embedding_manager_forward.1} parent=1 // pred_region
      %159 = dma.done [#allocation3], 36864
    $region89: #{embedding_manager_forward.1} parent=1 // pred_fallthru
      _
    // Predicated region
    $region90: #{embedding_manager_forward.1} parent=1 // pred_check
      _
    $region91: #{embedding_manager_forward.1} parent=1 // pred_check_branch
      %161 = sbr.rel (0) target = $region93
    $region92: #{embedding_manager_forward.1} parent=1 // pred_region
      %162 = dma.done [#allocation5], 49152
    $region93: #{embedding_manager_forward.1} parent=1 // pred_fallthru
      _
    // Predicated region
    $region94: #{embedding_manager_forward.1} parent=1 // pred_check
      _
    $region95: #{embedding_manager_forward.1} parent=1 // pred_check_branch
      %164 = sbr.rel (0) target = $region97
    $region96: #{embedding_manager_forward.1} parent=1 // pred_region
      %165 = dma.done [#allocation5], 49152
    $region97: #{embedding_manager_forward.1} parent=1 // pred_fallthru
      _
    // Predicated region
    $region98: #{embedding_manager_forward.1} parent=1 // pred_check
      _
    $region99: #{embedding_manager_forward.1} parent=1 // pred_check_branch
      %167 = sbr.rel (0) target = $region101
    $region100: #{embedding_manager_forward.1} parent=1 // pred_region
      %168 = dma.done [#allocation8], 36864
    $region101: #{embedding_manager_forward.1} parent=1 // pred_fallthru
      _
    // Predicated region
    $region102: #{embedding_manager_forward.1} parent=1 // pred_check
      _
    $region103: #{embedding_manager_forward.1} parent=1 // pred_check_branch
      %170 = sbr.rel (0) target = $region105
    $region104: #{embedding_manager_forward.1} parent=1 // pred_region
      %171 = dma.done [#allocation8], 16
    $region105: #{embedding_manager_forward.1} parent=1 // pred_fallthru
      _
    // Predicated region
    $region106: #{embedding_manager_forward.1} parent=1 // pred_check
      _
    $region107: #{embedding_manager_forward.1} parent=1 // pred_check_branch
      %173 = sbr.rel (0) target = $region109
    $region108: #{embedding_manager_forward.1} parent=1 // pred_region
      %174 = dma.done [#allocation11], 16
    $region109: #{embedding_manager_forward.1} parent=1 // pred_fallthru
      _
    // Predicated region
    $region110: #{embedding_manager_forward.1} parent=1 // pred_check
      _
    $region111: #{embedding_manager_forward.1} parent=1 // pred_check_branch
      %176 = sbr.rel (0) target = $region113
    $region112: #{embedding_manager_forward.1} parent=1 // pred_region
      %177 = dma.done [#allocation11], 16
    $region113: #{embedding_manager_forward.1} parent=1 // pred_fallthru
      _
    // Predicated region
    $region114: #{embedding_manager_forward.1} parent=1 // pred_check
      _
    $region115: #{embedding_manager_forward.1} parent=1 // pred_check_branch
      %179 = sbr.rel (0) target = $region117
    $region116: #{embedding_manager_forward.1} parent=1 // pred_region
      %180 = dma.done [#allocation14], 768
    $region117: #{embedding_manager_forward.1} parent=1 // pred_fallthru
      _
    // Predicated region
    $region118: #{embedding_manager_forward.1} parent=1 // pred_check
      _
    $region119: #{embedding_manager_forward.1} parent=1 // pred_check_branch
      %182 = sbr.rel (0) target = $region121
    $region120: #{embedding_manager_forward.1} parent=1 // pred_region
      %183 = dma.done [#allocation14], 36864
    $region121: #{embedding_manager_forward.1} parent=1 // pred_fallthru
      _
    %v185 = vld [vmem:[%s2] sm:$0x7]
    %v186 = vld [vmem:[%s3] sm:$0x7]
    %v187 = vld [vmem:[%s4] sm:$0x7]
    %v189 = vlaneseq
    %v190 = vshrl.u32 %v189, 7
    %v191 = vsub.s32 0, %v190
    %v192 = vrot.slane %v185, %v191
    %v193 = vlaneseq
    %v194 = vshrl.u32 %v193, 7
    %v195 = vsub.s32 1, %v194
    %v196 = vrot.slane %v185, %v195
    %v197 = vlaneseq
    %v198 = vshrl.u32 %v197, 7
    %v199 = vsub.s32 2, %v198
    %v200 = vrot.slane %v185, %v199
    %vm204 = vcmask 1040384
    %v205 = vsel %vm204, %v192, 0.0
    %v206 = vsel %vm204, %v196, 0.0
    %v207 = vadd.f32 %v205, %v206
    %vm208 = vcmask 376832
    %v209 = vsel %vm208, %v200, 0.0
    %v210 = vadd.f32 %v207, %v209
    %211 = vadd.xlane.f32.xlu0 %v210
    %v212 = vpop.xlane.xlu0 %211
    %v213 = vrcp.pop 303.0
    %v214 = vmul.f32 %v212, %v213
    %v216 = vlaneseq
    %v217 = vshrl.u32 %v216, 7
    %v218 = vsub.s32 0, %v217
    %v219 = vrot.slane %v214, %v218
    %v221 = vsub.f32 %v185, %v219
    %v222 = vmul.f32 %v221, %v221
    %v224 = vlaneseq
    %v225 = vshrl.u32 %v224, 7
    %v226 = vsub.s32 0, %v225
    %v227 = vrot.slane %v222, %v226
    %v228 = vlaneseq
    %v229 = vshrl.u32 %v228, 7
    %v230 = vsub.s32 1, %v229
    %v231 = vrot.slane %v222, %v230
    %v232 = vlaneseq
    %v233 = vshrl.u32 %v232, 7
    %v234 = vsub.s32 2, %v233
    %v235 = vrot.slane %v222, %v234
    %v239 = vsel %vm204, %v227, 0.0
    %v240 = vsel %vm204, %v231, 0.0
    %v241 = vadd.f32 %v239, %v240
    %v242 = vsel %vm208, %v235, 0.0
    %v243 = vadd.f32 %v241, %v242
    %244 = vadd.xlane.f32.xlu0 %v243
    %v245 = vpop.xlane.xlu0 %244
    %v246 = vmul.f32 %v245, %v213
    %v247 = vadd.f32 %v246, 1e-05
    %v248 = vrsqrt.pop %v247
    %v250 = vlaneseq
    %v251 = vshrl.u32 %v250, 7
    %v252 = vsub.s32 0, %v251
    %v253 = vrot.slane %v248, %v252
    %v255 = vmul.f32 %v221, %v253
    %v256 = vmul.f32 %v255, %v186
    %v257 = vadd.f32 %v256, %v187
    %v259 = vlaneseq
    %v260 = vshrl.u32 %v259, 7
    %v261 = vsub.s32 0, %v260
    %v262 = vrot.slane %v257, %v261
    %v263 = vlaneseq
    %v264 = vshrl.u32 %v263, 7
    %v265 = vsub.s32 1, %v264
    %v266 = vrot.slane %v257, %v265
    %v267 = vlaneseq
    %v268 = vshrl.u32 %v267, 7
    %v269 = vsub.s32 2, %v268
    %v270 = vrot.slane %v257, %v269
    %v274 = vpack.c.bf16 %v262, %v262
    %v275 = vpack.c.bf16 %v266, %v266
    %v276 = vpack.c.bf16 %v270, %v270
    %v277 = vld [vmem:[%s5] sm:$0xff]
    %v278 = vld [vmem:[%s5 + $0x8] sm:$0xff]
    %v279 = vld [vmem:[%s5 + $0x10] sm:$0xff]
    %v280 = vld [vmem:[%s5 + $0x18] sm:$0xff]
    %v281 = vld [vmem:[%s5 + $0x20] sm:$0xff]
    %v282 = vld [vmem:[%s5 + $0x28] sm:$0xff]
    %v283 = vld [vmem:[%s5 + $0x30] sm:$0xff]
    %v284 = vld [vmem:[%s5 + $0x38] sm:$0xff]
    %v285 = vld [vmem:[%s5 + $0x40] sm:$0xff]
    %v286 = vld [vmem:[%s5 + $0x48] sm:$0xff]
    %v287 = vld [vmem:[%s5 + $0x50] sm:$0xff]
    %v288 = vld [vmem:[%s5 + $0x58] sm:$0xff]
    %v289 = vld [vmem:[%s5 + $0x60] sm:$0xff]
    %v290 = vld [vmem:[%s5 + $0x68] sm:$0xff]
    %v291 = vld [vmem:[%s5 + $0x70] sm:$0xff]
    %v292 = vld [vmem:[%s5 + $0x78] sm:$0xff]
    %v293 = vld [vmem:[%s5 + $0x80] sm:$0xff]
    %v294 = vld [vmem:[%s5 + $0x88] sm:$0xff]
    %v295 = vld [vmem:[%s5 + $0x90] sm:$0xff]
    %v296 = vld [vmem:[%s5 + $0x98] sm:$0xff]
    %v297 = vld [vmem:[%s5 + $0xa0] sm:$0xff]
    %v298 = vld [vmem:[%s5 + $0xa8] sm:$0xff]
    %v299 = vld [vmem:[%s5 + $0xb0] sm:$0xff]
    %v300 = vld [vmem:[%s5 + $0xb8] sm:$0xff]
    %v301 = vld [vmem:[%s5 + $0xc0] sm:$0xff]
    %v302 = vld [vmem:[%s5 + $0xc8] sm:$0xff]
    %v303 = vld [vmem:[%s5 + $0xd0] sm:$0xff]
    %v304 = vld [vmem:[%s5 + $0xd8] sm:$0xff]
    %v305 = vld [vmem:[%s5 + $0xe0] sm:$0xff]
    %v306 = vld [vmem:[%s5 + $0xe8] sm:$0xff]
    %v307 = vld [vmem:[%s5 + $0xf0] sm:$0xff]
    %v308 = vld [vmem:[%s5 + $0xf8] sm:$0xff]
    %v309 = vld [vmem:[%s5 + $0x100] sm:$0xff]
    %v310 = vld [vmem:[%s5 + $0x108] sm:$0xff]
    %v311 = vld [vmem:[%s5 + $0x110] sm:$0xff]
    %v312 = vld [vmem:[%s5 + $0x118] sm:$0xff]
    %v313 = vld [vmem:[%s5 + $0x120] sm:$0xff]
    %v314 = vld [vmem:[%s5 + $0x128] sm:$0xff]
    %v315 = vld [vmem:[%s5 + $0x130] sm:$0xff]
    %v316 = vld [vmem:[%s5 + $0x138] sm:$0xff]
    %v317 = vld [vmem:[%s5 + $0x140] sm:$0xff]
    %v318 = vld [vmem:[%s5 + $0x148] sm:$0xff]
    %v319 = vld [vmem:[%s5 + $0x150] sm:$0xff]
    %v320 = vld [vmem:[%s5 + $0x158] sm:$0xff]
    %v321 = vld [vmem:[%s5 + $0x160] sm:$0xff]
    %v322 = vld [vmem:[%s5 + $0x168] sm:$0xff]
    %v323 = vld [vmem:[%s5 + $0x170] sm:$0xff]
    %v324 = vld [vmem:[%s5 + $0x178] sm:$0xff]
    %v325 = vld [vmem:[%s5 + $0x180] sm:$0xff]
    %v326 = vld [vmem:[%s5 + $0x188] sm:$0xff]
    %v327 = vld [vmem:[%s5 + $0x190] sm:$0xff]
    %v328 = vld [vmem:[%s5 + $0x198] sm:$0xff]
    %v329 = vld [vmem:[%s5 + $0x1a0] sm:$0xff]
    %v330 = vld [vmem:[%s5 + $0x1a8] sm:$0xff]
    %v331 = vld [vmem:[%s5 + $0x1b0] sm:$0xff]
    %v332 = vld [vmem:[%s5 + $0x1b8] sm:$0xff]
    %v333 = vld [vmem:[%s5 + $0x1c0] sm:$0xff]
    %v334 = vld [vmem:[%s5 + $0x1c8] sm:$0xff]
    %v335 = vld [vmem:[%s5 + $0x1d0] sm:$0xff]
    %v336 = vld [vmem:[%s5 + $0x1d8] sm:$0xff]
    %v337 = vld [vmem:[%s5 + $0x1e0] sm:$0xff]
    %v338 = vld [vmem:[%s5 + $0x1e8] sm:$0xff]
    %v339 = vld [vmem:[%s5 + $0x1f0] sm:$0xff]
    %v340 = vld [vmem:[%s5 + $0x1f8] sm:$0xff]
    %v341 = vld [vmem:[%s5 + $0x200] sm:$0xff]
    %v342 = vld [vmem:[%s5 + $0x208] sm:$0xff]
    %v343 = vld [vmem:[%s5 + $0x210] sm:$0xff]
    %v344 = vld [vmem:[%s5 + $0x218] sm:$0xff]
    %v345 = vld [vmem:[%s5 + $0x220] sm:$0xff]
    %v346 = vld [vmem:[%s5 + $0x228] sm:$0xff]
    %v347 = vld [vmem:[%s5 + $0x230] sm:$0xff]
    %v348 = vld [vmem:[%s5 + $0x238] sm:$0xff]
    %v349 = vld [vmem:[%s5 + $0x240] sm:$0xff]
    %v350 = vld [vmem:[%s5 + $0x248] sm:$0xff]
    %v351 = vld [vmem:[%s5 + $0x250] sm:$0xff]
    %v352 = vld [vmem:[%s5 + $0x258] sm:$0xff]
    %v353 = vld [vmem:[%s5 + $0x260] sm:$0xff]
    %v354 = vld [vmem:[%s5 + $0x268] sm:$0xff]
    %v355 = vld [vmem:[%s5 + $0x270] sm:$0xff]
    %v356 = vld [vmem:[%s5 + $0x278] sm:$0xff]
    %v357 = vld [vmem:[%s5 + $0x280] sm:$0xff]
    %v358 = vld [vmem:[%s5 + $0x288] sm:$0xff]
    %v359 = vld [vmem:[%s5 + $0x290] sm:$0xff]
    %v360 = vld [vmem:[%s5 + $0x298] sm:$0xff]
    %v361 = vld [vmem:[%s5 + $0x2a0] sm:$0xff]
    %v362 = vld [vmem:[%s5 + $0x2a8] sm:$0xff]
    %v363 = vld [vmem:[%s5 + $0x2b0] sm:$0xff]
    %v364 = vld [vmem:[%s5 + $0x2b8] sm:$0xff]
    %v365 = vld [vmem:[%s5 + $0x2c0] sm:$0xff]
    %v366 = vld [vmem:[%s5 + $0x2c8] sm:$0xff]
    %v367 = vld [vmem:[%s5 + $0x2d0] sm:$0xff]
    %v368 = vld [vmem:[%s5 + $0x2d8] sm:$0xff]
    %v369 = vld [vmem:[%s5 + $0x2e0] sm:$0xff]
    %v370 = vld [vmem:[%s5 + $0x2e8] sm:$0xff]
    %v371 = vld [vmem:[%s5 + $0x2f0] sm:$0xff]
    %v372 = vld [vmem:[%s5 + $0x2f8] sm:$0xff]
    %v373 = vld [vmem:[%s5 + $0x300] sm:$0xff]
    %v374 = vld [vmem:[%s5 + $0x308] sm:$0xff]
    %v375 = vld [vmem:[%s5 + $0x310] sm:$0xff]
    %v376 = vld [vmem:[%s5 + $0x318] sm:$0xff]
    %v377 = vld [vmem:[%s5 + $0x320] sm:$0xff]
    %v378 = vld [vmem:[%s5 + $0x328] sm:$0xff]
    %v379 = vld [vmem:[%s5 + $0x330] sm:$0xff]
    %v380 = vld [vmem:[%s5 + $0x338] sm:$0xff]
    %v381 = vld [vmem:[%s5 + $0x340] sm:$0xff]
    %v382 = vld [vmem:[%s5 + $0x348] sm:$0xff]
    %v383 = vld [vmem:[%s5 + $0x350] sm:$0xff]
    %v384 = vld [vmem:[%s5 + $0x358] sm:$0xff]
    %v385 = vld [vmem:[%s5 + $0x360] sm:$0xff]
    %v386 = vld [vmem:[%s5 + $0x368] sm:$0xff]
    %v387 = vld [vmem:[%s5 + $0x370] sm:$0xff]
    %v388 = vld [vmem:[%s5 + $0x378] sm:$0xff]
    %v389 = vld [vmem:[%s5 + $0x380] sm:$0xff]
    %v390 = vld [vmem:[%s5 + $0x388] sm:$0xff]
    %v391 = vld [vmem:[%s6] sm:$0x3f]
    %v506 = vunpack.c.l.b16 %v277
    %v507 = vunpack.c.h.b16 %v277
    %v508 = vunpack.c.l.b16 %v278
    %v509 = vunpack.c.h.b16 %v278
    %v510 = vunpack.c.l.b16 %v279
    %v511 = vunpack.c.h.b16 %v279
    %v512 = vunpack.c.l.b16 %v280
    %v513 = vunpack.c.h.b16 %v280
    %v514 = vunpack.c.l.b16 %v281
    %v515 = vunpack.c.h.b16 %v281
    %v516 = vunpack.c.l.b16 %v282
    %v517 = vunpack.c.h.b16 %v282
    %v518 = vunpack.c.l.b16 %v283
    %v519 = vunpack.c.h.b16 %v283
    %v520 = vunpack.c.l.b16 %v284
    %v521 = vunpack.c.h.b16 %v284
    %v522 = vunpack.c.l.b16 %v285
    %v523 = vunpack.c.h.b16 %v285
    %v524 = vunpack.c.l.b16 %v286
    %v525 = vunpack.c.h.b16 %v286
    %v526 = vunpack.c.l.b16 %v287
    %v527 = vunpack.c.h.b16 %v287
    %v528 = vunpack.c.l.b16 %v288
    %v529 = vunpack.c.h.b16 %v288
    %v530 = vunpack.c.l.b16 %v289
    %v531 = vunpack.c.h.b16 %v289
    %v532 = vunpack.c.l.b16 %v290
    %v533 = vunpack.c.h.b16 %v290
    %v534 = vunpack.c.l.b16 %v291
    %v535 = vunpack.c.h.b16 %v291
    %v536 = vunpack.c.l.b16 %v292
    %v537 = vunpack.c.h.b16 %v292
    %v538 = vunpack.c.l.b16 %v293
    %v539 = vunpack.c.h.b16 %v293
    %v540 = vunpack.c.l.b16 %v294
    %v541 = vunpack.c.h.b16 %v294
    %v542 = vunpack.c.l.b16 %v295
    %v543 = vunpack.c.h.b16 %v295
    %v544 = vunpack.c.l.b16 %v296
    %v545 = vunpack.c.h.b16 %v296
    %v546 = vunpack.c.l.b16 %v297
    %v547 = vunpack.c.h.b16 %v297
    %v548 = vunpack.c.l.b16 %v298
    %v549 = vunpack.c.h.b16 %v298
    %v550 = vunpack.c.l.b16 %v299
    %v551 = vunpack.c.h.b16 %v299
    %v552 = vunpack.c.l.b16 %v300
    %v553 = vunpack.c.h.b16 %v300
    %v554 = vunpack.c.l.b16 %v301
    %v555 = vunpack.c.h.b16 %v301
    %v556 = vunpack.c.l.b16 %v302
    %v557 = vunpack.c.h.b16 %v302
    %v558 = vunpack.c.l.b16 %v303
    %v559 = vunpack.c.h.b16 %v303
    %v560 = vunpack.c.l.b16 %v304
    %v561 = vunpack.c.h.b16 %v304
    %v562 = vunpack.c.l.b16 %v305
    %v563 = vunpack.c.h.b16 %v305
    %v564 = vunpack.c.l.b16 %v306
    %v565 = vunpack.c.h.b16 %v306
    %v566 = vunpack.c.l.b16 %v307
    %v567 = vunpack.c.h.b16 %v307
    %v568 = vunpack.c.l.b16 %v308
    %v569 = vunpack.c.h.b16 %v308
    %v570 = vunpack.c.l.b16 %v309
    %v571 = vunpack.c.h.b16 %v309
    %v572 = vunpack.c.l.b16 %v310
    %v573 = vunpack.c.h.b16 %v310
    %v574 = vunpack.c.l.b16 %v311
    %v575 = vunpack.c.h.b16 %v311
    %v576 = vunpack.c.l.b16 %v312
    %v577 = vunpack.c.h.b16 %v312
    %v578 = vunpack.c.l.b16 %v313
    %v579 = vunpack.c.h.b16 %v313
    %v580 = vunpack.c.l.b16 %v314
    %v581 = vunpack.c.h.b16 %v314
    %v582 = vunpack.c.l.b16 %v315
    %v583 = vunpack.c.h.b16 %v315
    %v584 = vunpack.c.l.b16 %v316
    %v585 = vunpack.c.h.b16 %v316
    %v586 = vunpack.c.l.b16 %v317
    %v587 = vunpack.c.h.b16 %v317
    %v588 = vunpack.c.l.b16 %v318
    %v589 = vunpack.c.h.b16 %v318
    %v590 = vunpack.c.l.b16 %v319
    %v591 = vunpack.c.h.b16 %v319
    %v592 = vunpack.c.l.b16 %v320
    %v593 = vunpack.c.h.b16 %v320
    %v594 = vunpack.c.l.b16 %v321
    %v595 = vunpack.c.h.b16 %v321
    %v596 = vunpack.c.l.b16 %v322
    %v597 = vunpack.c.h.b16 %v322
    %v598 = vunpack.c.l.b16 %v323
    %v599 = vunpack.c.h.b16 %v323
    %v600 = vunpack.c.l.b16 %v324
    %v601 = vunpack.c.h.b16 %v324
    %v602 = vunpack.c.l.b16 %v325
    %v603 = vunpack.c.h.b16 %v325
    %v604 = vunpack.c.l.b16 %v326
    %v605 = vunpack.c.h.b16 %v326
    %v606 = vunpack.c.l.b16 %v327
    %v607 = vunpack.c.h.b16 %v327
    %v608 = vunpack.c.l.b16 %v328
    %v609 = vunpack.c.h.b16 %v328
    %v610 = vunpack.c.l.b16 %v329
    %v611 = vunpack.c.h.b16 %v329
    %v612 = vunpack.c.l.b16 %v330
    %v613 = vunpack.c.h.b16 %v330
    %v614 = vunpack.c.l.b16 %v331
    %v615 = vunpack.c.h.b16 %v331
    %v616 = vunpack.c.l.b16 %v332
    %v617 = vunpack.c.h.b16 %v332
    %v618 = vunpack.c.l.b16 %v333
    %v619 = vunpack.c.h.b16 %v333
    %v620 = vunpack.c.l.b16 %v334
    %v621 = vunpack.c.h.b16 %v334
    %v622 = vunpack.c.l.b16 %v335
    %v623 = vunpack.c.h.b16 %v335
    %v624 = vunpack.c.l.b16 %v336
    %v625 = vunpack.c.h.b16 %v336
    %v626 = vunpack.c.l.b16 %v337
    %v627 = vunpack.c.h.b16 %v337
    %v628 = vunpack.c.l.b16 %v338
    %v629 = vunpack.c.h.b16 %v338
    %v630 = vunpack.c.l.b16 %v339
    %v631 = vunpack.c.h.b16 %v339
    %v632 = vunpack.c.l.b16 %v340
    %v633 = vunpack.c.h.b16 %v340
    %v634 = vunpack.c.l.b16 %v341
    %v635 = vunpack.c.h.b16 %v341
    %v636 = vunpack.c.l.b16 %v342
    %v637 = vunpack.c.h.b16 %v342
    %v638 = vunpack.c.l.b16 %v343
    %v639 = vunpack.c.h.b16 %v343
    %v640 = vunpack.c.l.b16 %v344
    %v641 = vunpack.c.h.b16 %v344
    %v642 = vunpack.c.l.b16 %v345
    %v643 = vunpack.c.h.b16 %v345
    %v644 = vunpack.c.l.b16 %v346
    %v645 = vunpack.c.h.b16 %v346
    %v646 = vunpack.c.l.b16 %v347
    %v647 = vunpack.c.h.b16 %v347
    %v648 = vunpack.c.l.b16 %v348
    %v649 = vunpack.c.h.b16 %v348
    %v650 = vunpack.c.l.b16 %v349
    %v651 = vunpack.c.h.b16 %v349
    %v652 = vunpack.c.l.b16 %v350
    %v653 = vunpack.c.h.b16 %v350
    %v654 = vunpack.c.l.b16 %v351
    %v655 = vunpack.c.h.b16 %v351
    %v656 = vunpack.c.l.b16 %v352
    %v657 = vunpack.c.h.b16 %v352
    %v658 = vunpack.c.l.b16 %v353
    %v659 = vunpack.c.h.b16 %v353
    %v660 = vunpack.c.l.b16 %v354
    %v661 = vunpack.c.h.b16 %v354
    %v662 = vunpack.c.l.b16 %v355
    %v663 = vunpack.c.h.b16 %v355
    %v664 = vunpack.c.l.b16 %v356
    %v665 = vunpack.c.h.b16 %v356
    %v666 = vunpack.c.l.b16 %v357
    %v667 = vunpack.c.h.b16 %v357
    %v668 = vunpack.c.l.b16 %v358
    %v669 = vunpack.c.h.b16 %v358
    %v670 = vunpack.c.l.b16 %v359
    %v671 = vunpack.c.h.b16 %v359
    %v672 = vunpack.c.l.b16 %v360
    %v673 = vunpack.c.h.b16 %v360
    %v674 = vunpack.c.l.b16 %v361
    %v675 = vunpack.c.h.b16 %v361
    %v676 = vunpack.c.l.b16 %v362
    %v677 = vunpack.c.h.b16 %v362
    %v678 = vunpack.c.l.b16 %v363
    %v679 = vunpack.c.h.b16 %v363
    %v680 = vunpack.c.l.b16 %v364
    %v681 = vunpack.c.h.b16 %v364
    %v682 = vunpack.c.l.b16 %v365
    %v683 = vunpack.c.h.b16 %v365
    %v684 = vunpack.c.l.b16 %v366
    %v685 = vunpack.c.h.b16 %v366
    %v686 = vunpack.c.l.b16 %v367
    %v687 = vunpack.c.h.b16 %v367
    %v688 = vunpack.c.l.b16 %v368
    %v689 = vunpack.c.h.b16 %v368
    %v690 = vunpack.c.l.b16 %v369
    %v691 = vunpack.c.h.b16 %v369
    %v692 = vunpack.c.l.b16 %v370
    %v693 = vunpack.c.h.b16 %v370
    %v694 = vunpack.c.l.b16 %v371
    %v695 = vunpack.c.h.b16 %v371
    %v696 = vunpack.c.l.b16 %v372
    %v697 = vunpack.c.h.b16 %v372
    %v698 = vunpack.c.l.b16 %v373
    %v699 = vunpack.c.h.b16 %v373
    %v700 = vunpack.c.l.b16 %v374
    %v701 = vunpack.c.h.b16 %v374
    %v702 = vunpack.c.l.b16 %v375
    %v703 = vunpack.c.h.b16 %v375
    %v704 = vunpack.c.l.b16 %v376
    %v705 = vunpack.c.h.b16 %v376
    %v706 = vunpack.c.l.b16 %v377
    %v707 = vunpack.c.h.b16 %v377
    %v708 = vunpack.c.l.b16 %v378
    %v709 = vunpack.c.h.b16 %v378
    %v710 = vunpack.c.l.b16 %v379
    %v711 = vunpack.c.h.b16 %v379
    %v712 = vunpack.c.l.b16 %v380
    %v713 = vunpack.c.h.b16 %v380
    %v714 = vunpack.c.l.b16 %v381
    %v715 = vunpack.c.h.b16 %v381
    %v716 = vunpack.c.l.b16 %v382
    %v717 = vunpack.c.h.b16 %v382
    %v718 = vunpack.c.l.b16 %v383
    %v719 = vunpack.c.h.b16 %v383
    %v720 = vunpack.c.l.b16 %v384
    %v721 = vunpack.c.h.b16 %v384
    %v722 = vunpack.c.l.b16 %v385
    %v723 = vunpack.c.h.b16 %v385
    %v724 = vunpack.c.l.b16 %v386
    %v725 = vunpack.c.h.b16 %v386
    %v726 = vunpack.c.l.b16 %v387
    %v727 = vunpack.c.h.b16 %v387
    %v728 = vunpack.c.l.b16 %v388
    %v729 = vunpack.c.h.b16 %v388
    %v730 = vunpack.c.l.b16 %v389
    %v731 = vunpack.c.h.b16 %v389
    %v732 = vunpack.c.l.b16 %v390
    %v733 = vunpack.c.h.b16 %v390
    %v734 = vpack.c.b16 %v512, %v506
    %v735 = vpack.c.b16 %v513, %v507
    %v736 = vpack.c.b16 %v514, %v508
    %v737 = vpack.c.b16 %v515, %v509
    %v738 = vpack.c.b16 %v516, %v510
    %v739 = vpack.c.b16 %v517, %v511
    %v740 = vpack.c.b16 %v524, %v518
    %v741 = vpack.c.b16 %v525, %v519
    %v742 = vpack.c.b16 %v526, %v520
    %v743 = vpack.c.b16 %v527, %v521
    %v744 = vpack.c.b16 %v528, %v522
    %v745 = vpack.c.b16 %v529, %v523
    %v746 = vpack.c.b16 %v536, %v530
    %v747 = vpack.c.b16 %v537, %v531
    %v748 = vpack.c.b16 %v538, %v532
    %v749 = vpack.c.b16 %v539, %v533
    %v750 = vpack.c.b16 %v540, %v534
    %v751 = vpack.c.b16 %v541, %v535
    %v752 = vpack.c.b16 %v548, %v542
    %v753 = vpack.c.b16 %v549, %v543
    %v754 = vpack.c.b16 %v550, %v544
    %v755 = vpack.c.b16 %v551, %v545
    %v756 = vpack.c.b16 %v552, %v546
    %v757 = vpack.c.b16 %v553, %v547
    %v758 = vpack.c.b16 %v560, %v554
    %v759 = vpack.c.b16 %v561, %v555
    %v760 = vpack.c.b16 %v562, %v556
    %v761 = vpack.c.b16 %v563, %v557
    %v762 = vpack.c.b16 %v564, %v558
    %v763 = vpack.c.b16 %v565, %v559
    %v764 = vpack.c.b16 %v572, %v566
    %v765 = vpack.c.b16 %v573, %v567
    %v766 = vpack.c.b16 %v574, %v568
    %v767 = vpack.c.b16 %v575, %v569
    %v768 = vpack.c.b16 %v576, %v570
    %v769 = vpack.c.b16 %v577, %v571
    %v770 = vpack.c.b16 %v584, %v578
    %v771 = vpack.c.b16 %v585, %v579
    %v772 = vpack.c.b16 %v586, %v580
    %v773 = vpack.c.b16 %v587, %v581
    %v774 = vpack.c.b16 %v588, %v582
    %v775 = vpack.c.b16 %v589, %v583
    %v776 = vpack.c.b16 %v596, %v590
    %v777 = vpack.c.b16 %v597, %v591
    %v778 = vpack.c.b16 %v598, %v592
    %v779 = vpack.c.b16 %v599, %v593
    %v780 = vpack.c.b16 %v600, %v594
    %v781 = vpack.c.b16 %v601, %v595
    %v782 = vpack.c.b16 %v608, %v602
    %v783 = vpack.c.b16 %v609, %v603
    %v784 = vpack.c.b16 %v610, %v604
    %v785 = vpack.c.b16 %v611, %v605
    %v786 = vpack.c.b16 %v612, %v606
    %v787 = vpack.c.b16 %v613, %v607
    %v788 = vpack.c.b16 %v620, %v614
    %v789 = vpack.c.b16 %v621, %v615
    %v790 = vpack.c.b16 %v622, %v616
    %v791 = vpack.c.b16 %v623, %v617
    %v792 = vpack.c.b16 %v624, %v618
    %v793 = vpack.c.b16 %v625, %v619
    %v794 = vpack.c.b16 %v632, %v626
    %v795 = vpack.c.b16 %v633, %v627
    %v796 = vpack.c.b16 %v634, %v628
    %v797 = vpack.c.b16 %v635, %v629
    %v798 = vpack.c.b16 %v636, %v630
    %v799 = vpack.c.b16 %v637, %v631
    %v800 = vpack.c.b16 %v644, %v638
    %v801 = vpack.c.b16 %v645, %v639
    %v802 = vpack.c.b16 %v646, %v640
    %v803 = vpack.c.b16 %v647, %v641
    %v804 = vpack.c.b16 %v648, %v642
    %v805 = vpack.c.b16 %v649, %v643
    %v806 = vpack.c.b16 %v656, %v650
    %v807 = vpack.c.b16 %v657, %v651
    %v808 = vpack.c.b16 %v658, %v652
    %v809 = vpack.c.b16 %v659, %v653
    %v810 = vpack.c.b16 %v660, %v654
    %v811 = vpack.c.b16 %v661, %v655
    %v812 = vpack.c.b16 %v668, %v662
    %v813 = vpack.c.b16 %v669, %v663
    %v814 = vpack.c.b16 %v670, %v664
    %v815 = vpack.c.b16 %v671, %v665
    %v816 = vpack.c.b16 %v672, %v666
    %v817 = vpack.c.b16 %v673, %v667
    %v818 = vpack.c.b16 %v680, %v674
    %v819 = vpack.c.b16 %v681, %v675
    %v820 = vpack.c.b16 %v682, %v676
    %v821 = vpack.c.b16 %v683, %v677
    %v822 = vpack.c.b16 %v684, %v678
    %v823 = vpack.c.b16 %v685, %v679
    %v824 = vpack.c.b16 %v692, %v686
    %v825 = vpack.c.b16 %v693, %v687
    %v826 = vpack.c.b16 %v694, %v688
    %v827 = vpack.c.b16 %v695, %v689
    %v828 = vpack.c.b16 %v696, %v690
    %v829 = vpack.c.b16 %v697, %v691
    %v830 = vpack.c.b16 %v704, %v698
    %v831 = vpack.c.b16 %v705, %v699
    %v832 = vpack.c.b16 %v706, %v700
    %v833 = vpack.c.b16 %v707, %v701
    %v834 = vpack.c.b16 %v708, %v702
    %v835 = vpack.c.b16 %v709, %v703
    %v836 = vpack.c.b16 %v716, %v710
    %v837 = vpack.c.b16 %v717, %v711
    %v838 = vpack.c.b16 %v718, %v712
    %v839 = vpack.c.b16 %v719, %v713
    %v840 = vpack.c.b16 %v720, %v714
    %v841 = vpack.c.b16 %v721, %v715
    %v842 = vpack.c.b16 %v728, %v722
    %v843 = vpack.c.b16 %v729, %v723
    %v844 = vpack.c.b16 %v730, %v724
    %v845 = vpack.c.b16 %v731, %v725
    %v846 = vpack.c.b16 %v732, %v726
    %v847 = vpack.c.b16 %v733, %v727
    %v957 = vlaneseq
    %v958 = vshrl.u32 %v957, 7
    %v959 = vsub.s32 0, %v958
    %v960 = vrot.slane %v391, %v959
    %v961 = vlaneseq
    %v962 = vshrl.u32 %v961, 7
    %v963 = vsub.s32 1, %v962
    %v964 = vrot.slane %v391, %v963
    %v965 = vlaneseq
    %v966 = vshrl.u32 %v965, 7
    %v967 = vsub.s32 2, %v966
    %v968 = vrot.slane %v391, %v967
    %v969 = vlaneseq
    %v970 = vshrl.u32 %v969, 7
    %v971 = vsub.s32 3, %v970
    %v972 = vrot.slane %v391, %v971
    %v973 = vlaneseq
    %v974 = vshrl.u32 %v973, 7
    %v975 = vsub.s32 4, %v974
    %v976 = vrot.slane %v391, %v975
    %v977 = vlaneseq
    %v978 = vshrl.u32 %v977, 7
    %v979 = vsub.s32 5, %v978
    %v980 = vrot.slane %v391, %v979
    %vm987 = vcmask 384000
    %v989 = vsel %vm987, %v276, 0
    %vm991 = vcmask 1046528
    %vm992 = vcmask 1047552
    %v993 = vsel %vm991, 4294967295, 65535
    %v994 = vsel %vm992, %v993, 0
    %v996 = vand.u32 %v842, %v994
    %v999 = vand.u32 %v843, %v994
    %v1002 = vand.u32 %v844, %v994
    %v1005 = vand.u32 %v845, %v994
    %v1008 = vand.u32 %v846, %v994
    %v1011 = vand.u32 %v847, %v994
    %1013 = vmatprep.subr.bf16.mxu0 %v735
    %1014 = vmatpush1.bf16.msra.mxu0 %v734
    %1015 = vmatprep.subr.bf16.mxu0 %v741
    %1016 = vmatpush1.bf16.msra.mxu0 %v740
    %1017 = vmatprep.subr.bf16.mxu0 %v747
    %1018 = vmatpush1.bf16.msra.mxu0 %v746
    %1019 = vmatprep.subr.bf16.mxu0 %v753
    %1020 = vmatpush1.bf16.msra.mxu0 %v752
    %1021 = vmatprep.subr.bf16.mxu0 %v759
    %1022 = vmatpush1.bf16.msra.mxu0 %v758
    %1023 = vmatprep.subr.bf16.mxu0 %v765
    %1024 = vmatpush1.bf16.msra.mxu0 %v764
    %1025 = vmatprep.subr.bf16.mxu0 %v771
    %1026 = vmatpush1.bf16.msra.mxu0 %v770
    %1027 = vmatprep.subr.bf16.mxu0 %v777
    %1028 = vmatpush1.bf16.msra.mxu0 %v776
    %1029 = vmatprep.subr.bf16.mxu0 %v783
    %1030 = vmatpush1.bf16.msra.mxu0 %v782
    %1031 = vmatprep.subr.bf16.mxu0 %v789
    %1032 = vmatpush1.bf16.msra.mxu0 %v788
    %1033 = vmatprep.subr.bf16.mxu0 %v795
    %1034 = vmatpush1.bf16.msra.mxu0 %v794
    %1035 = vmatprep.subr.bf16.mxu0 %v801
    %1036 = vmatpush1.bf16.msra.mxu0 %v800
    %1037 = vmatprep.subr.bf16.mxu0 %v807
    %1038 = vmatpush1.bf16.msra.mxu0 %v806
    %1039 = vmatprep.subr.bf16.mxu0 %v813
    %1040 = vmatpush1.bf16.msra.mxu0 %v812
    %1041 = vmatprep.subr.bf16.mxu0 %v819
    %1042 = vmatpush1.bf16.msra.mxu0 %v818
    %1043 = vmatprep.subr.bf16.mxu0 %v825
    %1044 = vmatpush1.bf16.msra.mxu0 %v824
    %1045 = vmatprep.mubr.bf16.mxu0 %v275
    %1046 = vmatmul.mubr.bf16.gmra.mrb[0].mxu0 %v274
    %v1047 = vpop.f32.mrb[0].mxu0
    %v1048 = vadd.f32 %v960, %v1047
    %v1049 = vpop.f32.mrb[0].mxu0
    %v1050 = vadd.f32 %v964, %v1049
    %v1051 = vpop.f32.mrb[0].mxu0
    %v1052 = vpop.f32.mrb[0].mxu0
    %1053 = vdwg.mxu0
    %1054 = vmatprep.subr.bf16.mxu0 %v831
    %1055 = vmatpush1.bf16.msra.mxu0 %v830
    %1056 = vmatprep.subr.bf16.mxu0 %v837
    %1057 = vmatpush1.bf16.msra.mxu0 %v836
    %1058 = vmatprep.subr.bf16.mxu0 %v999
    %1059 = vmatpush1.bf16.msra.mxu0 %v996
    %1060 = vmatprep.subr.bf16.mxu0 0
    %1061 = vmatpush1.bf16.msra.mxu0 0
    %1062 = vmatprep.subr.bf16.mxu0 0
    %1063 = vmatpush1.bf16.msra.mxu0 0
    %1064 = vmatprep.subr.bf16.mxu0 0
    %1065 = vmatpush1.bf16.msra.mxu0 0
    %1066 = vmatprep.subr.bf16.mxu0 0
    %1067 = vmatpush1.bf16.msra.mxu0 0
    %1068 = vmatprep.subr.bf16.mxu0 0
    %1069 = vmatpush1.bf16.msra.mxu0 0
    %1070 = vmatprep.subr.bf16.mxu0 0
    %1071 = vmatpush1.bf16.msra.mxu0 0
    %1072 = vmatprep.subr.bf16.mxu0 0
    %1073 = vmatpush1.bf16.msra.mxu0 0
    %1074 = vmatprep.subr.bf16.mxu0 0
    %1075 = vmatpush1.bf16.msra.mxu0 0
    %1076 = vmatprep.subr.bf16.mxu0 0
    %1077 = vmatpush1.bf16.msra.mxu0 0
    %1078 = vmatprep.subr.bf16.mxu0 0
    %1079 = vmatpush1.bf16.msra.mxu0 0
    %1080 = vmatprep.subr.bf16.mxu0 0
    %1081 = vmatpush1.bf16.msra.mxu0 0
    %1082 = vmatprep.subr.bf16.mxu0 0
    %1083 = vmatpush1.bf16.msra.mxu0 0
    %1084 = vmatprep.subr.bf16.mxu0 0
    %1085 = vmatpush1.bf16.msra.mxu0 0
    %1086 = vmatprep.mubr.bf16.mxu0 0
    %1087 = vmatmul.mubr.bf16.gmra.mrb[0].mxu0 %v989
    %v1088 = vpop.f32.mrb[0].mxu0
    %v1089 = vadd.f32 %v1048, %v1088
    %v1090 = vpop.f32.mrb[0].mxu0
    %v1091 = vadd.f32 %v1050, %v1090
    %v1092 = vpop.f32.mrb[0].mxu0
    %v1093 = vpop.f32.mrb[0].mxu0
    %1094 = vdwg.mxu0
    %1095 = vmatprep.subr.bf16.mxu0 %v737
    %1096 = vmatpush1.bf16.msra.mxu0 %v736
    %1097 = vmatprep.subr.bf16.mxu0 %v743
    %1098 = vmatpush1.bf16.msra.mxu0 %v742
    %1099 = vmatprep.subr.bf16.mxu0 %v749
    %1100 = vmatpush1.bf16.msra.mxu0 %v748
    %1101 = vmatprep.subr.bf16.mxu0 %v755
    %1102 = vmatpush1.bf16.msra.mxu0 %v754
    %1103 = vmatprep.subr.bf16.mxu0 %v761
    %1104 = vmatpush1.bf16.msra.mxu0 %v760
    %1105 = vmatprep.subr.bf16.mxu0 %v767
    %1106 = vmatpush1.bf16.msra.mxu0 %v766
    %1107 = vmatprep.subr.bf16.mxu0 %v773
    %1108 = vmatpush1.bf16.msra.mxu0 %v772
    %1109 = vmatprep.subr.bf16.mxu0 %v779
    %1110 = vmatpush1.bf16.msra.mxu0 %v778
    %1111 = vmatprep.subr.bf16.mxu0 %v785
    %1112 = vmatpush1.bf16.msra.mxu0 %v784
    %1113 = vmatprep.subr.bf16.mxu0 %v791
    %1114 = vmatpush1.bf16.msra.mxu0 %v790
    %1115 = vmatprep.subr.bf16.mxu0 %v797
    %1116 = vmatpush1.bf16.msra.mxu0 %v796
    %1117 = vmatprep.subr.bf16.mxu0 %v803
    %1118 = vmatpush1.bf16.msra.mxu0 %v802
    %1119 = vmatprep.subr.bf16.mxu0 %v809
    %1120 = vmatpush1.bf16.msra.mxu0 %v808
    %1121 = vmatprep.subr.bf16.mxu0 %v815
    %1122 = vmatpush1.bf16.msra.mxu0 %v814
    %1123 = vmatprep.subr.bf16.mxu0 %v821
    %1124 = vmatpush1.bf16.msra.mxu0 %v820
    %1125 = vmatprep.subr.bf16.mxu0 %v827
    %1126 = vmatpush1.bf16.msra.mxu0 %v826
    %1127 = vmatprep.mubr.bf16.mxu0 %v275
    %1128 = vmatmul.mubr.bf16.gmra.mrb[0].mxu0 %v274
    %v1129 = vpop.f32.mrb[0].mxu0
    %v1130 = vadd.f32 %v968, %v1129
    %v1131 = vpop.f32.mrb[0].mxu0
    %v1132 = vadd.f32 %v972, %v1131
    %v1133 = vpop.f32.mrb[0].mxu0
    %v1134 = vpop.f32.mrb[0].mxu0
    %1135 = vdwg.mxu0
    %1136 = vmatprep.subr.bf16.mxu0 %v833
    %1137 = vmatpush1.bf16.msra.mxu0 %v832
    %1138 = vmatprep.subr.bf16.mxu0 %v839
    %1139 = vmatpush1.bf16.msra.mxu0 %v838
    %1140 = vmatprep.subr.bf16.mxu0 %v1005
    %1141 = vmatpush1.bf16.msra.mxu0 %v1002
    %1142 = vmatprep.subr.bf16.mxu0 0
    %1143 = vmatpush1.bf16.msra.mxu0 0
    %1144 = vmatprep.subr.bf16.mxu0 0
    %1145 = vmatpush1.bf16.msra.mxu0 0
    %1146 = vmatprep.subr.bf16.mxu0 0
    %1147 = vmatpush1.bf16.msra.mxu0 0
    %1148 = vmatprep.subr.bf16.mxu0 0
    %1149 = vmatpush1.bf16.msra.mxu0 0
    %1150 = vmatprep.subr.bf16.mxu0 0
    %1151 = vmatpush1.bf16.msra.mxu0 0
    %1152 = vmatprep.subr.bf16.mxu0 0
    %1153 = vmatpush1.bf16.msra.mxu0 0
    %1154 = vmatprep.subr.bf16.mxu0 0
    %1155 = vmatpush1.bf16.msra.mxu0 0
    %1156 = vmatprep.subr.bf16.mxu0 0
    %1157 = vmatpush1.bf16.msra.mxu0 0
    %1158 = vmatprep.subr.bf16.mxu0 0
    %1159 = vmatpush1.bf16.msra.mxu0 0
    %1160 = vmatprep.subr.bf16.mxu0 0
    %1161 = vmatpush1.bf16.msra.mxu0 0
    %1162 = vmatprep.subr.bf16.mxu0 0
    %1163 = vmatpush1.bf16.msra.mxu0 0
    %1164 = vmatprep.subr.bf16.mxu0 0
    %1165 = vmatpush1.bf16.msra.mxu0 0
    %1166 = vmatprep.subr.bf16.mxu0 0
    %1167 = vmatpush1.bf16.msra.mxu0 0
    %1168 = vmatprep.mubr.bf16.mxu0 0
    %1169 = vmatmul.mubr.bf16.gmra.mrb[0].mxu0 %v989
    %v1170 = vpop.f32.mrb[0].mxu0
    %v1171 = vadd.f32 %v1130, %v1170
    %v1172 = vpop.f32.mrb[0].mxu0
    %v1173 = vadd.f32 %v1132, %v1172
    %v1174 = vpop.f32.mrb[0].mxu0
    %v1175 = vpop.f32.mrb[0].mxu0
    %1176 = vdwg.mxu0
    %1177 = vmatprep.subr.bf16.mxu0 %v739
    %1178 = vmatpush1.bf16.msra.mxu0 %v738
    %1179 = vmatprep.subr.bf16.mxu0 %v745
    %1180 = vmatpush1.bf16.msra.mxu0 %v744
    %1181 = vmatprep.subr.bf16.mxu0 %v751
    %1182 = vmatpush1.bf16.msra.mxu0 %v750
    %1183 = vmatprep.subr.bf16.mxu0 %v757
    %1184 = vmatpush1.bf16.msra.mxu0 %v756
    %1185 = vmatprep.subr.bf16.mxu0 %v763
    %1186 = vmatpush1.bf16.msra.mxu0 %v762
    %1187 = vmatprep.subr.bf16.mxu0 %v769
    %1188 = vmatpush1.bf16.msra.mxu0 %v768
    %1189 = vmatprep.subr.bf16.mxu0 %v775
    %1190 = vmatpush1.bf16.msra.mxu0 %v774
    %1191 = vmatprep.subr.bf16.mxu0 %v781
    %1192 = vmatpush1.bf16.msra.mxu0 %v780
    %1193 = vmatprep.subr.bf16.mxu0 %v787
    %1194 = vmatpush1.bf16.msra.mxu0 %v786
    %1195 = vmatprep.subr.bf16.mxu0 %v793
    %1196 = vmatpush1.bf16.msra.mxu0 %v792
    %1197 = vmatprep.subr.bf16.mxu0 %v799
    %1198 = vmatpush1.bf16.msra.mxu0 %v798
    %1199 = vmatprep.subr.bf16.mxu0 %v805
    %1200 = vmatpush1.bf16.msra.mxu0 %v804
    %1201 = vmatprep.subr.bf16.mxu0 %v811
    %1202 = vmatpush1.bf16.msra.mxu0 %v810
    %1203 = vmatprep.subr.bf16.mxu0 %v817
    %1204 = vmatpush1.bf16.msra.mxu0 %v816
    %1205 = vmatprep.subr.bf16.mxu0 %v823
    %1206 = vmatpush1.bf16.msra.mxu0 %v822
    %1207 = vmatprep.subr.bf16.mxu0 %v829
    %1208 = vmatpush1.bf16.msra.mxu0 %v828
    %1209 = vmatprep.mubr.bf16.mxu0 %v275
    %1210 = vmatmul.mubr.bf16.gmra.mrb[0].mxu0 %v274
    %v1211 = vpop.f32.mrb[0].mxu0
    %v1212 = vadd.f32 %v976, %v1211
    %v1213 = vpop.f32.mrb[0].mxu0
    %v1214 = vadd.f32 %v980, %v1213
    %v1215 = vpop.f32.mrb[0].mxu0
    %v1216 = vpop.f32.mrb[0].mxu0
    %1217 = vdwg.mxu0
    %1218 = vmatprep.subr.bf16.mxu0 %v835
    %1219 = vmatpush1.bf16.msra.mxu0 %v834
    %1220 = vmatprep.subr.bf16.mxu0 %v841
    %1221 = vmatpush1.bf16.msra.mxu0 %v840
    %1222 = vmatprep.subr.bf16.mxu0 %v1011
    %1223 = vmatpush1.bf16.msra.mxu0 %v1008
    %1224 = vmatprep.subr.bf16.mxu0 0
    %1225 = vmatpush1.bf16.msra.mxu0 0
    %1226 = vmatprep.subr.bf16.mxu0 0
    %1227 = vmatpush1.bf16.msra.mxu0 0
    %1228 = vmatprep.subr.bf16.mxu0 0
    %1229 = vmatpush1.bf16.msra.mxu0 0
    %1230 = vmatprep.subr.bf16.mxu0 0
    %1231 = vmatpush1.bf16.msra.mxu0 0
    %1232 = vmatprep.subr.bf16.mxu0 0
    %1233 = vmatpush1.bf16.msra.mxu0 0
    %1234 = vmatprep.subr.bf16.mxu0 0
    %1235 = vmatpush1.bf16.msra.mxu0 0
    %1236 = vmatprep.subr.bf16.mxu0 0
    %1237 = vmatpush1.bf16.msra.mxu0 0
    %1238 = vmatprep.subr.bf16.mxu0 0
    %1239 = vmatpush1.bf16.msra.mxu0 0
    %1240 = vmatprep.subr.bf16.mxu0 0
    %1241 = vmatpush1.bf16.msra.mxu0 0
    %1242 = vmatprep.subr.bf16.mxu0 0
    %1243 = vmatpush1.bf16.msra.mxu0 0
    %1244 = vmatprep.subr.bf16.mxu0 0
    %1245 = vmatpush1.bf16.msra.mxu0 0
    %1246 = vmatprep.subr.bf16.mxu0 0
    %1247 = vmatpush1.bf16.msra.mxu0 0
    %1248 = vmatprep.subr.bf16.mxu0 0
    %1249 = vmatpush1.bf16.msra.mxu0 0
    %1250 = vmatprep.mubr.bf16.mxu0 0
    %1251 = vmatmul.mubr.bf16.gmra.mrb[0].mxu0 %v989
    %v1252 = vpop.f32.mrb[0].mxu0
    %v1253 = vadd.f32 %v1212, %v1252
    %v1254 = vpop.f32.mrb[0].mxu0
    %v1255 = vadd.f32 %v1214, %v1254
    %v1256 = vpop.f32.mrb[0].mxu0
    %v1257 = vpop.f32.mrb[0].mxu0
    %1258 = vdwg.mxu0
    %v1259 = vxor.u32 %v1089, 2147483648
    %v1260 = vxor.u32 %v1091, 2147483648
    %v1261 = vxor.u32 %v1171, 2147483648
    %v1262 = vxor.u32 %v1173, 2147483648
    %v1263 = vxor.u32 %v1253, 2147483648
    %v1264 = vxor.u32 %v1255, 2147483648
    %v1265 = vmul.f32 %v1259, 1.442695
    %v1266 = vpow.pop %v1265
    %v1267 = vmul.f32 %v1260, 1.442695
    %v1268 = vpow.pop %v1267
    %v1269 = vmul.f32 %v1261, 1.442695
    %v1270 = vpow.pop %v1269
    %v1271 = vmul.f32 %v1262, 1.442695
    %v1272 = vpow.pop %v1271
    %v1273 = vmul.f32 %v1263, 1.442695
    %v1274 = vpow.pop %v1273
    %v1275 = vmul.f32 %v1264, 1.442695
    %v1276 = vpow.pop %v1275
    %v1277 = vadd.f32 %v1266, 1.0
    %v1278 = vadd.f32 %v1268, 1.0
    %v1279 = vadd.f32 %v1270, 1.0
    %v1280 = vadd.f32 %v1272, 1.0
    %v1281 = vadd.f32 %v1274, 1.0
    %v1282 = vadd.f32 %v1276, 1.0
    %v1283 = vrcp.pop %v1277
    %v1284 = vmul.f32 1.0, %v1283
    %v1285 = vrcp.pop %v1278
    %v1286 = vmul.f32 1.0, %v1285
    %v1287 = vrcp.pop %v1279
    %v1288 = vmul.f32 1.0, %v1287
    %v1289 = vrcp.pop %v1280
    %v1290 = vmul.f32 1.0, %v1289
    %v1291 = vrcp.pop %v1281
    %v1292 = vmul.f32 1.0, %v1291
    %v1293 = vrcp.pop %v1282
    %v1294 = vmul.f32 1.0, %v1293
    %v1295 = vmul.f32 %v1089, %v1284
    %v1296 = vmul.f32 %v1091, %v1286
    %v1297 = vmul.f32 %v1171, %v1288
    %v1298 = vmul.f32 %v1173, %v1290
    %v1299 = vmul.f32 %v1253, %v1292
    %v1300 = vmul.f32 %v1255, %v1294
    %v1301 = vpack.c.bf16 %v1295, %v1295
    %v1302 = vpack.c.bf16 %v1296, %v1296
    %v1303 = vpack.c.bf16 %v1297, %v1297
    %v1304 = vpack.c.bf16 %v1298, %v1298
    %v1305 = vpack.c.bf16 %v1299, %v1299
    %v1306 = vpack.c.bf16 %v1300, %v1300
    %v1307 = vld [vmem:[#allocation2] sm:$0xff]
    %v1308 = vld [vmem:[#allocation2 + $0x8] sm:$0xff]
    %v1309 = vld [vmem:[#allocation2 + $0x10] sm:$0xff]
    %v1310 = vld [vmem:[#allocation2 + $0x18] sm:$0xff]
    %v1311 = vld [vmem:[#allocation2 + $0x20] sm:$0xff]
    %v1312 = vld [vmem:[#allocation2 + $0x28] sm:$0xff]
    %v1313 = vld [vmem:[#allocation2 + $0x30] sm:$0xff]
    %v1314 = vld [vmem:[#allocation2 + $0x38] sm:$0xff]
    %v1315 = vld [vmem:[#allocation2 + $0x40] sm:$0xff]
    %v1316 = vld [vmem:[#allocation2 + $0x48] sm:$0xff]
    %v1317 = vld [vmem:[#allocation2 + $0x50] sm:$0xff]
    %v1318 = vld [vmem:[#allocation2 + $0x58] sm:$0xff]
    %v1319 = vld [vmem:[#allocation2 + $0x60] sm:$0xff]
    %v1320 = vld [vmem:[#allocation2 + $0x68] sm:$0xff]
    %v1321 = vld [vmem:[#allocation2 + $0x70] sm:$0xff]
    %v1322 = vld [vmem:[#allocation2 + $0x78] sm:$0xff]
    %v1323 = vld [vmem:[#allocation2 + $0x80] sm:$0xff]
    %v1324 = vld [vmem:[#allocation2 + $0x88] sm:$0xff]
    %v1325 = vld [vmem:[#allocation2 + $0x90] sm:$0xff]
    %v1326 = vld [vmem:[#allocation2 + $0x98] sm:$0xff]
    %v1327 = vld [vmem:[#allocation2 + $0xa0] sm:$0xff]
    %v1328 = vld [vmem:[#allocation2 + $0xa8] sm:$0xff]
    %v1329 = vld [vmem:[#allocation2 + $0xb0] sm:$0xff]
    %v1330 = vld [vmem:[#allocation2 + $0xb8] sm:$0xff]
    %v1331 = vld [vmem:[#allocation2 + $0xc0] sm:$0xff]
    %v1332 = vld [vmem:[#allocation2 + $0xc8] sm:$0xff]
    %v1333 = vld [vmem:[#allocation2 + $0xd0] sm:$0xff]
    %v1334 = vld [vmem:[#allocation2 + $0xd8] sm:$0xff]
    %v1335 = vld [vmem:[#allocation2 + $0xe0] sm:$0xff]
    %v1336 = vld [vmem:[#allocation2 + $0xe8] sm:$0xff]
    %v1337 = vld [vmem:[#allocation2 + $0xf0] sm:$0xff]
    %v1338 = vld [vmem:[#allocation2 + $0xf8] sm:$0xff]
    %v1339 = vld [vmem:[#allocation2 + $0x100] sm:$0xff]
    %v1340 = vld [vmem:[#allocation2 + $0x108] sm:$0xff]
    %v1341 = vld [vmem:[#allocation2 + $0x110] sm:$0xff]
    %v1342 = vld [vmem:[#allocation2 + $0x118] sm:$0xff]
    %v1343 = vld [vmem:[#allocation2 + $0x120] sm:$0xff]
    %v1344 = vld [vmem:[#allocation2 + $0x128] sm:$0xff]
    %v1345 = vld [vmem:[#allocation2 + $0x130] sm:$0xff]
    %v1346 = vld [vmem:[#allocation2 + $0x138] sm:$0xff]
    %v1347 = vld [vmem:[#allocation2 + $0x140] sm:$0xff]
    %v1348 = vld [vmem:[#allocation2 + $0x148] sm:$0xff]
    %v1349 = vld [vmem:[#allocation2 + $0x150] sm:$0xff]
    %v1350 = vld [vmem:[#allocation2 + $0x158] sm:$0xff]
    %v1351 = vld [vmem:[#allocation2 + $0x160] sm:$0xff]
    %v1352 = vld [vmem:[#allocation2 + $0x168] sm:$0xff]
    %v1353 = vld [vmem:[#allocation2 + $0x170] sm:$0xff]
    %v1354 = vld [vmem:[#allocation2 + $0x178] sm:$0xff]
    %v1355 = vld [vmem:[#allocation2 + $0x180] sm:$0xff]
    %v1356 = vld [vmem:[#allocation2 + $0x188] sm:$0xff]
    %v1357 = vld [vmem:[#allocation2 + $0x190] sm:$0xff]
    %v1358 = vld [vmem:[#allocation2 + $0x198] sm:$0xff]
    %v1359 = vld [vmem:[#allocation2 + $0x1a0] sm:$0xff]
    %v1360 = vld [vmem:[#allocation2 + $0x1a8] sm:$0xff]
    %v1361 = vld [vmem:[#allocation2 + $0x1b0] sm:$0xff]
    %v1362 = vld [vmem:[#allocation2 + $0x1b8] sm:$0xff]
    %v1363 = vld [vmem:[#allocation2 + $0x1c0] sm:$0xff]
    %v1364 = vld [vmem:[#allocation2 + $0x1c8] sm:$0xff]
    %v1365 = vld [vmem:[#allocation2 + $0x1d0] sm:$0xff]
    %v1366 = vld [vmem:[#allocation2 + $0x1d8] sm:$0xff]
    %v1367 = vld [vmem:[#allocation2 + $0x1e0] sm:$0xff]
    %v1368 = vld [vmem:[#allocation2 + $0x1e8] sm:$0xff]
    %v1369 = vld [vmem:[#allocation2 + $0x1f0] sm:$0xff]
    %v1370 = vld [vmem:[#allocation2 + $0x1f8] sm:$0xff]
    %v1371 = vld [vmem:[#allocation2 + $0x200] sm:$0xff]
    %v1372 = vld [vmem:[#allocation2 + $0x208] sm:$0xff]
    %v1373 = vld [vmem:[#allocation2 + $0x210] sm:$0xff]
    %v1374 = vld [vmem:[#allocation2 + $0x218] sm:$0xff]
    %v1375 = vld [vmem:[#allocation2 + $0x220] sm:$0xff]
    %v1376 = vld [vmem:[#allocation2 + $0x228] sm:$0xff]
    %v1377 = vld [vmem:[#allocation2 + $0x230] sm:$0xff]
    %v1378 = vld [vmem:[#allocation2 + $0x238] sm:$0xff]
    %v1379 = vld [vmem:[#allocation2 + $0x240] sm:$0xff]
    %v1380 = vld [vmem:[#allocation2 + $0x248] sm:$0xff]
    %v1381 = vld [vmem:[#allocation2 + $0x250] sm:$0xff]
    %v1382 = vld [vmem:[#allocation2 + $0x258] sm:$0xff]
    %v1383 = vld [vmem:[#allocation2 + $0x260] sm:$0xff]
    %v1384 = vld [vmem:[#allocation2 + $0x268] sm:$0xff]
    %v1385 = vld [vmem:[#allocation2 + $0x270] sm:$0xff]
    %v1386 = vld [vmem:[#allocation2 + $0x278] sm:$0xff]
    %v1387 = vld [vmem:[#allocation2 + $0x280] sm:$0xff]
    %v1388 = vld [vmem:[#allocation2 + $0x288] sm:$0xff]
    %v1389 = vld [vmem:[#allocation2 + $0x290] sm:$0xff]
    %v1390 = vld [vmem:[#allocation2 + $0x298] sm:$0xff]
    %v1391 = vld [vmem:[#allocation2 + $0x2a0] sm:$0xff]
    %v1392 = vld [vmem:[#allocation2 + $0x2a8] sm:$0xff]
    %v1393 = vld [vmem:[#allocation2 + $0x2b0] sm:$0xff]
    %v1394 = vld [vmem:[#allocation2 + $0x2b8] sm:$0xff]
    %v1395 = vld [vmem:[#allocation2 + $0x2c0] sm:$0xff]
    %v1396 = vld [vmem:[#allocation2 + $0x2c8] sm:$0xff]
    %v1397 = vld [vmem:[#allocation2 + $0x2d0] sm:$0xff]
    %v1398 = vld [vmem:[#allocation2 + $0x2d8] sm:$0xff]
    %v1399 = vld [vmem:[#allocation2 + $0x2e0] sm:$0xff]
    %v1400 = vld [vmem:[#allocation2 + $0x2e8] sm:$0xff]
    %v1401 = vld [vmem:[#allocation2 + $0x2f0] sm:$0xff]
    %v1402 = vld [vmem:[#allocation2 + $0x2f8] sm:$0xff]
    %v1403 = vld [vmem:[#allocation2 + $0x300] sm:$0xff]
    %v1404 = vld [vmem:[#allocation2 + $0x308] sm:$0xff]
    %v1405 = vld [vmem:[#allocation2 + $0x310] sm:$0xff]
    %v1406 = vld [vmem:[#allocation2 + $0x318] sm:$0xff]
    %v1407 = vld [vmem:[#allocation2 + $0x320] sm:$0xff]
    %v1408 = vld [vmem:[#allocation2 + $0x328] sm:$0xff]
    %v1409 = vld [vmem:[#allocation2 + $0x330] sm:$0xff]
    %v1410 = vld [vmem:[#allocation2 + $0x338] sm:$0xff]
    %v1411 = vld [vmem:[#allocation2 + $0x340] sm:$0xff]
    %v1412 = vld [vmem:[#allocation2 + $0x348] sm:$0xff]
    %v1413 = vld [vmem:[#allocation2 + $0x350] sm:$0xff]
    %v1414 = vld [vmem:[#allocation2 + $0x358] sm:$0xff]
    %v1415 = vld [vmem:[#allocation2 + $0x360] sm:$0xff]
    %v1416 = vld [vmem:[#allocation2 + $0x368] sm:$0xff]
    %v1417 = vld [vmem:[#allocation2 + $0x370] sm:$0xff]
    %v1418 = vld [vmem:[#allocation2 + $0x378] sm:$0xff]
    %v1419 = vld [vmem:[#allocation2 + $0x380] sm:$0xff]
    %v1420 = vld [vmem:[#allocation2 + $0x388] sm:$0xff]
    %v1421 = vld [vmem:[#allocation2 + $0x390] sm:$0xff]
    %v1422 = vld [vmem:[#allocation2 + $0x398] sm:$0xff]
    %v1423 = vld [vmem:[#allocation2 + $0x3a0] sm:$0xff]
    %v1424 = vld [vmem:[#allocation2 + $0x3a8] sm:$0xff]
    %v1425 = vld [vmem:[#allocation2 + $0x3b0] sm:$0xff]
    %v1426 = vld [vmem:[#allocation2 + $0x3b8] sm:$0xff]
    %v1427 = vld [vmem:[#allocation2 + $0x3c0] sm:$0xff]
    %v1428 = vld [vmem:[#allocation2 + $0x3c8] sm:$0xff]
    %v1429 = vld [vmem:[#allocation2 + $0x3d0] sm:$0xff]
    %v1430 = vld [vmem:[#allocation2 + $0x3d8] sm:$0xff]
    %v1431 = vld [vmem:[#allocation2 + $0x3e0] sm:$0xff]
    %v1432 = vld [vmem:[#allocation2 + $0x3e8] sm:$0xff]
    %v1433 = vld [vmem:[#allocation2 + $0x3f0] sm:$0xff]
    %v1434 = vld [vmem:[#allocation2 + $0x3f8] sm:$0xff]
    %v1435 = vld [vmem:[#allocation2 + $0x400] sm:$0xff]
    %v1436 = vld [vmem:[#allocation2 + $0x408] sm:$0xff]
    %v1437 = vld [vmem:[#allocation2 + $0x410] sm:$0xff]
    %v1438 = vld [vmem:[#allocation2 + $0x418] sm:$0xff]
    %v1439 = vld [vmem:[#allocation2 + $0x420] sm:$0xff]
    %v1440 = vld [vmem:[#allocation2 + $0x428] sm:$0xff]
    %v1441 = vld [vmem:[#allocation2 + $0x430] sm:$0xff]
    %v1442 = vld [vmem:[#allocation2 + $0x438] sm:$0xff]
    %v1443 = vld [vmem:[#allocation2 + $0x440] sm:$0xff]
    %v1444 = vld [vmem:[#allocation2 + $0x448] sm:$0xff]
    %v1445 = vld [vmem:[#allocation2 + $0x450] sm:$0xff]
    %v1446 = vld [vmem:[#allocation2 + $0x458] sm:$0xff]
    %v1447 = vld [vmem:[#allocation2 + $0x460] sm:$0xff]
    %v1448 = vld [vmem:[#allocation2 + $0x468] sm:$0xff]
    %v1449 = vld [vmem:[#allocation2 + $0x470] sm:$0xff]
    %v1450 = vld [vmem:[#allocation2 + $0x478] sm:$0xff]
    %v1451 = vld [vmem:[#allocation2 + $0x480] sm:$0xff]
    %v1452 = vld [vmem:[#allocation2 + $0x488] sm:$0xff]
    %v1453 = vld [vmem:[#allocation2 + $0x490] sm:$0xff]
    %v1454 = vld [vmem:[#allocation2 + $0x498] sm:$0xff]
    %v1455 = vld [vmem:[#allocation2 + $0x4a0] sm:$0xff]
    %v1456 = vld [vmem:[#allocation2 + $0x4a8] sm:$0xff]
    %v1457 = vld [vmem:[#allocation2 + $0x4b0] sm:$0xff]
    %v1458 = vld [vmem:[#allocation2 + $0x4b8] sm:$0xff]
    %v1459 = vld [vmem:[#allocation2 + $0x4c0] sm:$0xff]
    %v1460 = vld [vmem:[#allocation2 + $0x4c8] sm:$0xff]
    %v1461 = vld [vmem:[#allocation2 + $0x4d0] sm:$0xff]
    %v1462 = vld [vmem:[#allocation2 + $0x4d8] sm:$0xff]
    %v1463 = vld [vmem:[#allocation2 + $0x4e0] sm:$0xff]
    %v1464 = vld [vmem:[#allocation2 + $0x4e8] sm:$0xff]
    %v1465 = vld [vmem:[#allocation2 + $0x4f0] sm:$0xff]
    %v1466 = vld [vmem:[#allocation2 + $0x4f8] sm:$0xff]
    %v1467 = vld [vmem:[#allocation2 + $0x500] sm:$0xff]
    %v1468 = vld [vmem:[#allocation2 + $0x508] sm:$0xff]
    %v1469 = vld [vmem:[#allocation2 + $0x510] sm:$0xff]
    %v1470 = vld [vmem:[#allocation2 + $0x518] sm:$0xff]
    %v1471 = vld [vmem:[#allocation2 + $0x520] sm:$0xff]
    %v1472 = vld [vmem:[#allocation2 + $0x528] sm:$0xff]
    %v1473 = vld [vmem:[#allocation2 + $0x530] sm:$0xff]
    %v1474 = vld [vmem:[#allocation2 + $0x538] sm:$0xff]
    %v1475 = vld [vmem:[#allocation2 + $0x540] sm:$0xff]
    %v1476 = vld [vmem:[#allocation2 + $0x548] sm:$0xff]
    %v1477 = vld [vmem:[#allocation2 + $0x550] sm:$0xff]
    %v1478 = vld [vmem:[#allocation2 + $0x558] sm:$0xff]
    %v1479 = vld [vmem:[#allocation2 + $0x560] sm:$0xff]
    %v1480 = vld [vmem:[#allocation2 + $0x568] sm:$0xff]
    %v1481 = vld [vmem:[#allocation2 + $0x570] sm:$0xff]
    %v1482 = vld [vmem:[#allocation2 + $0x578] sm:$0xff]
    %v1483 = vld [vmem:[#allocation2 + $0x580] sm:$0xff]
    %v1484 = vld [vmem:[#allocation2 + $0x588] sm:$0xff]
    %v1485 = vld [vmem:[#allocation2 + $0x590] sm:$0xff]
    %v1486 = vld [vmem:[#allocation2 + $0x598] sm:$0xff]
    %v1487 = vld [vmem:[#allocation2 + $0x5a0] sm:$0xff]
    %v1488 = vld [vmem:[#allocation2 + $0x5a8] sm:$0xff]
    %v1489 = vld [vmem:[#allocation2 + $0x5b0] sm:$0xff]
    %v1490 = vld [vmem:[#allocation2 + $0x5b8] sm:$0xff]
    %v1491 = vld [vmem:[#allocation2 + $0x5c0] sm:$0xff]
    %v1492 = vld [vmem:[#allocation2 + $0x5c8] sm:$0xff]
    %v1493 = vld [vmem:[#allocation2 + $0x5d0] sm:$0xff]
    %v1494 = vld [vmem:[#allocation2 + $0x5d8] sm:$0xff]
    %v1495 = vld [vmem:[#allocation2 + $0x5e0] sm:$0xff]
    %v1496 = vld [vmem:[#allocation2 + $0x5e8] sm:$0xff]
    %v1497 = vld [vmem:[#allocation2 + $0x5f0] sm:$0xff]
    %v1498 = vld [vmem:[#allocation2 + $0x5f8] sm:$0xff]
    %v1499 = vld [vmem:[#allocation2 + $0x600] sm:$0xff]
    %v1500 = vld [vmem:[#allocation2 + $0x608] sm:$0xff]
    %v1501 = vld [vmem:[#allocation2 + $0x610] sm:$0xff]
    %v1502 = vld [vmem:[#allocation2 + $0x618] sm:$0xff]
    %v1503 = vld [vmem:[#allocation2 + $0x620] sm:$0xff]
    %v1504 = vld [vmem:[#allocation2 + $0x628] sm:$0xff]
    %v1505 = vld [vmem:[#allocation2 + $0x630] sm:$0xff]
    %v1506 = vld [vmem:[#allocation2 + $0x638] sm:$0xff]
    %v1507 = vld [vmem:[#allocation2 + $0x640] sm:$0xff]
    %v1508 = vld [vmem:[#allocation2 + $0x648] sm:$0xff]
    %v1509 = vld [vmem:[#allocation2 + $0x650] sm:$0xff]
    %v1510 = vld [vmem:[#allocation2 + $0x658] sm:$0xff]
    %v1511 = vld [vmem:[#allocation2 + $0x660] sm:$0xff]
    %v1512 = vld [vmem:[#allocation2 + $0x668] sm:$0xff]
    %v1513 = vld [vmem:[#allocation2 + $0x670] sm:$0xff]
    %v1514 = vld [vmem:[#allocation2 + $0x678] sm:$0xff]
    %v1515 = vld [vmem:[#allocation2 + $0x680] sm:$0xff]
    %v1516 = vld [vmem:[#allocation2 + $0x688] sm:$0xff]
    %v1517 = vld [vmem:[#allocation2 + $0x690] sm:$0xff]
    %v1518 = vld [vmem:[#allocation2 + $0x698] sm:$0xff]
    %v1519 = vld [vmem:[#allocation2 + $0x6a0] sm:$0xff]
    %v1520 = vld [vmem:[#allocation2 + $0x6a8] sm:$0xff]
    %v1521 = vld [vmem:[#allocation2 + $0x6b0] sm:$0xff]
    %v1522 = vld [vmem:[#allocation2 + $0x6b8] sm:$0xff]
    %v1523 = vld [vmem:[#allocation2 + $0x6c0] sm:$0xff]
    %v1524 = vld [vmem:[#allocation2 + $0x6c8] sm:$0xff]
    %v1525 = vld [vmem:[#allocation2 + $0x6d0] sm:$0xff]
    %v1526 = vld [vmem:[#allocation2 + $0x6d8] sm:$0xff]
    %v1527 = vld [vmem:[#allocation2 + $0x6e0] sm:$0xff]
    %v1528 = vld [vmem:[#allocation2 + $0x6e8] sm:$0xff]
    %v1529 = vld [vmem:[#allocation2 + $0x6f0] sm:$0xff]
    %v1530 = vld [vmem:[#allocation2 + $0x6f8] sm:$0xff]
    %v1531 = vld [vmem:[#allocation2 + $0x700] sm:$0xff]
    %v1532 = vld [vmem:[#allocation2 + $0x708] sm:$0xff]
    %v1533 = vld [vmem:[#allocation2 + $0x710] sm:$0xff]
    %v1534 = vld [vmem:[#allocation2 + $0x718] sm:$0xff]
    %v1535 = vld [vmem:[#allocation2 + $0x720] sm:$0xff]
    %v1536 = vld [vmem:[#allocation2 + $0x728] sm:$0xff]
    %v1537 = vld [vmem:[#allocation2 + $0x730] sm:$0xff]
    %v1538 = vld [vmem:[#allocation2 + $0x738] sm:$0xff]
    %v1539 = vld [vmem:[#allocation2 + $0x740] sm:$0xff]
    %v1540 = vld [vmem:[#allocation2 + $0x748] sm:$0xff]
    %v1541 = vld [vmem:[#allocation2 + $0x750] sm:$0xff]
    %v1542 = vld [vmem:[#allocation2 + $0x758] sm:$0xff]
    %v1543 = vld [vmem:[#allocation2 + $0x760] sm:$0xff]
    %v1544 = vld [vmem:[#allocation2 + $0x768] sm:$0xff]
    %v1545 = vld [vmem:[#allocation2 + $0x770] sm:$0xff]
    %v1546 = vld [vmem:[#allocation2 + $0x778] sm:$0xff]
    %v1547 = vld [vmem:[#allocation2 + $0x780] sm:$0xff]
    %v1548 = vld [vmem:[#allocation2 + $0x788] sm:$0xff]
    %v1549 = vld [vmem:[#allocation2 + $0x790] sm:$0xff]
    %v1550 = vld [vmem:[#allocation2 + $0x798] sm:$0xff]
    %v1551 = vld [vmem:[#allocation2 + $0x7a0] sm:$0xff]
    %v1552 = vld [vmem:[#allocation2 + $0x7a8] sm:$0xff]
    %v1553 = vld [vmem:[#allocation2 + $0x7b0] sm:$0xff]
    %v1554 = vld [vmem:[#allocation2 + $0x7b8] sm:$0xff]
    %v1555 = vld [vmem:[#allocation2 + $0x7c0] sm:$0xff]
    %v1556 = vld [vmem:[#allocation2 + $0x7c8] sm:$0xff]
    %v1557 = vld [vmem:[#allocation2 + $0x7d0] sm:$0xff]
    %v1558 = vld [vmem:[#allocation2 + $0x7d8] sm:$0xff]
    %v1559 = vld [vmem:[#allocation2 + $0x7e0] sm:$0xff]
    %v1560 = vld [vmem:[#allocation2 + $0x7e8] sm:$0xff]
    %v1561 = vld [vmem:[#allocation2 + $0x7f0] sm:$0xff]
    %v1562 = vld [vmem:[#allocation2 + $0x7f8] sm:$0xff]
    %v1563 = vld [vmem:[#allocation2 + $0x800] sm:$0xff]
    %v1564 = vld [vmem:[#allocation2 + $0x808] sm:$0xff]
    %v1565 = vld [vmem:[#allocation2 + $0x810] sm:$0xff]
    %v1566 = vld [vmem:[#allocation2 + $0x818] sm:$0xff]
    %v1567 = vld [vmem:[#allocation2 + $0x820] sm:$0xff]
    %v1568 = vld [vmem:[#allocation2 + $0x828] sm:$0xff]
    %v1569 = vld [vmem:[#allocation2 + $0x830] sm:$0xff]
    %v1570 = vld [vmem:[#allocation2 + $0x838] sm:$0xff]
    %v1571 = vld [vmem:[#allocation2 + $0x840] sm:$0xff]
    %v1572 = vld [vmem:[#allocation2 + $0x848] sm:$0xff]
    %v1573 = vld [vmem:[#allocation2 + $0x850] sm:$0xff]
    %v1574 = vld [vmem:[#allocation2 + $0x858] sm:$0xff]
    %v1575 = vld [vmem:[#allocation2 + $0x860] sm:$0xff]
    %v1576 = vld [vmem:[#allocation2 + $0x868] sm:$0xff]
    %v1577 = vld [vmem:[#allocation2 + $0x870] sm:$0xff]
    %v1578 = vld [vmem:[#allocation2 + $0x878] sm:$0xff]
    %v1579 = vld [vmem:[#allocation2 + $0x880] sm:$0xff]
    %v1580 = vld [vmem:[#allocation2 + $0x888] sm:$0xff]
    %v1581 = vld [vmem:[#allocation2 + $0x890] sm:$0xff]
    %v1582 = vld [vmem:[#allocation2 + $0x898] sm:$0xff]
    %v1583 = vld [vmem:[#allocation2 + $0x8a0] sm:$0xff]
    %v1584 = vld [vmem:[#allocation2 + $0x8a8] sm:$0xff]
    %v1585 = vld [vmem:[#allocation2 + $0x8b0] sm:$0xff]
    %v1586 = vld [vmem:[#allocation2 + $0x8b8] sm:$0xff]
    %v1587 = vld [vmem:[#allocation2 + $0x8c0] sm:$0xff]
    %v1588 = vld [vmem:[#allocation2 + $0x8c8] sm:$0xff]
    %v1589 = vld [vmem:[#allocation2 + $0x8d0] sm:$0xff]
    %v1590 = vld [vmem:[#allocation2 + $0x8d8] sm:$0xff]
    %v1591 = vld [vmem:[#allocation2 + $0x8e0] sm:$0xff]
    %v1592 = vld [vmem:[#allocation2 + $0x8e8] sm:$0xff]
    %v1593 = vld [vmem:[#allocation2 + $0x8f0] sm:$0xff]
    %v1594 = vld [vmem:[#allocation2 + $0x8f8] sm:$0xff]
    %v1595 = vld [vmem:[%s8] sm:$0x3f]
    %v1884 = vunpack.c.l.b16 %v1307
    %v1885 = vunpack.c.h.b16 %v1307
    %v1886 = vunpack.c.l.b16 %v1308
    %v1887 = vunpack.c.h.b16 %v1308
    %v1888 = vunpack.c.l.b16 %v1309
    %v1889 = vunpack.c.h.b16 %v1309
    %v1890 = vunpack.c.l.b16 %v1310
    %v1891 = vunpack.c.h.b16 %v1310
    %v1892 = vunpack.c.l.b16 %v1311
    %v1893 = vunpack.c.h.b16 %v1311
    %v1894 = vunpack.c.l.b16 %v1312
    %v1895 = vunpack.c.h.b16 %v1312
    %v1896 = vunpack.c.l.b16 %v1313
    %v1897 = vunpack.c.h.b16 %v1313
    %v1898 = vunpack.c.l.b16 %v1314
    %v1899 = vunpack.c.h.b16 %v1314
    %v1900 = vunpack.c.l.b16 %v1315
    %v1901 = vunpack.c.h.b16 %v1315
    %v1902 = vunpack.c.l.b16 %v1316
    %v1903 = vunpack.c.h.b16 %v1316
    %v1904 = vunpack.c.l.b16 %v1317
    %v1905 = vunpack.c.h.b16 %v1317
    %v1906 = vunpack.c.l.b16 %v1318
    %v1907 = vunpack.c.h.b16 %v1318
    %v1908 = vunpack.c.l.b16 %v1319
    %v1909 = vunpack.c.h.b16 %v1319
    %v1910 = vunpack.c.l.b16 %v1320
    %v1911 = vunpack.c.h.b16 %v1320
    %v1912 = vunpack.c.l.b16 %v1321
    %v1913 = vunpack.c.h.b16 %v1321
    %v1914 = vunpack.c.l.b16 %v1322
    %v1915 = vunpack.c.h.b16 %v1322
    %v1916 = vunpack.c.l.b16 %v1323
    %v1917 = vunpack.c.h.b16 %v1323
    %v1918 = vunpack.c.l.b16 %v1324
    %v1919 = vunpack.c.h.b16 %v1324
    %v1920 = vunpack.c.l.b16 %v1325
    %v1921 = vunpack.c.h.b16 %v1325
    %v1922 = vunpack.c.l.b16 %v1326
    %v1923 = vunpack.c.h.b16 %v1326
    %v1924 = vunpack.c.l.b16 %v1327
    %v1925 = vunpack.c.h.b16 %v1327
    %v1926 = vunpack.c.l.b16 %v1328
    %v1927 = vunpack.c.h.b16 %v1328
    %v1928 = vunpack.c.l.b16 %v1329
    %v1929 = vunpack.c.h.b16 %v1329
    %v1930 = vunpack.c.l.b16 %v1330
    %v1931 = vunpack.c.h.b16 %v1330
    %v1932 = vunpack.c.l.b16 %v1331
    %v1933 = vunpack.c.h.b16 %v1331
    %v1934 = vunpack.c.l.b16 %v1332
    %v1935 = vunpack.c.h.b16 %v1332
    %v1936 = vunpack.c.l.b16 %v1333
    %v1937 = vunpack.c.h.b16 %v1333
    %v1938 = vunpack.c.l.b16 %v1334
    %v1939 = vunpack.c.h.b16 %v1334
    %v1940 = vunpack.c.l.b16 %v1335
    %v1941 = vunpack.c.h.b16 %v1335
    %v1942 = vunpack.c.l.b16 %v1336
    %v1943 = vunpack.c.h.b16 %v1336
    %v1944 = vunpack.c.l.b16 %v1337
    %v1945 = vunpack.c.h.b16 %v1337
    %v1946 = vunpack.c.l.b16 %v1338
    %v1947 = vunpack.c.h.b16 %v1338
    %v1948 = vunpack.c.l.b16 %v1339
    %v1949 = vunpack.c.h.b16 %v1339
    %v1950 = vunpack.c.l.b16 %v1340
    %v1951 = vunpack.c.h.b16 %v1340
    %v1952 = vunpack.c.l.b16 %v1341
    %v1953 = vunpack.c.h.b16 %v1341
    %v1954 = vunpack.c.l.b16 %v1342
    %v1955 = vunpack.c.h.b16 %v1342
    %v1956 = vunpack.c.l.b16 %v1343
    %v1957 = vunpack.c.h.b16 %v1343
    %v1958 = vunpack.c.l.b16 %v1344
    %v1959 = vunpack.c.h.b16 %v1344
    %v1960 = vunpack.c.l.b16 %v1345
    %v1961 = vunpack.c.h.b16 %v1345
    %v1962 = vunpack.c.l.b16 %v1346
    %v1963 = vunpack.c.h.b16 %v1346
    %v1964 = vunpack.c.l.b16 %v1347
    %v1965 = vunpack.c.h.b16 %v1347
    %v1966 = vunpack.c.l.b16 %v1348
    %v1967 = vunpack.c.h.b16 %v1348
    %v1968 = vunpack.c.l.b16 %v1349
    %v1969 = vunpack.c.h.b16 %v1349
    %v1970 = vunpack.c.l.b16 %v1350
    %v1971 = vunpack.c.h.b16 %v1350
    %v1972 = vunpack.c.l.b16 %v1351
    %v1973 = vunpack.c.h.b16 %v1351
    %v1974 = vunpack.c.l.b16 %v1352
    %v1975 = vunpack.c.h.b16 %v1352
    %v1976 = vunpack.c.l.b16 %v1353
    %v1977 = vunpack.c.h.b16 %v1353
    %v1978 = vunpack.c.l.b16 %v1354
    %v1979 = vunpack.c.h.b16 %v1354
    %v1980 = vunpack.c.l.b16 %v1355
    %v1981 = vunpack.c.h.b16 %v1355
    %v1982 = vunpack.c.l.b16 %v1356
    %v1983 = vunpack.c.h.b16 %v1356
    %v1984 = vunpack.c.l.b16 %v1357
    %v1985 = vunpack.c.h.b16 %v1357
    %v1986 = vunpack.c.l.b16 %v1358
    %v1987 = vunpack.c.h.b16 %v1358
    %v1988 = vunpack.c.l.b16 %v1359
    %v1989 = vunpack.c.h.b16 %v1359
    %v1990 = vunpack.c.l.b16 %v1360
    %v1991 = vunpack.c.h.b16 %v1360
    %v1992 = vunpack.c.l.b16 %v1361
    %v1993 = vunpack.c.h.b16 %v1361
    %v1994 = vunpack.c.l.b16 %v1362
    %v1995 = vunpack.c.h.b16 %v1362
    %v1996 = vunpack.c.l.b16 %v1363
    %v1997 = vunpack.c.h.b16 %v1363
    %v1998 = vunpack.c.l.b16 %v1364
    %v1999 = vunpack.c.h.b16 %v1364
    %v2000 = vunpack.c.l.b16 %v1365
    %v2001 = vunpack.c.h.b16 %v1365
    %v2002 = vunpack.c.l.b16 %v1366
    %v2003 = vunpack.c.h.b16 %v1366
    %v2004 = vunpack.c.l.b16 %v1367
    %v2005 = vunpack.c.h.b16 %v1367
    %v2006 = vunpack.c.l.b16 %v1368
    %v2007 = vunpack.c.h.b16 %v1368
    %v2008 = vunpack.c.l.b16 %v1369
    %v2009 = vunpack.c.h.b16 %v1369
    %v2010 = vunpack.c.l.b16 %v1370
    %v2011 = vunpack.c.h.b16 %v1370
    %v2012 = vunpack.c.l.b16 %v1371
    %v2013 = vunpack.c.h.b16 %v1371
    %v2014 = vunpack.c.l.b16 %v1372
    %v2015 = vunpack.c.h.b16 %v1372
    %v2016 = vunpack.c.l.b16 %v1373
    %v2017 = vunpack.c.h.b16 %v1373
    %v2018 = vunpack.c.l.b16 %v1374
    %v2019 = vunpack.c.h.b16 %v1374
    %v2020 = vunpack.c.l.b16 %v1375
    %v2021 = vunpack.c.h.b16 %v1375
    %v2022 = vunpack.c.l.b16 %v1376
    %v2023 = vunpack.c.h.b16 %v1376
    %v2024 = vunpack.c.l.b16 %v1377
    %v2025 = vunpack.c.h.b16 %v1377
    %v2026 = vunpack.c.l.b16 %v1378
    %v2027 = vunpack.c.h.b16 %v1378
    %v2028 = vunpack.c.l.b16 %v1379
    %v2029 = vunpack.c.h.b16 %v1379
    %v2030 = vunpack.c.l.b16 %v1380
    %v2031 = vunpack.c.h.b16 %v1380
    %v2032 = vunpack.c.l.b16 %v1381
    %v2033 = vunpack.c.h.b16 %v1381
    %v2034 = vunpack.c.l.b16 %v1382
    %v2035 = vunpack.c.h.b16 %v1382
    %v2036 = vunpack.c.l.b16 %v1383
    %v2037 = vunpack.c.h.b16 %v1383
    %v2038 = vunpack.c.l.b16 %v1384
    %v2039 = vunpack.c.h.b16 %v1384
    %v2040 = vunpack.c.l.b16 %v1385
    %v2041 = vunpack.c.h.b16 %v1385
    %v2042 = vunpack.c.l.b16 %v1386
    %v2043 = vunpack.c.h.b16 %v1386
    %v2044 = vunpack.c.l.b16 %v1387
    %v2045 = vunpack.c.h.b16 %v1387
    %v2046 = vunpack.c.l.b16 %v1388
    %v2047 = vunpack.c.h.b16 %v1388
    %v2048 = vunpack.c.l.b16 %v1389
    %v2049 = vunpack.c.h.b16 %v1389
    %v2050 = vunpack.c.l.b16 %v1390
    %v2051 = vunpack.c.h.b16 %v1390
    %v2052 = vunpack.c.l.b16 %v1391
    %v2053 = vunpack.c.h.b16 %v1391
    %v2054 = vunpack.c.l.b16 %v1392
    %v2055 = vunpack.c.h.b16 %v1392
    %v2056 = vunpack.c.l.b16 %v1393
    %v2057 = vunpack.c.h.b16 %v1393
    %v2058 = vunpack.c.l.b16 %v1394
    %v2059 = vunpack.c.h.b16 %v1394
    %v2060 = vunpack.c.l.b16 %v1395
    %v2061 = vunpack.c.h.b16 %v1395
    %v2062 = vunpack.c.l.b16 %v1396
    %v2063 = vunpack.c.h.b16 %v1396
    %v2064 = vunpack.c.l.b16 %v1397
    %v2065 = vunpack.c.h.b16 %v1397
    %v2066 = vunpack.c.l.b16 %v1398
    %v2067 = vunpack.c.h.b16 %v1398
    %v2068 = vunpack.c.l.b16 %v1399
    %v2069 = vunpack.c.h.b16 %v1399
    %v2070 = vunpack.c.l.b16 %v1400
    %v2071 = vunpack.c.h.b16 %v1400
    %v2072 = vunpack.c.l.b16 %v1401
    %v2073 = vunpack.c.h.b16 %v1401
    %v2074 = vunpack.c.l.b16 %v1402
    %v2075 = vunpack.c.h.b16 %v1402
    %v2076 = vunpack.c.l.b16 %v1403
    %v2077 = vunpack.c.h.b16 %v1403
    %v2078 = vunpack.c.l.b16 %v1404
    %v2079 = vunpack.c.h.b16 %v1404
    %v2080 = vunpack.c.l.b16 %v1405
    %v2081 = vunpack.c.h.b16 %v1405
    %v2082 = vunpack.c.l.b16 %v1406
    %v2083 = vunpack.c.h.b16 %v1406
    %v2084 = vunpack.c.l.b16 %v1407
    %v2085 = vunpack.c.h.b16 %v1407
    %v2086 = vunpack.c.l.b16 %v1408
    %v2087 = vunpack.c.h.b16 %v1408
    %v2088 = vunpack.c.l.b16 %v1409
    %v2089 = vunpack.c.h.b16 %v1409
    %v2090 = vunpack.c.l.b16 %v1410
    %v2091 = vunpack.c.h.b16 %v1410
    %v2092 = vunpack.c.l.b16 %v1411
    %v2093 = vunpack.c.h.b16 %v1411
    %v2094 = vunpack.c.l.b16 %v1412
    %v2095 = vunpack.c.h.b16 %v1412
    %v2096 = vunpack.c.l.b16 %v1413
    %v2097 = vunpack.c.h.b16 %v1413
    %v2098 = vunpack.c.l.b16 %v1414
    %v2099 = vunpack.c.h.b16 %v1414
    %v2100 = vunpack.c.l.b16 %v1415
    %v2101 = vunpack.c.h.b16 %v1415
    %v2102 = vunpack.c.l.b16 %v1416
    %v2103 = vunpack.c.h.b16 %v1416
    %v2104 = vunpack.c.l.b16 %v1417
    %v2105 = vunpack.c.h.b16 %v1417
    %v2106 = vunpack.c.l.b16 %v1418
    %v2107 = vunpack.c.h.b16 %v1418
    %v2108 = vunpack.c.l.b16 %v1419
    %v2109 = vunpack.c.h.b16 %v1419
    %v2110 = vunpack.c.l.b16 %v1420
    %v2111 = vunpack.c.h.b16 %v1420
    %v2112 = vunpack.c.l.b16 %v1421
    %v2113 = vunpack.c.h.b16 %v1421
    %v2114 = vunpack.c.l.b16 %v1422
    %v2115 = vunpack.c.h.b16 %v1422
    %v2116 = vunpack.c.l.b16 %v1423
    %v2117 = vunpack.c.h.b16 %v1423
    %v2118 = vunpack.c.l.b16 %v1424
    %v2119 = vunpack.c.h.b16 %v1424
    %v2120 = vunpack.c.l.b16 %v1425
    %v2121 = vunpack.c.h.b16 %v1425
    %v2122 = vunpack.c.l.b16 %v1426
    %v2123 = vunpack.c.h.b16 %v1426
    %v2124 = vunpack.c.l.b16 %v1427
    %v2125 = vunpack.c.h.b16 %v1427
    %v2126 = vunpack.c.l.b16 %v1428
    %v2127 = vunpack.c.h.b16 %v1428
    %v2128 = vunpack.c.l.b16 %v1429
    %v2129 = vunpack.c.h.b16 %v1429
    %v2130 = vunpack.c.l.b16 %v1430
    %v2131 = vunpack.c.h.b16 %v1430
    %v2132 = vunpack.c.l.b16 %v1431
    %v2133 = vunpack.c.h.b16 %v1431
    %v2134 = vunpack.c.l.b16 %v1432
    %v2135 = vunpack.c.h.b16 %v1432
    %v2136 = vunpack.c.l.b16 %v1433
    %v2137 = vunpack.c.h.b16 %v1433
    %v2138 = vunpack.c.l.b16 %v1434
    %v2139 = vunpack.c.h.b16 %v1434
    %v2140 = vunpack.c.l.b16 %v1435
    %v2141 = vunpack.c.h.b16 %v1435
    %v2142 = vunpack.c.l.b16 %v1436
    %v2143 = vunpack.c.h.b16 %v1436
    %v2144 = vunpack.c.l.b16 %v1437
    %v2145 = vunpack.c.h.b16 %v1437
    %v2146 = vunpack.c.l.b16 %v1438
    %v2147 = vunpack.c.h.b16 %v1438
    %v2148 = vunpack.c.l.b16 %v1439
    %v2149 = vunpack.c.h.b16 %v1439
    %v2150 = vunpack.c.l.b16 %v1440
    %v2151 = vunpack.c.h.b16 %v1440
    %v2152 = vunpack.c.l.b16 %v1441
    %v2153 = vunpack.c.h.b16 %v1441
    %v2154 = vunpack.c.l.b16 %v1442
    %v2155 = vunpack.c.h.b16 %v1442
    %v2156 = vunpack.c.l.b16 %v1443
    %v2157 = vunpack.c.h.b16 %v1443
    %v2158 = vunpack.c.l.b16 %v1444
    %v2159 = vunpack.c.h.b16 %v1444
    %v2160 = vunpack.c.l.b16 %v1445
    %v2161 = vunpack.c.h.b16 %v1445
    %v2162 = vunpack.c.l.b16 %v1446
    %v2163 = vunpack.c.h.b16 %v1446
    %v2164 = vunpack.c.l.b16 %v1447
    %v2165 = vunpack.c.h.b16 %v1447
    %v2166 = vunpack.c.l.b16 %v1448
    %v2167 = vunpack.c.h.b16 %v1448
    %v2168 = vunpack.c.l.b16 %v1449
    %v2169 = vunpack.c.h.b16 %v1449
    %v2170 = vunpack.c.l.b16 %v1450
    %v2171 = vunpack.c.h.b16 %v1450
    %v2172 = vunpack.c.l.b16 %v1451
    %v2173 = vunpack.c.h.b16 %v1451
    %v2174 = vunpack.c.l.b16 %v1452
    %v2175 = vunpack.c.h.b16 %v1452
    %v2176 = vunpack.c.l.b16 %v1453
    %v2177 = vunpack.c.h.b16 %v1453
    %v2178 = vunpack.c.l.b16 %v1454
    %v2179 = vunpack.c.h.b16 %v1454
    %v2180 = vunpack.c.l.b16 %v1455
    %v2181 = vunpack.c.h.b16 %v1455
    %v2182 = vunpack.c.l.b16 %v1456
    %v2183 = vunpack.c.h.b16 %v1456
    %v2184 = vunpack.c.l.b16 %v1457
    %v2185 = vunpack.c.h.b16 %v1457
    %v2186 = vunpack.c.l.b16 %v1458
    %v2187 = vunpack.c.h.b16 %v1458
    %v2188 = vunpack.c.l.b16 %v1459
    %v2189 = vunpack.c.h.b16 %v1459
    %v2190 = vunpack.c.l.b16 %v1460
    %v2191 = vunpack.c.h.b16 %v1460
    %v2192 = vunpack.c.l.b16 %v1461
    %v2193 = vunpack.c.h.b16 %v1461
    %v2194 = vunpack.c.l.b16 %v1462
    %v2195 = vunpack.c.h.b16 %v1462
    %v2196 = vunpack.c.l.b16 %v1463
    %v2197 = vunpack.c.h.b16 %v1463
    %v2198 = vunpack.c.l.b16 %v1464
    %v2199 = vunpack.c.h.b16 %v1464
    %v2200 = vunpack.c.l.b16 %v1465
    %v2201 = vunpack.c.h.b16 %v1465
    %v2202 = vunpack.c.l.b16 %v1466
    %v2203 = vunpack.c.h.b16 %v1466
    %v2204 = vunpack.c.l.b16 %v1467
    %v2205 = vunpack.c.h.b16 %v1467
    %v2206 = vunpack.c.l.b16 %v1468
    %v2207 = vunpack.c.h.b16 %v1468
    %v2208 = vunpack.c.l.b16 %v1469
    %v2209 = vunpack.c.h.b16 %v1469
    %v2210 = vunpack.c.l.b16 %v1470
    %v2211 = vunpack.c.h.b16 %v1470
    %v2212 = vunpack.c.l.b16 %v1471
    %v2213 = vunpack.c.h.b16 %v1471
    %v2214 = vunpack.c.l.b16 %v1472
    %v2215 = vunpack.c.h.b16 %v1472
    %v2216 = vunpack.c.l.b16 %v1473
    %v2217 = vunpack.c.h.b16 %v1473
    %v2218 = vunpack.c.l.b16 %v1474
    %v2219 = vunpack.c.h.b16 %v1474
    %v2220 = vunpack.c.l.b16 %v1475
    %v2221 = vunpack.c.h.b16 %v1475
    %v2222 = vunpack.c.l.b16 %v1476
    %v2223 = vunpack.c.h.b16 %v1476
    %v2224 = vunpack.c.l.b16 %v1477
    %v2225 = vunpack.c.h.b16 %v1477
    %v2226 = vunpack.c.l.b16 %v1478
    %v2227 = vunpack.c.h.b16 %v1478
    %v2228 = vunpack.c.l.b16 %v1479
    %v2229 = vunpack.c.h.b16 %v1479
    %v2230 = vunpack.c.l.b16 %v1480
    %v2231 = vunpack.c.h.b16 %v1480
    %v2232 = vunpack.c.l.b16 %v1481
    %v2233 = vunpack.c.h.b16 %v1481
    %v2234 = vunpack.c.l.b16 %v1482
    %v2235 = vunpack.c.h.b16 %v1482
    %v2236 = vunpack.c.l.b16 %v1483
    %v2237 = vunpack.c.h.b16 %v1483
    %v2238 = vunpack.c.l.b16 %v1484
    %v2239 = vunpack.c.h.b16 %v1484
    %v2240 = vunpack.c.l.b16 %v1485
    %v2241 = vunpack.c.h.b16 %v1485
    %v2242 = vunpack.c.l.b16 %v1486
    %v2243 = vunpack.c.h.b16 %v1486
    %v2244 = vunpack.c.l.b16 %v1487
    %v2245 = vunpack.c.h.b16 %v1487
    %v2246 = vunpack.c.l.b16 %v1488
    %v2247 = vunpack.c.h.b16 %v1488
    %v2248 = vunpack.c.l.b16 %v1489
    %v2249 = vunpack.c.h.b16 %v1489
    %v2250 = vunpack.c.l.b16 %v1490
    %v2251 = vunpack.c.h.b16 %v1490
    %v2252 = vunpack.c.l.b16 %v1491
    %v2253 = vunpack.c.h.b16 %v1491
    %v2254 = vunpack.c.l.b16 %v1492
    %v2255 = vunpack.c.h.b16 %v1492
    %v2256 = vunpack.c.l.b16 %v1493
    %v2257 = vunpack.c.h.b16 %v1493
    %v2258 = vunpack.c.l.b16 %v1494
    %v2259 = vunpack.c.h.b16 %v1494
    %v2260 = vunpack.c.l.b16 %v1495
    %v2261 = vunpack.c.h.b16 %v1495
    %v2262 = vunpack.c.l.b16 %v1496
    %v2263 = vunpack.c.h.b16 %v1496
    %v2264 = vunpack.c.l.b16 %v1497
    %v2265 = vunpack.c.h.b16 %v1497
    %v2266 = vunpack.c.l.b16 %v1498
    %v2267 = vunpack.c.h.b16 %v1498
    %v2268 = vunpack.c.l.b16 %v1499
    %v2269 = vunpack.c.h.b16 %v1499
    %v2270 = vunpack.c.l.b16 %v1500
    %v2271 = vunpack.c.h.b16 %v1500
    %v2272 = vunpack.c.l.b16 %v1501
    %v2273 = vunpack.c.h.b16 %v1501
    %v2274 = vunpack.c.l.b16 %v1502
    %v2275 = vunpack.c.h.b16 %v1502
    %v2276 = vunpack.c.l.b16 %v1503
    %v2277 = vunpack.c.h.b16 %v1503
    %v2278 = vunpack.c.l.b16 %v1504
    %v2279 = vunpack.c.h.b16 %v1504
    %v2280 = vunpack.c.l.b16 %v1505
    %v2281 = vunpack.c.h.b16 %v1505
    %v2282 = vunpack.c.l.b16 %v1506
    %v2283 = vunpack.c.h.b16 %v1506
    %v2284 = vunpack.c.l.b16 %v1507
    %v2285 = vunpack.c.h.b16 %v1507
    %v2286 = vunpack.c.l.b16 %v1508
    %v2287 = vunpack.c.h.b16 %v1508
    %v2288 = vunpack.c.l.b16 %v1509
    %v2289 = vunpack.c.h.b16 %v1509
    %v2290 = vunpack.c.l.b16 %v1510
    %v2291 = vunpack.c.h.b16 %v1510
    %v2292 = vunpack.c.l.b16 %v1511
    %v2293 = vunpack.c.h.b16 %v1511
    %v2294 = vunpack.c.l.b16 %v1512
    %v2295 = vunpack.c.h.b16 %v1512
    %v2296 = vunpack.c.l.b16 %v1513
    %v2297 = vunpack.c.h.b16 %v1513
    %v2298 = vunpack.c.l.b16 %v1514
    %v2299 = vunpack.c.h.b16 %v1514
    %v2300 = vunpack.c.l.b16 %v1515
    %v2301 = vunpack.c.h.b16 %v1515
    %v2302 = vunpack.c.l.b16 %v1516
    %v2303 = vunpack.c.h.b16 %v1516
    %v2304 = vunpack.c.l.b16 %v1517
    %v2305 = vunpack.c.h.b16 %v1517
    %v2306 = vunpack.c.l.b16 %v1518
    %v2307 = vunpack.c.h.b16 %v1518
    %v2308 = vunpack.c.l.b16 %v1519
    %v2309 = vunpack.c.h.b16 %v1519
    %v2310 = vunpack.c.l.b16 %v1520
    %v2311 = vunpack.c.h.b16 %v1520
    %v2312 = vunpack.c.l.b16 %v1521
    %v2313 = vunpack.c.h.b16 %v1521
    %v2314 = vunpack.c.l.b16 %v1522
    %v2315 = vunpack.c.h.b16 %v1522
    %v2316 = vunpack.c.l.b16 %v1523
    %v2317 = vunpack.c.h.b16 %v1523
    %v2318 = vunpack.c.l.b16 %v1524
    %v2319 = vunpack.c.h.b16 %v1524
    %v2320 = vunpack.c.l.b16 %v1525
    %v2321 = vunpack.c.h.b16 %v1525
    %v2322 = vunpack.c.l.b16 %v1526
    %v2323 = vunpack.c.h.b16 %v1526
    %v2324 = vunpack.c.l.b16 %v1527
    %v2325 = vunpack.c.h.b16 %v1527
    %v2326 = vunpack.c.l.b16 %v1528
    %v2327 = vunpack.c.h.b16 %v1528
    %v2328 = vunpack.c.l.b16 %v1529
    %v2329 = vunpack.c.h.b16 %v1529
    %v2330 = vunpack.c.l.b16 %v1530
    %v2331 = vunpack.c.h.b16 %v1530
    %v2332 = vunpack.c.l.b16 %v1531
    %v2333 = vunpack.c.h.b16 %v1531
    %v2334 = vunpack.c.l.b16 %v1532
    %v2335 = vunpack.c.h.b16 %v1532
    %v2336 = vunpack.c.l.b16 %v1533
    %v2337 = vunpack.c.h.b16 %v1533
    %v2338 = vunpack.c.l.b16 %v1534
    %v2339 = vunpack.c.h.b16 %v1534
    %v2340 = vunpack.c.l.b16 %v1535
    %v2341 = vunpack.c.h.b16 %v1535
    %v2342 = vunpack.c.l.b16 %v1536
    %v2343 = vunpack.c.h.b16 %v1536
    %v2344 = vunpack.c.l.b16 %v1537
    %v2345 = vunpack.c.h.b16 %v1537
    %v2346 = vunpack.c.l.b16 %v1538
    %v2347 = vunpack.c.h.b16 %v1538
    %v2348 = vunpack.c.l.b16 %v1539
    %v2349 = vunpack.c.h.b16 %v1539
    %v2350 = vunpack.c.l.b16 %v1540
    %v2351 = vunpack.c.h.b16 %v1540
    %v2352 = vunpack.c.l.b16 %v1541
    %v2353 = vunpack.c.h.b16 %v1541
    %v2354 = vunpack.c.l.b16 %v1542
    %v2355 = vunpack.c.h.b16 %v1542
    %v2356 = vunpack.c.l.b16 %v1543
    %v2357 = vunpack.c.h.b16 %v1543
    %v2358 = vunpack.c.l.b16 %v1544
    %v2359 = vunpack.c.h.b16 %v1544
    %v2360 = vunpack.c.l.b16 %v1545
    %v2361 = vunpack.c.h.b16 %v1545
    %v2362 = vunpack.c.l.b16 %v1546
    %v2363 = vunpack.c.h.b16 %v1546
    %v2364 = vunpack.c.l.b16 %v1547
    %v2365 = vunpack.c.h.b16 %v1547
    %v2366 = vunpack.c.l.b16 %v1548
    %v2367 = vunpack.c.h.b16 %v1548
    %v2368 = vunpack.c.l.b16 %v1549
    %v2369 = vunpack.c.h.b16 %v1549
    %v2370 = vunpack.c.l.b16 %v1550
    %v2371 = vunpack.c.h.b16 %v1550
    %v2372 = vunpack.c.l.b16 %v1551
    %v2373 = vunpack.c.h.b16 %v1551
    %v2374 = vunpack.c.l.b16 %v1552
    %v2375 = vunpack.c.h.b16 %v1552
    %v2376 = vunpack.c.l.b16 %v1553
    %v2377 = vunpack.c.h.b16 %v1553
    %v2378 = vunpack.c.l.b16 %v1554
    %v2379 = vunpack.c.h.b16 %v1554
    %v2380 = vunpack.c.l.b16 %v1555
    %v2381 = vunpack.c.h.b16 %v1555
    %v2382 = vunpack.c.l.b16 %v1556
    %v2383 = vunpack.c.h.b16 %v1556
    %v2384 = vunpack.c.l.b16 %v1557
    %v2385 = vunpack.c.h.b16 %v1557
    %v2386 = vunpack.c.l.b16 %v1558
    %v2387 = vunpack.c.h.b16 %v1558
    %v2388 = vunpack.c.l.b16 %v1559
    %v2389 = vunpack.c.h.b16 %v1559
    %v2390 = vunpack.c.l.b16 %v1560
    %v2391 = vunpack.c.h.b16 %v1560
    %v2392 = vunpack.c.l.b16 %v1561
    %v2393 = vunpack.c.h.b16 %v1561
    %v2394 = vunpack.c.l.b16 %v1562
    %v2395 = vunpack.c.h.b16 %v1562
    %v2396 = vunpack.c.l.b16 %v1563
    %v2397 = vunpack.c.h.b16 %v1563
    %v2398 = vunpack.c.l.b16 %v1564
    %v2399 = vunpack.c.h.b16 %v1564
    %v2400 = vunpack.c.l.b16 %v1565
    %v2401 = vunpack.c.h.b16 %v1565
    %v2402 = vunpack.c.l.b16 %v1566
    %v2403 = vunpack.c.h.b16 %v1566
    %v2404 = vunpack.c.l.b16 %v1567
    %v2405 = vunpack.c.h.b16 %v1567
    %v2406 = vunpack.c.l.b16 %v1568
    %v2407 = vunpack.c.h.b16 %v1568
    %v2408 = vunpack.c.l.b16 %v1569
    %v2409 = vunpack.c.h.b16 %v1569
    %v2410 = vunpack.c.l.b16 %v1570
    %v2411 = vunpack.c.h.b16 %v1570
    %v2412 = vunpack.c.l.b16 %v1571
    %v2413 = vunpack.c.h.b16 %v1571
    %v2414 = vunpack.c.l.b16 %v1572
    %v2415 = vunpack.c.h.b16 %v1572
    %v2416 = vunpack.c.l.b16 %v1573
    %v2417 = vunpack.c.h.b16 %v1573
    %v2418 = vunpack.c.l.b16 %v1574
    %v2419 = vunpack.c.h.b16 %v1574
    %v2420 = vunpack.c.l.b16 %v1575
    %v2421 = vunpack.c.h.b16 %v1575
    %v2422 = vunpack.c.l.b16 %v1576
    %v2423 = vunpack.c.h.b16 %v1576
    %v2424 = vunpack.c.l.b16 %v1577
    %v2425 = vunpack.c.h.b16 %v1577
    %v2426 = vunpack.c.l.b16 %v1578
    %v2427 = vunpack.c.h.b16 %v1578
    %v2428 = vunpack.c.l.b16 %v1579
    %v2429 = vunpack.c.h.b16 %v1579
    %v2430 = vunpack.c.l.b16 %v1580
    %v2431 = vunpack.c.h.b16 %v1580
    %v2432 = vunpack.c.l.b16 %v1581
    %v2433 = vunpack.c.h.b16 %v1581
    %v2434 = vunpack.c.l.b16 %v1582
    %v2435 = vunpack.c.h.b16 %v1582
    %v2436 = vunpack.c.l.b16 %v1583
    %v2437 = vunpack.c.h.b16 %v1583
    %v2438 = vunpack.c.l.b16 %v1584
    %v2439 = vunpack.c.h.b16 %v1584
    %v2440 = vunpack.c.l.b16 %v1585
    %v2441 = vunpack.c.h.b16 %v1585
    %v2442 = vunpack.c.l.b16 %v1586
    %v2443 = vunpack.c.h.b16 %v1586
    %v2444 = vunpack.c.l.b16 %v1587
    %v2445 = vunpack.c.h.b16 %v1587
    %v2446 = vunpack.c.l.b16 %v1588
    %v2447 = vunpack.c.h.b16 %v1588
    %v2448 = vunpack.c.l.b16 %v1589
    %v2449 = vunpack.c.h.b16 %v1589
    %v2450 = vunpack.c.l.b16 %v1590
    %v2451 = vunpack.c.h.b16 %v1590
    %v2452 = vunpack.c.l.b16 %v1591
    %v2453 = vunpack.c.h.b16 %v1591
    %v2454 = vunpack.c.l.b16 %v1592
    %v2455 = vunpack.c.h.b16 %v1592
    %v2456 = vunpack.c.l.b16 %v1593
    %v2457 = vunpack.c.h.b16 %v1593
    %v2458 = vunpack.c.l.b16 %v1594
    %v2459 = vunpack.c.h.b16 %v1594
    %v2460 = vpack.c.b16 %v1890, %v1884
    %v2461 = vpack.c.b16 %v1891, %v1885
    %v2462 = vpack.c.b16 %v1892, %v1886
    %v2463 = vpack.c.b16 %v1893, %v1887
    %v2464 = vpack.c.b16 %v1894, %v1888
    %v2465 = vpack.c.b16 %v1895, %v1889
    %v2466 = vpack.c.b16 %v1902, %v1896
    %v2467 = vpack.c.b16 %v1903, %v1897
    %v2468 = vpack.c.b16 %v1904, %v1898
    %v2469 = vpack.c.b16 %v1905, %v1899
    %v2470 = vpack.c.b16 %v1906, %v1900
    %v2471 = vpack.c.b16 %v1907, %v1901
    %v2472 = vpack.c.b16 %v1914, %v1908
    %v2473 = vpack.c.b16 %v1915, %v1909
    %v2474 = vpack.c.b16 %v1916, %v1910
    %v2475 = vpack.c.b16 %v1917, %v1911
    %v2476 = vpack.c.b16 %v1918, %v1912
    %v2477 = vpack.c.b16 %v1919, %v1913
    %v2478 = vpack.c.b16 %v1926, %v1920
    %v2479 = vpack.c.b16 %v1927, %v1921
    %v2480 = vpack.c.b16 %v1928, %v1922
    %v2481 = vpack.c.b16 %v1929, %v1923
    %v2482 = vpack.c.b16 %v1930, %v1924
    %v2483 = vpack.c.b16 %v1931, %v1925
    %v2484 = vpack.c.b16 %v1938, %v1932
    %v2485 = vpack.c.b16 %v1939, %v1933
    %v2486 = vpack.c.b16 %v1940, %v1934
    %v2487 = vpack.c.b16 %v1941, %v1935
    %v2488 = vpack.c.b16 %v1942, %v1936
    %v2489 = vpack.c.b16 %v1943, %v1937
    %v2490 = vpack.c.b16 %v1950, %v1944
    %v2491 = vpack.c.b16 %v1951, %v1945
    %v2492 = vpack.c.b16 %v1952, %v1946
    %v2493 = vpack.c.b16 %v1953, %v1947
    %v2494 = vpack.c.b16 %v1954, %v1948
    %v2495 = vpack.c.b16 %v1955, %v1949
    %v2496 = vpack.c.b16 %v1962, %v1956
    %v2497 = vpack.c.b16 %v1963, %v1957
    %v2498 = vpack.c.b16 %v1964, %v1958
    %v2499 = vpack.c.b16 %v1965, %v1959
    %v2500 = vpack.c.b16 %v1966, %v1960
    %v2501 = vpack.c.b16 %v1967, %v1961
    %v2502 = vpack.c.b16 %v1974, %v1968
    %v2503 = vpack.c.b16 %v1975, %v1969
    %v2504 = vpack.c.b16 %v1976, %v1970
    %v2505 = vpack.c.b16 %v1977, %v1971
    %v2506 = vpack.c.b16 %v1978, %v1972
    %v2507 = vpack.c.b16 %v1979, %v1973
    %v2508 = vpack.c.b16 %v1986, %v1980
    %v2509 = vpack.c.b16 %v1987, %v1981
    %v2510 = vpack.c.b16 %v1988, %v1982
    %v2511 = vpack.c.b16 %v1989, %v1983
    %v2512 = vpack.c.b16 %v1990, %v1984
    %v2513 = vpack.c.b16 %v1991, %v1985
    %v2514 = vpack.c.b16 %v1998, %v1992
    %v2515 = vpack.c.b16 %v1999, %v1993
    %v2516 = vpack.c.b16 %v2000, %v1994
    %v2517 = vpack.c.b16 %v2001, %v1995
    %v2518 = vpack.c.b16 %v2002, %v1996
    %v2519 = vpack.c.b16 %v2003, %v1997
    %v2520 = vpack.c.b16 %v2010, %v2004
    %v2521 = vpack.c.b16 %v2011, %v2005
    %v2522 = vpack.c.b16 %v2012, %v2006
    %v2523 = vpack.c.b16 %v2013, %v2007
    %v2524 = vpack.c.b16 %v2014, %v2008
    %v2525 = vpack.c.b16 %v2015, %v2009
    %v2526 = vpack.c.b16 %v2022, %v2016
    %v2527 = vpack.c.b16 %v2023, %v2017
    %v2528 = vpack.c.b16 %v2024, %v2018
    %v2529 = vpack.c.b16 %v2025, %v2019
    %v2530 = vpack.c.b16 %v2026, %v2020
    %v2531 = vpack.c.b16 %v2027, %v2021
    %v2532 = vpack.c.b16 %v2034, %v2028
    %v2533 = vpack.c.b16 %v2035, %v2029
    %v2534 = vpack.c.b16 %v2036, %v2030
    %v2535 = vpack.c.b16 %v2037, %v2031
    %v2536 = vpack.c.b16 %v2038, %v2032
    %v2537 = vpack.c.b16 %v2039, %v2033
    %v2538 = vpack.c.b16 %v2046, %v2040
    %v2539 = vpack.c.b16 %v2047, %v2041
    %v2540 = vpack.c.b16 %v2048, %v2042
    %v2541 = vpack.c.b16 %v2049, %v2043
    %v2542 = vpack.c.b16 %v2050, %v2044
    %v2543 = vpack.c.b16 %v2051, %v2045
    %v2544 = vpack.c.b16 %v2058, %v2052
    %v2545 = vpack.c.b16 %v2059, %v2053
    %v2546 = vpack.c.b16 %v2060, %v2054
    %v2547 = vpack.c.b16 %v2061, %v2055
    %v2548 = vpack.c.b16 %v2062, %v2056
    %v2549 = vpack.c.b16 %v2063, %v2057
    %v2550 = vpack.c.b16 %v2070, %v2064
    %v2551 = vpack.c.b16 %v2071, %v2065
    %v2552 = vpack.c.b16 %v2072, %v2066
    %v2553 = vpack.c.b16 %v2073, %v2067
    %v2554 = vpack.c.b16 %v2074, %v2068
    %v2555 = vpack.c.b16 %v2075, %v2069
    %v2556 = vpack.c.b16 %v2082, %v2076
    %v2557 = vpack.c.b16 %v2083, %v2077
    %v2558 = vpack.c.b16 %v2084, %v2078
    %v2559 = vpack.c.b16 %v2085, %v2079
    %v2560 = vpack.c.b16 %v2086, %v2080
    %v2561 = vpack.c.b16 %v2087, %v2081
    %v2562 = vpack.c.b16 %v2094, %v2088
    %v2563 = vpack.c.b16 %v2095, %v2089
    %v2564 = vpack.c.b16 %v2096, %v2090
    %v2565 = vpack.c.b16 %v2097, %v2091
    %v2566 = vpack.c.b16 %v2098, %v2092
    %v2567 = vpack.c.b16 %v2099, %v2093
    %v2568 = vpack.c.b16 %v2106, %v2100
    %v2569 = vpack.c.b16 %v2107, %v2101
    %v2570 = vpack.c.b16 %v2108, %v2102
    %v2571 = vpack.c.b16 %v2109, %v2103
    %v2572 = vpack.c.b16 %v2110, %v2104
    %v2573 = vpack.c.b16 %v2111, %v2105
    %v2574 = vpack.c.b16 %v2118, %v2112
    %v2575 = vpack.c.b16 %v2119, %v2113
    %v2576 = vpack.c.b16 %v2120, %v2114
    %v2577 = vpack.c.b16 %v2121, %v2115
    %v2578 = vpack.c.b16 %v2122, %v2116
    %v2579 = vpack.c.b16 %v2123, %v2117
    %v2580 = vpack.c.b16 %v2130, %v2124
    %v2581 = vpack.c.b16 %v2131, %v2125
    %v2582 = vpack.c.b16 %v2132, %v2126
    %v2583 = vpack.c.b16 %v2133, %v2127
    %v2584 = vpack.c.b16 %v2134, %v2128
    %v2585 = vpack.c.b16 %v2135, %v2129
    %v2586 = vpack.c.b16 %v2142, %v2136
    %v2587 = vpack.c.b16 %v2143, %v2137
    %v2588 = vpack.c.b16 %v2144, %v2138
    %v2589 = vpack.c.b16 %v2145, %v2139
    %v2590 = vpack.c.b16 %v2146, %v2140
    %v2591 = vpack.c.b16 %v2147, %v2141
    %v2592 = vpack.c.b16 %v2154, %v2148
    %v2593 = vpack.c.b16 %v2155, %v2149
    %v2594 = vpack.c.b16 %v2156, %v2150
    %v2595 = vpack.c.b16 %v2157, %v2151
    %v2596 = vpack.c.b16 %v2158, %v2152
    %v2597 = vpack.c.b16 %v2159, %v2153
    %v2598 = vpack.c.b16 %v2166, %v2160
    %v2599 = vpack.c.b16 %v2167, %v2161
    %v2600 = vpack.c.b16 %v2168, %v2162
    %v2601 = vpack.c.b16 %v2169, %v2163
    %v2602 = vpack.c.b16 %v2170, %v2164
    %v2603 = vpack.c.b16 %v2171, %v2165
    %v2604 = vpack.c.b16 %v2178, %v2172
    %v2605 = vpack.c.b16 %v2179, %v2173
    %v2606 = vpack.c.b16 %v2180, %v2174
    %v2607 = vpack.c.b16 %v2181, %v2175
    %v2608 = vpack.c.b16 %v2182, %v2176
    %v2609 = vpack.c.b16 %v2183, %v2177
    %v2610 = vpack.c.b16 %v2190, %v2184
    %v2611 = vpack.c.b16 %v2191, %v2185
    %v2612 = vpack.c.b16 %v2192, %v2186
    %v2613 = vpack.c.b16 %v2193, %v2187
    %v2614 = vpack.c.b16 %v2194, %v2188
    %v2615 = vpack.c.b16 %v2195, %v2189
    %v2616 = vpack.c.b16 %v2202, %v2196
    %v2617 = vpack.c.b16 %v2203, %v2197
    %v2618 = vpack.c.b16 %v2204, %v2198
    %v2619 = vpack.c.b16 %v2205, %v2199
    %v2620 = vpack.c.b16 %v2206, %v2200
    %v2621 = vpack.c.b16 %v2207, %v2201
    %v2622 = vpack.c.b16 %v2214, %v2208
    %v2623 = vpack.c.b16 %v2215, %v2209
    %v2624 = vpack.c.b16 %v2216, %v2210
    %v2625 = vpack.c.b16 %v2217, %v2211
    %v2626 = vpack.c.b16 %v2218, %v2212
    %v2627 = vpack.c.b16 %v2219, %v2213
    %v2628 = vpack.c.b16 %v2226, %v2220
    %v2629 = vpack.c.b16 %v2227, %v2221
    %v2630 = vpack.c.b16 %v2228, %v2222
    %v2631 = vpack.c.b16 %v2229, %v2223
    %v2632 = vpack.c.b16 %v2230, %v2224
    %v2633 = vpack.c.b16 %v2231, %v2225
    %v2634 = vpack.c.b16 %v2238, %v2232
    %v2635 = vpack.c.b16 %v2239, %v2233
    %v2636 = vpack.c.b16 %v2240, %v2234
    %v2637 = vpack.c.b16 %v2241, %v2235
    %v2638 = vpack.c.b16 %v2242, %v2236
    %v2639 = vpack.c.b16 %v2243, %v2237
    %v2640 = vpack.c.b16 %v2250, %v2244
    %v2641 = vpack.c.b16 %v2251, %v2245
    %v2642 = vpack.c.b16 %v2252, %v2246
    %v2643 = vpack.c.b16 %v2253, %v2247
    %v2644 = vpack.c.b16 %v2254, %v2248
    %v2645 = vpack.c.b16 %v2255, %v2249
    %v2646 = vpack.c.b16 %v2262, %v2256
    %v2647 = vpack.c.b16 %v2263, %v2257
    %v2648 = vpack.c.b16 %v2264, %v2258
    %v2649 = vpack.c.b16 %v2265, %v2259
    %v2650 = vpack.c.b16 %v2266, %v2260
    %v2651 = vpack.c.b16 %v2267, %v2261
    %v2652 = vpack.c.b16 %v2274, %v2268
    %v2653 = vpack.c.b16 %v2275, %v2269
    %v2654 = vpack.c.b16 %v2276, %v2270
    %v2655 = vpack.c.b16 %v2277, %v2271
    %v2656 = vpack.c.b16 %v2278, %v2272
    %v2657 = vpack.c.b16 %v2279, %v2273
    %v2658 = vpack.c.b16 %v2286, %v2280
    %v2659 = vpack.c.b16 %v2287, %v2281
    %v2660 = vpack.c.b16 %v2288, %v2282
    %v2661 = vpack.c.b16 %v2289, %v2283
    %v2662 = vpack.c.b16 %v2290, %v2284
    %v2663 = vpack.c.b16 %v2291, %v2285
    %v2664 = vpack.c.b16 %v2298, %v2292
    %v2665 = vpack.c.b16 %v2299, %v2293
    %v2666 = vpack.c.b16 %v2300, %v2294
    %v2667 = vpack.c.b16 %v2301, %v2295
    %v2668 = vpack.c.b16 %v2302, %v2296
    %v2669 = vpack.c.b16 %v2303, %v2297
    %v2670 = vpack.c.b16 %v2310, %v2304
    %v2671 = vpack.c.b16 %v2311, %v2305
    %v2672 = vpack.c.b16 %v2312, %v2306
    %v2673 = vpack.c.b16 %v2313, %v2307
    %v2674 = vpack.c.b16 %v2314, %v2308
    %v2675 = vpack.c.b16 %v2315, %v2309
    %v2676 = vpack.c.b16 %v2322, %v2316
    %v2677 = vpack.c.b16 %v2323, %v2317
    %v2678 = vpack.c.b16 %v2324, %v2318
    %v2679 = vpack.c.b16 %v2325, %v2319
    %v2680 = vpack.c.b16 %v2326, %v2320
    %v2681 = vpack.c.b16 %v2327, %v2321
    %v2682 = vpack.c.b16 %v2334, %v2328
    %v2683 = vpack.c.b16 %v2335, %v2329
    %v2684 = vpack.c.b16 %v2336, %v2330
    %v2685 = vpack.c.b16 %v2337, %v2331
    %v2686 = vpack.c.b16 %v2338, %v2332
    %v2687 = vpack.c.b16 %v2339, %v2333
    %v2688 = vpack.c.b16 %v2346, %v2340
    %v2689 = vpack.c.b16 %v2347, %v2341
    %v2690 = vpack.c.b16 %v2348, %v2342
    %v2691 = vpack.c.b16 %v2349, %v2343
    %v2692 = vpack.c.b16 %v2350, %v2344
    %v2693 = vpack.c.b16 %v2351, %v2345
    %v2694 = vpack.c.b16 %v2358, %v2352
    %v2695 = vpack.c.b16 %v2359, %v2353
    %v2696 = vpack.c.b16 %v2360, %v2354
    %v2697 = vpack.c.b16 %v2361, %v2355
    %v2698 = vpack.c.b16 %v2362, %v2356
    %v2699 = vpack.c.b16 %v2363, %v2357
    %v2700 = vpack.c.b16 %v2370, %v2364
    %v2701 = vpack.c.b16 %v2371, %v2365
    %v2702 = vpack.c.b16 %v2372, %v2366
    %v2703 = vpack.c.b16 %v2373, %v2367
    %v2704 = vpack.c.b16 %v2374, %v2368
    %v2705 = vpack.c.b16 %v2375, %v2369
    %v2706 = vpack.c.b16 %v2382, %v2376
    %v2707 = vpack.c.b16 %v2383, %v2377
    %v2708 = vpack.c.b16 %v2384, %v2378
    %v2709 = vpack.c.b16 %v2385, %v2379
    %v2710 = vpack.c.b16 %v2386, %v2380
    %v2711 = vpack.c.b16 %v2387, %v2381
    %v2712 = vpack.c.b16 %v2394, %v2388
    %v2713 = vpack.c.b16 %v2395, %v2389
    %v2714 = vpack.c.b16 %v2396, %v2390
    %v2715 = vpack.c.b16 %v2397, %v2391
    %v2716 = vpack.c.b16 %v2398, %v2392
    %v2717 = vpack.c.b16 %v2399, %v2393
    %v2718 = vpack.c.b16 %v2406, %v2400
    %v2719 = vpack.c.b16 %v2407, %v2401
    %v2720 = vpack.c.b16 %v2408, %v2402
    %v2721 = vpack.c.b16 %v2409, %v2403
    %v2722 = vpack.c.b16 %v2410, %v2404
    %v2723 = vpack.c.b16 %v2411, %v2405
    %v2724 = vpack.c.b16 %v2418, %v2412
    %v2725 = vpack.c.b16 %v2419, %v2413
    %v2726 = vpack.c.b16 %v2420, %v2414
    %v2727 = vpack.c.b16 %v2421, %v2415
    %v2728 = vpack.c.b16 %v2422, %v2416
    %v2729 = vpack.c.b16 %v2423, %v2417
    %v2730 = vpack.c.b16 %v2430, %v2424
    %v2731 = vpack.c.b16 %v2431, %v2425
    %v2732 = vpack.c.b16 %v2432, %v2426
    %v2733 = vpack.c.b16 %v2433, %v2427
    %v2734 = vpack.c.b16 %v2434, %v2428
    %v2735 = vpack.c.b16 %v2435, %v2429
    %v2736 = vpack.c.b16 %v2442, %v2436
    %v2737 = vpack.c.b16 %v2443, %v2437
    %v2738 = vpack.c.b16 %v2444, %v2438
    %v2739 = vpack.c.b16 %v2445, %v2439
    %v2740 = vpack.c.b16 %v2446, %v2440
    %v2741 = vpack.c.b16 %v2447, %v2441
    %v2742 = vpack.c.b16 %v2454, %v2448
    %v2743 = vpack.c.b16 %v2455, %v2449
    %v2744 = vpack.c.b16 %v2456, %v2450
    %v2745 = vpack.c.b16 %v2457, %v2451
    %v2746 = vpack.c.b16 %v2458, %v2452
    %v2747 = vpack.c.b16 %v2459, %v2453
    %v3037 = vlaneseq
    %v3038 = vshrl.u32 %v3037, 7
    %v3039 = vsub.s32 0, %v3038
    %v3040 = vrot.slane %v1595, %v3039
    %v3041 = vlaneseq
    %v3042 = vshrl.u32 %v3041, 7
    %v3043 = vsub.s32 1, %v3042
    %v3044 = vrot.slane %v1595, %v3043
    %v3045 = vlaneseq
    %v3046 = vshrl.u32 %v3045, 7
    %v3047 = vsub.s32 2, %v3046
    %v3048 = vrot.slane %v1595, %v3047
    %v3049 = vlaneseq
    %v3050 = vshrl.u32 %v3049, 7
    %v3051 = vsub.s32 3, %v3050
    %v3052 = vrot.slane %v1595, %v3051
    %v3053 = vlaneseq
    %v3054 = vshrl.u32 %v3053, 7
    %v3055 = vsub.s32 4, %v3054
    %v3056 = vrot.slane %v1595, %v3055
    %v3057 = vlaneseq
    %v3058 = vshrl.u32 %v3057, 7
    %v3059 = vsub.s32 5, %v3058
    %v3060 = vrot.slane %v1595, %v3059
    %3067 = vmatprep.subr.bf16.mxu0 %v2461
    %3068 = vmatpush1.bf16.msra.mxu0 %v2460
    %3069 = vmatprep.subr.bf16.mxu0 %v2467
    %3070 = vmatpush1.bf16.msra.mxu0 %v2466
    %3071 = vmatprep.subr.bf16.mxu0 %v2473
    %3072 = vmatpush1.bf16.msra.mxu0 %v2472
    %3073 = vmatprep.subr.bf16.mxu0 %v2479
    %3074 = vmatpush1.bf16.msra.mxu0 %v2478
    %3075 = vmatprep.subr.bf16.mxu0 %v2485
    %3076 = vmatpush1.bf16.msra.mxu0 %v2484
    %3077 = vmatprep.subr.bf16.mxu0 %v2491
    %3078 = vmatpush1.bf16.msra.mxu0 %v2490
    %3079 = vmatprep.subr.bf16.mxu0 %v2497
    %3080 = vmatpush1.bf16.msra.mxu0 %v2496
    %3081 = vmatprep.subr.bf16.mxu0 %v2503
    %3082 = vmatpush1.bf16.msra.mxu0 %v2502
    %3083 = vmatprep.subr.bf16.mxu0 %v2509
    %3084 = vmatpush1.bf16.msra.mxu0 %v2508
    %3085 = vmatprep.subr.bf16.mxu0 %v2515
    %3086 = vmatpush1.bf16.msra.mxu0 %v2514
    %3087 = vmatprep.subr.bf16.mxu0 %v2521
    %3088 = vmatpush1.bf16.msra.mxu0 %v2520
    %3089 = vmatprep.subr.bf16.mxu0 %v2527
    %3090 = vmatpush1.bf16.msra.mxu0 %v2526
    %3091 = vmatprep.subr.bf16.mxu0 %v2533
    %3092 = vmatpush1.bf16.msra.mxu0 %v2532
    %3093 = vmatprep.subr.bf16.mxu0 %v2539
    %3094 = vmatpush1.bf16.msra.mxu0 %v2538
    %3095 = vmatprep.subr.bf16.mxu0 %v2545
    %3096 = vmatpush1.bf16.msra.mxu0 %v2544
    %3097 = vmatprep.subr.bf16.mxu0 %v2551
    %3098 = vmatpush1.bf16.msra.mxu0 %v2550
    %3099 = vmatprep.mubr.bf16.mxu0 %v1302
    %3100 = vmatmul.mubr.bf16.gmra.mrb[0].mxu0 %v1301
    %v3101 = vpop.f32.mrb[0].mxu0
    %v3102 = vadd.f32 %v3040, %v3101
    %v3103 = vpop.f32.mrb[0].mxu0
    %v3104 = vadd.f32 %v3044, %v3103
    %v3105 = vpop.f32.mrb[0].mxu0
    %v3106 = vpop.f32.mrb[0].mxu0
    %3107 = vdwg.mxu0
    %3108 = vmatprep.subr.bf16.mxu0 %v2557
    %3109 = vmatpush1.bf16.msra.mxu0 %v2556
    %3110 = vmatprep.subr.bf16.mxu0 %v2563
    %3111 = vmatpush1.bf16.msra.mxu0 %v2562
    %3112 = vmatprep.subr.bf16.mxu0 %v2569
    %3113 = vmatpush1.bf16.msra.mxu0 %v2568
    %3114 = vmatprep.subr.bf16.mxu0 %v2575
    %3115 = vmatpush1.bf16.msra.mxu0 %v2574
    %3116 = vmatprep.subr.bf16.mxu0 %v2581
    %3117 = vmatpush1.bf16.msra.mxu0 %v2580
    %3118 = vmatprep.subr.bf16.mxu0 %v2587
    %3119 = vmatpush1.bf16.msra.mxu0 %v2586
    %3120 = vmatprep.subr.bf16.mxu0 %v2593
    %3121 = vmatpush1.bf16.msra.mxu0 %v2592
    %3122 = vmatprep.subr.bf16.mxu0 %v2599
    %3123 = vmatpush1.bf16.msra.mxu0 %v2598
    %3124 = vmatprep.subr.bf16.mxu0 %v2605
    %3125 = vmatpush1.bf16.msra.mxu0 %v2604
    %3126 = vmatprep.subr.bf16.mxu0 %v2611
    %3127 = vmatpush1.bf16.msra.mxu0 %v2610
    %3128 = vmatprep.subr.bf16.mxu0 %v2617
    %3129 = vmatpush1.bf16.msra.mxu0 %v2616
    %3130 = vmatprep.subr.bf16.mxu0 %v2623
    %3131 = vmatpush1.bf16.msra.mxu0 %v2622
    %3132 = vmatprep.subr.bf16.mxu0 %v2629
    %3133 = vmatpush1.bf16.msra.mxu0 %v2628
    %3134 = vmatprep.subr.bf16.mxu0 %v2635
    %3135 = vmatpush1.bf16.msra.mxu0 %v2634
    %3136 = vmatprep.subr.bf16.mxu0 %v2641
    %3137 = vmatpush1.bf16.msra.mxu0 %v2640
    %3138 = vmatprep.subr.bf16.mxu0 %v2647
    %3139 = vmatpush1.bf16.msra.mxu0 %v2646
    %3140 = vmatprep.mubr.bf16.mxu0 %v1304
    %3141 = vmatmul.mubr.bf16.gmra.mrb[0].mxu0 %v1303
    %v3142 = vpop.f32.mrb[0].mxu0
    %v3143 = vadd.f32 %v3102, %v3142
    %v3144 = vpop.f32.mrb[0].mxu0
    %v3145 = vadd.f32 %v3104, %v3144
    %v3146 = vpop.f32.mrb[0].mxu0
    %v3147 = vpop.f32.mrb[0].mxu0
    %3148 = vdwg.mxu0
    %3149 = vmatprep.subr.bf16.mxu0 %v2653
    %3150 = vmatpush1.bf16.msra.mxu0 %v2652
    %3151 = vmatprep.subr.bf16.mxu0 %v2659
    %3152 = vmatpush1.bf16.msra.mxu0 %v2658
    %3153 = vmatprep.subr.bf16.mxu0 %v2665
    %3154 = vmatpush1.bf16.msra.mxu0 %v2664
    %3155 = vmatprep.subr.bf16.mxu0 %v2671
    %3156 = vmatpush1.bf16.msra.mxu0 %v2670
    %3157 = vmatprep.subr.bf16.mxu0 %v2677
    %3158 = vmatpush1.bf16.msra.mxu0 %v2676
    %3159 = vmatprep.subr.bf16.mxu0 %v2683
    %3160 = vmatpush1.bf16.msra.mxu0 %v2682
    %3161 = vmatprep.subr.bf16.mxu0 %v2689
    %3162 = vmatpush1.bf16.msra.mxu0 %v2688
    %3163 = vmatprep.subr.bf16.mxu0 %v2695
    %3164 = vmatpush1.bf16.msra.mxu0 %v2694
    %3165 = vmatprep.subr.bf16.mxu0 %v2701
    %3166 = vmatpush1.bf16.msra.mxu0 %v2700
    %3167 = vmatprep.subr.bf16.mxu0 %v2707
    %3168 = vmatpush1.bf16.msra.mxu0 %v2706
    %3169 = vmatprep.subr.bf16.mxu0 %v2713
    %3170 = vmatpush1.bf16.msra.mxu0 %v2712
    %3171 = vmatprep.subr.bf16.mxu0 %v2719
    %3172 = vmatpush1.bf16.msra.mxu0 %v2718
    %3173 = vmatprep.subr.bf16.mxu0 %v2725
    %3174 = vmatpush1.bf16.msra.mxu0 %v2724
    %3175 = vmatprep.subr.bf16.mxu0 %v2731
    %3176 = vmatpush1.bf16.msra.mxu0 %v2730
    %3177 = vmatprep.subr.bf16.mxu0 %v2737
    %3178 = vmatpush1.bf16.msra.mxu0 %v2736
    %3179 = vmatprep.subr.bf16.mxu0 %v2743
    %3180 = vmatpush1.bf16.msra.mxu0 %v2742
    %3181 = vmatprep.mubr.bf16.mxu0 %v1306
    %3182 = vmatmul.mubr.bf16.gmra.mrb[0].mxu0 %v1305
    %v3183 = vpop.f32.mrb[0].mxu0
    %v3184 = vadd.f32 %v3143, %v3183
    %v3185 = vpop.f32.mrb[0].mxu0
    %v3186 = vadd.f32 %v3145, %v3185
    %v3187 = vpop.f32.mrb[0].mxu0
    %v3188 = vpop.f32.mrb[0].mxu0
    %3189 = vdwg.mxu0
    %3190 = vmatprep.subr.bf16.mxu0 %v2463
    %3191 = vmatpush1.bf16.msra.mxu0 %v2462
    %3192 = vmatprep.subr.bf16.mxu0 %v2469
    %3193 = vmatpush1.bf16.msra.mxu0 %v2468
    %3194 = vmatprep.subr.bf16.mxu0 %v2475
    %3195 = vmatpush1.bf16.msra.mxu0 %v2474
    %3196 = vmatprep.subr.bf16.mxu0 %v2481
    %3197 = vmatpush1.bf16.msra.mxu0 %v2480
    %3198 = vmatprep.subr.bf16.mxu0 %v2487
    %3199 = vmatpush1.bf16.msra.mxu0 %v2486
    %3200 = vmatprep.subr.bf16.mxu0 %v2493
    %3201 = vmatpush1.bf16.msra.mxu0 %v2492
    %3202 = vmatprep.subr.bf16.mxu0 %v2499
    %3203 = vmatpush1.bf16.msra.mxu0 %v2498
    %3204 = vmatprep.subr.bf16.mxu0 %v2505
    %3205 = vmatpush1.bf16.msra.mxu0 %v2504
    %3206 = vmatprep.subr.bf16.mxu0 %v2511
    %3207 = vmatpush1.bf16.msra.mxu0 %v2510
    %3208 = vmatprep.subr.bf16.mxu0 %v2517
    %3209 = vmatpush1.bf16.msra.mxu0 %v2516
    %3210 = vmatprep.subr.bf16.mxu0 %v2523
    %3211 = vmatpush1.bf16.msra.mxu0 %v2522
    %3212 = vmatprep.subr.bf16.mxu0 %v2529
    %3213 = vmatpush1.bf16.msra.mxu0 %v2528
    %3214 = vmatprep.subr.bf16.mxu0 %v2535
    %3215 = vmatpush1.bf16.msra.mxu0 %v2534
    %3216 = vmatprep.subr.bf16.mxu0 %v2541
    %3217 = vmatpush1.bf16.msra.mxu0 %v2540
    %3218 = vmatprep.subr.bf16.mxu0 %v2547
    %3219 = vmatpush1.bf16.msra.mxu0 %v2546
    %3220 = vmatprep.subr.bf16.mxu0 %v2553
    %3221 = vmatpush1.bf16.msra.mxu0 %v2552
    %3222 = vmatprep.mubr.bf16.mxu0 %v1302
    %3223 = vmatmul.mubr.bf16.gmra.mrb[0].mxu0 %v1301
    %v3224 = vpop.f32.mrb[0].mxu0
    %v3225 = vadd.f32 %v3048, %v3224
    %v3226 = vpop.f32.mrb[0].mxu0
    %v3227 = vadd.f32 %v3052, %v3226
    %v3228 = vpop.f32.mrb[0].mxu0
    %v3229 = vpop.f32.mrb[0].mxu0
    %3230 = vdwg.mxu0
    %3231 = vmatprep.subr.bf16.mxu0 %v2559
    %3232 = vmatpush1.bf16.msra.mxu0 %v2558
    %3233 = vmatprep.subr.bf16.mxu0 %v2565
    %3234 = vmatpush1.bf16.msra.mxu0 %v2564
    %3235 = vmatprep.subr.bf16.mxu0 %v2571
    %3236 = vmatpush1.bf16.msra.mxu0 %v2570
    %3237 = vmatprep.subr.bf16.mxu0 %v2577
    %3238 = vmatpush1.bf16.msra.mxu0 %v2576
    %3239 = vmatprep.subr.bf16.mxu0 %v2583
    %3240 = vmatpush1.bf16.msra.mxu0 %v2582
    %3241 = vmatprep.subr.bf16.mxu0 %v2589
    %3242 = vmatpush1.bf16.msra.mxu0 %v2588
    %3243 = vmatprep.subr.bf16.mxu0 %v2595
    %3244 = vmatpush1.bf16.msra.mxu0 %v2594
    %3245 = vmatprep.subr.bf16.mxu0 %v2601
    %3246 = vmatpush1.bf16.msra.mxu0 %v2600
    %3247 = vmatprep.subr.bf16.mxu0 %v2607
    %3248 = vmatpush1.bf16.msra.mxu0 %v2606
    %3249 = vmatprep.subr.bf16.mxu0 %v2613
    %3250 = vmatpush1.bf16.msra.mxu0 %v2612
    %3251 = vmatprep.subr.bf16.mxu0 %v2619
    %3252 = vmatpush1.bf16.msra.mxu0 %v2618
    %3253 = vmatprep.subr.bf16.mxu0 %v2625
    %3254 = vmatpush1.bf16.msra.mxu0 %v2624
    %3255 = vmatprep.subr.bf16.mxu0 %v2631
    %3256 = vmatpush1.bf16.msra.mxu0 %v2630
    %3257 = vmatprep.subr.bf16.mxu0 %v2637
    %3258 = vmatpush1.bf16.msra.mxu0 %v2636
    %3259 = vmatprep.subr.bf16.mxu0 %v2643
    %3260 = vmatpush1.bf16.msra.mxu0 %v2642
    %3261 = vmatprep.subr.bf16.mxu0 %v2649
    %3262 = vmatpush1.bf16.msra.mxu0 %v2648
    %3263 = vmatprep.mubr.bf16.mxu0 %v1304
    %3264 = vmatmul.mubr.bf16.gmra.mrb[0].mxu0 %v1303
    %v3265 = vpop.f32.mrb[0].mxu0
    %v3266 = vadd.f32 %v3225, %v3265
    %v3267 = vpop.f32.mrb[0].mxu0
    %v3268 = vadd.f32 %v3227, %v3267
    %v3269 = vpop.f32.mrb[0].mxu0
    %v3270 = vpop.f32.mrb[0].mxu0
    %3271 = vdwg.mxu0
    %3272 = vmatprep.subr.bf16.mxu0 %v2655
    %3273 = vmatpush1.bf16.msra.mxu0 %v2654
    %3274 = vmatprep.subr.bf16.mxu0 %v2661
    %3275 = vmatpush1.bf16.msra.mxu0 %v2660
    %3276 = vmatprep.subr.bf16.mxu0 %v2667
    %3277 = vmatpush1.bf16.msra.mxu0 %v2666
    %3278 = vmatprep.subr.bf16.mxu0 %v2673
    %3279 = vmatpush1.bf16.msra.mxu0 %v2672
    %3280 = vmatprep.subr.bf16.mxu0 %v2679
    %3281 = vmatpush1.bf16.msra.mxu0 %v2678
    %3282 = vmatprep.subr.bf16.mxu0 %v2685
    %3283 = vmatpush1.bf16.msra.mxu0 %v2684
    %3284 = vmatprep.subr.bf16.mxu0 %v2691
    %3285 = vmatpush1.bf16.msra.mxu0 %v2690
    %3286 = vmatprep.subr.bf16.mxu0 %v2697
    %3287 = vmatpush1.bf16.msra.mxu0 %v2696
    %3288 = vmatprep.subr.bf16.mxu0 %v2703
    %3289 = vmatpush1.bf16.msra.mxu0 %v2702
    %3290 = vmatprep.subr.bf16.mxu0 %v2709
    %3291 = vmatpush1.bf16.msra.mxu0 %v2708
    %3292 = vmatprep.subr.bf16.mxu0 %v2715
    %3293 = vmatpush1.bf16.msra.mxu0 %v2714
    %3294 = vmatprep.subr.bf16.mxu0 %v2721
    %3295 = vmatpush1.bf16.msra.mxu0 %v2720
    %3296 = vmatprep.subr.bf16.mxu0 %v2727
    %3297 = vmatpush1.bf16.msra.mxu0 %v2726
    %3298 = vmatprep.subr.bf16.mxu0 %v2733
    %3299 = vmatpush1.bf16.msra.mxu0 %v2732
    %3300 = vmatprep.subr.bf16.mxu0 %v2739
    %3301 = vmatpush1.bf16.msra.mxu0 %v2738
    %3302 = vmatprep.subr.bf16.mxu0 %v2745
    %3303 = vmatpush1.bf16.msra.mxu0 %v2744
    %3304 = vmatprep.mubr.bf16.mxu0 %v1306
    %3305 = vmatmul.mubr.bf16.gmra.mrb[0].mxu0 %v1305
    %v3306 = vpop.f32.mrb[0].mxu0
    %v3307 = vadd.f32 %v3266, %v3306
    %v3308 = vpop.f32.mrb[0].mxu0
    %v3309 = vadd.f32 %v3268, %v3308
    %v3310 = vpop.f32.mrb[0].mxu0
    %v3311 = vpop.f32.mrb[0].mxu0
    %3312 = vdwg.mxu0
    %3313 = vmatprep.subr.bf16.mxu0 %v2465
    %3314 = vmatpush1.bf16.msra.mxu0 %v2464
    %3315 = vmatprep.subr.bf16.mxu0 %v2471
    %3316 = vmatpush1.bf16.msra.mxu0 %v2470
    %3317 = vmatprep.subr.bf16.mxu0 %v2477
    %3318 = vmatpush1.bf16.msra.mxu0 %v2476
    %3319 = vmatprep.subr.bf16.mxu0 %v2483
    %3320 = vmatpush1.bf16.msra.mxu0 %v2482
    %3321 = vmatprep.subr.bf16.mxu0 %v2489
    %3322 = vmatpush1.bf16.msra.mxu0 %v2488
    %3323 = vmatprep.subr.bf16.mxu0 %v2495
    %3324 = vmatpush1.bf16.msra.mxu0 %v2494
    %3325 = vmatprep.subr.bf16.mxu0 %v2501
    %3326 = vmatpush1.bf16.msra.mxu0 %v2500
    %3327 = vmatprep.subr.bf16.mxu0 %v2507
    %3328 = vmatpush1.bf16.msra.mxu0 %v2506
    %3329 = vmatprep.subr.bf16.mxu0 %v2513
    %3330 = vmatpush1.bf16.msra.mxu0 %v2512
    %3331 = vmatprep.subr.bf16.mxu0 %v2519
    %3332 = vmatpush1.bf16.msra.mxu0 %v2518
    %3333 = vmatprep.subr.bf16.mxu0 %v2525
    %3334 = vmatpush1.bf16.msra.mxu0 %v2524
    %3335 = vmatprep.subr.bf16.mxu0 %v2531
    %3336 = vmatpush1.bf16.msra.mxu0 %v2530
    %3337 = vmatprep.subr.bf16.mxu0 %v2537
    %3338 = vmatpush1.bf16.msra.mxu0 %v2536
    %3339 = vmatprep.subr.bf16.mxu0 %v2543
    %3340 = vmatpush1.bf16.msra.mxu0 %v2542
    %3341 = vmatprep.subr.bf16.mxu0 %v2549
    %3342 = vmatpush1.bf16.msra.mxu0 %v2548
    %3343 = vmatprep.subr.bf16.mxu0 %v2555
    %3344 = vmatpush1.bf16.msra.mxu0 %v2554
    %3345 = vmatprep.mubr.bf16.mxu0 %v1302
    %3346 = vmatmul.mubr.bf16.gmra.mrb[0].mxu0 %v1301
    %v3347 = vpop.f32.mrb[0].mxu0
    %v3348 = vadd.f32 %v3056, %v3347
    %v3349 = vpop.f32.mrb[0].mxu0
    %v3350 = vadd.f32 %v3060, %v3349
    %v3351 = vpop.f32.mrb[0].mxu0
    %v3352 = vpop.f32.mrb[0].mxu0
    %3353 = vdwg.mxu0
    %3354 = vmatprep.subr.bf16.mxu0 %v2561
    %3355 = vmatpush1.bf16.msra.mxu0 %v2560
    %3356 = vmatprep.subr.bf16.mxu0 %v2567
    %3357 = vmatpush1.bf16.msra.mxu0 %v2566
    %3358 = vmatprep.subr.bf16.mxu0 %v2573
    %3359 = vmatpush1.bf16.msra.mxu0 %v2572
    %3360 = vmatprep.subr.bf16.mxu0 %v2579
    %3361 = vmatpush1.bf16.msra.mxu0 %v2578
    %3362 = vmatprep.subr.bf16.mxu0 %v2585
    %3363 = vmatpush1.bf16.msra.mxu0 %v2584
    %3364 = vmatprep.subr.bf16.mxu0 %v2591
    %3365 = vmatpush1.bf16.msra.mxu0 %v2590
    %3366 = vmatprep.subr.bf16.mxu0 %v2597
    %3367 = vmatpush1.bf16.msra.mxu0 %v2596
    %3368 = vmatprep.subr.bf16.mxu0 %v2603
    %3369 = vmatpush1.bf16.msra.mxu0 %v2602
    %3370 = vmatprep.subr.bf16.mxu0 %v2609
    %3371 = vmatpush1.bf16.msra.mxu0 %v2608
    %3372 = vmatprep.subr.bf16.mxu0 %v2615
    %3373 = vmatpush1.bf16.msra.mxu0 %v2614
    %3374 = vmatprep.subr.bf16.mxu0 %v2621
    %3375 = vmatpush1.bf16.msra.mxu0 %v2620
    %3376 = vmatprep.subr.bf16.mxu0 %v2627
    %3377 = vmatpush1.bf16.msra.mxu0 %v2626
    %3378 = vmatprep.subr.bf16.mxu0 %v2633
    %3379 = vmatpush1.bf16.msra.mxu0 %v2632
    %3380 = vmatprep.subr.bf16.mxu0 %v2639
    %3381 = vmatpush1.bf16.msra.mxu0 %v2638
    %3382 = vmatprep.subr.bf16.mxu0 %v2645
    %3383 = vmatpush1.bf16.msra.mxu0 %v2644
    %3384 = vmatprep.subr.bf16.mxu0 %v2651
    %3385 = vmatpush1.bf16.msra.mxu0 %v2650
    %3386 = vmatprep.mubr.bf16.mxu0 %v1304
    %3387 = vmatmul.mubr.bf16.gmra.mrb[0].mxu0 %v1303
    %v3388 = vpop.f32.mrb[0].mxu0
    %v3389 = vadd.f32 %v3348, %v3388
    %v3390 = vpop.f32.mrb[0].mxu0
    %v3391 = vadd.f32 %v3350, %v3390
    %v3392 = vpop.f32.mrb[0].mxu0
    %v3393 = vpop.f32.mrb[0].mxu0
    %3394 = vdwg.mxu0
    %3395 = vmatprep.subr.bf16.mxu0 %v2657
    %3396 = vmatpush1.bf16.msra.mxu0 %v2656
    %3397 = vmatprep.subr.bf16.mxu0 %v2663
    %3398 = vmatpush1.bf16.msra.mxu0 %v2662
    %3399 = vmatprep.subr.bf16.mxu0 %v2669
    %3400 = vmatpush1.bf16.msra.mxu0 %v2668
    %3401 = vmatprep.subr.bf16.mxu0 %v2675
    %3402 = vmatpush1.bf16.msra.mxu0 %v2674
    %3403 = vmatprep.subr.bf16.mxu0 %v2681
    %3404 = vmatpush1.bf16.msra.mxu0 %v2680
    %3405 = vmatprep.subr.bf16.mxu0 %v2687
    %3406 = vmatpush1.bf16.msra.mxu0 %v2686
    %3407 = vmatprep.subr.bf16.mxu0 %v2693
    %3408 = vmatpush1.bf16.msra.mxu0 %v2692
    %3409 = vmatprep.subr.bf16.mxu0 %v2699
    %3410 = vmatpush1.bf16.msra.mxu0 %v2698
    %3411 = vmatprep.subr.bf16.mxu0 %v2705
    %3412 = vmatpush1.bf16.msra.mxu0 %v2704
    %3413 = vmatprep.subr.bf16.mxu0 %v2711
    %3414 = vmatpush1.bf16.msra.mxu0 %v2710
    %3415 = vmatprep.subr.bf16.mxu0 %v2717
    %3416 = vmatpush1.bf16.msra.mxu0 %v2716
    %3417 = vmatprep.subr.bf16.mxu0 %v2723
    %3418 = vmatpush1.bf16.msra.mxu0 %v2722
    %3419 = vmatprep.subr.bf16.mxu0 %v2729
    %3420 = vmatpush1.bf16.msra.mxu0 %v2728
    %3421 = vmatprep.subr.bf16.mxu0 %v2735
    %3422 = vmatpush1.bf16.msra.mxu0 %v2734
    %3423 = vmatprep.subr.bf16.mxu0 %v2741
    %3424 = vmatpush1.bf16.msra.mxu0 %v2740
    %3425 = vmatprep.subr.bf16.mxu0 %v2747
    %3426 = vmatpush1.bf16.msra.mxu0 %v2746
    %3427 = vmatprep.mubr.bf16.mxu0 %v1306
    %3428 = vmatmul.mubr.bf16.gmra.mrb[0].mxu0 %v1305
    %v3429 = vpop.f32.mrb[0].mxu0
    %v3430 = vadd.f32 %v3389, %v3429
    %v3431 = vpop.f32.mrb[0].mxu0
    %v3432 = vadd.f32 %v3391, %v3431
    %v3433 = vpop.f32.mrb[0].mxu0
    %v3434 = vpop.f32.mrb[0].mxu0
    %3435 = vdwg.mxu0
    %v3436 = vpack.c.bf16 %v3184, %v3184
    %v3437 = vpack.c.bf16 %v3186, %v3186
    %v3438 = vpack.c.bf16 %v3307, %v3307
    %v3439 = vpack.c.bf16 %v3309, %v3309
    %v3440 = vpack.c.bf16 %v3430, %v3430
    %v3441 = vpack.c.bf16 %v3432, %v3432
    %v3442 = vld [vmem:[#allocation4] sm:$0xff]
    %v3443 = vld [vmem:[#allocation4 + $0x8] sm:$0xff]
    %v3444 = vld [vmem:[#allocation4 + $0x10] sm:$0xff]
    %v3445 = vld [vmem:[#allocation4 + $0x18] sm:$0xff]
    %v3446 = vld [vmem:[#allocation4 + $0x20] sm:$0xff]
    %v3447 = vld [vmem:[#allocation4 + $0x28] sm:$0xff]
    %v3448 = vld [vmem:[#allocation4 + $0x30] sm:$0xff]
    %v3449 = vld [vmem:[#allocation4 + $0x38] sm:$0xff]
    %v3450 = vld [vmem:[#allocation4 + $0x40] sm:$0xff]
    %v3451 = vld [vmem:[#allocation4 + $0x48] sm:$0xff]
    %v3452 = vld [vmem:[#allocation4 + $0x50] sm:$0xff]
    %v3453 = vld [vmem:[#allocation4 + $0x58] sm:$0xff]
    %v3454 = vld [vmem:[#allocation4 + $0x60] sm:$0xff]
    %v3455 = vld [vmem:[#allocation4 + $0x68] sm:$0xff]
    %v3456 = vld [vmem:[#allocation4 + $0x70] sm:$0xff]
    %v3457 = vld [vmem:[#allocation4 + $0x78] sm:$0xff]
    %v3458 = vld [vmem:[#allocation4 + $0x80] sm:$0xff]
    %v3459 = vld [vmem:[#allocation4 + $0x88] sm:$0xff]
    %v3460 = vld [vmem:[#allocation4 + $0x90] sm:$0xff]
    %v3461 = vld [vmem:[#allocation4 + $0x98] sm:$0xff]
    %v3462 = vld [vmem:[#allocation4 + $0xa0] sm:$0xff]
    %v3463 = vld [vmem:[#allocation4 + $0xa8] sm:$0xff]
    %v3464 = vld [vmem:[#allocation4 + $0xb0] sm:$0xff]
    %v3465 = vld [vmem:[#allocation4 + $0xb8] sm:$0xff]
    %v3466 = vld [vmem:[#allocation4 + $0xc0] sm:$0xff]
    %v3467 = vld [vmem:[#allocation4 + $0xc8] sm:$0xff]
    %v3468 = vld [vmem:[#allocation4 + $0xd0] sm:$0xff]
    %v3469 = vld [vmem:[#allocation4 + $0xd8] sm:$0xff]
    %v3470 = vld [vmem:[#allocation4 + $0xe0] sm:$0xff]
    %v3471 = vld [vmem:[#allocation4 + $0xe8] sm:$0xff]
    %v3472 = vld [vmem:[#allocation4 + $0xf0] sm:$0xff]
    %v3473 = vld [vmem:[#allocation4 + $0xf8] sm:$0xff]
    %v3474 = vld [vmem:[#allocation4 + $0x100] sm:$0xff]
    %v3475 = vld [vmem:[#allocation4 + $0x108] sm:$0xff]
    %v3476 = vld [vmem:[#allocation4 + $0x110] sm:$0xff]
    %v3477 = vld [vmem:[#allocation4 + $0x118] sm:$0xff]
    %v3478 = vld [vmem:[#allocation4 + $0x120] sm:$0xff]
    %v3479 = vld [vmem:[#allocation4 + $0x128] sm:$0xff]
    %v3480 = vld [vmem:[#allocation4 + $0x130] sm:$0xff]
    %v3481 = vld [vmem:[#allocation4 + $0x138] sm:$0xff]
    %v3482 = vld [vmem:[#allocation4 + $0x140] sm:$0xff]
    %v3483 = vld [vmem:[#allocation4 + $0x148] sm:$0xff]
    %v3484 = vld [vmem:[#allocation4 + $0x150] sm:$0xff]
    %v3485 = vld [vmem:[#allocation4 + $0x158] sm:$0xff]
    %v3486 = vld [vmem:[#allocation4 + $0x160] sm:$0xff]
    %v3487 = vld [vmem:[#allocation4 + $0x168] sm:$0xff]
    %v3488 = vld [vmem:[#allocation4 + $0x170] sm:$0xff]
    %v3489 = vld [vmem:[#allocation4 + $0x178] sm:$0xff]
    %v3490 = vld [vmem:[#allocation4 + $0x180] sm:$0xff]
    %v3491 = vld [vmem:[#allocation4 + $0x188] sm:$0xff]
    %v3492 = vld [vmem:[#allocation4 + $0x190] sm:$0xff]
    %v3493 = vld [vmem:[#allocation4 + $0x198] sm:$0xff]
    %v3494 = vld [vmem:[#allocation4 + $0x1a0] sm:$0xff]
    %v3495 = vld [vmem:[#allocation4 + $0x1a8] sm:$0xff]
    %v3496 = vld [vmem:[#allocation4 + $0x1b0] sm:$0xff]
    %v3497 = vld [vmem:[#allocation4 + $0x1b8] sm:$0xff]
    %v3498 = vld [vmem:[#allocation4 + $0x1c0] sm:$0xff]
    %v3499 = vld [vmem:[#allocation4 + $0x1c8] sm:$0xff]
    %v3500 = vld [vmem:[#allocation4 + $0x1d0] sm:$0xff]
    %v3501 = vld [vmem:[#allocation4 + $0x1d8] sm:$0xff]
    %v3502 = vld [vmem:[#allocation4 + $0x1e0] sm:$0xff]
    %v3503 = vld [vmem:[#allocation4 + $0x1e8] sm:$0xff]
    %v3504 = vld [vmem:[#allocation4 + $0x1f0] sm:$0xff]
    %v3505 = vld [vmem:[#allocation4 + $0x1f8] sm:$0xff]
    %v3506 = vld [vmem:[#allocation4 + $0x200] sm:$0xff]
    %v3507 = vld [vmem:[#allocation4 + $0x208] sm:$0xff]
    %v3508 = vld [vmem:[#allocation4 + $0x210] sm:$0xff]
    %v3509 = vld [vmem:[#allocation4 + $0x218] sm:$0xff]
    %v3510 = vld [vmem:[#allocation4 + $0x220] sm:$0xff]
    %v3511 = vld [vmem:[#allocation4 + $0x228] sm:$0xff]
    %v3512 = vld [vmem:[#allocation4 + $0x230] sm:$0xff]
    %v3513 = vld [vmem:[#allocation4 + $0x238] sm:$0xff]
    %v3514 = vld [vmem:[#allocation4 + $0x240] sm:$0xff]
    %v3515 = vld [vmem:[#allocation4 + $0x248] sm:$0xff]
    %v3516 = vld [vmem:[#allocation4 + $0x250] sm:$0xff]
    %v3517 = vld [vmem:[#allocation4 + $0x258] sm:$0xff]
    %v3518 = vld [vmem:[#allocation4 + $0x260] sm:$0xff]
    %v3519 = vld [vmem:[#allocation4 + $0x268] sm:$0xff]
    %v3520 = vld [vmem:[#allocation4 + $0x270] sm:$0xff]
    %v3521 = vld [vmem:[#allocation4 + $0x278] sm:$0xff]
    %v3522 = vld [vmem:[#allocation4 + $0x280] sm:$0xff]
    %v3523 = vld [vmem:[#allocation4 + $0x288] sm:$0xff]
    %v3524 = vld [vmem:[#allocation4 + $0x290] sm:$0xff]
    %v3525 = vld [vmem:[#allocation4 + $0x298] sm:$0xff]
    %v3526 = vld [vmem:[#allocation4 + $0x2a0] sm:$0xff]
    %v3527 = vld [vmem:[#allocation4 + $0x2a8] sm:$0xff]
    %v3528 = vld [vmem:[#allocation4 + $0x2b0] sm:$0xff]
    %v3529 = vld [vmem:[#allocation4 + $0x2b8] sm:$0xff]
    %v3530 = vld [vmem:[#allocation4 + $0x2c0] sm:$0xff]
    %v3531 = vld [vmem:[#allocation4 + $0x2c8] sm:$0xff]
    %v3532 = vld [vmem:[#allocation4 + $0x2d0] sm:$0xff]
    %v3533 = vld [vmem:[#allocation4 + $0x2d8] sm:$0xff]
    %v3534 = vld [vmem:[#allocation4 + $0x2e0] sm:$0xff]
    %v3535 = vld [vmem:[#allocation4 + $0x2e8] sm:$0xff]
    %v3536 = vld [vmem:[#allocation4 + $0x2f0] sm:$0xff]
    %v3537 = vld [vmem:[#allocation4 + $0x2f8] sm:$0xff]
    %v3538 = vld [vmem:[#allocation4 + $0x300] sm:$0xff]
    %v3539 = vld [vmem:[#allocation4 + $0x308] sm:$0xff]
    %v3540 = vld [vmem:[#allocation4 + $0x310] sm:$0xff]
    %v3541 = vld [vmem:[#allocation4 + $0x318] sm:$0xff]
    %v3542 = vld [vmem:[#allocation4 + $0x320] sm:$0xff]
    %v3543 = vld [vmem:[#allocation4 + $0x328] sm:$0xff]
    %v3544 = vld [vmem:[#allocation4 + $0x330] sm:$0xff]
    %v3545 = vld [vmem:[#allocation4 + $0x338] sm:$0xff]
    %v3546 = vld [vmem:[#allocation4 + $0x340] sm:$0xff]
    %v3547 = vld [vmem:[#allocation4 + $0x348] sm:$0xff]
    %v3548 = vld [vmem:[#allocation4 + $0x350] sm:$0xff]
    %v3549 = vld [vmem:[#allocation4 + $0x358] sm:$0xff]
    %v3550 = vld [vmem:[#allocation4 + $0x360] sm:$0xff]
    %v3551 = vld [vmem:[#allocation4 + $0x368] sm:$0xff]
    %v3552 = vld [vmem:[#allocation4 + $0x370] sm:$0xff]
    %v3553 = vld [vmem:[#allocation4 + $0x378] sm:$0xff]
    %v3554 = vld [vmem:[#allocation4 + $0x380] sm:$0xff]
    %v3555 = vld [vmem:[#allocation4 + $0x388] sm:$0xff]
    %v3556 = vld [vmem:[#allocation4 + $0x390] sm:$0xff]
    %v3557 = vld [vmem:[#allocation4 + $0x398] sm:$0xff]
    %v3558 = vld [vmem:[#allocation4 + $0x3a0] sm:$0xff]
    %v3559 = vld [vmem:[#allocation4 + $0x3a8] sm:$0xff]
    %v3560 = vld [vmem:[#allocation4 + $0x3b0] sm:$0xff]
    %v3561 = vld [vmem:[#allocation4 + $0x3b8] sm:$0xff]
    %v3562 = vld [vmem:[#allocation4 + $0x3c0] sm:$0xff]
    %v3563 = vld [vmem:[#allocation4 + $0x3c8] sm:$0xff]
    %v3564 = vld [vmem:[#allocation4 + $0x3d0] sm:$0xff]
    %v3565 = vld [vmem:[#allocation4 + $0x3d8] sm:$0xff]
    %v3566 = vld [vmem:[#allocation4 + $0x3e0] sm:$0xff]
    %v3567 = vld [vmem:[#allocation4 + $0x3e8] sm:$0xff]
    %v3568 = vld [vmem:[#allocation4 + $0x3f0] sm:$0xff]
    %v3569 = vld [vmem:[#allocation4 + $0x3f8] sm:$0xff]
    %v3570 = vld [vmem:[#allocation4 + $0x400] sm:$0xff]
    %v3571 = vld [vmem:[#allocation4 + $0x408] sm:$0xff]
    %v3572 = vld [vmem:[#allocation4 + $0x410] sm:$0xff]
    %v3573 = vld [vmem:[#allocation4 + $0x418] sm:$0xff]
    %v3574 = vld [vmem:[#allocation4 + $0x420] sm:$0xff]
    %v3575 = vld [vmem:[#allocation4 + $0x428] sm:$0xff]
    %v3576 = vld [vmem:[#allocation4 + $0x430] sm:$0xff]
    %v3577 = vld [vmem:[#allocation4 + $0x438] sm:$0xff]
    %v3578 = vld [vmem:[#allocation4 + $0x440] sm:$0xff]
    %v3579 = vld [vmem:[#allocation4 + $0x448] sm:$0xff]
    %v3580 = vld [vmem:[#allocation4 + $0x450] sm:$0xff]
    %v3581 = vld [vmem:[#allocation4 + $0x458] sm:$0xff]
    %v3582 = vld [vmem:[#allocation4 + $0x460] sm:$0xff]
    %v3583 = vld [vmem:[#allocation4 + $0x468] sm:$0xff]
    %v3584 = vld [vmem:[#allocation4 + $0x470] sm:$0xff]
    %v3585 = vld [vmem:[#allocation4 + $0x478] sm:$0xff]
    %v3586 = vld [vmem:[#allocation4 + $0x480] sm:$0xff]
    %v3587 = vld [vmem:[#allocation4 + $0x488] sm:$0xff]
    %v3588 = vld [vmem:[#allocation4 + $0x490] sm:$0xff]
    %v3589 = vld [vmem:[#allocation4 + $0x498] sm:$0xff]
    %v3590 = vld [vmem:[#allocation4 + $0x4a0] sm:$0xff]
    %v3591 = vld [vmem:[#allocation4 + $0x4a8] sm:$0xff]
    %v3592 = vld [vmem:[#allocation4 + $0x4b0] sm:$0xff]
    %v3593 = vld [vmem:[#allocation4 + $0x4b8] sm:$0xff]
    %v3594 = vld [vmem:[#allocation4 + $0x4c0] sm:$0xff]
    %v3595 = vld [vmem:[#allocation4 + $0x4c8] sm:$0xff]
    %v3596 = vld [vmem:[#allocation4 + $0x4d0] sm:$0xff]
    %v3597 = vld [vmem:[#allocation4 + $0x4d8] sm:$0xff]
    %v3598 = vld [vmem:[#allocation4 + $0x4e0] sm:$0xff]
    %v3599 = vld [vmem:[#allocation4 + $0x4e8] sm:$0xff]
    %v3600 = vld [vmem:[#allocation4 + $0x4f0] sm:$0xff]
    %v3601 = vld [vmem:[#allocation4 + $0x4f8] sm:$0xff]
    %v3602 = vld [vmem:[#allocation4 + $0x500] sm:$0xff]
    %v3603 = vld [vmem:[#allocation4 + $0x508] sm:$0xff]
    %v3604 = vld [vmem:[#allocation4 + $0x510] sm:$0xff]
    %v3605 = vld [vmem:[#allocation4 + $0x518] sm:$0xff]
    %v3606 = vld [vmem:[#allocation4 + $0x520] sm:$0xff]
    %v3607 = vld [vmem:[#allocation4 + $0x528] sm:$0xff]
    %v3608 = vld [vmem:[#allocation4 + $0x530] sm:$0xff]
    %v3609 = vld [vmem:[#allocation4 + $0x538] sm:$0xff]
    %v3610 = vld [vmem:[#allocation4 + $0x540] sm:$0xff]
    %v3611 = vld [vmem:[#allocation4 + $0x548] sm:$0xff]
    %v3612 = vld [vmem:[#allocation4 + $0x550] sm:$0xff]
    %v3613 = vld [vmem:[#allocation4 + $0x558] sm:$0xff]
    %v3614 = vld [vmem:[#allocation4 + $0x560] sm:$0xff]
    %v3615 = vld [vmem:[#allocation4 + $0x568] sm:$0xff]
    %v3616 = vld [vmem:[#allocation4 + $0x570] sm:$0xff]
    %v3617 = vld [vmem:[#allocation4 + $0x578] sm:$0xff]
    %v3618 = vld [vmem:[#allocation4 + $0x580] sm:$0xff]
    %v3619 = vld [vmem:[#allocation4 + $0x588] sm:$0xff]
    %v3620 = vld [vmem:[#allocation4 + $0x590] sm:$0xff]
    %v3621 = vld [vmem:[#allocation4 + $0x598] sm:$0xff]
    %v3622 = vld [vmem:[#allocation4 + $0x5a0] sm:$0xff]
    %v3623 = vld [vmem:[#allocation4 + $0x5a8] sm:$0xff]
    %v3624 = vld [vmem:[#allocation4 + $0x5b0] sm:$0xff]
    %v3625 = vld [vmem:[#allocation4 + $0x5b8] sm:$0xff]
    %v3626 = vld [vmem:[#allocation4 + $0x5c0] sm:$0xff]
    %v3627 = vld [vmem:[#allocation4 + $0x5c8] sm:$0xff]
    %v3628 = vld [vmem:[#allocation4 + $0x5d0] sm:$0xff]
    %v3629 = vld [vmem:[#allocation4 + $0x5d8] sm:$0xff]
    %v3630 = vld [vmem:[#allocation4 + $0x5e0] sm:$0xff]
    %v3631 = vld [vmem:[#allocation4 + $0x5e8] sm:$0xff]
    %v3632 = vld [vmem:[#allocation4 + $0x5f0] sm:$0xff]
    %v3633 = vld [vmem:[#allocation4 + $0x5f8] sm:$0xff]
    %v3634 = vld [vmem:[#allocation4 + $0x600] sm:$0xff]
    %v3635 = vld [vmem:[#allocation4 + $0x608] sm:$0xff]
    %v3636 = vld [vmem:[#allocation4 + $0x610] sm:$0xff]
    %v3637 = vld [vmem:[#allocation4 + $0x618] sm:$0xff]
    %v3638 = vld [vmem:[#allocation4 + $0x620] sm:$0xff]
    %v3639 = vld [vmem:[#allocation4 + $0x628] sm:$0xff]
    %v3640 = vld [vmem:[#allocation4 + $0x630] sm:$0xff]
    %v3641 = vld [vmem:[#allocation4 + $0x638] sm:$0xff]
    %v3642 = vld [vmem:[#allocation4 + $0x640] sm:$0xff]
    %v3643 = vld [vmem:[#allocation4 + $0x648] sm:$0xff]
    %v3644 = vld [vmem:[#allocation4 + $0x650] sm:$0xff]
    %v3645 = vld [vmem:[#allocation4 + $0x658] sm:$0xff]
    %v3646 = vld [vmem:[#allocation4 + $0x660] sm:$0xff]
    %v3647 = vld [vmem:[#allocation4 + $0x668] sm:$0xff]
    %v3648 = vld [vmem:[#allocation4 + $0x670] sm:$0xff]
    %v3649 = vld [vmem:[#allocation4 + $0x678] sm:$0xff]
    %v3650 = vld [vmem:[#allocation4 + $0x680] sm:$0xff]
    %v3651 = vld [vmem:[#allocation4 + $0x688] sm:$0xff]
    %v3652 = vld [vmem:[#allocation4 + $0x690] sm:$0xff]
    %v3653 = vld [vmem:[#allocation4 + $0x698] sm:$0xff]
    %v3654 = vld [vmem:[#allocation4 + $0x6a0] sm:$0xff]
    %v3655 = vld [vmem:[#allocation4 + $0x6a8] sm:$0xff]
    %v3656 = vld [vmem:[#allocation4 + $0x6b0] sm:$0xff]
    %v3657 = vld [vmem:[#allocation4 + $0x6b8] sm:$0xff]
    %v3658 = vld [vmem:[#allocation4 + $0x6c0] sm:$0xff]
    %v3659 = vld [vmem:[#allocation4 + $0x6c8] sm:$0xff]
    %v3660 = vld [vmem:[#allocation4 + $0x6d0] sm:$0xff]
    %v3661 = vld [vmem:[#allocation4 + $0x6d8] sm:$0xff]
    %v3662 = vld [vmem:[#allocation4 + $0x6e0] sm:$0xff]
    %v3663 = vld [vmem:[#allocation4 + $0x6e8] sm:$0xff]
    %v3664 = vld [vmem:[#allocation4 + $0x6f0] sm:$0xff]
    %v3665 = vld [vmem:[#allocation4 + $0x6f8] sm:$0xff]
    %v3666 = vld [vmem:[#allocation4 + $0x700] sm:$0xff]
    %v3667 = vld [vmem:[#allocation4 + $0x708] sm:$0xff]
    %v3668 = vld [vmem:[#allocation4 + $0x710] sm:$0xff]
    %v3669 = vld [vmem:[#allocation4 + $0x718] sm:$0xff]
    %v3670 = vld [vmem:[#allocation4 + $0x720] sm:$0xff]
    %v3671 = vld [vmem:[#allocation4 + $0x728] sm:$0xff]
    %v3672 = vld [vmem:[#allocation4 + $0x730] sm:$0xff]
    %v3673 = vld [vmem:[#allocation4 + $0x738] sm:$0xff]
    %v3674 = vld [vmem:[#allocation4 + $0x740] sm:$0xff]
    %v3675 = vld [vmem:[#allocation4 + $0x748] sm:$0xff]
    %v3676 = vld [vmem:[#allocation4 + $0x750] sm:$0xff]
    %v3677 = vld [vmem:[#allocation4 + $0x758] sm:$0xff]
    %v3678 = vld [vmem:[#allocation4 + $0x760] sm:$0xff]
    %v3679 = vld [vmem:[#allocation4 + $0x768] sm:$0xff]
    %v3680 = vld [vmem:[#allocation4 + $0x770] sm:$0xff]
    %v3681 = vld [vmem:[#allocation4 + $0x778] sm:$0xff]
    %v3682 = vld [vmem:[#allocation4 + $0x780] sm:$0xff]
    %v3683 = vld [vmem:[#allocation4 + $0x788] sm:$0xff]
    %v3684 = vld [vmem:[#allocation4 + $0x790] sm:$0xff]
    %v3685 = vld [vmem:[#allocation4 + $0x798] sm:$0xff]
    %v3686 = vld [vmem:[#allocation4 + $0x7a0] sm:$0xff]
    %v3687 = vld [vmem:[#allocation4 + $0x7a8] sm:$0xff]
    %v3688 = vld [vmem:[#allocation4 + $0x7b0] sm:$0xff]
    %v3689 = vld [vmem:[#allocation4 + $0x7b8] sm:$0xff]
    %v3690 = vld [vmem:[#allocation4 + $0x7c0] sm:$0xff]
    %v3691 = vld [vmem:[#allocation4 + $0x7c8] sm:$0xff]
    %v3692 = vld [vmem:[#allocation4 + $0x7d0] sm:$0xff]
    %v3693 = vld [vmem:[#allocation4 + $0x7d8] sm:$0xff]
    %v3694 = vld [vmem:[#allocation4 + $0x7e0] sm:$0xff]
    %v3695 = vld [vmem:[#allocation4 + $0x7e8] sm:$0xff]
    %v3696 = vld [vmem:[#allocation4 + $0x7f0] sm:$0xff]
    %v3697 = vld [vmem:[#allocation4 + $0x7f8] sm:$0xff]
    %v3698 = vld [vmem:[#allocation4 + $0x800] sm:$0xff]
    %v3699 = vld [vmem:[#allocation4 + $0x808] sm:$0xff]
    %v3700 = vld [vmem:[#allocation4 + $0x810] sm:$0xff]
    %v3701 = vld [vmem:[#allocation4 + $0x818] sm:$0xff]
    %v3702 = vld [vmem:[#allocation4 + $0x820] sm:$0xff]
    %v3703 = vld [vmem:[#allocation4 + $0x828] sm:$0xff]
    %v3704 = vld [vmem:[#allocation4 + $0x830] sm:$0xff]
    %v3705 = vld [vmem:[#allocation4 + $0x838] sm:$0xff]
    %v3706 = vld [vmem:[#allocation4 + $0x840] sm:$0xff]
    %v3707 = vld [vmem:[#allocation4 + $0x848] sm:$0xff]
    %v3708 = vld [vmem:[#allocation4 + $0x850] sm:$0xff]
    %v3709 = vld [vmem:[#allocation4 + $0x858] sm:$0xff]
    %v3710 = vld [vmem:[#allocation4 + $0x860] sm:$0xff]
    %v3711 = vld [vmem:[#allocation4 + $0x868] sm:$0xff]
    %v3712 = vld [vmem:[#allocation4 + $0x870] sm:$0xff]
    %v3713 = vld [vmem:[#allocation4 + $0x878] sm:$0xff]
    %v3714 = vld [vmem:[#allocation4 + $0x880] sm:$0xff]
    %v3715 = vld [vmem:[#allocation4 + $0x888] sm:$0xff]
    %v3716 = vld [vmem:[#allocation4 + $0x890] sm:$0xff]
    %v3717 = vld [vmem:[#allocation4 + $0x898] sm:$0xff]
    %v3718 = vld [vmem:[#allocation4 + $0x8a0] sm:$0xff]
    %v3719 = vld [vmem:[#allocation4 + $0x8a8] sm:$0xff]
    %v3720 = vld [vmem:[#allocation4 + $0x8b0] sm:$0xff]
    %v3721 = vld [vmem:[#allocation4 + $0x8b8] sm:$0xff]
    %v3722 = vld [vmem:[#allocation4 + $0x8c0] sm:$0xff]
    %v3723 = vld [vmem:[#allocation4 + $0x8c8] sm:$0xff]
    %v3724 = vld [vmem:[#allocation4 + $0x8d0] sm:$0xff]
    %v3725 = vld [vmem:[#allocation4 + $0x8d8] sm:$0xff]
    %v3726 = vld [vmem:[#allocation4 + $0x8e0] sm:$0xff]
    %v3727 = vld [vmem:[#allocation4 + $0x8e8] sm:$0xff]
    %v3728 = vld [vmem:[#allocation4 + $0x8f0] sm:$0xff]
    %v3729 = vld [vmem:[#allocation4 + $0x8f8] sm:$0xff]
    %v3730 = vld [vmem:[#allocation4 + $0x900] sm:$0xff]
    %v3731 = vld [vmem:[#allocation4 + $0x908] sm:$0xff]
    %v3732 = vld [vmem:[#allocation4 + $0x910] sm:$0xff]
    %v3733 = vld [vmem:[#allocation4 + $0x918] sm:$0xff]
    %v3734 = vld [vmem:[#allocation4 + $0x920] sm:$0xff]
    %v3735 = vld [vmem:[#allocation4 + $0x928] sm:$0xff]
    %v3736 = vld [vmem:[#allocation4 + $0x930] sm:$0xff]
    %v3737 = vld [vmem:[#allocation4 + $0x938] sm:$0xff]
    %v3738 = vld [vmem:[#allocation4 + $0x940] sm:$0xff]
    %v3739 = vld [vmem:[#allocation4 + $0x948] sm:$0xff]
    %v3740 = vld [vmem:[#allocation4 + $0x950] sm:$0xff]
    %v3741 = vld [vmem:[#allocation4 + $0x958] sm:$0xff]
    %v3742 = vld [vmem:[#allocation4 + $0x960] sm:$0xff]
    %v3743 = vld [vmem:[#allocation4 + $0x968] sm:$0xff]
    %v3744 = vld [vmem:[#allocation4 + $0x970] sm:$0xff]
    %v3745 = vld [vmem:[#allocation4 + $0x978] sm:$0xff]
    %v3746 = vld [vmem:[#allocation4 + $0x980] sm:$0xff]
    %v3747 = vld [vmem:[#allocation4 + $0x988] sm:$0xff]
    %v3748 = vld [vmem:[#allocation4 + $0x990] sm:$0xff]
    %v3749 = vld [vmem:[#allocation4 + $0x998] sm:$0xff]
    %v3750 = vld [vmem:[#allocation4 + $0x9a0] sm:$0xff]
    %v3751 = vld [vmem:[#allocation4 + $0x9a8] sm:$0xff]
    %v3752 = vld [vmem:[#allocation4 + $0x9b0] sm:$0xff]
    %v3753 = vld [vmem:[#allocation4 + $0x9b8] sm:$0xff]
    %v3754 = vld [vmem:[#allocation4 + $0x9c0] sm:$0xff]
    %v3755 = vld [vmem:[#allocation4 + $0x9c8] sm:$0xff]
    %v3756 = vld [vmem:[#allocation4 + $0x9d0] sm:$0xff]
    %v3757 = vld [vmem:[#allocation4 + $0x9d8] sm:$0xff]
    %v3758 = vld [vmem:[#allocation4 + $0x9e0] sm:$0xff]
    %v3759 = vld [vmem:[#allocation4 + $0x9e8] sm:$0xff]
    %v3760 = vld [vmem:[#allocation4 + $0x9f0] sm:$0xff]
    %v3761 = vld [vmem:[#allocation4 + $0x9f8] sm:$0xff]
    %v3762 = vld [vmem:[#allocation4 + $0xa00] sm:$0xff]
    %v3763 = vld [vmem:[#allocation4 + $0xa08] sm:$0xff]
    %v3764 = vld [vmem:[#allocation4 + $0xa10] sm:$0xff]
    %v3765 = vld [vmem:[#allocation4 + $0xa18] sm:$0xff]
    %v3766 = vld [vmem:[#allocation4 + $0xa20] sm:$0xff]
    %v3767 = vld [vmem:[#allocation4 + $0xa28] sm:$0xff]
    %v3768 = vld [vmem:[#allocation4 + $0xa30] sm:$0xff]
    %v3769 = vld [vmem:[#allocation4 + $0xa38] sm:$0xff]
    %v3770 = vld [vmem:[#allocation4 + $0xa40] sm:$0xff]
    %v3771 = vld [vmem:[#allocation4 + $0xa48] sm:$0xff]
    %v3772 = vld [vmem:[#allocation4 + $0xa50] sm:$0xff]
    %v3773 = vld [vmem:[#allocation4 + $0xa58] sm:$0xff]
    %v3774 = vld [vmem:[#allocation4 + $0xa60] sm:$0xff]
    %v3775 = vld [vmem:[#allocation4 + $0xa68] sm:$0xff]
    %v3776 = vld [vmem:[#allocation4 + $0xa70] sm:$0xff]
    %v3777 = vld [vmem:[#allocation4 + $0xa78] sm:$0xff]
    %v3778 = vld [vmem:[#allocation4 + $0xa80] sm:$0xff]
    %v3779 = vld [vmem:[#allocation4 + $0xa88] sm:$0xff]
    %v3780 = vld [vmem:[#allocation4 + $0xa90] sm:$0xff]
    %v3781 = vld [vmem:[#allocation4 + $0xa98] sm:$0xff]
    %v3782 = vld [vmem:[#allocation4 + $0xaa0] sm:$0xff]
    %v3783 = vld [vmem:[#allocation4 + $0xaa8] sm:$0xff]
    %v3784 = vld [vmem:[#allocation4 + $0xab0] sm:$0xff]
    %v3785 = vld [vmem:[#allocation4 + $0xab8] sm:$0xff]
    %v3786 = vld [vmem:[#allocation4 + $0xac0] sm:$0xff]
    %v3787 = vld [vmem:[#allocation4 + $0xac8] sm:$0xff]
    %v3788 = vld [vmem:[#allocation4 + $0xad0] sm:$0xff]
    %v3789 = vld [vmem:[#allocation4 + $0xad8] sm:$0xff]
    %v3790 = vld [vmem:[#allocation4 + $0xae0] sm:$0xff]
    %v3791 = vld [vmem:[#allocation4 + $0xae8] sm:$0xff]
    %v3792 = vld [vmem:[#allocation4 + $0xaf0] sm:$0xff]
    %v3793 = vld [vmem:[#allocation4 + $0xaf8] sm:$0xff]
    %v3794 = vld [vmem:[#allocation4 + $0xb00] sm:$0xff]
    %v3795 = vld [vmem:[#allocation4 + $0xb08] sm:$0xff]
    %v3796 = vld [vmem:[#allocation4 + $0xb10] sm:$0xff]
    %v3797 = vld [vmem:[#allocation4 + $0xb18] sm:$0xff]
    %v3798 = vld [vmem:[#allocation4 + $0xb20] sm:$0xff]
    %v3799 = vld [vmem:[#allocation4 + $0xb28] sm:$0xff]
    %v3800 = vld [vmem:[#allocation4 + $0xb30] sm:$0xff]
    %v3801 = vld [vmem:[#allocation4 + $0xb38] sm:$0xff]
    %v3802 = vld [vmem:[#allocation4 + $0xb40] sm:$0xff]
    %v3803 = vld [vmem:[#allocation4 + $0xb48] sm:$0xff]
    %v3804 = vld [vmem:[#allocation4 + $0xb50] sm:$0xff]
    %v3805 = vld [vmem:[#allocation4 + $0xb58] sm:$0xff]
    %v3806 = vld [vmem:[#allocation4 + $0xb60] sm:$0xff]
    %v3807 = vld [vmem:[#allocation4 + $0xb68] sm:$0xff]
    %v3808 = vld [vmem:[#allocation4 + $0xb70] sm:$0xff]
    %v3809 = vld [vmem:[#allocation4 + $0xb78] sm:$0xff]
    %v3810 = vld [vmem:[#allocation4 + $0xb80] sm:$0xff]
    %v3811 = vld [vmem:[#allocation4 + $0xb88] sm:$0xff]
    %v3812 = vld [vmem:[#allocation4 + $0xb90] sm:$0xff]
    %v3813 = vld [vmem:[#allocation4 + $0xb98] sm:$0xff]
    %v3814 = vld [vmem:[#allocation4 + $0xba0] sm:$0xff]
    %v3815 = vld [vmem:[#allocation4 + $0xba8] sm:$0xff]
    %v3816 = vld [vmem:[#allocation4 + $0xbb0] sm:$0xff]
    %v3817 = vld [vmem:[#allocation4 + $0xbb8] sm:$0xff]
    %v3818 = vld [vmem:[#allocation4 + $0xbc0] sm:$0xff]
    %v3819 = vld [vmem:[#allocation4 + $0xbc8] sm:$0xff]
    %v3820 = vld [vmem:[#allocation4 + $0xbd0] sm:$0xff]
    %v3821 = vld [vmem:[#allocation4 + $0xbd8] sm:$0xff]
    %v3822 = vld [vmem:[#allocation4 + $0xbe0] sm:$0xff]
    %v3823 = vld [vmem:[#allocation4 + $0xbe8] sm:$0xff]
    %v3824 = vld [vmem:[#allocation4 + $0xbf0] sm:$0xff]
    %v3825 = vld [vmem:[#allocation4 + $0xbf8] sm:$0xff]
    %v4210 = vunpack.c.l.b16 %v3442
    %v4211 = vunpack.c.h.b16 %v3442
    %v4212 = vunpack.c.l.b16 %v3443
    %v4213 = vunpack.c.h.b16 %v3443
    %v4214 = vunpack.c.l.b16 %v3444
    %v4215 = vunpack.c.h.b16 %v3444
    %v4216 = vunpack.c.l.b16 %v3445
    %v4217 = vunpack.c.h.b16 %v3445
    %v4218 = vunpack.c.l.b16 %v3446
    %v4219 = vunpack.c.h.b16 %v3446
    %v4220 = vunpack.c.l.b16 %v3447
    %v4221 = vunpack.c.h.b16 %v3447
    %v4222 = vunpack.c.l.b16 %v3448
    %v4223 = vunpack.c.h.b16 %v3448
    %v4224 = vunpack.c.l.b16 %v3449
    %v4225 = vunpack.c.h.b16 %v3449
    %v4226 = vunpack.c.l.b16 %v3450
    %v4227 = vunpack.c.h.b16 %v3450
    %v4228 = vunpack.c.l.b16 %v3451
    %v4229 = vunpack.c.h.b16 %v3451
    %v4230 = vunpack.c.l.b16 %v3452
    %v4231 = vunpack.c.h.b16 %v3452
    %v4232 = vunpack.c.l.b16 %v3453
    %v4233 = vunpack.c.h.b16 %v3453
    %v4234 = vunpack.c.l.b16 %v3454
    %v4235 = vunpack.c.h.b16 %v3454
    %v4236 = vunpack.c.l.b16 %v3455
    %v4237 = vunpack.c.h.b16 %v3455
    %v4238 = vunpack.c.l.b16 %v3456
    %v4239 = vunpack.c.h.b16 %v3456
    %v4240 = vunpack.c.l.b16 %v3457
    %v4241 = vunpack.c.h.b16 %v3457
    %v4242 = vunpack.c.l.b16 %v3458
    %v4243 = vunpack.c.h.b16 %v3458
    %v4244 = vunpack.c.l.b16 %v3459
    %v4245 = vunpack.c.h.b16 %v3459
    %v4246 = vunpack.c.l.b16 %v3460
    %v4247 = vunpack.c.h.b16 %v3460
    %v4248 = vunpack.c.l.b16 %v3461
    %v4249 = vunpack.c.h.b16 %v3461
    %v4250 = vunpack.c.l.b16 %v3462
    %v4251 = vunpack.c.h.b16 %v3462
    %v4252 = vunpack.c.l.b16 %v3463
    %v4253 = vunpack.c.h.b16 %v3463
    %v4254 = vunpack.c.l.b16 %v3464
    %v4255 = vunpack.c.h.b16 %v3464
    %v4256 = vunpack.c.l.b16 %v3465
    %v4257 = vunpack.c.h.b16 %v3465
    %v4258 = vunpack.c.l.b16 %v3466
    %v4259 = vunpack.c.h.b16 %v3466
    %v4260 = vunpack.c.l.b16 %v3467
    %v4261 = vunpack.c.h.b16 %v3467
    %v4262 = vunpack.c.l.b16 %v3468
    %v4263 = vunpack.c.h.b16 %v3468
    %v4264 = vunpack.c.l.b16 %v3469
    %v4265 = vunpack.c.h.b16 %v3469
    %v4266 = vunpack.c.l.b16 %v3470
    %v4267 = vunpack.c.h.b16 %v3470
    %v4268 = vunpack.c.l.b16 %v3471
    %v4269 = vunpack.c.h.b16 %v3471
    %v4270 = vunpack.c.l.b16 %v3472
    %v4271 = vunpack.c.h.b16 %v3472
    %v4272 = vunpack.c.l.b16 %v3473
    %v4273 = vunpack.c.h.b16 %v3473
    %v4274 = vunpack.c.l.b16 %v3474
    %v4275 = vunpack.c.h.b16 %v3474
    %v4276 = vunpack.c.l.b16 %v3475
    %v4277 = vunpack.c.h.b16 %v3475
    %v4278 = vunpack.c.l.b16 %v3476
    %v4279 = vunpack.c.h.b16 %v3476
    %v4280 = vunpack.c.l.b16 %v3477
    %v4281 = vunpack.c.h.b16 %v3477
    %v4282 = vunpack.c.l.b16 %v3478
    %v4283 = vunpack.c.h.b16 %v3478
    %v4284 = vunpack.c.l.b16 %v3479
    %v4285 = vunpack.c.h.b16 %v3479
    %v4286 = vunpack.c.l.b16 %v3480
    %v4287 = vunpack.c.h.b16 %v3480
    %v4288 = vunpack.c.l.b16 %v3481
    %v4289 = vunpack.c.h.b16 %v3481
    %v4290 = vunpack.c.l.b16 %v3482
    %v4291 = vunpack.c.h.b16 %v3482
    %v4292 = vunpack.c.l.b16 %v3483
    %v4293 = vunpack.c.h.b16 %v3483
    %v4294 = vunpack.c.l.b16 %v3484
    %v4295 = vunpack.c.h.b16 %v3484
    %v4296 = vunpack.c.l.b16 %v3485
    %v4297 = vunpack.c.h.b16 %v3485
    %v4298 = vunpack.c.l.b16 %v3486
    %v4299 = vunpack.c.h.b16 %v3486
    %v4300 = vunpack.c.l.b16 %v3487
    %v4301 = vunpack.c.h.b16 %v3487
    %v4302 = vunpack.c.l.b16 %v3488
    %v4303 = vunpack.c.h.b16 %v3488
    %v4304 = vunpack.c.l.b16 %v3489
    %v4305 = vunpack.c.h.b16 %v3489
    %v4306 = vunpack.c.l.b16 %v3490
    %v4307 = vunpack.c.h.b16 %v3490
    %v4308 = vunpack.c.l.b16 %v3491
    %v4309 = vunpack.c.h.b16 %v3491
    %v4310 = vunpack.c.l.b16 %v3492
    %v4311 = vunpack.c.h.b16 %v3492
    %v4312 = vunpack.c.l.b16 %v3493
    %v4313 = vunpack.c.h.b16 %v3493
    %v4314 = vunpack.c.l.b16 %v3494
    %v4315 = vunpack.c.h.b16 %v3494
    %v4316 = vunpack.c.l.b16 %v3495
    %v4317 = vunpack.c.h.b16 %v3495
    %v4318 = vunpack.c.l.b16 %v3496
    %v4319 = vunpack.c.h.b16 %v3496
    %v4320 = vunpack.c.l.b16 %v3497
    %v4321 = vunpack.c.h.b16 %v3497
    %v4322 = vunpack.c.l.b16 %v3498
    %v4323 = vunpack.c.h.b16 %v3498
    %v4324 = vunpack.c.l.b16 %v3499
    %v4325 = vunpack.c.h.b16 %v3499
    %v4326 = vunpack.c.l.b16 %v3500
    %v4327 = vunpack.c.h.b16 %v3500
    %v4328 = vunpack.c.l.b16 %v3501
    %v4329 = vunpack.c.h.b16 %v3501
    %v4330 = vunpack.c.l.b16 %v3502
    %v4331 = vunpack.c.h.b16 %v3502
    %v4332 = vunpack.c.l.b16 %v3503
    %v4333 = vunpack.c.h.b16 %v3503
    %v4334 = vunpack.c.l.b16 %v3504
    %v4335 = vunpack.c.h.b16 %v3504
    %v4336 = vunpack.c.l.b16 %v3505
    %v4337 = vunpack.c.h.b16 %v3505
    %v4338 = vunpack.c.l.b16 %v3506
    %v4339 = vunpack.c.h.b16 %v3506
    %v4340 = vunpack.c.l.b16 %v3507
    %v4341 = vunpack.c.h.b16 %v3507
    %v4342 = vunpack.c.l.b16 %v3508
    %v4343 = vunpack.c.h.b16 %v3508
    %v4344 = vunpack.c.l.b16 %v3509
    %v4345 = vunpack.c.h.b16 %v3509
    %v4346 = vunpack.c.l.b16 %v3510
    %v4347 = vunpack.c.h.b16 %v3510
    %v4348 = vunpack.c.l.b16 %v3511
    %v4349 = vunpack.c.h.b16 %v3511
    %v4350 = vunpack.c.l.b16 %v3512
    %v4351 = vunpack.c.h.b16 %v3512
    %v4352 = vunpack.c.l.b16 %v3513
    %v4353 = vunpack.c.h.b16 %v3513
    %v4354 = vunpack.c.l.b16 %v3514
    %v4355 = vunpack.c.h.b16 %v3514
    %v4356 = vunpack.c.l.b16 %v3515
    %v4357 = vunpack.c.h.b16 %v3515
    %v4358 = vunpack.c.l.b16 %v3516
    %v4359 = vunpack.c.h.b16 %v3516
    %v4360 = vunpack.c.l.b16 %v3517
    %v4361 = vunpack.c.h.b16 %v3517
    %v4362 = vunpack.c.l.b16 %v3518
    %v4363 = vunpack.c.h.b16 %v3518
    %v4364 = vunpack.c.l.b16 %v3519
    %v4365 = vunpack.c.h.b16 %v3519
    %v4366 = vunpack.c.l.b16 %v3520
    %v4367 = vunpack.c.h.b16 %v3520
    %v4368 = vunpack.c.l.b16 %v3521
    %v4369 = vunpack.c.h.b16 %v3521
    %v4370 = vunpack.c.l.b16 %v3522
    %v4371 = vunpack.c.h.b16 %v3522
    %v4372 = vunpack.c.l.b16 %v3523
    %v4373 = vunpack.c.h.b16 %v3523
    %v4374 = vunpack.c.l.b16 %v3524
    %v4375 = vunpack.c.h.b16 %v3524
    %v4376 = vunpack.c.l.b16 %v3525
    %v4377 = vunpack.c.h.b16 %v3525
    %v4378 = vunpack.c.l.b16 %v3526
    %v4379 = vunpack.c.h.b16 %v3526
    %v4380 = vunpack.c.l.b16 %v3527
    %v4381 = vunpack.c.h.b16 %v3527
    %v4382 = vunpack.c.l.b16 %v3528
    %v4383 = vunpack.c.h.b16 %v3528
    %v4384 = vunpack.c.l.b16 %v3529
    %v4385 = vunpack.c.h.b16 %v3529
    %v4386 = vunpack.c.l.b16 %v3530
    %v4387 = vunpack.c.h.b16 %v3530
    %v4388 = vunpack.c.l.b16 %v3531
    %v4389 = vunpack.c.h.b16 %v3531
    %v4390 = vunpack.c.l.b16 %v3532
    %v4391 = vunpack.c.h.b16 %v3532
    %v4392 = vunpack.c.l.b16 %v3533
    %v4393 = vunpack.c.h.b16 %v3533
    %v4394 = vunpack.c.l.b16 %v3534
    %v4395 = vunpack.c.h.b16 %v3534
    %v4396 = vunpack.c.l.b16 %v3535
    %v4397 = vunpack.c.h.b16 %v3535
    %v4398 = vunpack.c.l.b16 %v3536
    %v4399 = vunpack.c.h.b16 %v3536
    %v4400 = vunpack.c.l.b16 %v3537
    %v4401 = vunpack.c.h.b16 %v3537
    %v4402 = vunpack.c.l.b16 %v3538
    %v4403 = vunpack.c.h.b16 %v3538
    %v4404 = vunpack.c.l.b16 %v3539
    %v4405 = vunpack.c.h.b16 %v3539
    %v4406 = vunpack.c.l.b16 %v3540
    %v4407 = vunpack.c.h.b16 %v3540
    %v4408 = vunpack.c.l.b16 %v3541
    %v4409 = vunpack.c.h.b16 %v3541
    %v4410 = vunpack.c.l.b16 %v3542
    %v4411 = vunpack.c.h.b16 %v3542
    %v4412 = vunpack.c.l.b16 %v3543
    %v4413 = vunpack.c.h.b16 %v3543
    %v4414 = vunpack.c.l.b16 %v3544
    %v4415 = vunpack.c.h.b16 %v3544
    %v4416 = vunpack.c.l.b16 %v3545
    %v4417 = vunpack.c.h.b16 %v3545
    %v4418 = vunpack.c.l.b16 %v3546
    %v4419 = vunpack.c.h.b16 %v3546
    %v4420 = vunpack.c.l.b16 %v3547
    %v4421 = vunpack.c.h.b16 %v3547
    %v4422 = vunpack.c.l.b16 %v3548
    %v4423 = vunpack.c.h.b16 %v3548
    %v4424 = vunpack.c.l.b16 %v3549
    %v4425 = vunpack.c.h.b16 %v3549
    %v4426 = vunpack.c.l.b16 %v3550
    %v4427 = vunpack.c.h.b16 %v3550
    %v4428 = vunpack.c.l.b16 %v3551
    %v4429 = vunpack.c.h.b16 %v3551
    %v4430 = vunpack.c.l.b16 %v3552
    %v4431 = vunpack.c.h.b16 %v3552
    %v4432 = vunpack.c.l.b16 %v3553
    %v4433 = vunpack.c.h.b16 %v3553
    %v4434 = vunpack.c.l.b16 %v3554
    %v4435 = vunpack.c.h.b16 %v3554
    %v4436 = vunpack.c.l.b16 %v3555
    %v4437 = vunpack.c.h.b16 %v3555
    %v4438 = vunpack.c.l.b16 %v3556
    %v4439 = vunpack.c.h.b16 %v3556
    %v4440 = vunpack.c.l.b16 %v3557
    %v4441 = vunpack.c.h.b16 %v3557
    %v4442 = vunpack.c.l.b16 %v3558
    %v4443 = vunpack.c.h.b16 %v3558
    %v4444 = vunpack.c.l.b16 %v3559
    %v4445 = vunpack.c.h.b16 %v3559
    %v4446 = vunpack.c.l.b16 %v3560
    %v4447 = vunpack.c.h.b16 %v3560
    %v4448 = vunpack.c.l.b16 %v3561
    %v4449 = vunpack.c.h.b16 %v3561
    %v4450 = vunpack.c.l.b16 %v3562
    %v4451 = vunpack.c.h.b16 %v3562
    %v4452 = vunpack.c.l.b16 %v3563
    %v4453 = vunpack.c.h.b16 %v3563
    %v4454 = vunpack.c.l.b16 %v3564
    %v4455 = vunpack.c.h.b16 %v3564
    %v4456 = vunpack.c.l.b16 %v3565
    %v4457 = vunpack.c.h.b16 %v3565
    %v4458 = vunpack.c.l.b16 %v3566
    %v4459 = vunpack.c.h.b16 %v3566
    %v4460 = vunpack.c.l.b16 %v3567
    %v4461 = vunpack.c.h.b16 %v3567
    %v4462 = vunpack.c.l.b16 %v3568
    %v4463 = vunpack.c.h.b16 %v3568
    %v4464 = vunpack.c.l.b16 %v3569
    %v4465 = vunpack.c.h.b16 %v3569
    %v4466 = vunpack.c.l.b16 %v3570
    %v4467 = vunpack.c.h.b16 %v3570
    %v4468 = vunpack.c.l.b16 %v3571
    %v4469 = vunpack.c.h.b16 %v3571
    %v4470 = vunpack.c.l.b16 %v3572
    %v4471 = vunpack.c.h.b16 %v3572
    %v4472 = vunpack.c.l.b16 %v3573
    %v4473 = vunpack.c.h.b16 %v3573
    %v4474 = vunpack.c.l.b16 %v3574
    %v4475 = vunpack.c.h.b16 %v3574
    %v4476 = vunpack.c.l.b16 %v3575
    %v4477 = vunpack.c.h.b16 %v3575
    %v4478 = vunpack.c.l.b16 %v3576
    %v4479 = vunpack.c.h.b16 %v3576
    %v4480 = vunpack.c.l.b16 %v3577
    %v4481 = vunpack.c.h.b16 %v3577
    %v4482 = vunpack.c.l.b16 %v3578
    %v4483 = vunpack.c.h.b16 %v3578
    %v4484 = vunpack.c.l.b16 %v3579
    %v4485 = vunpack.c.h.b16 %v3579
    %v4486 = vunpack.c.l.b16 %v3580
    %v4487 = vunpack.c.h.b16 %v3580
    %v4488 = vunpack.c.l.b16 %v3581
    %v4489 = vunpack.c.h.b16 %v3581
    %v4490 = vunpack.c.l.b16 %v3582
    %v4491 = vunpack.c.h.b16 %v3582
    %v4492 = vunpack.c.l.b16 %v3583
    %v4493 = vunpack.c.h.b16 %v3583
    %v4494 = vunpack.c.l.b16 %v3584
    %v4495 = vunpack.c.h.b16 %v3584
    %v4496 = vunpack.c.l.b16 %v3585
    %v4497 = vunpack.c.h.b16 %v3585
    %v4498 = vunpack.c.l.b16 %v3586
    %v4499 = vunpack.c.h.b16 %v3586
    %v4500 = vunpack.c.l.b16 %v3587
    %v4501 = vunpack.c.h.b16 %v3587
    %v4502 = vunpack.c.l.b16 %v3588
    %v4503 = vunpack.c.h.b16 %v3588
    %v4504 = vunpack.c.l.b16 %v3589
    %v4505 = vunpack.c.h.b16 %v3589
    %v4506 = vunpack.c.l.b16 %v3590
    %v4507 = vunpack.c.h.b16 %v3590
    %v4508 = vunpack.c.l.b16 %v3591
    %v4509 = vunpack.c.h.b16 %v3591
    %v4510 = vunpack.c.l.b16 %v3592
    %v4511 = vunpack.c.h.b16 %v3592
    %v4512 = vunpack.c.l.b16 %v3593
    %v4513 = vunpack.c.h.b16 %v3593
    %v4514 = vunpack.c.l.b16 %v3594
    %v4515 = vunpack.c.h.b16 %v3594
    %v4516 = vunpack.c.l.b16 %v3595
    %v4517 = vunpack.c.h.b16 %v3595
    %v4518 = vunpack.c.l.b16 %v3596
    %v4519 = vunpack.c.h.b16 %v3596
    %v4520 = vunpack.c.l.b16 %v3597
    %v4521 = vunpack.c.h.b16 %v3597
    %v4522 = vunpack.c.l.b16 %v3598
    %v4523 = vunpack.c.h.b16 %v3598
    %v4524 = vunpack.c.l.b16 %v3599
    %v4525 = vunpack.c.h.b16 %v3599
    %v4526 = vunpack.c.l.b16 %v3600
    %v4527 = vunpack.c.h.b16 %v3600
    %v4528 = vunpack.c.l.b16 %v3601
    %v4529 = vunpack.c.h.b16 %v3601
    %v4530 = vunpack.c.l.b16 %v3602
    %v4531 = vunpack.c.h.b16 %v3602
    %v4532 = vunpack.c.l.b16 %v3603
    %v4533 = vunpack.c.h.b16 %v3603
    %v4534 = vunpack.c.l.b16 %v3604
    %v4535 = vunpack.c.h.b16 %v3604
    %v4536 = vunpack.c.l.b16 %v3605
    %v4537 = vunpack.c.h.b16 %v3605
    %v4538 = vunpack.c.l.b16 %v3606
    %v4539 = vunpack.c.h.b16 %v3606
    %v4540 = vunpack.c.l.b16 %v3607
    %v4541 = vunpack.c.h.b16 %v3607
    %v4542 = vunpack.c.l.b16 %v3608
    %v4543 = vunpack.c.h.b16 %v3608
    %v4544 = vunpack.c.l.b16 %v3609
    %v4545 = vunpack.c.h.b16 %v3609
    %v4546 = vunpack.c.l.b16 %v3610
    %v4547 = vunpack.c.h.b16 %v3610
    %v4548 = vunpack.c.l.b16 %v3611
    %v4549 = vunpack.c.h.b16 %v3611
    %v4550 = vunpack.c.l.b16 %v3612
    %v4551 = vunpack.c.h.b16 %v3612
    %v4552 = vunpack.c.l.b16 %v3613
    %v4553 = vunpack.c.h.b16 %v3613
    %v4554 = vunpack.c.l.b16 %v3614
    %v4555 = vunpack.c.h.b16 %v3614
    %v4556 = vunpack.c.l.b16 %v3615
    %v4557 = vunpack.c.h.b16 %v3615
    %v4558 = vunpack.c.l.b16 %v3616
    %v4559 = vunpack.c.h.b16 %v3616
    %v4560 = vunpack.c.l.b16 %v3617
    %v4561 = vunpack.c.h.b16 %v3617
    %v4562 = vunpack.c.l.b16 %v3618
    %v4563 = vunpack.c.h.b16 %v3618
    %v4564 = vunpack.c.l.b16 %v3619
    %v4565 = vunpack.c.h.b16 %v3619
    %v4566 = vunpack.c.l.b16 %v3620
    %v4567 = vunpack.c.h.b16 %v3620
    %v4568 = vunpack.c.l.b16 %v3621
    %v4569 = vunpack.c.h.b16 %v3621
    %v4570 = vunpack.c.l.b16 %v3622
    %v4571 = vunpack.c.h.b16 %v3622
    %v4572 = vunpack.c.l.b16 %v3623
    %v4573 = vunpack.c.h.b16 %v3623
    %v4574 = vunpack.c.l.b16 %v3624
    %v4575 = vunpack.c.h.b16 %v3624
    %v4576 = vunpack.c.l.b16 %v3625
    %v4577 = vunpack.c.h.b16 %v3625
    %v4578 = vunpack.c.l.b16 %v3626
    %v4579 = vunpack.c.h.b16 %v3626
    %v4580 = vunpack.c.l.b16 %v3627
    %v4581 = vunpack.c.h.b16 %v3627
    %v4582 = vunpack.c.l.b16 %v3628
    %v4583 = vunpack.c.h.b16 %v3628
    %v4584 = vunpack.c.l.b16 %v3629
    %v4585 = vunpack.c.h.b16 %v3629
    %v4586 = vunpack.c.l.b16 %v3630
    %v4587 = vunpack.c.h.b16 %v3630
    %v4588 = vunpack.c.l.b16 %v3631
    %v4589 = vunpack.c.h.b16 %v3631
    %v4590 = vunpack.c.l.b16 %v3632
    %v4591 = vunpack.c.h.b16 %v3632
    %v4592 = vunpack.c.l.b16 %v3633
    %v4593 = vunpack.c.h.b16 %v3633
    %v4594 = vunpack.c.l.b16 %v3634
    %v4595 = vunpack.c.h.b16 %v3634
    %v4596 = vunpack.c.l.b16 %v3635
    %v4597 = vunpack.c.h.b16 %v3635
    %v4598 = vunpack.c.l.b16 %v3636
    %v4599 = vunpack.c.h.b16 %v3636
    %v4600 = vunpack.c.l.b16 %v3637
    %v4601 = vunpack.c.h.b16 %v3637
    %v4602 = vunpack.c.l.b16 %v3638
    %v4603 = vunpack.c.h.b16 %v3638
    %v4604 = vunpack.c.l.b16 %v3639
    %v4605 = vunpack.c.h.b16 %v3639
    %v4606 = vunpack.c.l.b16 %v3640
    %v4607 = vunpack.c.h.b16 %v3640
    %v4608 = vunpack.c.l.b16 %v3641
    %v4609 = vunpack.c.h.b16 %v3641
    %v4610 = vunpack.c.l.b16 %v3642
    %v4611 = vunpack.c.h.b16 %v3642
    %v4612 = vunpack.c.l.b16 %v3643
    %v4613 = vunpack.c.h.b16 %v3643
    %v4614 = vunpack.c.l.b16 %v3644
    %v4615 = vunpack.c.h.b16 %v3644
    %v4616 = vunpack.c.l.b16 %v3645
    %v4617 = vunpack.c.h.b16 %v3645
    %v4618 = vunpack.c.l.b16 %v3646
    %v4619 = vunpack.c.h.b16 %v3646
    %v4620 = vunpack.c.l.b16 %v3647
    %v4621 = vunpack.c.h.b16 %v3647
    %v4622 = vunpack.c.l.b16 %v3648
    %v4623 = vunpack.c.h.b16 %v3648
    %v4624 = vunpack.c.l.b16 %v3649
    %v4625 = vunpack.c.h.b16 %v3649
    %v4626 = vunpack.c.l.b16 %v3650
    %v4627 = vunpack.c.h.b16 %v3650
    %v4628 = vunpack.c.l.b16 %v3651
    %v4629 = vunpack.c.h.b16 %v3651
    %v4630 = vunpack.c.l.b16 %v3652
    %v4631 = vunpack.c.h.b16 %v3652
    %v4632 = vunpack.c.l.b16 %v3653
    %v4633 = vunpack.c.h.b16 %v3653
    %v4634 = vunpack.c.l.b16 %v3654
    %v4635 = vunpack.c.h.b16 %v3654
    %v4636 = vunpack.c.l.b16 %v3655
    %v4637 = vunpack.c.h.b16 %v3655
    %v4638 = vunpack.c.l.b16 %v3656
    %v4639 = vunpack.c.h.b16 %v3656
    %v4640 = vunpack.c.l.b16 %v3657
    %v4641 = vunpack.c.h.b16 %v3657
    %v4642 = vunpack.c.l.b16 %v3658
    %v4643 = vunpack.c.h.b16 %v3658
    %v4644 = vunpack.c.l.b16 %v3659
    %v4645 = vunpack.c.h.b16 %v3659
    %v4646 = vunpack.c.l.b16 %v3660
    %v4647 = vunpack.c.h.b16 %v3660
    %v4648 = vunpack.c.l.b16 %v3661
    %v4649 = vunpack.c.h.b16 %v3661
    %v4650 = vunpack.c.l.b16 %v3662
    %v4651 = vunpack.c.h.b16 %v3662
    %v4652 = vunpack.c.l.b16 %v3663
    %v4653 = vunpack.c.h.b16 %v3663
    %v4654 = vunpack.c.l.b16 %v3664
    %v4655 = vunpack.c.h.b16 %v3664
    %v4656 = vunpack.c.l.b16 %v3665
    %v4657 = vunpack.c.h.b16 %v3665
    %v4658 = vunpack.c.l.b16 %v3666
    %v4659 = vunpack.c.h.b16 %v3666
    %v4660 = vunpack.c.l.b16 %v3667
    %v4661 = vunpack.c.h.b16 %v3667
    %v4662 = vunpack.c.l.b16 %v3668
    %v4663 = vunpack.c.h.b16 %v3668
    %v4664 = vunpack.c.l.b16 %v3669
    %v4665 = vunpack.c.h.b16 %v3669
    %v4666 = vunpack.c.l.b16 %v3670
    %v4667 = vunpack.c.h.b16 %v3670
    %v4668 = vunpack.c.l.b16 %v3671
    %v4669 = vunpack.c.h.b16 %v3671
    %v4670 = vunpack.c.l.b16 %v3672
    %v4671 = vunpack.c.h.b16 %v3672
    %v4672 = vunpack.c.l.b16 %v3673
    %v4673 = vunpack.c.h.b16 %v3673
    %v4674 = vunpack.c.l.b16 %v3674
    %v4675 = vunpack.c.h.b16 %v3674
    %v4676 = vunpack.c.l.b16 %v3675
    %v4677 = vunpack.c.h.b16 %v3675
    %v4678 = vunpack.c.l.b16 %v3676
    %v4679 = vunpack.c.h.b16 %v3676
    %v4680 = vunpack.c.l.b16 %v3677
    %v4681 = vunpack.c.h.b16 %v3677
    %v4682 = vunpack.c.l.b16 %v3678
    %v4683 = vunpack.c.h.b16 %v3678
    %v4684 = vunpack.c.l.b16 %v3679
    %v4685 = vunpack.c.h.b16 %v3679
    %v4686 = vunpack.c.l.b16 %v3680
    %v4687 = vunpack.c.h.b16 %v3680
    %v4688 = vunpack.c.l.b16 %v3681
    %v4689 = vunpack.c.h.b16 %v3681
    %v4690 = vunpack.c.l.b16 %v3682
    %v4691 = vunpack.c.h.b16 %v3682
    %v4692 = vunpack.c.l.b16 %v3683
    %v4693 = vunpack.c.h.b16 %v3683
    %v4694 = vunpack.c.l.b16 %v3684
    %v4695 = vunpack.c.h.b16 %v3684
    %v4696 = vunpack.c.l.b16 %v3685
    %v4697 = vunpack.c.h.b16 %v3685
    %v4698 = vunpack.c.l.b16 %v3686
    %v4699 = vunpack.c.h.b16 %v3686
    %v4700 = vunpack.c.l.b16 %v3687
    %v4701 = vunpack.c.h.b16 %v3687
    %v4702 = vunpack.c.l.b16 %v3688
    %v4703 = vunpack.c.h.b16 %v3688
    %v4704 = vunpack.c.l.b16 %v3689
    %v4705 = vunpack.c.h.b16 %v3689
    %v4706 = vunpack.c.l.b16 %v3690
    %v4707 = vunpack.c.h.b16 %v3690
    %v4708 = vunpack.c.l.b16 %v3691
    %v4709 = vunpack.c.h.b16 %v3691
    %v4710 = vunpack.c.l.b16 %v3692
    %v4711 = vunpack.c.h.b16 %v3692
    %v4712 = vunpack.c.l.b16 %v3693
    %v4713 = vunpack.c.h.b16 %v3693
    %v4714 = vunpack.c.l.b16 %v3694
    %v4715 = vunpack.c.h.b16 %v3694
    %v4716 = vunpack.c.l.b16 %v3695
    %v4717 = vunpack.c.h.b16 %v3695
    %v4718 = vunpack.c.l.b16 %v3696
    %v4719 = vunpack.c.h.b16 %v3696
    %v4720 = vunpack.c.l.b16 %v3697
    %v4721 = vunpack.c.h.b16 %v3697
    %v4722 = vunpack.c.l.b16 %v3698
    %v4723 = vunpack.c.h.b16 %v3698
    %v4724 = vunpack.c.l.b16 %v3699
    %v4725 = vunpack.c.h.b16 %v3699
    %v4726 = vunpack.c.l.b16 %v3700
    %v4727 = vunpack.c.h.b16 %v3700
    %v4728 = vunpack.c.l.b16 %v3701
    %v4729 = vunpack.c.h.b16 %v3701
    %v4730 = vunpack.c.l.b16 %v3702
    %v4731 = vunpack.c.h.b16 %v3702
    %v4732 = vunpack.c.l.b16 %v3703
    %v4733 = vunpack.c.h.b16 %v3703
    %v4734 = vunpack.c.l.b16 %v3704
    %v4735 = vunpack.c.h.b16 %v3704
    %v4736 = vunpack.c.l.b16 %v3705
    %v4737 = vunpack.c.h.b16 %v3705
    %v4738 = vunpack.c.l.b16 %v3706
    %v4739 = vunpack.c.h.b16 %v3706
    %v4740 = vunpack.c.l.b16 %v3707
    %v4741 = vunpack.c.h.b16 %v3707
    %v4742 = vunpack.c.l.b16 %v3708
    %v4743 = vunpack.c.h.b16 %v3708
    %v4744 = vunpack.c.l.b16 %v3709
    %v4745 = vunpack.c.h.b16 %v3709
    %v4746 = vunpack.c.l.b16 %v3710
    %v4747 = vunpack.c.h.b16 %v3710
    %v4748 = vunpack.c.l.b16 %v3711
    %v4749 = vunpack.c.h.b16 %v3711
    %v4750 = vunpack.c.l.b16 %v3712
    %v4751 = vunpack.c.h.b16 %v3712
    %v4752 = vunpack.c.l.b16 %v3713
    %v4753 = vunpack.c.h.b16 %v3713
    %v4754 = vunpack.c.l.b16 %v3714
    %v4755 = vunpack.c.h.b16 %v3714
    %v4756 = vunpack.c.l.b16 %v3715
    %v4757 = vunpack.c.h.b16 %v3715
    %v4758 = vunpack.c.l.b16 %v3716
    %v4759 = vunpack.c.h.b16 %v3716
    %v4760 = vunpack.c.l.b16 %v3717
    %v4761 = vunpack.c.h.b16 %v3717
    %v4762 = vunpack.c.l.b16 %v3718
    %v4763 = vunpack.c.h.b16 %v3718
    %v4764 = vunpack.c.l.b16 %v3719
    %v4765 = vunpack.c.h.b16 %v3719
    %v4766 = vunpack.c.l.b16 %v3720
    %v4767 = vunpack.c.h.b16 %v3720
    %v4768 = vunpack.c.l.b16 %v3721
    %v4769 = vunpack.c.h.b16 %v3721
    %v4770 = vunpack.c.l.b16 %v3722
    %v4771 = vunpack.c.h.b16 %v3722
    %v4772 = vunpack.c.l.b16 %v3723
    %v4773 = vunpack.c.h.b16 %v3723
    %v4774 = vunpack.c.l.b16 %v3724
    %v4775 = vunpack.c.h.b16 %v3724
    %v4776 = vunpack.c.l.b16 %v3725
    %v4777 = vunpack.c.h.b16 %v3725
    %v4778 = vunpack.c.l.b16 %v3726
    %v4779 = vunpack.c.h.b16 %v3726
    %v4780 = vunpack.c.l.b16 %v3727
    %v4781 = vunpack.c.h.b16 %v3727
    %v4782 = vunpack.c.l.b16 %v3728
    %v4783 = vunpack.c.h.b16 %v3728
    %v4784 = vunpack.c.l.b16 %v3729
    %v4785 = vunpack.c.h.b16 %v3729
    %v4786 = vunpack.c.l.b16 %v3730
    %v4787 = vunpack.c.h.b16 %v3730
    %v4788 = vunpack.c.l.b16 %v3731
    %v4789 = vunpack.c.h.b16 %v3731
    %v4790 = vunpack.c.l.b16 %v3732
    %v4791 = vunpack.c.h.b16 %v3732
    %v4792 = vunpack.c.l.b16 %v3733
    %v4793 = vunpack.c.h.b16 %v3733
    %v4794 = vunpack.c.l.b16 %v3734
    %v4795 = vunpack.c.h.b16 %v3734
    %v4796 = vunpack.c.l.b16 %v3735
    %v4797 = vunpack.c.h.b16 %v3735
    %v4798 = vunpack.c.l.b16 %v3736
    %v4799 = vunpack.c.h.b16 %v3736
    %v4800 = vunpack.c.l.b16 %v3737
    %v4801 = vunpack.c.h.b16 %v3737
    %v4802 = vunpack.c.l.b16 %v3738
    %v4803 = vunpack.c.h.b16 %v3738
    %v4804 = vunpack.c.l.b16 %v3739
    %v4805 = vunpack.c.h.b16 %v3739
    %v4806 = vunpack.c.l.b16 %v3740
    %v4807 = vunpack.c.h.b16 %v3740
    %v4808 = vunpack.c.l.b16 %v3741
    %v4809 = vunpack.c.h.b16 %v3741
    %v4810 = vunpack.c.l.b16 %v3742
    %v4811 = vunpack.c.h.b16 %v3742
    %v4812 = vunpack.c.l.b16 %v3743
    %v4813 = vunpack.c.h.b16 %v3743
    %v4814 = vunpack.c.l.b16 %v3744
    %v4815 = vunpack.c.h.b16 %v3744
    %v4816 = vunpack.c.l.b16 %v3745
    %v4817 = vunpack.c.h.b16 %v3745
    %v4818 = vunpack.c.l.b16 %v3746
    %v4819 = vunpack.c.h.b16 %v3746
    %v4820 = vunpack.c.l.b16 %v3747
    %v4821 = vunpack.c.h.b16 %v3747
    %v4822 = vunpack.c.l.b16 %v3748
    %v4823 = vunpack.c.h.b16 %v3748
    %v4824 = vunpack.c.l.b16 %v3749
    %v4825 = vunpack.c.h.b16 %v3749
    %v4826 = vunpack.c.l.b16 %v3750
    %v4827 = vunpack.c.h.b16 %v3750
    %v4828 = vunpack.c.l.b16 %v3751
    %v4829 = vunpack.c.h.b16 %v3751
    %v4830 = vunpack.c.l.b16 %v3752
    %v4831 = vunpack.c.h.b16 %v3752
    %v4832 = vunpack.c.l.b16 %v3753
    %v4833 = vunpack.c.h.b16 %v3753
    %v4834 = vunpack.c.l.b16 %v3754
    %v4835 = vunpack.c.h.b16 %v3754
    %v4836 = vunpack.c.l.b16 %v3755
    %v4837 = vunpack.c.h.b16 %v3755
    %v4838 = vunpack.c.l.b16 %v3756
    %v4839 = vunpack.c.h.b16 %v3756
    %v4840 = vunpack.c.l.b16 %v3757
    %v4841 = vunpack.c.h.b16 %v3757
    %v4842 = vunpack.c.l.b16 %v3758
    %v4843 = vunpack.c.h.b16 %v3758
    %v4844 = vunpack.c.l.b16 %v3759
    %v4845 = vunpack.c.h.b16 %v3759
    %v4846 = vunpack.c.l.b16 %v3760
    %v4847 = vunpack.c.h.b16 %v3760
    %v4848 = vunpack.c.l.b16 %v3761
    %v4849 = vunpack.c.h.b16 %v3761
    %v4850 = vunpack.c.l.b16 %v3762
    %v4851 = vunpack.c.h.b16 %v3762
    %v4852 = vunpack.c.l.b16 %v3763
    %v4853 = vunpack.c.h.b16 %v3763
    %v4854 = vunpack.c.l.b16 %v3764
    %v4855 = vunpack.c.h.b16 %v3764
    %v4856 = vunpack.c.l.b16 %v3765
    %v4857 = vunpack.c.h.b16 %v3765
    %v4858 = vunpack.c.l.b16 %v3766
    %v4859 = vunpack.c.h.b16 %v3766
    %v4860 = vunpack.c.l.b16 %v3767
    %v4861 = vunpack.c.h.b16 %v3767
    %v4862 = vunpack.c.l.b16 %v3768
    %v4863 = vunpack.c.h.b16 %v3768
    %v4864 = vunpack.c.l.b16 %v3769
    %v4865 = vunpack.c.h.b16 %v3769
    %v4866 = vunpack.c.l.b16 %v3770
    %v4867 = vunpack.c.h.b16 %v3770
    %v4868 = vunpack.c.l.b16 %v3771
    %v4869 = vunpack.c.h.b16 %v3771
    %v4870 = vunpack.c.l.b16 %v3772
    %v4871 = vunpack.c.h.b16 %v3772
    %v4872 = vunpack.c.l.b16 %v3773
    %v4873 = vunpack.c.h.b16 %v3773
    %v4874 = vunpack.c.l.b16 %v3774
    %v4875 = vunpack.c.h.b16 %v3774
    %v4876 = vunpack.c.l.b16 %v3775
    %v4877 = vunpack.c.h.b16 %v3775
    %v4878 = vunpack.c.l.b16 %v3776
    %v4879 = vunpack.c.h.b16 %v3776
    %v4880 = vunpack.c.l.b16 %v3777
    %v4881 = vunpack.c.h.b16 %v3777
    %v4882 = vunpack.c.l.b16 %v3778
    %v4883 = vunpack.c.h.b16 %v3778
    %v4884 = vunpack.c.l.b16 %v3779
    %v4885 = vunpack.c.h.b16 %v3779
    %v4886 = vunpack.c.l.b16 %v3780
    %v4887 = vunpack.c.h.b16 %v3780
    %v4888 = vunpack.c.l.b16 %v3781
    %v4889 = vunpack.c.h.b16 %v3781
    %v4890 = vunpack.c.l.b16 %v3782
    %v4891 = vunpack.c.h.b16 %v3782
    %v4892 = vunpack.c.l.b16 %v3783
    %v4893 = vunpack.c.h.b16 %v3783
    %v4894 = vunpack.c.l.b16 %v3784
    %v4895 = vunpack.c.h.b16 %v3784
    %v4896 = vunpack.c.l.b16 %v3785
    %v4897 = vunpack.c.h.b16 %v3785
    %v4898 = vunpack.c.l.b16 %v3786
    %v4899 = vunpack.c.h.b16 %v3786
    %v4900 = vunpack.c.l.b16 %v3787
    %v4901 = vunpack.c.h.b16 %v3787
    %v4902 = vunpack.c.l.b16 %v3788
    %v4903 = vunpack.c.h.b16 %v3788
    %v4904 = vunpack.c.l.b16 %v3789
    %v4905 = vunpack.c.h.b16 %v3789
    %v4906 = vunpack.c.l.b16 %v3790
    %v4907 = vunpack.c.h.b16 %v3790
    %v4908 = vunpack.c.l.b16 %v3791
    %v4909 = vunpack.c.h.b16 %v3791
    %v4910 = vunpack.c.l.b16 %v3792
    %v4911 = vunpack.c.h.b16 %v3792
    %v4912 = vunpack.c.l.b16 %v3793
    %v4913 = vunpack.c.h.b16 %v3793
    %v4914 = vunpack.c.l.b16 %v3794
    %v4915 = vunpack.c.h.b16 %v3794
    %v4916 = vunpack.c.l.b16 %v3795
    %v4917 = vunpack.c.h.b16 %v3795
    %v4918 = vunpack.c.l.b16 %v3796
    %v4919 = vunpack.c.h.b16 %v3796
    %v4920 = vunpack.c.l.b16 %v3797
    %v4921 = vunpack.c.h.b16 %v3797
    %v4922 = vunpack.c.l.b16 %v3798
    %v4923 = vunpack.c.h.b16 %v3798
    %v4924 = vunpack.c.l.b16 %v3799
    %v4925 = vunpack.c.h.b16 %v3799
    %v4926 = vunpack.c.l.b16 %v3800
    %v4927 = vunpack.c.h.b16 %v3800
    %v4928 = vunpack.c.l.b16 %v3801
    %v4929 = vunpack.c.h.b16 %v3801
    %v4930 = vunpack.c.l.b16 %v3802
    %v4931 = vunpack.c.h.b16 %v3802
    %v4932 = vunpack.c.l.b16 %v3803
    %v4933 = vunpack.c.h.b16 %v3803
    %v4934 = vunpack.c.l.b16 %v3804
    %v4935 = vunpack.c.h.b16 %v3804
    %v4936 = vunpack.c.l.b16 %v3805
    %v4937 = vunpack.c.h.b16 %v3805
    %v4938 = vunpack.c.l.b16 %v3806
    %v4939 = vunpack.c.h.b16 %v3806
    %v4940 = vunpack.c.l.b16 %v3807
    %v4941 = vunpack.c.h.b16 %v3807
    %v4942 = vunpack.c.l.b16 %v3808
    %v4943 = vunpack.c.h.b16 %v3808
    %v4944 = vunpack.c.l.b16 %v3809
    %v4945 = vunpack.c.h.b16 %v3809
    %v4946 = vunpack.c.l.b16 %v3810
    %v4947 = vunpack.c.h.b16 %v3810
    %v4948 = vunpack.c.l.b16 %v3811
    %v4949 = vunpack.c.h.b16 %v3811
    %v4950 = vunpack.c.l.b16 %v3812
    %v4951 = vunpack.c.h.b16 %v3812
    %v4952 = vunpack.c.l.b16 %v3813
    %v4953 = vunpack.c.h.b16 %v3813
    %v4954 = vunpack.c.l.b16 %v3814
    %v4955 = vunpack.c.h.b16 %v3814
    %v4956 = vunpack.c.l.b16 %v3815
    %v4957 = vunpack.c.h.b16 %v3815
    %v4958 = vunpack.c.l.b16 %v3816
    %v4959 = vunpack.c.h.b16 %v3816
    %v4960 = vunpack.c.l.b16 %v3817
    %v4961 = vunpack.c.h.b16 %v3817
    %v4962 = vunpack.c.l.b16 %v3818
    %v4963 = vunpack.c.h.b16 %v3818
    %v4964 = vunpack.c.l.b16 %v3819
    %v4965 = vunpack.c.h.b16 %v3819
    %v4966 = vunpack.c.l.b16 %v3820
    %v4967 = vunpack.c.h.b16 %v3820
    %v4968 = vunpack.c.l.b16 %v3821
    %v4969 = vunpack.c.h.b16 %v3821
    %v4970 = vunpack.c.l.b16 %v3822
    %v4971 = vunpack.c.h.b16 %v3822
    %v4972 = vunpack.c.l.b16 %v3823
    %v4973 = vunpack.c.h.b16 %v3823
    %v4974 = vunpack.c.l.b16 %v3824
    %v4975 = vunpack.c.h.b16 %v3824
    %v4976 = vunpack.c.l.b16 %v3825
    %v4977 = vunpack.c.h.b16 %v3825
    %v4978 = vpack.c.b16 %v4218, %v4210
    %v4979 = vpack.c.b16 %v4219, %v4211
    %v4980 = vpack.c.b16 %v4220, %v4212
    %v4981 = vpack.c.b16 %v4221, %v4213
    %v4982 = vpack.c.b16 %v4222, %v4214
    %v4983 = vpack.c.b16 %v4223, %v4215
    %v4984 = vpack.c.b16 %v4224, %v4216
    %v4985 = vpack.c.b16 %v4225, %v4217
    %v4986 = vpack.c.b16 %v4234, %v4226
    %v4987 = vpack.c.b16 %v4235, %v4227
    %v4988 = vpack.c.b16 %v4236, %v4228
    %v4989 = vpack.c.b16 %v4237, %v4229
    %v4990 = vpack.c.b16 %v4238, %v4230
    %v4991 = vpack.c.b16 %v4239, %v4231
    %v4992 = vpack.c.b16 %v4240, %v4232
    %v4993 = vpack.c.b16 %v4241, %v4233
    %v4994 = vpack.c.b16 %v4250, %v4242
    %v4995 = vpack.c.b16 %v4251, %v4243
    %v4996 = vpack.c.b16 %v4252, %v4244
    %v4997 = vpack.c.b16 %v4253, %v4245
    %v4998 = vpack.c.b16 %v4254, %v4246
    %v4999 = vpack.c.b16 %v4255, %v4247
    %v5000 = vpack.c.b16 %v4256, %v4248
    %v5001 = vpack.c.b16 %v4257, %v4249
    %v5002 = vpack.c.b16 %v4266, %v4258
    %v5003 = vpack.c.b16 %v4267, %v4259
    %v5004 = vpack.c.b16 %v4268, %v4260
    %v5005 = vpack.c.b16 %v4269, %v4261
    %v5006 = vpack.c.b16 %v4270, %v4262
    %v5007 = vpack.c.b16 %v4271, %v4263
    %v5008 = vpack.c.b16 %v4272, %v4264
    %v5009 = vpack.c.b16 %v4273, %v4265
    %v5010 = vpack.c.b16 %v4282, %v4274
    %v5011 = vpack.c.b16 %v4283, %v4275
    %v5012 = vpack.c.b16 %v4284, %v4276
    %v5013 = vpack.c.b16 %v4285, %v4277
    %v5014 = vpack.c.b16 %v4286, %v4278
    %v5015 = vpack.c.b16 %v4287, %v4279
    %v5016 = vpack.c.b16 %v4288, %v4280
    %v5017 = vpack.c.b16 %v4289, %v4281
    %v5018 = vpack.c.b16 %v4298, %v4290
    %v5019 = vpack.c.b16 %v4299, %v4291
    %v5020 = vpack.c.b16 %v4300, %v4292
    %v5021 = vpack.c.b16 %v4301, %v4293
    %v5022 = vpack.c.b16 %v4302, %v4294
    %v5023 = vpack.c.b16 %v4303, %v4295
    %v5024 = vpack.c.b16 %v4304, %v4296
    %v5025 = vpack.c.b16 %v4305, %v4297
    %v5026 = vpack.c.b16 %v4314, %v4306
    %v5027 = vpack.c.b16 %v4315, %v4307
    %v5028 = vpack.c.b16 %v4316, %v4308
    %v5029 = vpack.c.b16 %v4317, %v4309
    %v5030 = vpack.c.b16 %v4318, %v4310
    %v5031 = vpack.c.b16 %v4319, %v4311
    %v5032 = vpack.c.b16 %v4320, %v4312
    %v5033 = vpack.c.b16 %v4321, %v4313
    %v5034 = vpack.c.b16 %v4330, %v4322
    %v5035 = vpack.c.b16 %v4331, %v4323
    %v5036 = vpack.c.b16 %v4332, %v4324
    %v5037 = vpack.c.b16 %v4333, %v4325
    %v5038 = vpack.c.b16 %v4334, %v4326
    %v5039 = vpack.c.b16 %v4335, %v4327
    %v5040 = vpack.c.b16 %v4336, %v4328
    %v5041 = vpack.c.b16 %v4337, %v4329
    %v5042 = vpack.c.b16 %v4346, %v4338
    %v5043 = vpack.c.b16 %v4347, %v4339
    %v5044 = vpack.c.b16 %v4348, %v4340
    %v5045 = vpack.c.b16 %v4349, %v4341
    %v5046 = vpack.c.b16 %v4350, %v4342
    %v5047 = vpack.c.b16 %v4351, %v4343
    %v5048 = vpack.c.b16 %v4352, %v4344
    %v5049 = vpack.c.b16 %v4353, %v4345
    %v5050 = vpack.c.b16 %v4362, %v4354
    %v5051 = vpack.c.b16 %v4363, %v4355
    %v5052 = vpack.c.b16 %v4364, %v4356
    %v5053 = vpack.c.b16 %v4365, %v4357
    %v5054 = vpack.c.b16 %v4366, %v4358
    %v5055 = vpack.c.b16 %v4367, %v4359
    %v5056 = vpack.c.b16 %v4368, %v4360
    %v5057 = vpack.c.b16 %v4369, %v4361
    %v5058 = vpack.c.b16 %v4378, %v4370
    %v5059 = vpack.c.b16 %v4379, %v4371
    %v5060 = vpack.c.b16 %v4380, %v4372
    %v5061 = vpack.c.b16 %v4381, %v4373
    %v5062 = vpack.c.b16 %v4382, %v4374
    %v5063 = vpack.c.b16 %v4383, %v4375
    %v5064 = vpack.c.b16 %v4384, %v4376
    %v5065 = vpack.c.b16 %v4385, %v4377
    %v5066 = vpack.c.b16 %v4394, %v4386
    %v5067 = vpack.c.b16 %v4395, %v4387
    %v5068 = vpack.c.b16 %v4396, %v4388
    %v5069 = vpack.c.b16 %v4397, %v4389
    %v5070 = vpack.c.b16 %v4398, %v4390
    %v5071 = vpack.c.b16 %v4399, %v4391
    %v5072 = vpack.c.b16 %v4400, %v4392
    %v5073 = vpack.c.b16 %v4401, %v4393
    %v5074 = vpack.c.b16 %v4410, %v4402
    %v5075 = vpack.c.b16 %v4411, %v4403
    %v5076 = vpack.c.b16 %v4412, %v4404
    %v5077 = vpack.c.b16 %v4413, %v4405
    %v5078 = vpack.c.b16 %v4414, %v4406
    %v5079 = vpack.c.b16 %v4415, %v4407
    %v5080 = vpack.c.b16 %v4416, %v4408
    %v5081 = vpack.c.b16 %v4417, %v4409
    %v5082 = vpack.c.b16 %v4426, %v4418
    %v5083 = vpack.c.b16 %v4427, %v4419
    %v5084 = vpack.c.b16 %v4428, %v4420
    %v5085 = vpack.c.b16 %v4429, %v4421
    %v5086 = vpack.c.b16 %v4430, %v4422
    %v5087 = vpack.c.b16 %v4431, %v4423
    %v5088 = vpack.c.b16 %v4432, %v4424
    %v5089 = vpack.c.b16 %v4433, %v4425
    %v5090 = vpack.c.b16 %v4442, %v4434
    %v5091 = vpack.c.b16 %v4443, %v4435
    %v5092 = vpack.c.b16 %v4444, %v4436
    %v5093 = vpack.c.b16 %v4445, %v4437
    %v5094 = vpack.c.b16 %v4446, %v4438
    %v5095 = vpack.c.b16 %v4447, %v4439
    %v5096 = vpack.c.b16 %v4448, %v4440
    %v5097 = vpack.c.b16 %v4449, %v4441
    %v5098 = vpack.c.b16 %v4458, %v4450
    %v5099 = vpack.c.b16 %v4459, %v4451
    %v5100 = vpack.c.b16 %v4460, %v4452
    %v5101 = vpack.c.b16 %v4461, %v4453
    %v5102 = vpack.c.b16 %v4462, %v4454
    %v5103 = vpack.c.b16 %v4463, %v4455
    %v5104 = vpack.c.b16 %v4464, %v4456
    %v5105 = vpack.c.b16 %v4465, %v4457
    %v5106 = vpack.c.b16 %v4474, %v4466
    %v5107 = vpack.c.b16 %v4475, %v4467
    %v5108 = vpack.c.b16 %v4476, %v4468
    %v5109 = vpack.c.b16 %v4477, %v4469
    %v5110 = vpack.c.b16 %v4478, %v4470
    %v5111 = vpack.c.b16 %v4479, %v4471
    %v5112 = vpack.c.b16 %v4480, %v4472
    %v5113 = vpack.c.b16 %v4481, %v4473
    %v5114 = vpack.c.b16 %v4490, %v4482
    %v5115 = vpack.c.b16 %v4491, %v4483
    %v5116 = vpack.c.b16 %v4492, %v4484
    %v5117 = vpack.c.b16 %v4493, %v4485
    %v5118 = vpack.c.b16 %v4494, %v4486
    %v5119 = vpack.c.b16 %v4495, %v4487
    %v5120 = vpack.c.b16 %v4496, %v4488
    %v5121 = vpack.c.b16 %v4497, %v4489
    %v5122 = vpack.c.b16 %v4506, %v4498
    %v5123 = vpack.c.b16 %v4507, %v4499
    %v5124 = vpack.c.b16 %v4508, %v4500
    %v5125 = vpack.c.b16 %v4509, %v4501
    %v5126 = vpack.c.b16 %v4510, %v4502
    %v5127 = vpack.c.b16 %v4511, %v4503
    %v5128 = vpack.c.b16 %v4512, %v4504
    %v5129 = vpack.c.b16 %v4513, %v4505
    %v5130 = vpack.c.b16 %v4522, %v4514
    %v5131 = vpack.c.b16 %v4523, %v4515
    %v5132 = vpack.c.b16 %v4524, %v4516
    %v5133 = vpack.c.b16 %v4525, %v4517
    %v5134 = vpack.c.b16 %v4526, %v4518
    %v5135 = vpack.c.b16 %v4527, %v4519
    %v5136 = vpack.c.b16 %v4528, %v4520
    %v5137 = vpack.c.b16 %v4529, %v4521
    %v5138 = vpack.c.b16 %v4538, %v4530
    %v5139 = vpack.c.b16 %v4539, %v4531
    %v5140 = vpack.c.b16 %v4540, %v4532
    %v5141 = vpack.c.b16 %v4541, %v4533
    %v5142 = vpack.c.b16 %v4542, %v4534
    %v5143 = vpack.c.b16 %v4543, %v4535
    %v5144 = vpack.c.b16 %v4544, %v4536
    %v5145 = vpack.c.b16 %v4545, %v4537
    %v5146 = vpack.c.b16 %v4554, %v4546
    %v5147 = vpack.c.b16 %v4555, %v4547
    %v5148 = vpack.c.b16 %v4556, %v4548
    %v5149 = vpack.c.b16 %v4557, %v4549
    %v5150 = vpack.c.b16 %v4558, %v4550
    %v5151 = vpack.c.b16 %v4559, %v4551
    %v5152 = vpack.c.b16 %v4560, %v4552
    %v5153 = vpack.c.b16 %v4561, %v4553
    %v5154 = vpack.c.b16 %v4570, %v4562
    %v5155 = vpack.c.b16 %v4571, %v4563
    %v5156 = vpack.c.b16 %v4572, %v4564
    %v5157 = vpack.c.b16 %v4573, %v4565
    %v5158 = vpack.c.b16 %v4574, %v4566
    %v5159 = vpack.c.b16 %v4575, %v4567
    %v5160 = vpack.c.b16 %v4576, %v4568
    %v5161 = vpack.c.b16 %v4577, %v4569
    %v5162 = vpack.c.b16 %v4586, %v4578
    %v5163 = vpack.c.b16 %v4587, %v4579
    %v5164 = vpack.c.b16 %v4588, %v4580
    %v5165 = vpack.c.b16 %v4589, %v4581
    %v5166 = vpack.c.b16 %v4590, %v4582
    %v5167 = vpack.c.b16 %v4591, %v4583
    %v5168 = vpack.c.b16 %v4592, %v4584
    %v5169 = vpack.c.b16 %v4593, %v4585
    %v5170 = vpack.c.b16 %v4602, %v4594
    %v5171 = vpack.c.b16 %v4603, %v4595
    %v5172 = vpack.c.b16 %v4604, %v4596
    %v5173 = vpack.c.b16 %v4605, %v4597
    %v5174 = vpack.c.b16 %v4606, %v4598
    %v5175 = vpack.c.b16 %v4607, %v4599
    %v5176 = vpack.c.b16 %v4608, %v4600
    %v5177 = vpack.c.b16 %v4609, %v4601
    %v5178 = vpack.c.b16 %v4618, %v4610
    %v5179 = vpack.c.b16 %v4619, %v4611
    %v5180 = vpack.c.b16 %v4620, %v4612
    %v5181 = vpack.c.b16 %v4621, %v4613
    %v5182 = vpack.c.b16 %v4622, %v4614
    %v5183 = vpack.c.b16 %v4623, %v4615
    %v5184 = vpack.c.b16 %v4624, %v4616
    %v5185 = vpack.c.b16 %v4625, %v4617
    %v5186 = vpack.c.b16 %v4634, %v4626
    %v5187 = vpack.c.b16 %v4635, %v4627
    %v5188 = vpack.c.b16 %v4636, %v4628
    %v5189 = vpack.c.b16 %v4637, %v4629
    %v5190 = vpack.c.b16 %v4638, %v4630
    %v5191 = vpack.c.b16 %v4639, %v4631
    %v5192 = vpack.c.b16 %v4640, %v4632
    %v5193 = vpack.c.b16 %v4641, %v4633
    %v5194 = vpack.c.b16 %v4650, %v4642
    %v5195 = vpack.c.b16 %v4651, %v4643
    %v5196 = vpack.c.b16 %v4652, %v4644
    %v5197 = vpack.c.b16 %v4653, %v4645
    %v5198 = vpack.c.b16 %v4654, %v4646
    %v5199 = vpack.c.b16 %v4655, %v4647
    %v5200 = vpack.c.b16 %v4656, %v4648
    %v5201 = vpack.c.b16 %v4657, %v4649
    %v5202 = vpack.c.b16 %v4666, %v4658
    %v5203 = vpack.c.b16 %v4667, %v4659
    %v5204 = vpack.c.b16 %v4668, %v4660
    %v5205 = vpack.c.b16 %v4669, %v4661
    %v5206 = vpack.c.b16 %v4670, %v4662
    %v5207 = vpack.c.b16 %v4671, %v4663
    %v5208 = vpack.c.b16 %v4672, %v4664
    %v5209 = vpack.c.b16 %v4673, %v4665
    %v5210 = vpack.c.b16 %v4682, %v4674
    %v5211 = vpack.c.b16 %v4683, %v4675
    %v5212 = vpack.c.b16 %v4684, %v4676
    %v5213 = vpack.c.b16 %v4685, %v4677
    %v5214 = vpack.c.b16 %v4686, %v4678
    %v5215 = vpack.c.b16 %v4687, %v4679
    %v5216 = vpack.c.b16 %v4688, %v4680
    %v5217 = vpack.c.b16 %v4689, %v4681
    %v5218 = vpack.c.b16 %v4698, %v4690
    %v5219 = vpack.c.b16 %v4699, %v4691
    %v5220 = vpack.c.b16 %v4700, %v4692
    %v5221 = vpack.c.b16 %v4701, %v4693
    %v5222 = vpack.c.b16 %v4702, %v4694
    %v5223 = vpack.c.b16 %v4703, %v4695
    %v5224 = vpack.c.b16 %v4704, %v4696
    %v5225 = vpack.c.b16 %v4705, %v4697
    %v5226 = vpack.c.b16 %v4714, %v4706
    %v5227 = vpack.c.b16 %v4715, %v4707
    %v5228 = vpack.c.b16 %v4716, %v4708
    %v5229 = vpack.c.b16 %v4717, %v4709
    %v5230 = vpack.c.b16 %v4718, %v4710
    %v5231 = vpack.c.b16 %v4719, %v4711
    %v5232 = vpack.c.b16 %v4720, %v4712
    %v5233 = vpack.c.b16 %v4721, %v4713
    %v5234 = vpack.c.b16 %v4730, %v4722
    %v5235 = vpack.c.b16 %v4731, %v4723
    %v5236 = vpack.c.b16 %v4732, %v4724
    %v5237 = vpack.c.b16 %v4733, %v4725
    %v5238 = vpack.c.b16 %v4734, %v4726
    %v5239 = vpack.c.b16 %v4735, %v4727
    %v5240 = vpack.c.b16 %v4736, %v4728
    %v5241 = vpack.c.b16 %v4737, %v4729
    %v5242 = vpack.c.b16 %v4746, %v4738
    %v5243 = vpack.c.b16 %v4747, %v4739
    %v5244 = vpack.c.b16 %v4748, %v4740
    %v5245 = vpack.c.b16 %v4749, %v4741
    %v5246 = vpack.c.b16 %v4750, %v4742
    %v5247 = vpack.c.b16 %v4751, %v4743
    %v5248 = vpack.c.b16 %v4752, %v4744
    %v5249 = vpack.c.b16 %v4753, %v4745
    %v5250 = vpack.c.b16 %v4762, %v4754
    %v5251 = vpack.c.b16 %v4763, %v4755
    %v5252 = vpack.c.b16 %v4764, %v4756
    %v5253 = vpack.c.b16 %v4765, %v4757
    %v5254 = vpack.c.b16 %v4766, %v4758
    %v5255 = vpack.c.b16 %v4767, %v4759
    %v5256 = vpack.c.b16 %v4768, %v4760
    %v5257 = vpack.c.b16 %v4769, %v4761
    %v5258 = vpack.c.b16 %v4778, %v4770
    %v5259 = vpack.c.b16 %v4779, %v4771
    %v5260 = vpack.c.b16 %v4780, %v4772
    %v5261 = vpack.c.b16 %v4781, %v4773
    %v5262 = vpack.c.b16 %v4782, %v4774
    %v5263 = vpack.c.b16 %v4783, %v4775
    %v5264 = vpack.c.b16 %v4784, %v4776
    %v5265 = vpack.c.b16 %v4785, %v4777
    %v5266 = vpack.c.b16 %v4794, %v4786
    %v5267 = vpack.c.b16 %v4795, %v4787
    %v5268 = vpack.c.b16 %v4796, %v4788
    %v5269 = vpack.c.b16 %v4797, %v4789
    %v5270 = vpack.c.b16 %v4798, %v4790
    %v5271 = vpack.c.b16 %v4799, %v4791
    %v5272 = vpack.c.b16 %v4800, %v4792
    %v5273 = vpack.c.b16 %v4801, %v4793
    %v5274 = vpack.c.b16 %v4810, %v4802
    %v5275 = vpack.c.b16 %v4811, %v4803
    %v5276 = vpack.c.b16 %v4812, %v4804
    %v5277 = vpack.c.b16 %v4813, %v4805
    %v5278 = vpack.c.b16 %v4814, %v4806
    %v5279 = vpack.c.b16 %v4815, %v4807
    %v5280 = vpack.c.b16 %v4816, %v4808
    %v5281 = vpack.c.b16 %v4817, %v4809
    %v5282 = vpack.c.b16 %v4826, %v4818
    %v5283 = vpack.c.b16 %v4827, %v4819
    %v5284 = vpack.c.b16 %v4828, %v4820
    %v5285 = vpack.c.b16 %v4829, %v4821
    %v5286 = vpack.c.b16 %v4830, %v4822
    %v5287 = vpack.c.b16 %v4831, %v4823
    %v5288 = vpack.c.b16 %v4832, %v4824
    %v5289 = vpack.c.b16 %v4833, %v4825
    %v5290 = vpack.c.b16 %v4842, %v4834
    %v5291 = vpack.c.b16 %v4843, %v4835
    %v5292 = vpack.c.b16 %v4844, %v4836
    %v5293 = vpack.c.b16 %v4845, %v4837
    %v5294 = vpack.c.b16 %v4846, %v4838
    %v5295 = vpack.c.b16 %v4847, %v4839
    %v5296 = vpack.c.b16 %v4848, %v4840
    %v5297 = vpack.c.b16 %v4849, %v4841
    %v5298 = vpack.c.b16 %v4858, %v4850
    %v5299 = vpack.c.b16 %v4859, %v4851
    %v5300 = vpack.c.b16 %v4860, %v4852
    %v5301 = vpack.c.b16 %v4861, %v4853
    %v5302 = vpack.c.b16 %v4862, %v4854
    %v5303 = vpack.c.b16 %v4863, %v4855
    %v5304 = vpack.c.b16 %v4864, %v4856
    %v5305 = vpack.c.b16 %v4865, %v4857
    %v5306 = vpack.c.b16 %v4874, %v4866
    %v5307 = vpack.c.b16 %v4875, %v4867
    %v5308 = vpack.c.b16 %v4876, %v4868
    %v5309 = vpack.c.b16 %v4877, %v4869
    %v5310 = vpack.c.b16 %v4878, %v4870
    %v5311 = vpack.c.b16 %v4879, %v4871
    %v5312 = vpack.c.b16 %v4880, %v4872
    %v5313 = vpack.c.b16 %v4881, %v4873
    %v5314 = vpack.c.b16 %v4890, %v4882
    %v5315 = vpack.c.b16 %v4891, %v4883
    %v5316 = vpack.c.b16 %v4892, %v4884
    %v5317 = vpack.c.b16 %v4893, %v4885
    %v5318 = vpack.c.b16 %v4894, %v4886
    %v5319 = vpack.c.b16 %v4895, %v4887
    %v5320 = vpack.c.b16 %v4896, %v4888
    %v5321 = vpack.c.b16 %v4897, %v4889
    %v5322 = vpack.c.b16 %v4906, %v4898
    %v5323 = vpack.c.b16 %v4907, %v4899
    %v5324 = vpack.c.b16 %v4908, %v4900
    %v5325 = vpack.c.b16 %v4909, %v4901
    %v5326 = vpack.c.b16 %v4910, %v4902
    %v5327 = vpack.c.b16 %v4911, %v4903
    %v5328 = vpack.c.b16 %v4912, %v4904
    %v5329 = vpack.c.b16 %v4913, %v4905
    %v5330 = vpack.c.b16 %v4922, %v4914
    %v5331 = vpack.c.b16 %v4923, %v4915
    %v5332 = vpack.c.b16 %v4924, %v4916
    %v5333 = vpack.c.b16 %v4925, %v4917
    %v5334 = vpack.c.b16 %v4926, %v4918
    %v5335 = vpack.c.b16 %v4927, %v4919
    %v5336 = vpack.c.b16 %v4928, %v4920
    %v5337 = vpack.c.b16 %v4929, %v4921
    %v5338 = vpack.c.b16 %v4938, %v4930
    %v5339 = vpack.c.b16 %v4939, %v4931
    %v5340 = vpack.c.b16 %v4940, %v4932
    %v5341 = vpack.c.b16 %v4941, %v4933
    %v5342 = vpack.c.b16 %v4942, %v4934
    %v5343 = vpack.c.b16 %v4943, %v4935
    %v5344 = vpack.c.b16 %v4944, %v4936
    %v5345 = vpack.c.b16 %v4945, %v4937
    %v5346 = vpack.c.b16 %v4954, %v4946
    %v5347 = vpack.c.b16 %v4955, %v4947
    %v5348 = vpack.c.b16 %v4956, %v4948
    %v5349 = vpack.c.b16 %v4957, %v4949
    %v5350 = vpack.c.b16 %v4958, %v4950
    %v5351 = vpack.c.b16 %v4959, %v4951
    %v5352 = vpack.c.b16 %v4960, %v4952
    %v5353 = vpack.c.b16 %v4961, %v4953
    %v5354 = vpack.c.b16 %v4970, %v4962
    %v5355 = vpack.c.b16 %v4971, %v4963
    %v5356 = vpack.c.b16 %v4972, %v4964
    %v5357 = vpack.c.b16 %v4973, %v4965
    %v5358 = vpack.c.b16 %v4974, %v4966
    %v5359 = vpack.c.b16 %v4975, %v4967
    %v5360 = vpack.c.b16 %v4976, %v4968
    %v5361 = vpack.c.b16 %v4977, %v4969
    %5746 = vmatprep.subr.bf16.mxu0 %v4979
    %5747 = vmatpush1.bf16.msra.mxu0 %v4978
    %5748 = vmatprep.subr.bf16.mxu0 %v4987
    %5749 = vmatpush1.bf16.msra.mxu0 %v4986
    %5750 = vmatprep.subr.bf16.mxu0 %v4995
    %5751 = vmatpush1.bf16.msra.mxu0 %v4994
    %5752 = vmatprep.subr.bf16.mxu0 %v5003
    %5753 = vmatpush1.bf16.msra.mxu0 %v5002
    %5754 = vmatprep.subr.bf16.mxu0 %v5011
    %5755 = vmatpush1.bf16.msra.mxu0 %v5010
    %5756 = vmatprep.subr.bf16.mxu0 %v5019
    %5757 = vmatpush1.bf16.msra.mxu0 %v5018
    %5758 = vmatprep.subr.bf16.mxu0 %v5027
    %5759 = vmatpush1.bf16.msra.mxu0 %v5026
    %5760 = vmatprep.subr.bf16.mxu0 %v5035
    %5761 = vmatpush1.bf16.msra.mxu0 %v5034
    %5762 = vmatprep.subr.bf16.mxu0 %v5043
    %5763 = vmatpush1.bf16.msra.mxu0 %v5042
    %5764 = vmatprep.subr.bf16.mxu0 %v5051
    %5765 = vmatpush1.bf16.msra.mxu0 %v5050
    %5766 = vmatprep.subr.bf16.mxu0 %v5059
    %5767 = vmatpush1.bf16.msra.mxu0 %v5058
    %5768 = vmatprep.subr.bf16.mxu0 %v5067
    %5769 = vmatpush1.bf16.msra.mxu0 %v5066
    %5770 = vmatprep.subr.bf16.mxu0 %v5075
    %5771 = vmatpush1.bf16.msra.mxu0 %v5074
    %5772 = vmatprep.subr.bf16.mxu0 %v5083
    %5773 = vmatpush1.bf16.msra.mxu0 %v5082
    %5774 = vmatprep.subr.bf16.mxu0 %v5091
    %5775 = vmatpush1.bf16.msra.mxu0 %v5090
    %5776 = vmatprep.subr.bf16.mxu0 %v5099
    %5777 = vmatpush1.bf16.msra.mxu0 %v5098
    %5778 = vmatprep.mubr.bf16.mxu0 %v3437
    %5779 = vmatmul.mubr.bf16.gmra.mrb[0].mxu0 %v3436
    %v5780 = vpop.f32.mrb[0].mxu0
    %v5781 = vadd.f32 0.0, %v5780
    %v5782 = vpop.f32.mrb[0].mxu0
    %v5783 = vadd.f32 0.0, %v5782
    %v5784 = vpop.f32.mrb[0].mxu0
    %v5785 = vpop.f32.mrb[0].mxu0
    %5786 = vdwg.mxu0
    %5787 = vmatprep.subr.bf16.mxu0 %v5107
    %5788 = vmatpush1.bf16.msra.mxu0 %v5106
    %5789 = vmatprep.subr.bf16.mxu0 %v5115
    %5790 = vmatpush1.bf16.msra.mxu0 %v5114
    %5791 = vmatprep.subr.bf16.mxu0 %v5123
    %5792 = vmatpush1.bf16.msra.mxu0 %v5122
    %5793 = vmatprep.subr.bf16.mxu0 %v5131
    %5794 = vmatpush1.bf16.msra.mxu0 %v5130
    %5795 = vmatprep.subr.bf16.mxu0 %v5139
    %5796 = vmatpush1.bf16.msra.mxu0 %v5138
    %5797 = vmatprep.subr.bf16.mxu0 %v5147
    %5798 = vmatpush1.bf16.msra.mxu0 %v5146
    %5799 = vmatprep.subr.bf16.mxu0 %v5155
    %5800 = vmatpush1.bf16.msra.mxu0 %v5154
    %5801 = vmatprep.subr.bf16.mxu0 %v5163
    %5802 = vmatpush1.bf16.msra.mxu0 %v5162
    %5803 = vmatprep.subr.bf16.mxu0 %v5171
    %5804 = vmatpush1.bf16.msra.mxu0 %v5170
    %5805 = vmatprep.subr.bf16.mxu0 %v5179
    %5806 = vmatpush1.bf16.msra.mxu0 %v5178
    %5807 = vmatprep.subr.bf16.mxu0 %v5187
    %5808 = vmatpush1.bf16.msra.mxu0 %v5186
    %5809 = vmatprep.subr.bf16.mxu0 %v5195
    %5810 = vmatpush1.bf16.msra.mxu0 %v5194
    %5811 = vmatprep.subr.bf16.mxu0 %v5203
    %5812 = vmatpush1.bf16.msra.mxu0 %v5202
    %5813 = vmatprep.subr.bf16.mxu0 %v5211
    %5814 = vmatpush1.bf16.msra.mxu0 %v5210
    %5815 = vmatprep.subr.bf16.mxu0 %v5219
    %5816 = vmatpush1.bf16.msra.mxu0 %v5218
    %5817 = vmatprep.subr.bf16.mxu0 %v5227
    %5818 = vmatpush1.bf16.msra.mxu0 %v5226
    %5819 = vmatprep.mubr.bf16.mxu0 %v3439
    %5820 = vmatmul.mubr.bf16.gmra.mrb[0].mxu0 %v3438
    %v5821 = vpop.f32.mrb[0].mxu0
    %v5822 = vadd.f32 %v5781, %v5821
    %v5823 = vpop.f32.mrb[0].mxu0
    %v5824 = vadd.f32 %v5783, %v5823
    %v5825 = vpop.f32.mrb[0].mxu0
    %v5826 = vpop.f32.mrb[0].mxu0
    %5827 = vdwg.mxu0
    %5828 = vmatprep.subr.bf16.mxu0 %v5235
    %5829 = vmatpush1.bf16.msra.mxu0 %v5234
    %5830 = vmatprep.subr.bf16.mxu0 %v5243
    %5831 = vmatpush1.bf16.msra.mxu0 %v5242
    %5832 = vmatprep.subr.bf16.mxu0 %v5251
    %5833 = vmatpush1.bf16.msra.mxu0 %v5250
    %5834 = vmatprep.subr.bf16.mxu0 %v5259
    %5835 = vmatpush1.bf16.msra.mxu0 %v5258
    %5836 = vmatprep.subr.bf16.mxu0 %v5267
    %5837 = vmatpush1.bf16.msra.mxu0 %v5266
    %5838 = vmatprep.subr.bf16.mxu0 %v5275
    %5839 = vmatpush1.bf16.msra.mxu0 %v5274
    %5840 = vmatprep.subr.bf16.mxu0 %v5283
    %5841 = vmatpush1.bf16.msra.mxu0 %v5282
    %5842 = vmatprep.subr.bf16.mxu0 %v5291
    %5843 = vmatpush1.bf16.msra.mxu0 %v5290
    %5844 = vmatprep.subr.bf16.mxu0 %v5299
    %5845 = vmatpush1.bf16.msra.mxu0 %v5298
    %5846 = vmatprep.subr.bf16.mxu0 %v5307
    %5847 = vmatpush1.bf16.msra.mxu0 %v5306
    %5848 = vmatprep.subr.bf16.mxu0 %v5315
    %5849 = vmatpush1.bf16.msra.mxu0 %v5314
    %5850 = vmatprep.subr.bf16.mxu0 %v5323
    %5851 = vmatpush1.bf16.msra.mxu0 %v5322
    %5852 = vmatprep.subr.bf16.mxu0 %v5331
    %5853 = vmatpush1.bf16.msra.mxu0 %v5330
    %5854 = vmatprep.subr.bf16.mxu0 %v5339
    %5855 = vmatpush1.bf16.msra.mxu0 %v5338
    %5856 = vmatprep.subr.bf16.mxu0 %v5347
    %5857 = vmatpush1.bf16.msra.mxu0 %v5346
    %5858 = vmatprep.subr.bf16.mxu0 %v5355
    %5859 = vmatpush1.bf16.msra.mxu0 %v5354
    %5860 = vmatprep.mubr.bf16.mxu0 %v3441
    %5861 = vmatmul.mubr.bf16.gmra.mrb[0].mxu0 %v3440
    %v5862 = vpop.f32.mrb[0].mxu0
    %v5863 = vadd.f32 %v5822, %v5862
    %v5864 = vpop.f32.mrb[0].mxu0
    %v5865 = vadd.f32 %v5824, %v5864
    %v5866 = vpop.f32.mrb[0].mxu0
    %v5867 = vpop.f32.mrb[0].mxu0
    %5868 = vdwg.mxu0
    %5869 = vmatprep.subr.bf16.mxu0 %v4981
    %5870 = vmatpush1.bf16.msra.mxu0 %v4980
    %5871 = vmatprep.subr.bf16.mxu0 %v4989
    %5872 = vmatpush1.bf16.msra.mxu0 %v4988
    %5873 = vmatprep.subr.bf16.mxu0 %v4997
    %5874 = vmatpush1.bf16.msra.mxu0 %v4996
    %5875 = vmatprep.subr.bf16.mxu0 %v5005
    %5876 = vmatpush1.bf16.msra.mxu0 %v5004
    %5877 = vmatprep.subr.bf16.mxu0 %v5013
    %5878 = vmatpush1.bf16.msra.mxu0 %v5012
    %5879 = vmatprep.subr.bf16.mxu0 %v5021
    %5880 = vmatpush1.bf16.msra.mxu0 %v5020
    %5881 = vmatprep.subr.bf16.mxu0 %v5029
    %5882 = vmatpush1.bf16.msra.mxu0 %v5028
    %5883 = vmatprep.subr.bf16.mxu0 %v5037
    %5884 = vmatpush1.bf16.msra.mxu0 %v5036
    %5885 = vmatprep.subr.bf16.mxu0 %v5045
    %5886 = vmatpush1.bf16.msra.mxu0 %v5044
    %5887 = vmatprep.subr.bf16.mxu0 %v5053
    %5888 = vmatpush1.bf16.msra.mxu0 %v5052
    %5889 = vmatprep.subr.bf16.mxu0 %v5061
    %5890 = vmatpush1.bf16.msra.mxu0 %v5060
    %5891 = vmatprep.subr.bf16.mxu0 %v5069
    %5892 = vmatpush1.bf16.msra.mxu0 %v5068
    %5893 = vmatprep.subr.bf16.mxu0 %v5077
    %5894 = vmatpush1.bf16.msra.mxu0 %v5076
    %5895 = vmatprep.subr.bf16.mxu0 %v5085
    %5896 = vmatpush1.bf16.msra.mxu0 %v5084
    %5897 = vmatprep.subr.bf16.mxu0 %v5093
    %5898 = vmatpush1.bf16.msra.mxu0 %v5092
    %5899 = vmatprep.subr.bf16.mxu0 %v5101
    %5900 = vmatpush1.bf16.msra.mxu0 %v5100
    %5901 = vmatprep.mubr.bf16.mxu0 %v3437
    %5902 = vmatmul.mubr.bf16.gmra.mrb[0].mxu0 %v3436
    %v5903 = vpop.f32.mrb[0].mxu0
    %v5904 = vadd.f32 0.0, %v5903
    %v5905 = vpop.f32.mrb[0].mxu0
    %v5906 = vadd.f32 0.0, %v5905
    %v5907 = vpop.f32.mrb[0].mxu0
    %v5908 = vpop.f32.mrb[0].mxu0
    %5909 = vdwg.mxu0
    %5910 = vmatprep.subr.bf16.mxu0 %v5109
    %5911 = vmatpush1.bf16.msra.mxu0 %v5108
    %5912 = vmatprep.subr.bf16.mxu0 %v5117
    %5913 = vmatpush1.bf16.msra.mxu0 %v5116
    %5914 = vmatprep.subr.bf16.mxu0 %v5125
    %5915 = vmatpush1.bf16.msra.mxu0 %v5124
    %5916 = vmatprep.subr.bf16.mxu0 %v5133
    %5917 = vmatpush1.bf16.msra.mxu0 %v5132
    %5918 = vmatprep.subr.bf16.mxu0 %v5141
    %5919 = vmatpush1.bf16.msra.mxu0 %v5140
    %5920 = vmatprep.subr.bf16.mxu0 %v5149
    %5921 = vmatpush1.bf16.msra.mxu0 %v5148
    %5922 = vmatprep.subr.bf16.mxu0 %v5157
    %5923 = vmatpush1.bf16.msra.mxu0 %v5156
    %5924 = vmatprep.subr.bf16.mxu0 %v5165
    %5925 = vmatpush1.bf16.msra.mxu0 %v5164
    %5926 = vmatprep.subr.bf16.mxu0 %v5173
    %5927 = vmatpush1.bf16.msra.mxu0 %v5172
    %5928 = vmatprep.subr.bf16.mxu0 %v5181
    %5929 = vmatpush1.bf16.msra.mxu0 %v5180
    %5930 = vmatprep.subr.bf16.mxu0 %v5189
    %5931 = vmatpush1.bf16.msra.mxu0 %v5188
    %5932 = vmatprep.subr.bf16.mxu0 %v5197
    %5933 = vmatpush1.bf16.msra.mxu0 %v5196
    %5934 = vmatprep.subr.bf16.mxu0 %v5205
    %5935 = vmatpush1.bf16.msra.mxu0 %v5204
    %5936 = vmatprep.subr.bf16.mxu0 %v5213
    %5937 = vmatpush1.bf16.msra.mxu0 %v5212
    %5938 = vmatprep.subr.bf16.mxu0 %v5221
    %5939 = vmatpush1.bf16.msra.mxu0 %v5220
    %5940 = vmatprep.subr.bf16.mxu0 %v5229
    %5941 = vmatpush1.bf16.msra.mxu0 %v5228
    %5942 = vmatprep.mubr.bf16.mxu0 %v3439
    %5943 = vmatmul.mubr.bf16.gmra.mrb[0].mxu0 %v3438
    %v5944 = vpop.f32.mrb[0].mxu0
    %v5945 = vadd.f32 %v5904, %v5944
    %v5946 = vpop.f32.mrb[0].mxu0
    %v5947 = vadd.f32 %v5906, %v5946
    %v5948 = vpop.f32.mrb[0].mxu0
    %v5949 = vpop.f32.mrb[0].mxu0
    %5950 = vdwg.mxu0
    %5951 = vmatprep.subr.bf16.mxu0 %v5237
    %5952 = vmatpush1.bf16.msra.mxu0 %v5236
    %5953 = vmatprep.subr.bf16.mxu0 %v5245
    %5954 = vmatpush1.bf16.msra.mxu0 %v5244
    %5955 = vmatprep.subr.bf16.mxu0 %v5253
    %5956 = vmatpush1.bf16.msra.mxu0 %v5252
    %5957 = vmatprep.subr.bf16.mxu0 %v5261
    %5958 = vmatpush1.bf16.msra.mxu0 %v5260
    %5959 = vmatprep.subr.bf16.mxu0 %v5269
    %5960 = vmatpush1.bf16.msra.mxu0 %v5268
    %5961 = vmatprep.subr.bf16.mxu0 %v5277
    %5962 = vmatpush1.bf16.msra.mxu0 %v5276
    %5963 = vmatprep.subr.bf16.mxu0 %v5285
    %5964 = vmatpush1.bf16.msra.mxu0 %v5284
    %5965 = vmatprep.subr.bf16.mxu0 %v5293
    %5966 = vmatpush1.bf16.msra.mxu0 %v5292
    %5967 = vmatprep.subr.bf16.mxu0 %v5301
    %5968 = vmatpush1.bf16.msra.mxu0 %v5300
    %5969 = vmatprep.subr.bf16.mxu0 %v5309
    %5970 = vmatpush1.bf16.msra.mxu0 %v5308
    %5971 = vmatprep.subr.bf16.mxu0 %v5317
    %5972 = vmatpush1.bf16.msra.mxu0 %v5316
    %5973 = vmatprep.subr.bf16.mxu0 %v5325
    %5974 = vmatpush1.bf16.msra.mxu0 %v5324
    %5975 = vmatprep.subr.bf16.mxu0 %v5333
    %5976 = vmatpush1.bf16.msra.mxu0 %v5332
    %5977 = vmatprep.subr.bf16.mxu0 %v5341
    %5978 = vmatpush1.bf16.msra.mxu0 %v5340
    %5979 = vmatprep.subr.bf16.mxu0 %v5349
    %5980 = vmatpush1.bf16.msra.mxu0 %v5348
    %5981 = vmatprep.subr.bf16.mxu0 %v5357
    %5982 = vmatpush1.bf16.msra.mxu0 %v5356
    %5983 = vmatprep.mubr.bf16.mxu0 %v3441
    %5984 = vmatmul.mubr.bf16.gmra.mrb[0].mxu0 %v3440
    %v5985 = vpop.f32.mrb[0].mxu0
    %v5986 = vadd.f32 %v5945, %v5985
    %v5987 = vpop.f32.mrb[0].mxu0
    %v5988 = vadd.f32 %v5947, %v5987
    %v5989 = vpop.f32.mrb[0].mxu0
    %v5990 = vpop.f32.mrb[0].mxu0
    %5991 = vdwg.mxu0
    %5992 = vmatprep.subr.bf16.mxu0 %v4983
    %5993 = vmatpush1.bf16.msra.mxu0 %v4982
    %5994 = vmatprep.subr.bf16.mxu0 %v4991
    %5995 = vmatpush1.bf16.msra.mxu0 %v4990
    %5996 = vmatprep.subr.bf16.mxu0 %v4999
    %5997 = vmatpush1.bf16.msra.mxu0 %v4998
    %5998 = vmatprep.subr.bf16.mxu0 %v5007
    %5999 = vmatpush1.bf16.msra.mxu0 %v5006
    %6000 = vmatprep.subr.bf16.mxu0 %v5015
    %6001 = vmatpush1.bf16.msra.mxu0 %v5014
    %6002 = vmatprep.subr.bf16.mxu0 %v5023
    %6003 = vmatpush1.bf16.msra.mxu0 %v5022
    %6004 = vmatprep.subr.bf16.mxu0 %v5031
    %6005 = vmatpush1.bf16.msra.mxu0 %v5030
    %6006 = vmatprep.subr.bf16.mxu0 %v5039
    %6007 = vmatpush1.bf16.msra.mxu0 %v5038
    %6008 = vmatprep.subr.bf16.mxu0 %v5047
    %6009 = vmatpush1.bf16.msra.mxu0 %v5046
    %6010 = vmatprep.subr.bf16.mxu0 %v5055
    %6011 = vmatpush1.bf16.msra.mxu0 %v5054
    %6012 = vmatprep.subr.bf16.mxu0 %v5063
    %6013 = vmatpush1.bf16.msra.mxu0 %v5062
    %6014 = vmatprep.subr.bf16.mxu0 %v5071
    %6015 = vmatpush1.bf16.msra.mxu0 %v5070
    %6016 = vmatprep.subr.bf16.mxu0 %v5079
    %6017 = vmatpush1.bf16.msra.mxu0 %v5078
    %6018 = vmatprep.subr.bf16.mxu0 %v5087
    %6019 = vmatpush1.bf16.msra.mxu0 %v5086
    %6020 = vmatprep.subr.bf16.mxu0 %v5095
    %6021 = vmatpush1.bf16.msra.mxu0 %v5094
    %6022 = vmatprep.subr.bf16.mxu0 %v5103
    %6023 = vmatpush1.bf16.msra.mxu0 %v5102
    %6024 = vmatprep.mubr.bf16.mxu0 %v3437
    %6025 = vmatmul.mubr.bf16.gmra.mrb[0].mxu0 %v3436
    %v6026 = vpop.f32.mrb[0].mxu0
    %v6027 = vadd.f32 0.0, %v6026
    %v6028 = vpop.f32.mrb[0].mxu0
    %v6029 = vadd.f32 0.0, %v6028
    %v6030 = vpop.f32.mrb[0].mxu0
    %v6031 = vpop.f32.mrb[0].mxu0
    %6032 = vdwg.mxu0
    %6033 = vmatprep.subr.bf16.mxu0 %v5111
    %6034 = vmatpush1.bf16.msra.mxu0 %v5110
    %6035 = vmatprep.subr.bf16.mxu0 %v5119
    %6036 = vmatpush1.bf16.msra.mxu0 %v5118
    %6037 = vmatprep.subr.bf16.mxu0 %v5127
    %6038 = vmatpush1.bf16.msra.mxu0 %v5126
    %6039 = vmatprep.subr.bf16.mxu0 %v5135
    %6040 = vmatpush1.bf16.msra.mxu0 %v5134
    %6041 = vmatprep.subr.bf16.mxu0 %v5143
    %6042 = vmatpush1.bf16.msra.mxu0 %v5142
    %6043 = vmatprep.subr.bf16.mxu0 %v5151
    %6044 = vmatpush1.bf16.msra.mxu0 %v5150
    %6045 = vmatprep.subr.bf16.mxu0 %v5159
    %6046 = vmatpush1.bf16.msra.mxu0 %v5158
    %6047 = vmatprep.subr.bf16.mxu0 %v5167
    %6048 = vmatpush1.bf16.msra.mxu0 %v5166
    %6049 = vmatprep.subr.bf16.mxu0 %v5175
    %6050 = vmatpush1.bf16.msra.mxu0 %v5174
    %6051 = vmatprep.subr.bf16.mxu0 %v5183
    %6052 = vmatpush1.bf16.msra.mxu0 %v5182
    %6053 = vmatprep.subr.bf16.mxu0 %v5191
    %6054 = vmatpush1.bf16.msra.mxu0 %v5190
    %6055 = vmatprep.subr.bf16.mxu0 %v5199
    %6056 = vmatpush1.bf16.msra.mxu0 %v5198
    %6057 = vmatprep.subr.bf16.mxu0 %v5207
    %6058 = vmatpush1.bf16.msra.mxu0 %v5206
    %6059 = vmatprep.subr.bf16.mxu0 %v5215
    %6060 = vmatpush1.bf16.msra.mxu0 %v5214
    %6061 = vmatprep.subr.bf16.mxu0 %v5223
    %6062 = vmatpush1.bf16.msra.mxu0 %v5222
    %6063 = vmatprep.subr.bf16.mxu0 %v5231
    %6064 = vmatpush1.bf16.msra.mxu0 %v5230
    %6065 = vmatprep.mubr.bf16.mxu0 %v3439
    %6066 = vmatmul.mubr.bf16.gmra.mrb[0].mxu0 %v3438
    %v6067 = vpop.f32.mrb[0].mxu0
    %v6068 = vadd.f32 %v6027, %v6067
    %v6069 = vpop.f32.mrb[0].mxu0
    %v6070 = vadd.f32 %v6029, %v6069
    %v6071 = vpop.f32.mrb[0].mxu0
    %v6072 = vpop.f32.mrb[0].mxu0
    %6073 = vdwg.mxu0
    %6074 = vmatprep.subr.bf16.mxu0 %v5239
    %6075 = vmatpush1.bf16.msra.mxu0 %v5238
    %6076 = vmatprep.subr.bf16.mxu0 %v5247
    %6077 = vmatpush1.bf16.msra.mxu0 %v5246
    %6078 = vmatprep.subr.bf16.mxu0 %v5255
    %6079 = vmatpush1.bf16.msra.mxu0 %v5254
    %6080 = vmatprep.subr.bf16.mxu0 %v5263
    %6081 = vmatpush1.bf16.msra.mxu0 %v5262
    %6082 = vmatprep.subr.bf16.mxu0 %v5271
    %6083 = vmatpush1.bf16.msra.mxu0 %v5270
    %6084 = vmatprep.subr.bf16.mxu0 %v5279
    %6085 = vmatpush1.bf16.msra.mxu0 %v5278
    %6086 = vmatprep.subr.bf16.mxu0 %v5287
    %6087 = vmatpush1.bf16.msra.mxu0 %v5286
    %6088 = vmatprep.subr.bf16.mxu0 %v5295
    %6089 = vmatpush1.bf16.msra.mxu0 %v5294
    %6090 = vmatprep.subr.bf16.mxu0 %v5303
    %6091 = vmatpush1.bf16.msra.mxu0 %v5302
    %6092 = vmatprep.subr.bf16.mxu0 %v5311
    %6093 = vmatpush1.bf16.msra.mxu0 %v5310
    %6094 = vmatprep.subr.bf16.mxu0 %v5319
    %6095 = vmatpush1.bf16.msra.mxu0 %v5318
    %6096 = vmatprep.subr.bf16.mxu0 %v5327
    %6097 = vmatpush1.bf16.msra.mxu0 %v5326
    %6098 = vmatprep.subr.bf16.mxu0 %v5335
    %6099 = vmatpush1.bf16.msra.mxu0 %v5334
    %6100 = vmatprep.subr.bf16.mxu0 %v5343
    %6101 = vmatpush1.bf16.msra.mxu0 %v5342
    %6102 = vmatprep.subr.bf16.mxu0 %v5351
    %6103 = vmatpush1.bf16.msra.mxu0 %v5350
    %6104 = vmatprep.subr.bf16.mxu0 %v5359
    %6105 = vmatpush1.bf16.msra.mxu0 %v5358
    %6106 = vmatprep.mubr.bf16.mxu0 %v3441
    %6107 = vmatmul.mubr.bf16.gmra.mrb[0].mxu0 %v3440
    %v6108 = vpop.f32.mrb[0].mxu0
    %v6109 = vadd.f32 %v6068, %v6108
    %v6110 = vpop.f32.mrb[0].mxu0
    %v6111 = vadd.f32 %v6070, %v6110
    %v6112 = vpop.f32.mrb[0].mxu0
    %v6113 = vpop.f32.mrb[0].mxu0
    %6114 = vdwg.mxu0
    %6115 = vmatprep.subr.bf16.mxu0 %v4985
    %6116 = vmatpush1.bf16.msra.mxu0 %v4984
    %6117 = vmatprep.subr.bf16.mxu0 %v4993
    %6118 = vmatpush1.bf16.msra.mxu0 %v4992
    %6119 = vmatprep.subr.bf16.mxu0 %v5001
    %6120 = vmatpush1.bf16.msra.mxu0 %v5000
    %6121 = vmatprep.subr.bf16.mxu0 %v5009
    %6122 = vmatpush1.bf16.msra.mxu0 %v5008
    %6123 = vmatprep.subr.bf16.mxu0 %v5017
    %6124 = vmatpush1.bf16.msra.mxu0 %v5016
    %6125 = vmatprep.subr.bf16.mxu0 %v5025
    %6126 = vmatpush1.bf16.msra.mxu0 %v5024
    %6127 = vmatprep.subr.bf16.mxu0 %v5033
    %6128 = vmatpush1.bf16.msra.mxu0 %v5032
    %6129 = vmatprep.subr.bf16.mxu0 %v5041
    %6130 = vmatpush1.bf16.msra.mxu0 %v5040
    %6131 = vmatprep.subr.bf16.mxu0 %v5049
    %6132 = vmatpush1.bf16.msra.mxu0 %v5048
    %6133 = vmatprep.subr.bf16.mxu0 %v5057
    %6134 = vmatpush1.bf16.msra.mxu0 %v5056
    %6135 = vmatprep.subr.bf16.mxu0 %v5065
    %6136 = vmatpush1.bf16.msra.mxu0 %v5064
    %6137 = vmatprep.subr.bf16.mxu0 %v5073
    %6138 = vmatpush1.bf16.msra.mxu0 %v5072
    %6139 = vmatprep.subr.bf16.mxu0 %v5081
    %6140 = vmatpush1.bf16.msra.mxu0 %v5080
    %6141 = vmatprep.subr.bf16.mxu0 %v5089
    %6142 = vmatpush1.bf16.msra.mxu0 %v5088
    %6143 = vmatprep.subr.bf16.mxu0 %v5097
    %6144 = vmatpush1.bf16.msra.mxu0 %v5096
    %6145 = vmatprep.subr.bf16.mxu0 %v5105
    %6146 = vmatpush1.bf16.msra.mxu0 %v5104
    %6147 = vmatprep.mubr.bf16.mxu0 %v3437
    %6148 = vmatmul.mubr.bf16.gmra.mrb[0].mxu0 %v3436
    %v6149 = vpop.f32.mrb[0].mxu0
    %v6150 = vadd.f32 0.0, %v6149
    %v6151 = vpop.f32.mrb[0].mxu0
    %v6152 = vadd.f32 0.0, %v6151
    %v6153 = vpop.f32.mrb[0].mxu0
    %v6154 = vpop.f32.mrb[0].mxu0
    %6155 = vdwg.mxu0
    %6156 = vmatprep.subr.bf16.mxu0 %v5113
    %6157 = vmatpush1.bf16.msra.mxu0 %v5112
    %6158 = vmatprep.subr.bf16.mxu0 %v5121
    %6159 = vmatpush1.bf16.msra.mxu0 %v5120
    %6160 = vmatprep.subr.bf16.mxu0 %v5129
    %6161 = vmatpush1.bf16.msra.mxu0 %v5128
    %6162 = vmatprep.subr.bf16.mxu0 %v5137
    %6163 = vmatpush1.bf16.msra.mxu0 %v5136
    %6164 = vmatprep.subr.bf16.mxu0 %v5145
    %6165 = vmatpush1.bf16.msra.mxu0 %v5144
    %6166 = vmatprep.subr.bf16.mxu0 %v5153
    %6167 = vmatpush1.bf16.msra.mxu0 %v5152
    %6168 = vmatprep.subr.bf16.mxu0 %v5161
    %6169 = vmatpush1.bf16.msra.mxu0 %v5160
    %6170 = vmatprep.subr.bf16.mxu0 %v5169
    %6171 = vmatpush1.bf16.msra.mxu0 %v5168
    %6172 = vmatprep.subr.bf16.mxu0 %v5177
    %6173 = vmatpush1.bf16.msra.mxu0 %v5176
    %6174 = vmatprep.subr.bf16.mxu0 %v5185
    %6175 = vmatpush1.bf16.msra.mxu0 %v5184
    %6176 = vmatprep.subr.bf16.mxu0 %v5193
    %6177 = vmatpush1.bf16.msra.mxu0 %v5192
    %6178 = vmatprep.subr.bf16.mxu0 %v5201
    %6179 = vmatpush1.bf16.msra.mxu0 %v5200
    %6180 = vmatprep.subr.bf16.mxu0 %v5209
    %6181 = vmatpush1.bf16.msra.mxu0 %v5208
    %6182 = vmatprep.subr.bf16.mxu0 %v5217
    %6183 = vmatpush1.bf16.msra.mxu0 %v5216
    %6184 = vmatprep.subr.bf16.mxu0 %v5225
    %6185 = vmatpush1.bf16.msra.mxu0 %v5224
    %6186 = vmatprep.subr.bf16.mxu0 %v5233
    %6187 = vmatpush1.bf16.msra.mxu0 %v5232
    %6188 = vmatprep.mubr.bf16.mxu0 %v3439
    %6189 = vmatmul.mubr.bf16.gmra.mrb[0].mxu0 %v3438
    %v6190 = vpop.f32.mrb[0].mxu0
    %v6191 = vadd.f32 %v6150, %v6190
    %v6192 = vpop.f32.mrb[0].mxu0
    %v6193 = vadd.f32 %v6152, %v6192
    %v6194 = vpop.f32.mrb[0].mxu0
    %v6195 = vpop.f32.mrb[0].mxu0
    %6196 = vdwg.mxu0
    %6197 = vmatprep.subr.bf16.mxu0 %v5241
    %6198 = vmatpush1.bf16.msra.mxu0 %v5240
    %6199 = vmatprep.subr.bf16.mxu0 %v5249
    %6200 = vmatpush1.bf16.msra.mxu0 %v5248
    %6201 = vmatprep.subr.bf16.mxu0 %v5257
    %6202 = vmatpush1.bf16.msra.mxu0 %v5256
    %6203 = vmatprep.subr.bf16.mxu0 %v5265
    %6204 = vmatpush1.bf16.msra.mxu0 %v5264
    %6205 = vmatprep.subr.bf16.mxu0 %v5273
    %6206 = vmatpush1.bf16.msra.mxu0 %v5272
    %6207 = vmatprep.subr.bf16.mxu0 %v5281
    %6208 = vmatpush1.bf16.msra.mxu0 %v5280
    %6209 = vmatprep.subr.bf16.mxu0 %v5289
    %6210 = vmatpush1.bf16.msra.mxu0 %v5288
    %6211 = vmatprep.subr.bf16.mxu0 %v5297
    %6212 = vmatpush1.bf16.msra.mxu0 %v5296
    %6213 = vmatprep.subr.bf16.mxu0 %v5305
    %6214 = vmatpush1.bf16.msra.mxu0 %v5304
    %6215 = vmatprep.subr.bf16.mxu0 %v5313
    %6216 = vmatpush1.bf16.msra.mxu0 %v5312
    %6217 = vmatprep.subr.bf16.mxu0 %v5321
    %6218 = vmatpush1.bf16.msra.mxu0 %v5320
    %6219 = vmatprep.subr.bf16.mxu0 %v5329
    %6220 = vmatpush1.bf16.msra.mxu0 %v5328
    %6221 = vmatprep.subr.bf16.mxu0 %v5337
    %6222 = vmatpush1.bf16.msra.mxu0 %v5336
    %6223 = vmatprep.subr.bf16.mxu0 %v5345
    %6224 = vmatpush1.bf16.msra.mxu0 %v5344
    %6225 = vmatprep.subr.bf16.mxu0 %v5353
    %6226 = vmatpush1.bf16.msra.mxu0 %v5352
    %6227 = vmatprep.subr.bf16.mxu0 %v5361
    %6228 = vmatpush1.bf16.msra.mxu0 %v5360
    %6229 = vmatprep.mubr.bf16.mxu0 %v3441
    %6230 = vmatmul.mubr.bf16.gmra.mrb[0].mxu0 %v3440
    %v6231 = vpop.f32.mrb[0].mxu0
    %v6232 = vadd.f32 %v6191, %v6231
    %v6233 = vpop.f32.mrb[0].mxu0
    %v6234 = vadd.f32 %v6193, %v6233
    %v6235 = vpop.f32.mrb[0].mxu0
    %v6236 = vpop.f32.mrb[0].mxu0
    %6237 = vdwg.mxu0
    %v6238 = vpack.c.bf16 %v5863, %v5863
    %v6239 = vpack.c.bf16 %v5865, %v5865
    %v6240 = vpack.c.bf16 %v5986, %v5986
    %v6241 = vpack.c.bf16 %v5988, %v5988
    %v6242 = vpack.c.bf16 %v6109, %v6109
    %v6243 = vpack.c.bf16 %v6111, %v6111
    %v6244 = vpack.c.bf16 %v6232, %v6232
    %v6245 = vpack.c.bf16 %v6234, %v6234
    %v6246 = vld [vmem:[#allocation6] sm:$0xff]
    %v6247 = vld [vmem:[#allocation6 + $0x8] sm:$0xff]
    %v6248 = vld [vmem:[#allocation6 + $0x10] sm:$0xff]
    %v6249 = vld [vmem:[#allocation6 + $0x18] sm:$0xff]
    %v6250 = vld [vmem:[#allocation6 + $0x20] sm:$0xff]
    %v6251 = vld [vmem:[#allocation6 + $0x28] sm:$0xff]
    %v6252 = vld [vmem:[#allocation6 + $0x30] sm:$0xff]
    %v6253 = vld [vmem:[#allocation6 + $0x38] sm:$0xff]
    %v6254 = vld [vmem:[#allocation6 + $0x40] sm:$0xff]
    %v6255 = vld [vmem:[#allocation6 + $0x48] sm:$0xff]
    %v6256 = vld [vmem:[#allocation6 + $0x50] sm:$0xff]
    %v6257 = vld [vmem:[#allocation6 + $0x58] sm:$0xff]
    %v6258 = vld [vmem:[#allocation6 + $0x60] sm:$0xff]
    %v6259 = vld [vmem:[#allocation6 + $0x68] sm:$0xff]
    %v6260 = vld [vmem:[#allocation6 + $0x70] sm:$0xff]
    %v6261 = vld [vmem:[#allocation6 + $0x78] sm:$0xff]
    %v6262 = vld [vmem:[#allocation6 + $0x80] sm:$0xff]
    %v6263 = vld [vmem:[#allocation6 + $0x88] sm:$0xff]
    %v6264 = vld [vmem:[#allocation6 + $0x90] sm:$0xff]
    %v6265 = vld [vmem:[#allocation6 + $0x98] sm:$0xff]
    %v6266 = vld [vmem:[#allocation6 + $0xa0] sm:$0xff]
    %v6267 = vld [vmem:[#allocation6 + $0xa8] sm:$0xff]
    %v6268 = vld [vmem:[#allocation6 + $0xb0] sm:$0xff]
    %v6269 = vld [vmem:[#allocation6 + $0xb8] sm:$0xff]
    %v6270 = vld [vmem:[#allocation6 + $0xc0] sm:$0xff]
    %v6271 = vld [vmem:[#allocation6 + $0xc8] sm:$0xff]
    %v6272 = vld [vmem:[#allocation6 + $0xd0] sm:$0xff]
    %v6273 = vld [vmem:[#allocation6 + $0xd8] sm:$0xff]
    %v6274 = vld [vmem:[#allocation6 + $0xe0] sm:$0xff]
    %v6275 = vld [vmem:[#allocation6 + $0xe8] sm:$0xff]
    %v6276 = vld [vmem:[#allocation6 + $0xf0] sm:$0xff]
    %v6277 = vld [vmem:[#allocation6 + $0xf8] sm:$0xff]
    %v6278 = vld [vmem:[#allocation6 + $0x100] sm:$0xff]
    %v6279 = vld [vmem:[#allocation6 + $0x108] sm:$0xff]
    %v6280 = vld [vmem:[#allocation6 + $0x110] sm:$0xff]
    %v6281 = vld [vmem:[#allocation6 + $0x118] sm:$0xff]
    %v6282 = vld [vmem:[#allocation6 + $0x120] sm:$0xff]
    %v6283 = vld [vmem:[#allocation6 + $0x128] sm:$0xff]
    %v6284 = vld [vmem:[#allocation6 + $0x130] sm:$0xff]
    %v6285 = vld [vmem:[#allocation6 + $0x138] sm:$0xff]
    %v6286 = vld [vmem:[#allocation6 + $0x140] sm:$0xff]
    %v6287 = vld [vmem:[#allocation6 + $0x148] sm:$0xff]
    %v6288 = vld [vmem:[#allocation6 + $0x150] sm:$0xff]
    %v6289 = vld [vmem:[#allocation6 + $0x158] sm:$0xff]
    %v6290 = vld [vmem:[#allocation6 + $0x160] sm:$0xff]
    %v6291 = vld [vmem:[#allocation6 + $0x168] sm:$0xff]
    %v6292 = vld [vmem:[#allocation6 + $0x170] sm:$0xff]
    %v6293 = vld [vmem:[#allocation6 + $0x178] sm:$0xff]
    %v6294 = vld [vmem:[#allocation6 + $0x180] sm:$0xff]
    %v6295 = vld [vmem:[#allocation6 + $0x188] sm:$0xff]
    %v6296 = vld [vmem:[#allocation6 + $0x190] sm:$0xff]
    %v6297 = vld [vmem:[#allocation6 + $0x198] sm:$0xff]
    %v6298 = vld [vmem:[#allocation6 + $0x1a0] sm:$0xff]
    %v6299 = vld [vmem:[#allocation6 + $0x1a8] sm:$0xff]
    %v6300 = vld [vmem:[#allocation6 + $0x1b0] sm:$0xff]
    %v6301 = vld [vmem:[#allocation6 + $0x1b8] sm:$0xff]
    %v6302 = vld [vmem:[#allocation6 + $0x1c0] sm:$0xff]
    %v6303 = vld [vmem:[#allocation6 + $0x1c8] sm:$0xff]
    %v6304 = vld [vmem:[#allocation6 + $0x1d0] sm:$0xff]
    %v6305 = vld [vmem:[#allocation6 + $0x1d8] sm:$0xff]
    %v6306 = vld [vmem:[#allocation6 + $0x1e0] sm:$0xff]
    %v6307 = vld [vmem:[#allocation6 + $0x1e8] sm:$0xff]
    %v6308 = vld [vmem:[#allocation6 + $0x1f0] sm:$0xff]
    %v6309 = vld [vmem:[#allocation6 + $0x1f8] sm:$0xff]
    %v6310 = vld [vmem:[#allocation6 + $0x200] sm:$0xff]
    %v6311 = vld [vmem:[#allocation6 + $0x208] sm:$0xff]
    %v6312 = vld [vmem:[#allocation6 + $0x210] sm:$0xff]
    %v6313 = vld [vmem:[#allocation6 + $0x218] sm:$0xff]
    %v6314 = vld [vmem:[#allocation6 + $0x220] sm:$0xff]
    %v6315 = vld [vmem:[#allocation6 + $0x228] sm:$0xff]
    %v6316 = vld [vmem:[#allocation6 + $0x230] sm:$0xff]
    %v6317 = vld [vmem:[#allocation6 + $0x238] sm:$0xff]
    %v6318 = vld [vmem:[#allocation6 + $0x240] sm:$0xff]
    %v6319 = vld [vmem:[#allocation6 + $0x248] sm:$0xff]
    %v6320 = vld [vmem:[#allocation6 + $0x250] sm:$0xff]
    %v6321 = vld [vmem:[#allocation6 + $0x258] sm:$0xff]
    %v6322 = vld [vmem:[#allocation6 + $0x260] sm:$0xff]
    %v6323 = vld [vmem:[#allocation6 + $0x268] sm:$0xff]
    %v6324 = vld [vmem:[#allocation6 + $0x270] sm:$0xff]
    %v6325 = vld [vmem:[#allocation6 + $0x278] sm:$0xff]
    %v6326 = vld [vmem:[#allocation6 + $0x280] sm:$0xff]
    %v6327 = vld [vmem:[#allocation6 + $0x288] sm:$0xff]
    %v6328 = vld [vmem:[#allocation6 + $0x290] sm:$0xff]
    %v6329 = vld [vmem:[#allocation6 + $0x298] sm:$0xff]
    %v6330 = vld [vmem:[#allocation6 + $0x2a0] sm:$0xff]
    %v6331 = vld [vmem:[#allocation6 + $0x2a8] sm:$0xff]
    %v6332 = vld [vmem:[#allocation6 + $0x2b0] sm:$0xff]
    %v6333 = vld [vmem:[#allocation6 + $0x2b8] sm:$0xff]
    %v6334 = vld [vmem:[#allocation6 + $0x2c0] sm:$0xff]
    %v6335 = vld [vmem:[#allocation6 + $0x2c8] sm:$0xff]
    %v6336 = vld [vmem:[#allocation6 + $0x2d0] sm:$0xff]
    %v6337 = vld [vmem:[#allocation6 + $0x2d8] sm:$0xff]
    %v6338 = vld [vmem:[#allocation6 + $0x2e0] sm:$0xff]
    %v6339 = vld [vmem:[#allocation6 + $0x2e8] sm:$0xff]
    %v6340 = vld [vmem:[#allocation6 + $0x2f0] sm:$0xff]
    %v6341 = vld [vmem:[#allocation6 + $0x2f8] sm:$0xff]
    %v6342 = vld [vmem:[#allocation6 + $0x300] sm:$0xff]
    %v6343 = vld [vmem:[#allocation6 + $0x308] sm:$0xff]
    %v6344 = vld [vmem:[#allocation6 + $0x310] sm:$0xff]
    %v6345 = vld [vmem:[#allocation6 + $0x318] sm:$0xff]
    %v6346 = vld [vmem:[#allocation6 + $0x320] sm:$0xff]
    %v6347 = vld [vmem:[#allocation6 + $0x328] sm:$0xff]
    %v6348 = vld [vmem:[#allocation6 + $0x330] sm:$0xff]
    %v6349 = vld [vmem:[#allocation6 + $0x338] sm:$0xff]
    %v6350 = vld [vmem:[#allocation6 + $0x340] sm:$0xff]
    %v6351 = vld [vmem:[#allocation6 + $0x348] sm:$0xff]
    %v6352 = vld [vmem:[#allocation6 + $0x350] sm:$0xff]
    %v6353 = vld [vmem:[#allocation6 + $0x358] sm:$0xff]
    %v6354 = vld [vmem:[#allocation6 + $0x360] sm:$0xff]
    %v6355 = vld [vmem:[#allocation6 + $0x368] sm:$0xff]
    %v6356 = vld [vmem:[#allocation6 + $0x370] sm:$0xff]
    %v6357 = vld [vmem:[#allocation6 + $0x378] sm:$0xff]
    %v6358 = vld [vmem:[#allocation6 + $0x380] sm:$0xff]
    %v6359 = vld [vmem:[#allocation6 + $0x388] sm:$0xff]
    %v6360 = vld [vmem:[#allocation6 + $0x390] sm:$0xff]
    %v6361 = vld [vmem:[#allocation6 + $0x398] sm:$0xff]
    %v6362 = vld [vmem:[#allocation6 + $0x3a0] sm:$0xff]
    %v6363 = vld [vmem:[#allocation6 + $0x3a8] sm:$0xff]
    %v6364 = vld [vmem:[#allocation6 + $0x3b0] sm:$0xff]
    %v6365 = vld [vmem:[#allocation6 + $0x3b8] sm:$0xff]
    %v6366 = vld [vmem:[#allocation6 + $0x3c0] sm:$0xff]
    %v6367 = vld [vmem:[#allocation6 + $0x3c8] sm:$0xff]
    %v6368 = vld [vmem:[#allocation6 + $0x3d0] sm:$0xff]
    %v6369 = vld [vmem:[#allocation6 + $0x3d8] sm:$0xff]
    %v6370 = vld [vmem:[#allocation6 + $0x3e0] sm:$0xff]
    %v6371 = vld [vmem:[#allocation6 + $0x3e8] sm:$0xff]
    %v6372 = vld [vmem:[#allocation6 + $0x3f0] sm:$0xff]
    %v6373 = vld [vmem:[#allocation6 + $0x3f8] sm:$0xff]
    %v6374 = vld [vmem:[#allocation6 + $0x400] sm:$0xff]
    %v6375 = vld [vmem:[#allocation6 + $0x408] sm:$0xff]
    %v6376 = vld [vmem:[#allocation6 + $0x410] sm:$0xff]
    %v6377 = vld [vmem:[#allocation6 + $0x418] sm:$0xff]
    %v6378 = vld [vmem:[#allocation6 + $0x420] sm:$0xff]
    %v6379 = vld [vmem:[#allocation6 + $0x428] sm:$0xff]
    %v6380 = vld [vmem:[#allocation6 + $0x430] sm:$0xff]
    %v6381 = vld [vmem:[#allocation6 + $0x438] sm:$0xff]
    %v6382 = vld [vmem:[#allocation6 + $0x440] sm:$0xff]
    %v6383 = vld [vmem:[#allocation6 + $0x448] sm:$0xff]
    %v6384 = vld [vmem:[#allocation6 + $0x450] sm:$0xff]
    %v6385 = vld [vmem:[#allocation6 + $0x458] sm:$0xff]
    %v6386 = vld [vmem:[#allocation6 + $0x460] sm:$0xff]
    %v6387 = vld [vmem:[#allocation6 + $0x468] sm:$0xff]
    %v6388 = vld [vmem:[#allocation6 + $0x470] sm:$0xff]
    %v6389 = vld [vmem:[#allocation6 + $0x478] sm:$0xff]
    %v6390 = vld [vmem:[#allocation6 + $0x480] sm:$0xff]
    %v6391 = vld [vmem:[#allocation6 + $0x488] sm:$0xff]
    %v6392 = vld [vmem:[#allocation6 + $0x490] sm:$0xff]
    %v6393 = vld [vmem:[#allocation6 + $0x498] sm:$0xff]
    %v6394 = vld [vmem:[#allocation6 + $0x4a0] sm:$0xff]
    %v6395 = vld [vmem:[#allocation6 + $0x4a8] sm:$0xff]
    %v6396 = vld [vmem:[#allocation6 + $0x4b0] sm:$0xff]
    %v6397 = vld [vmem:[#allocation6 + $0x4b8] sm:$0xff]
    %v6398 = vld [vmem:[#allocation6 + $0x4c0] sm:$0xff]
    %v6399 = vld [vmem:[#allocation6 + $0x4c8] sm:$0xff]
    %v6400 = vld [vmem:[#allocation6 + $0x4d0] sm:$0xff]
    %v6401 = vld [vmem:[#allocation6 + $0x4d8] sm:$0xff]
    %v6402 = vld [vmem:[#allocation6 + $0x4e0] sm:$0xff]
    %v6403 = vld [vmem:[#allocation6 + $0x4e8] sm:$0xff]
    %v6404 = vld [vmem:[#allocation6 + $0x4f0] sm:$0xff]
    %v6405 = vld [vmem:[#allocation6 + $0x4f8] sm:$0xff]
    %v6406 = vld [vmem:[#allocation6 + $0x500] sm:$0xff]
    %v6407 = vld [vmem:[#allocation6 + $0x508] sm:$0xff]
    %v6408 = vld [vmem:[#allocation6 + $0x510] sm:$0xff]
    %v6409 = vld [vmem:[#allocation6 + $0x518] sm:$0xff]
    %v6410 = vld [vmem:[#allocation6 + $0x520] sm:$0xff]
    %v6411 = vld [vmem:[#allocation6 + $0x528] sm:$0xff]
    %v6412 = vld [vmem:[#allocation6 + $0x530] sm:$0xff]
    %v6413 = vld [vmem:[#allocation6 + $0x538] sm:$0xff]
    %v6414 = vld [vmem:[#allocation6 + $0x540] sm:$0xff]
    %v6415 = vld [vmem:[#allocation6 + $0x548] sm:$0xff]
    %v6416 = vld [vmem:[#allocation6 + $0x550] sm:$0xff]
    %v6417 = vld [vmem:[#allocation6 + $0x558] sm:$0xff]
    %v6418 = vld [vmem:[#allocation6 + $0x560] sm:$0xff]
    %v6419 = vld [vmem:[#allocation6 + $0x568] sm:$0xff]
    %v6420 = vld [vmem:[#allocation6 + $0x570] sm:$0xff]
    %v6421 = vld [vmem:[#allocation6 + $0x578] sm:$0xff]
    %v6422 = vld [vmem:[#allocation6 + $0x580] sm:$0xff]
    %v6423 = vld [vmem:[#allocation6 + $0x588] sm:$0xff]
    %v6424 = vld [vmem:[#allocation6 + $0x590] sm:$0xff]
    %v6425 = vld [vmem:[#allocation6 + $0x598] sm:$0xff]
    %v6426 = vld [vmem:[#allocation6 + $0x5a0] sm:$0xff]
    %v6427 = vld [vmem:[#allocation6 + $0x5a8] sm:$0xff]
    %v6428 = vld [vmem:[#allocation6 + $0x5b0] sm:$0xff]
    %v6429 = vld [vmem:[#allocation6 + $0x5b8] sm:$0xff]
    %v6430 = vld [vmem:[#allocation6 + $0x5c0] sm:$0xff]
    %v6431 = vld [vmem:[#allocation6 + $0x5c8] sm:$0xff]
    %v6432 = vld [vmem:[#allocation6 + $0x5d0] sm:$0xff]
    %v6433 = vld [vmem:[#allocation6 + $0x5d8] sm:$0xff]
    %v6434 = vld [vmem:[#allocation6 + $0x5e0] sm:$0xff]
    %v6435 = vld [vmem:[#allocation6 + $0x5e8] sm:$0xff]
    %v6436 = vld [vmem:[#allocation6 + $0x5f0] sm:$0xff]
    %v6437 = vld [vmem:[#allocation6 + $0x5f8] sm:$0xff]
    %v6438 = vld [vmem:[#allocation6 + $0x600] sm:$0xff]
    %v6439 = vld [vmem:[#allocation6 + $0x608] sm:$0xff]
    %v6440 = vld [vmem:[#allocation6 + $0x610] sm:$0xff]
    %v6441 = vld [vmem:[#allocation6 + $0x618] sm:$0xff]
    %v6442 = vld [vmem:[#allocation6 + $0x620] sm:$0xff]
    %v6443 = vld [vmem:[#allocation6 + $0x628] sm:$0xff]
    %v6444 = vld [vmem:[#allocation6 + $0x630] sm:$0xff]
    %v6445 = vld [vmem:[#allocation6 + $0x638] sm:$0xff]
    %v6446 = vld [vmem:[#allocation6 + $0x640] sm:$0xff]
    %v6447 = vld [vmem:[#allocation6 + $0x648] sm:$0xff]
    %v6448 = vld [vmem:[#allocation6 + $0x650] sm:$0xff]
    %v6449 = vld [vmem:[#allocation6 + $0x658] sm:$0xff]
    %v6450 = vld [vmem:[#allocation6 + $0x660] sm:$0xff]
    %v6451 = vld [vmem:[#allocation6 + $0x668] sm:$0xff]
    %v6452 = vld [vmem:[#allocation6 + $0x670] sm:$0xff]
    %v6453 = vld [vmem:[#allocation6 + $0x678] sm:$0xff]
    %v6454 = vld [vmem:[#allocation6 + $0x680] sm:$0xff]
    %v6455 = vld [vmem:[#allocation6 + $0x688] sm:$0xff]
    %v6456 = vld [vmem:[#allocation6 + $0x690] sm:$0xff]
    %v6457 = vld [vmem:[#allocation6 + $0x698] sm:$0xff]
    %v6458 = vld [vmem:[#allocation6 + $0x6a0] sm:$0xff]
    %v6459 = vld [vmem:[#allocation6 + $0x6a8] sm:$0xff]
    %v6460 = vld [vmem:[#allocation6 + $0x6b0] sm:$0xff]
    %v6461 = vld [vmem:[#allocation6 + $0x6b8] sm:$0xff]
    %v6462 = vld [vmem:[#allocation6 + $0x6c0] sm:$0xff]
    %v6463 = vld [vmem:[#allocation6 + $0x6c8] sm:$0xff]
    %v6464 = vld [vmem:[#allocation6 + $0x6d0] sm:$0xff]
    %v6465 = vld [vmem:[#allocation6 + $0x6d8] sm:$0xff]
    %v6466 = vld [vmem:[#allocation6 + $0x6e0] sm:$0xff]
    %v6467 = vld [vmem:[#allocation6 + $0x6e8] sm:$0xff]
    %v6468 = vld [vmem:[#allocation6 + $0x6f0] sm:$0xff]
    %v6469 = vld [vmem:[#allocation6 + $0x6f8] sm:$0xff]
    %v6470 = vld [vmem:[#allocation6 + $0x700] sm:$0xff]
    %v6471 = vld [vmem:[#allocation6 + $0x708] sm:$0xff]
    %v6472 = vld [vmem:[#allocation6 + $0x710] sm:$0xff]
    %v6473 = vld [vmem:[#allocation6 + $0x718] sm:$0xff]
    %v6474 = vld [vmem:[#allocation6 + $0x720] sm:$0xff]
    %v6475 = vld [vmem:[#allocation6 + $0x728] sm:$0xff]
    %v6476 = vld [vmem:[#allocation6 + $0x730] sm:$0xff]
    %v6477 = vld [vmem:[#allocation6 + $0x738] sm:$0xff]
    %v6478 = vld [vmem:[#allocation6 + $0x740] sm:$0xff]
    %v6479 = vld [vmem:[#allocation6 + $0x748] sm:$0xff]
    %v6480 = vld [vmem:[#allocation6 + $0x750] sm:$0xff]
    %v6481 = vld [vmem:[#allocation6 + $0x758] sm:$0xff]
    %v6482 = vld [vmem:[#allocation6 + $0x760] sm:$0xff]
    %v6483 = vld [vmem:[#allocation6 + $0x768] sm:$0xff]
    %v6484 = vld [vmem:[#allocation6 + $0x770] sm:$0xff]
    %v6485 = vld [vmem:[#allocation6 + $0x778] sm:$0xff]
    %v6486 = vld [vmem:[#allocation6 + $0x780] sm:$0xff]
    %v6487 = vld [vmem:[#allocation6 + $0x788] sm:$0xff]
    %v6488 = vld [vmem:[#allocation6 + $0x790] sm:$0xff]
    %v6489 = vld [vmem:[#allocation6 + $0x798] sm:$0xff]
    %v6490 = vld [vmem:[#allocation6 + $0x7a0] sm:$0xff]
    %v6491 = vld [vmem:[#allocation6 + $0x7a8] sm:$0xff]
    %v6492 = vld [vmem:[#allocation6 + $0x7b0] sm:$0xff]
    %v6493 = vld [vmem:[#allocation6 + $0x7b8] sm:$0xff]
    %v6494 = vld [vmem:[#allocation6 + $0x7c0] sm:$0xff]
    %v6495 = vld [vmem:[#allocation6 + $0x7c8] sm:$0xff]
    %v6496 = vld [vmem:[#allocation6 + $0x7d0] sm:$0xff]
    %v6497 = vld [vmem:[#allocation6 + $0x7d8] sm:$0xff]
    %v6498 = vld [vmem:[#allocation6 + $0x7e0] sm:$0xff]
    %v6499 = vld [vmem:[#allocation6 + $0x7e8] sm:$0xff]
    %v6500 = vld [vmem:[#allocation6 + $0x7f0] sm:$0xff]
    %v6501 = vld [vmem:[#allocation6 + $0x7f8] sm:$0xff]
    %v6502 = vld [vmem:[#allocation6 + $0x800] sm:$0xff]
    %v6503 = vld [vmem:[#allocation6 + $0x808] sm:$0xff]
    %v6504 = vld [vmem:[#allocation6 + $0x810] sm:$0xff]
    %v6505 = vld [vmem:[#allocation6 + $0x818] sm:$0xff]
    %v6506 = vld [vmem:[#allocation6 + $0x820] sm:$0xff]
    %v6507 = vld [vmem:[#allocation6 + $0x828] sm:$0xff]
    %v6508 = vld [vmem:[#allocation6 + $0x830] sm:$0xff]
    %v6509 = vld [vmem:[#allocation6 + $0x838] sm:$0xff]
    %v6510 = vld [vmem:[#allocation6 + $0x840] sm:$0xff]
    %v6511 = vld [vmem:[#allocation6 + $0x848] sm:$0xff]
    %v6512 = vld [vmem:[#allocation6 + $0x850] sm:$0xff]
    %v6513 = vld [vmem:[#allocation6 + $0x858] sm:$0xff]
    %v6514 = vld [vmem:[#allocation6 + $0x860] sm:$0xff]
    %v6515 = vld [vmem:[#allocation6 + $0x868] sm:$0xff]
    %v6516 = vld [vmem:[#allocation6 + $0x870] sm:$0xff]
    %v6517 = vld [vmem:[#allocation6 + $0x878] sm:$0xff]
    %v6518 = vld [vmem:[#allocation6 + $0x880] sm:$0xff]
    %v6519 = vld [vmem:[#allocation6 + $0x888] sm:$0xff]
    %v6520 = vld [vmem:[#allocation6 + $0x890] sm:$0xff]
    %v6521 = vld [vmem:[#allocation6 + $0x898] sm:$0xff]
    %v6522 = vld [vmem:[#allocation6 + $0x8a0] sm:$0xff]
    %v6523 = vld [vmem:[#allocation6 + $0x8a8] sm:$0xff]
    %v6524 = vld [vmem:[#allocation6 + $0x8b0] sm:$0xff]
    %v6525 = vld [vmem:[#allocation6 + $0x8b8] sm:$0xff]
    %v6526 = vld [vmem:[#allocation6 + $0x8c0] sm:$0xff]
    %v6527 = vld [vmem:[#allocation6 + $0x8c8] sm:$0xff]
    %v6528 = vld [vmem:[#allocation6 + $0x8d0] sm:$0xff]
    %v6529 = vld [vmem:[#allocation6 + $0x8d8] sm:$0xff]
    %v6530 = vld [vmem:[#allocation6 + $0x8e0] sm:$0xff]
    %v6531 = vld [vmem:[#allocation6 + $0x8e8] sm:$0xff]
    %v6532 = vld [vmem:[#allocation6 + $0x8f0] sm:$0xff]
    %v6533 = vld [vmem:[#allocation6 + $0x8f8] sm:$0xff]
    %v6534 = vld [vmem:[#allocation6 + $0x900] sm:$0xff]
    %v6535 = vld [vmem:[#allocation6 + $0x908] sm:$0xff]
    %v6536 = vld [vmem:[#allocation6 + $0x910] sm:$0xff]
    %v6537 = vld [vmem:[#allocation6 + $0x918] sm:$0xff]
    %v6538 = vld [vmem:[#allocation6 + $0x920] sm:$0xff]
    %v6539 = vld [vmem:[#allocation6 + $0x928] sm:$0xff]
    %v6540 = vld [vmem:[#allocation6 + $0x930] sm:$0xff]
    %v6541 = vld [vmem:[#allocation6 + $0x938] sm:$0xff]
    %v6542 = vld [vmem:[#allocation6 + $0x940] sm:$0xff]
    %v6543 = vld [vmem:[#allocation6 + $0x948] sm:$0xff]
    %v6544 = vld [vmem:[#allocation6 + $0x950] sm:$0xff]
    %v6545 = vld [vmem:[#allocation6 + $0x958] sm:$0xff]
    %v6546 = vld [vmem:[#allocation6 + $0x960] sm:$0xff]
    %v6547 = vld [vmem:[#allocation6 + $0x968] sm:$0xff]
    %v6548 = vld [vmem:[#allocation6 + $0x970] sm:$0xff]
    %v6549 = vld [vmem:[#allocation6 + $0x978] sm:$0xff]
    %v6550 = vld [vmem:[#allocation6 + $0x980] sm:$0xff]
    %v6551 = vld [vmem:[#allocation6 + $0x988] sm:$0xff]
    %v6552 = vld [vmem:[#allocation6 + $0x990] sm:$0xff]
    %v6553 = vld [vmem:[#allocation6 + $0x998] sm:$0xff]
    %v6554 = vld [vmem:[#allocation6 + $0x9a0] sm:$0xff]
    %v6555 = vld [vmem:[#allocation6 + $0x9a8] sm:$0xff]
    %v6556 = vld [vmem:[#allocation6 + $0x9b0] sm:$0xff]
    %v6557 = vld [vmem:[#allocation6 + $0x9b8] sm:$0xff]
    %v6558 = vld [vmem:[#allocation6 + $0x9c0] sm:$0xff]
    %v6559 = vld [vmem:[#allocation6 + $0x9c8] sm:$0xff]
    %v6560 = vld [vmem:[#allocation6 + $0x9d0] sm:$0xff]
    %v6561 = vld [vmem:[#allocation6 + $0x9d8] sm:$0xff]
    %v6562 = vld [vmem:[#allocation6 + $0x9e0] sm:$0xff]
    %v6563 = vld [vmem:[#allocation6 + $0x9e8] sm:$0xff]
    %v6564 = vld [vmem:[#allocation6 + $0x9f0] sm:$0xff]
    %v6565 = vld [vmem:[#allocation6 + $0x9f8] sm:$0xff]
    %v6566 = vld [vmem:[#allocation6 + $0xa00] sm:$0xff]
    %v6567 = vld [vmem:[#allocation6 + $0xa08] sm:$0xff]
    %v6568 = vld [vmem:[#allocation6 + $0xa10] sm:$0xff]
    %v6569 = vld [vmem:[#allocation6 + $0xa18] sm:$0xff]
    %v6570 = vld [vmem:[#allocation6 + $0xa20] sm:$0xff]
    %v6571 = vld [vmem:[#allocation6 + $0xa28] sm:$0xff]
    %v6572 = vld [vmem:[#allocation6 + $0xa30] sm:$0xff]
    %v6573 = vld [vmem:[#allocation6 + $0xa38] sm:$0xff]
    %v6574 = vld [vmem:[#allocation6 + $0xa40] sm:$0xff]
    %v6575 = vld [vmem:[#allocation6 + $0xa48] sm:$0xff]
    %v6576 = vld [vmem:[#allocation6 + $0xa50] sm:$0xff]
    %v6577 = vld [vmem:[#allocation6 + $0xa58] sm:$0xff]
    %v6578 = vld [vmem:[#allocation6 + $0xa60] sm:$0xff]
    %v6579 = vld [vmem:[#allocation6 + $0xa68] sm:$0xff]
    %v6580 = vld [vmem:[#allocation6 + $0xa70] sm:$0xff]
    %v6581 = vld [vmem:[#allocation6 + $0xa78] sm:$0xff]
    %v6582 = vld [vmem:[#allocation6 + $0xa80] sm:$0xff]
    %v6583 = vld [vmem:[#allocation6 + $0xa88] sm:$0xff]
    %v6584 = vld [vmem:[#allocation6 + $0xa90] sm:$0xff]
    %v6585 = vld [vmem:[#allocation6 + $0xa98] sm:$0xff]
    %v6586 = vld [vmem:[#allocation6 + $0xaa0] sm:$0xff]
    %v6587 = vld [vmem:[#allocation6 + $0xaa8] sm:$0xff]
    %v6588 = vld [vmem:[#allocation6 + $0xab0] sm:$0xff]
    %v6589 = vld [vmem:[#allocation6 + $0xab8] sm:$0xff]
    %v6590 = vld [vmem:[#allocation6 + $0xac0] sm:$0xff]
    %v6591 = vld [vmem:[#allocation6 + $0xac8] sm:$0xff]
    %v6592 = vld [vmem:[#allocation6 + $0xad0] sm:$0xff]
    %v6593 = vld [vmem:[#allocation6 + $0xad8] sm:$0xff]
    %v6594 = vld [vmem:[#allocation6 + $0xae0] sm:$0xff]
    %v6595 = vld [vmem:[#allocation6 + $0xae8] sm:$0xff]
    %v6596 = vld [vmem:[#allocation6 + $0xaf0] sm:$0xff]
    %v6597 = vld [vmem:[#allocation6 + $0xaf8] sm:$0xff]
    %v6598 = vld [vmem:[#allocation6 + $0xb00] sm:$0xff]
    %v6599 = vld [vmem:[#allocation6 + $0xb08] sm:$0xff]
    %v6600 = vld [vmem:[#allocation6 + $0xb10] sm:$0xff]
    %v6601 = vld [vmem:[#allocation6 + $0xb18] sm:$0xff]
    %v6602 = vld [vmem:[#allocation6 + $0xb20] sm:$0xff]
    %v6603 = vld [vmem:[#allocation6 + $0xb28] sm:$0xff]
    %v6604 = vld [vmem:[#allocation6 + $0xb30] sm:$0xff]
    %v6605 = vld [vmem:[#allocation6 + $0xb38] sm:$0xff]
    %v6606 = vld [vmem:[#allocation6 + $0xb40] sm:$0xff]
    %v6607 = vld [vmem:[#allocation6 + $0xb48] sm:$0xff]
    %v6608 = vld [vmem:[#allocation6 + $0xb50] sm:$0xff]
    %v6609 = vld [vmem:[#allocation6 + $0xb58] sm:$0xff]
    %v6610 = vld [vmem:[#allocation6 + $0xb60] sm:$0xff]
    %v6611 = vld [vmem:[#allocation6 + $0xb68] sm:$0xff]
    %v6612 = vld [vmem:[#allocation6 + $0xb70] sm:$0xff]
    %v6613 = vld [vmem:[#allocation6 + $0xb78] sm:$0xff]
    %v6614 = vld [vmem:[#allocation6 + $0xb80] sm:$0xff]
    %v6615 = vld [vmem:[#allocation6 + $0xb88] sm:$0xff]
    %v6616 = vld [vmem:[#allocation6 + $0xb90] sm:$0xff]
    %v6617 = vld [vmem:[#allocation6 + $0xb98] sm:$0xff]
    %v6618 = vld [vmem:[#allocation6 + $0xba0] sm:$0xff]
    %v6619 = vld [vmem:[#allocation6 + $0xba8] sm:$0xff]
    %v6620 = vld [vmem:[#allocation6 + $0xbb0] sm:$0xff]
    %v6621 = vld [vmem:[#allocation6 + $0xbb8] sm:$0xff]
    %v6622 = vld [vmem:[#allocation6 + $0xbc0] sm:$0xff]
    %v6623 = vld [vmem:[#allocation6 + $0xbc8] sm:$0xff]
    %v6624 = vld [vmem:[#allocation6 + $0xbd0] sm:$0xff]
    %v6625 = vld [vmem:[#allocation6 + $0xbd8] sm:$0xff]
    %v6626 = vld [vmem:[#allocation6 + $0xbe0] sm:$0xff]
    %v6627 = vld [vmem:[#allocation6 + $0xbe8] sm:$0xff]
    %v6628 = vld [vmem:[#allocation6 + $0xbf0] sm:$0xff]
    %v6629 = vld [vmem:[#allocation6 + $0xbf8] sm:$0xff]
    %v6630 = vld [vmem:[%s11] sm:$0x3f]
    %v7015 = vunpack.c.l.b16 %v6246
    %v7016 = vunpack.c.h.b16 %v6246
    %v7017 = vunpack.c.l.b16 %v6247
    %v7018 = vunpack.c.h.b16 %v6247
    %v7019 = vunpack.c.l.b16 %v6248
    %v7020 = vunpack.c.h.b16 %v6248
    %v7021 = vunpack.c.l.b16 %v6249
    %v7022 = vunpack.c.h.b16 %v6249
    %v7023 = vunpack.c.l.b16 %v6250
    %v7024 = vunpack.c.h.b16 %v6250
    %v7025 = vunpack.c.l.b16 %v6251
    %v7026 = vunpack.c.h.b16 %v6251
    %v7027 = vunpack.c.l.b16 %v6252
    %v7028 = vunpack.c.h.b16 %v6252
    %v7029 = vunpack.c.l.b16 %v6253
    %v7030 = vunpack.c.h.b16 %v6253
    %v7031 = vunpack.c.l.b16 %v6254
    %v7032 = vunpack.c.h.b16 %v6254
    %v7033 = vunpack.c.l.b16 %v6255
    %v7034 = vunpack.c.h.b16 %v6255
    %v7035 = vunpack.c.l.b16 %v6256
    %v7036 = vunpack.c.h.b16 %v6256
    %v7037 = vunpack.c.l.b16 %v6257
    %v7038 = vunpack.c.h.b16 %v6257
    %v7039 = vunpack.c.l.b16 %v6258
    %v7040 = vunpack.c.h.b16 %v6258
    %v7041 = vunpack.c.l.b16 %v6259
    %v7042 = vunpack.c.h.b16 %v6259
    %v7043 = vunpack.c.l.b16 %v6260
    %v7044 = vunpack.c.h.b16 %v6260
    %v7045 = vunpack.c.l.b16 %v6261
    %v7046 = vunpack.c.h.b16 %v6261
    %v7047 = vunpack.c.l.b16 %v6262
    %v7048 = vunpack.c.h.b16 %v6262
    %v7049 = vunpack.c.l.b16 %v6263
    %v7050 = vunpack.c.h.b16 %v6263
    %v7051 = vunpack.c.l.b16 %v6264
    %v7052 = vunpack.c.h.b16 %v6264
    %v7053 = vunpack.c.l.b16 %v6265
    %v7054 = vunpack.c.h.b16 %v6265
    %v7055 = vunpack.c.l.b16 %v6266
    %v7056 = vunpack.c.h.b16 %v6266
    %v7057 = vunpack.c.l.b16 %v6267
    %v7058 = vunpack.c.h.b16 %v6267
    %v7059 = vunpack.c.l.b16 %v6268
    %v7060 = vunpack.c.h.b16 %v6268
    %v7061 = vunpack.c.l.b16 %v6269
    %v7062 = vunpack.c.h.b16 %v6269
    %v7063 = vunpack.c.l.b16 %v6270
    %v7064 = vunpack.c.h.b16 %v6270
    %v7065 = vunpack.c.l.b16 %v6271
    %v7066 = vunpack.c.h.b16 %v6271
    %v7067 = vunpack.c.l.b16 %v6272
    %v7068 = vunpack.c.h.b16 %v6272
    %v7069 = vunpack.c.l.b16 %v6273
    %v7070 = vunpack.c.h.b16 %v6273
    %v7071 = vunpack.c.l.b16 %v6274
    %v7072 = vunpack.c.h.b16 %v6274
    %v7073 = vunpack.c.l.b16 %v6275
    %v7074 = vunpack.c.h.b16 %v6275
    %v7075 = vunpack.c.l.b16 %v6276
    %v7076 = vunpack.c.h.b16 %v6276
    %v7077 = vunpack.c.l.b16 %v6277
    %v7078 = vunpack.c.h.b16 %v6277
    %v7079 = vunpack.c.l.b16 %v6278
    %v7080 = vunpack.c.h.b16 %v6278
    %v7081 = vunpack.c.l.b16 %v6279
    %v7082 = vunpack.c.h.b16 %v6279
    %v7083 = vunpack.c.l.b16 %v6280
    %v7084 = vunpack.c.h.b16 %v6280
    %v7085 = vunpack.c.l.b16 %v6281
    %v7086 = vunpack.c.h.b16 %v6281
    %v7087 = vunpack.c.l.b16 %v6282
    %v7088 = vunpack.c.h.b16 %v6282
    %v7089 = vunpack.c.l.b16 %v6283
    %v7090 = vunpack.c.h.b16 %v6283
    %v7091 = vunpack.c.l.b16 %v6284
    %v7092 = vunpack.c.h.b16 %v6284
    %v7093 = vunpack.c.l.b16 %v6285
    %v7094 = vunpack.c.h.b16 %v6285
    %v7095 = vunpack.c.l.b16 %v6286
    %v7096 = vunpack.c.h.b16 %v6286
    %v7097 = vunpack.c.l.b16 %v6287
    %v7098 = vunpack.c.h.b16 %v6287
    %v7099 = vunpack.c.l.b16 %v6288
    %v7100 = vunpack.c.h.b16 %v6288
    %v7101 = vunpack.c.l.b16 %v6289
    %v7102 = vunpack.c.h.b16 %v6289
    %v7103 = vunpack.c.l.b16 %v6290
    %v7104 = vunpack.c.h.b16 %v6290
    %v7105 = vunpack.c.l.b16 %v6291
    %v7106 = vunpack.c.h.b16 %v6291
    %v7107 = vunpack.c.l.b16 %v6292
    %v7108 = vunpack.c.h.b16 %v6292
    %v7109 = vunpack.c.l.b16 %v6293
    %v7110 = vunpack.c.h.b16 %v6293
    %v7111 = vunpack.c.l.b16 %v6294
    %v7112 = vunpack.c.h.b16 %v6294
    %v7113 = vunpack.c.l.b16 %v6295
    %v7114 = vunpack.c.h.b16 %v6295
    %v7115 = vunpack.c.l.b16 %v6296
    %v7116 = vunpack.c.h.b16 %v6296
    %v7117 = vunpack.c.l.b16 %v6297
    %v7118 = vunpack.c.h.b16 %v6297
    %v7119 = vunpack.c.l.b16 %v6298
    %v7120 = vunpack.c.h.b16 %v6298
    %v7121 = vunpack.c.l.b16 %v6299
    %v7122 = vunpack.c.h.b16 %v6299
    %v7123 = vunpack.c.l.b16 %v6300
    %v7124 = vunpack.c.h.b16 %v6300
    %v7125 = vunpack.c.l.b16 %v6301
    %v7126 = vunpack.c.h.b16 %v6301
    %v7127 = vunpack.c.l.b16 %v6302
    %v7128 = vunpack.c.h.b16 %v6302
    %v7129 = vunpack.c.l.b16 %v6303
    %v7130 = vunpack.c.h.b16 %v6303
    %v7131 = vunpack.c.l.b16 %v6304
    %v7132 = vunpack.c.h.b16 %v6304
    %v7133 = vunpack.c.l.b16 %v6305
    %v7134 = vunpack.c.h.b16 %v6305
    %v7135 = vunpack.c.l.b16 %v6306
    %v7136 = vunpack.c.h.b16 %v6306
    %v7137 = vunpack.c.l.b16 %v6307
    %v7138 = vunpack.c.h.b16 %v6307
    %v7139 = vunpack.c.l.b16 %v6308
    %v7140 = vunpack.c.h.b16 %v6308
    %v7141 = vunpack.c.l.b16 %v6309
    %v7142 = vunpack.c.h.b16 %v6309
    %v7143 = vunpack.c.l.b16 %v6310
    %v7144 = vunpack.c.h.b16 %v6310
    %v7145 = vunpack.c.l.b16 %v6311
    %v7146 = vunpack.c.h.b16 %v6311
    %v7147 = vunpack.c.l.b16 %v6312
    %v7148 = vunpack.c.h.b16 %v6312
    %v7149 = vunpack.c.l.b16 %v6313
    %v7150 = vunpack.c.h.b16 %v6313
    %v7151 = vunpack.c.l.b16 %v6314
    %v7152 = vunpack.c.h.b16 %v6314
    %v7153 = vunpack.c.l.b16 %v6315
    %v7154 = vunpack.c.h.b16 %v6315
    %v7155 = vunpack.c.l.b16 %v6316
    %v7156 = vunpack.c.h.b16 %v6316
    %v7157 = vunpack.c.l.b16 %v6317
    %v7158 = vunpack.c.h.b16 %v6317
    %v7159 = vunpack.c.l.b16 %v6318
    %v7160 = vunpack.c.h.b16 %v6318
    %v7161 = vunpack.c.l.b16 %v6319
    %v7162 = vunpack.c.h.b16 %v6319
    %v7163 = vunpack.c.l.b16 %v6320
    %v7164 = vunpack.c.h.b16 %v6320
    %v7165 = vunpack.c.l.b16 %v6321
    %v7166 = vunpack.c.h.b16 %v6321
    %v7167 = vunpack.c.l.b16 %v6322
    %v7168 = vunpack.c.h.b16 %v6322
    %v7169 = vunpack.c.l.b16 %v6323
    %v7170 = vunpack.c.h.b16 %v6323
    %v7171 = vunpack.c.l.b16 %v6324
    %v7172 = vunpack.c.h.b16 %v6324
    %v7173 = vunpack.c.l.b16 %v6325
    %v7174 = vunpack.c.h.b16 %v6325
    %v7175 = vunpack.c.l.b16 %v6326
    %v7176 = vunpack.c.h.b16 %v6326
    %v7177 = vunpack.c.l.b16 %v6327
    %v7178 = vunpack.c.h.b16 %v6327
    %v7179 = vunpack.c.l.b16 %v6328
    %v7180 = vunpack.c.h.b16 %v6328
    %v7181 = vunpack.c.l.b16 %v6329
    %v7182 = vunpack.c.h.b16 %v6329
    %v7183 = vunpack.c.l.b16 %v6330
    %v7184 = vunpack.c.h.b16 %v6330
    %v7185 = vunpack.c.l.b16 %v6331
    %v7186 = vunpack.c.h.b16 %v6331
    %v7187 = vunpack.c.l.b16 %v6332
    %v7188 = vunpack.c.h.b16 %v6332
    %v7189 = vunpack.c.l.b16 %v6333
    %v7190 = vunpack.c.h.b16 %v6333
    %v7191 = vunpack.c.l.b16 %v6334
    %v7192 = vunpack.c.h.b16 %v6334
    %v7193 = vunpack.c.l.b16 %v6335
    %v7194 = vunpack.c.h.b16 %v6335
    %v7195 = vunpack.c.l.b16 %v6336
    %v7196 = vunpack.c.h.b16 %v6336
    %v7197 = vunpack.c.l.b16 %v6337
    %v7198 = vunpack.c.h.b16 %v6337
    %v7199 = vunpack.c.l.b16 %v6338
    %v7200 = vunpack.c.h.b16 %v6338
    %v7201 = vunpack.c.l.b16 %v6339
    %v7202 = vunpack.c.h.b16 %v6339
    %v7203 = vunpack.c.l.b16 %v6340
    %v7204 = vunpack.c.h.b16 %v6340
    %v7205 = vunpack.c.l.b16 %v6341
    %v7206 = vunpack.c.h.b16 %v6341
    %v7207 = vunpack.c.l.b16 %v6342
    %v7208 = vunpack.c.h.b16 %v6342
    %v7209 = vunpack.c.l.b16 %v6343
    %v7210 = vunpack.c.h.b16 %v6343
    %v7211 = vunpack.c.l.b16 %v6344
    %v7212 = vunpack.c.h.b16 %v6344
    %v7213 = vunpack.c.l.b16 %v6345
    %v7214 = vunpack.c.h.b16 %v6345
    %v7215 = vunpack.c.l.b16 %v6346
    %v7216 = vunpack.c.h.b16 %v6346
    %v7217 = vunpack.c.l.b16 %v6347
    %v7218 = vunpack.c.h.b16 %v6347
    %v7219 = vunpack.c.l.b16 %v6348
    %v7220 = vunpack.c.h.b16 %v6348
    %v7221 = vunpack.c.l.b16 %v6349
    %v7222 = vunpack.c.h.b16 %v6349
    %v7223 = vunpack.c.l.b16 %v6350
    %v7224 = vunpack.c.h.b16 %v6350
    %v7225 = vunpack.c.l.b16 %v6351
    %v7226 = vunpack.c.h.b16 %v6351
    %v7227 = vunpack.c.l.b16 %v6352
    %v7228 = vunpack.c.h.b16 %v6352
    %v7229 = vunpack.c.l.b16 %v6353
    %v7230 = vunpack.c.h.b16 %v6353
    %v7231 = vunpack.c.l.b16 %v6354
    %v7232 = vunpack.c.h.b16 %v6354
    %v7233 = vunpack.c.l.b16 %v6355
    %v7234 = vunpack.c.h.b16 %v6355
    %v7235 = vunpack.c.l.b16 %v6356
    %v7236 = vunpack.c.h.b16 %v6356
    %v7237 = vunpack.c.l.b16 %v6357
    %v7238 = vunpack.c.h.b16 %v6357
    %v7239 = vunpack.c.l.b16 %v6358
    %v7240 = vunpack.c.h.b16 %v6358
    %v7241 = vunpack.c.l.b16 %v6359
    %v7242 = vunpack.c.h.b16 %v6359
    %v7243 = vunpack.c.l.b16 %v6360
    %v7244 = vunpack.c.h.b16 %v6360
    %v7245 = vunpack.c.l.b16 %v6361
    %v7246 = vunpack.c.h.b16 %v6361
    %v7247 = vunpack.c.l.b16 %v6362
    %v7248 = vunpack.c.h.b16 %v6362
    %v7249 = vunpack.c.l.b16 %v6363
    %v7250 = vunpack.c.h.b16 %v6363
    %v7251 = vunpack.c.l.b16 %v6364
    %v7252 = vunpack.c.h.b16 %v6364
    %v7253 = vunpack.c.l.b16 %v6365
    %v7254 = vunpack.c.h.b16 %v6365
    %v7255 = vunpack.c.l.b16 %v6366
    %v7256 = vunpack.c.h.b16 %v6366
    %v7257 = vunpack.c.l.b16 %v6367
    %v7258 = vunpack.c.h.b16 %v6367
    %v7259 = vunpack.c.l.b16 %v6368
    %v7260 = vunpack.c.h.b16 %v6368
    %v7261 = vunpack.c.l.b16 %v6369
    %v7262 = vunpack.c.h.b16 %v6369
    %v7263 = vunpack.c.l.b16 %v6370
    %v7264 = vunpack.c.h.b16 %v6370
    %v7265 = vunpack.c.l.b16 %v6371
    %v7266 = vunpack.c.h.b16 %v6371
    %v7267 = vunpack.c.l.b16 %v6372
    %v7268 = vunpack.c.h.b16 %v6372
    %v7269 = vunpack.c.l.b16 %v6373
    %v7270 = vunpack.c.h.b16 %v6373
    %v7271 = vunpack.c.l.b16 %v6374
    %v7272 = vunpack.c.h.b16 %v6374
    %v7273 = vunpack.c.l.b16 %v6375
    %v7274 = vunpack.c.h.b16 %v6375
    %v7275 = vunpack.c.l.b16 %v6376
    %v7276 = vunpack.c.h.b16 %v6376
    %v7277 = vunpack.c.l.b16 %v6377
    %v7278 = vunpack.c.h.b16 %v6377
    %v7279 = vunpack.c.l.b16 %v6378
    %v7280 = vunpack.c.h.b16 %v6378
    %v7281 = vunpack.c.l.b16 %v6379
    %v7282 = vunpack.c.h.b16 %v6379
    %v7283 = vunpack.c.l.b16 %v6380
    %v7284 = vunpack.c.h.b16 %v6380
    %v7285 = vunpack.c.l.b16 %v6381
    %v7286 = vunpack.c.h.b16 %v6381
    %v7287 = vunpack.c.l.b16 %v6382
    %v7288 = vunpack.c.h.b16 %v6382
    %v7289 = vunpack.c.l.b16 %v6383
    %v7290 = vunpack.c.h.b16 %v6383
    %v7291 = vunpack.c.l.b16 %v6384
    %v7292 = vunpack.c.h.b16 %v6384
    %v7293 = vunpack.c.l.b16 %v6385
    %v7294 = vunpack.c.h.b16 %v6385
    %v7295 = vunpack.c.l.b16 %v6386
    %v7296 = vunpack.c.h.b16 %v6386
    %v7297 = vunpack.c.l.b16 %v6387
    %v7298 = vunpack.c.h.b16 %v6387
    %v7299 = vunpack.c.l.b16 %v6388
    %v7300 = vunpack.c.h.b16 %v6388
    %v7301 = vunpack.c.l.b16 %v6389
    %v7302 = vunpack.c.h.b16 %v6389
    %v7303 = vunpack.c.l.b16 %v6390
    %v7304 = vunpack.c.h.b16 %v6390
    %v7305 = vunpack.c.l.b16 %v6391
    %v7306 = vunpack.c.h.b16 %v6391
    %v7307 = vunpack.c.l.b16 %v6392
    %v7308 = vunpack.c.h.b16 %v6392
    %v7309 = vunpack.c.l.b16 %v6393
    %v7310 = vunpack.c.h.b16 %v6393
    %v7311 = vunpack.c.l.b16 %v6394
    %v7312 = vunpack.c.h.b16 %v6394
    %v7313 = vunpack.c.l.b16 %v6395
    %v7314 = vunpack.c.h.b16 %v6395
    %v7315 = vunpack.c.l.b16 %v6396
    %v7316 = vunpack.c.h.b16 %v6396
    %v7317 = vunpack.c.l.b16 %v6397
    %v7318 = vunpack.c.h.b16 %v6397
    %v7319 = vunpack.c.l.b16 %v6398
    %v7320 = vunpack.c.h.b16 %v6398
    %v7321 = vunpack.c.l.b16 %v6399
    %v7322 = vunpack.c.h.b16 %v6399
    %v7323 = vunpack.c.l.b16 %v6400
    %v7324 = vunpack.c.h.b16 %v6400
    %v7325 = vunpack.c.l.b16 %v6401
    %v7326 = vunpack.c.h.b16 %v6401
    %v7327 = vunpack.c.l.b16 %v6402
    %v7328 = vunpack.c.h.b16 %v6402
    %v7329 = vunpack.c.l.b16 %v6403
    %v7330 = vunpack.c.h.b16 %v6403
    %v7331 = vunpack.c.l.b16 %v6404
    %v7332 = vunpack.c.h.b16 %v6404
    %v7333 = vunpack.c.l.b16 %v6405
    %v7334 = vunpack.c.h.b16 %v6405
    %v7335 = vunpack.c.l.b16 %v6406
    %v7336 = vunpack.c.h.b16 %v6406
    %v7337 = vunpack.c.l.b16 %v6407
    %v7338 = vunpack.c.h.b16 %v6407
    %v7339 = vunpack.c.l.b16 %v6408
    %v7340 = vunpack.c.h.b16 %v6408
    %v7341 = vunpack.c.l.b16 %v6409
    %v7342 = vunpack.c.h.b16 %v6409
    %v7343 = vunpack.c.l.b16 %v6410
    %v7344 = vunpack.c.h.b16 %v6410
    %v7345 = vunpack.c.l.b16 %v6411
    %v7346 = vunpack.c.h.b16 %v6411
    %v7347 = vunpack.c.l.b16 %v6412
    %v7348 = vunpack.c.h.b16 %v6412
    %v7349 = vunpack.c.l.b16 %v6413
    %v7350 = vunpack.c.h.b16 %v6413
    %v7351 = vunpack.c.l.b16 %v6414
    %v7352 = vunpack.c.h.b16 %v6414
    %v7353 = vunpack.c.l.b16 %v6415
    %v7354 = vunpack.c.h.b16 %v6415
    %v7355 = vunpack.c.l.b16 %v6416
    %v7356 = vunpack.c.h.b16 %v6416
    %v7357 = vunpack.c.l.b16 %v6417
    %v7358 = vunpack.c.h.b16 %v6417
    %v7359 = vunpack.c.l.b16 %v6418
    %v7360 = vunpack.c.h.b16 %v6418
    %v7361 = vunpack.c.l.b16 %v6419
    %v7362 = vunpack.c.h.b16 %v6419
    %v7363 = vunpack.c.l.b16 %v6420
    %v7364 = vunpack.c.h.b16 %v6420
    %v7365 = vunpack.c.l.b16 %v6421
    %v7366 = vunpack.c.h.b16 %v6421
    %v7367 = vunpack.c.l.b16 %v6422
    %v7368 = vunpack.c.h.b16 %v6422
    %v7369 = vunpack.c.l.b16 %v6423
    %v7370 = vunpack.c.h.b16 %v6423
    %v7371 = vunpack.c.l.b16 %v6424
    %v7372 = vunpack.c.h.b16 %v6424
    %v7373 = vunpack.c.l.b16 %v6425
    %v7374 = vunpack.c.h.b16 %v6425
    %v7375 = vunpack.c.l.b16 %v6426
    %v7376 = vunpack.c.h.b16 %v6426
    %v7377 = vunpack.c.l.b16 %v6427
    %v7378 = vunpack.c.h.b16 %v6427
    %v7379 = vunpack.c.l.b16 %v6428
    %v7380 = vunpack.c.h.b16 %v6428
    %v7381 = vunpack.c.l.b16 %v6429
    %v7382 = vunpack.c.h.b16 %v6429
    %v7383 = vunpack.c.l.b16 %v6430
    %v7384 = vunpack.c.h.b16 %v6430
    %v7385 = vunpack.c.l.b16 %v6431
    %v7386 = vunpack.c.h.b16 %v6431
    %v7387 = vunpack.c.l.b16 %v6432
    %v7388 = vunpack.c.h.b16 %v6432
    %v7389 = vunpack.c.l.b16 %v6433
    %v7390 = vunpack.c.h.b16 %v6433
    %v7391 = vunpack.c.l.b16 %v6434
    %v7392 = vunpack.c.h.b16 %v6434
    %v7393 = vunpack.c.l.b16 %v6435
    %v7394 = vunpack.c.h.b16 %v6435
    %v7395 = vunpack.c.l.b16 %v6436
    %v7396 = vunpack.c.h.b16 %v6436
    %v7397 = vunpack.c.l.b16 %v6437
    %v7398 = vunpack.c.h.b16 %v6437
    %v7399 = vunpack.c.l.b16 %v6438
    %v7400 = vunpack.c.h.b16 %v6438
    %v7401 = vunpack.c.l.b16 %v6439
    %v7402 = vunpack.c.h.b16 %v6439
    %v7403 = vunpack.c.l.b16 %v6440
    %v7404 = vunpack.c.h.b16 %v6440
    %v7405 = vunpack.c.l.b16 %v6441
    %v7406 = vunpack.c.h.b16 %v6441
    %v7407 = vunpack.c.l.b16 %v6442
    %v7408 = vunpack.c.h.b16 %v6442
    %v7409 = vunpack.c.l.b16 %v6443
    %v7410 = vunpack.c.h.b16 %v6443
    %v7411 = vunpack.c.l.b16 %v6444
    %v7412 = vunpack.c.h.b16 %v6444
    %v7413 = vunpack.c.l.b16 %v6445
    %v7414 = vunpack.c.h.b16 %v6445
    %v7415 = vunpack.c.l.b16 %v6446
    %v7416 = vunpack.c.h.b16 %v6446
    %v7417 = vunpack.c.l.b16 %v6447
    %v7418 = vunpack.c.h.b16 %v6447
    %v7419 = vunpack.c.l.b16 %v6448
    %v7420 = vunpack.c.h.b16 %v6448
    %v7421 = vunpack.c.l.b16 %v6449
    %v7422 = vunpack.c.h.b16 %v6449
    %v7423 = vunpack.c.l.b16 %v6450
    %v7424 = vunpack.c.h.b16 %v6450
    %v7425 = vunpack.c.l.b16 %v6451
    %v7426 = vunpack.c.h.b16 %v6451
    %v7427 = vunpack.c.l.b16 %v6452
    %v7428 = vunpack.c.h.b16 %v6452
    %v7429 = vunpack.c.l.b16 %v6453
    %v7430 = vunpack.c.h.b16 %v6453
    %v7431 = vunpack.c.l.b16 %v6454
    %v7432 = vunpack.c.h.b16 %v6454
    %v7433 = vunpack.c.l.b16 %v6455
    %v7434 = vunpack.c.h.b16 %v6455
    %v7435 = vunpack.c.l.b16 %v6456
    %v7436 = vunpack.c.h.b16 %v6456
    %v7437 = vunpack.c.l.b16 %v6457
    %v7438 = vunpack.c.h.b16 %v6457
    %v7439 = vunpack.c.l.b16 %v6458
    %v7440 = vunpack.c.h.b16 %v6458
    %v7441 = vunpack.c.l.b16 %v6459
    %v7442 = vunpack.c.h.b16 %v6459
    %v7443 = vunpack.c.l.b16 %v6460
    %v7444 = vunpack.c.h.b16 %v6460
    %v7445 = vunpack.c.l.b16 %v6461
    %v7446 = vunpack.c.h.b16 %v6461
    %v7447 = vunpack.c.l.b16 %v6462
    %v7448 = vunpack.c.h.b16 %v6462
    %v7449 = vunpack.c.l.b16 %v6463
    %v7450 = vunpack.c.h.b16 %v6463
    %v7451 = vunpack.c.l.b16 %v6464
    %v7452 = vunpack.c.h.b16 %v6464
    %v7453 = vunpack.c.l.b16 %v6465
    %v7454 = vunpack.c.h.b16 %v6465
    %v7455 = vunpack.c.l.b16 %v6466
    %v7456 = vunpack.c.h.b16 %v6466
    %v7457 = vunpack.c.l.b16 %v6467
    %v7458 = vunpack.c.h.b16 %v6467
    %v7459 = vunpack.c.l.b16 %v6468
    %v7460 = vunpack.c.h.b16 %v6468
    %v7461 = vunpack.c.l.b16 %v6469
    %v7462 = vunpack.c.h.b16 %v6469
    %v7463 = vunpack.c.l.b16 %v6470
    %v7464 = vunpack.c.h.b16 %v6470
    %v7465 = vunpack.c.l.b16 %v6471
    %v7466 = vunpack.c.h.b16 %v6471
    %v7467 = vunpack.c.l.b16 %v6472
    %v7468 = vunpack.c.h.b16 %v6472
    %v7469 = vunpack.c.l.b16 %v6473
    %v7470 = vunpack.c.h.b16 %v6473
    %v7471 = vunpack.c.l.b16 %v6474
    %v7472 = vunpack.c.h.b16 %v6474
    %v7473 = vunpack.c.l.b16 %v6475
    %v7474 = vunpack.c.h.b16 %v6475
    %v7475 = vunpack.c.l.b16 %v6476
    %v7476 = vunpack.c.h.b16 %v6476
    %v7477 = vunpack.c.l.b16 %v6477
    %v7478 = vunpack.c.h.b16 %v6477
    %v7479 = vunpack.c.l.b16 %v6478
    %v7480 = vunpack.c.h.b16 %v6478
    %v7481 = vunpack.c.l.b16 %v6479
    %v7482 = vunpack.c.h.b16 %v6479
    %v7483 = vunpack.c.l.b16 %v6480
    %v7484 = vunpack.c.h.b16 %v6480
    %v7485 = vunpack.c.l.b16 %v6481
    %v7486 = vunpack.c.h.b16 %v6481
    %v7487 = vunpack.c.l.b16 %v6482
    %v7488 = vunpack.c.h.b16 %v6482
    %v7489 = vunpack.c.l.b16 %v6483
    %v7490 = vunpack.c.h.b16 %v6483
    %v7491 = vunpack.c.l.b16 %v6484
    %v7492 = vunpack.c.h.b16 %v6484
    %v7493 = vunpack.c.l.b16 %v6485
    %v7494 = vunpack.c.h.b16 %v6485
    %v7495 = vunpack.c.l.b16 %v6486
    %v7496 = vunpack.c.h.b16 %v6486
    %v7497 = vunpack.c.l.b16 %v6487
    %v7498 = vunpack.c.h.b16 %v6487
    %v7499 = vunpack.c.l.b16 %v6488
    %v7500 = vunpack.c.h.b16 %v6488
    %v7501 = vunpack.c.l.b16 %v6489
    %v7502 = vunpack.c.h.b16 %v6489
    %v7503 = vunpack.c.l.b16 %v6490
    %v7504 = vunpack.c.h.b16 %v6490
    %v7505 = vunpack.c.l.b16 %v6491
    %v7506 = vunpack.c.h.b16 %v6491
    %v7507 = vunpack.c.l.b16 %v6492
    %v7508 = vunpack.c.h.b16 %v6492
    %v7509 = vunpack.c.l.b16 %v6493
    %v7510 = vunpack.c.h.b16 %v6493
    %v7511 = vunpack.c.l.b16 %v6494
    %v7512 = vunpack.c.h.b16 %v6494
    %v7513 = vunpack.c.l.b16 %v6495
    %v7514 = vunpack.c.h.b16 %v6495
    %v7515 = vunpack.c.l.b16 %v6496
    %v7516 = vunpack.c.h.b16 %v6496
    %v7517 = vunpack.c.l.b16 %v6497
    %v7518 = vunpack.c.h.b16 %v6497
    %v7519 = vunpack.c.l.b16 %v6498
    %v7520 = vunpack.c.h.b16 %v6498
    %v7521 = vunpack.c.l.b16 %v6499
    %v7522 = vunpack.c.h.b16 %v6499
    %v7523 = vunpack.c.l.b16 %v6500
    %v7524 = vunpack.c.h.b16 %v6500
    %v7525 = vunpack.c.l.b16 %v6501
    %v7526 = vunpack.c.h.b16 %v6501
    %v7527 = vunpack.c.l.b16 %v6502
    %v7528 = vunpack.c.h.b16 %v6502
    %v7529 = vunpack.c.l.b16 %v6503
    %v7530 = vunpack.c.h.b16 %v6503
    %v7531 = vunpack.c.l.b16 %v6504
    %v7532 = vunpack.c.h.b16 %v6504
    %v7533 = vunpack.c.l.b16 %v6505
    %v7534 = vunpack.c.h.b16 %v6505
    %v7535 = vunpack.c.l.b16 %v6506
    %v7536 = vunpack.c.h.b16 %v6506
    %v7537 = vunpack.c.l.b16 %v6507
    %v7538 = vunpack.c.h.b16 %v6507
    %v7539 = vunpack.c.l.b16 %v6508
    %v7540 = vunpack.c.h.b16 %v6508
    %v7541 = vunpack.c.l.b16 %v6509
    %v7542 = vunpack.c.h.b16 %v6509
    %v7543 = vunpack.c.l.b16 %v6510
    %v7544 = vunpack.c.h.b16 %v6510
    %v7545 = vunpack.c.l.b16 %v6511
    %v7546 = vunpack.c.h.b16 %v6511
    %v7547 = vunpack.c.l.b16 %v6512
    %v7548 = vunpack.c.h.b16 %v6512
    %v7549 = vunpack.c.l.b16 %v6513
    %v7550 = vunpack.c.h.b16 %v6513
    %v7551 = vunpack.c.l.b16 %v6514
    %v7552 = vunpack.c.h.b16 %v6514
    %v7553 = vunpack.c.l.b16 %v6515
    %v7554 = vunpack.c.h.b16 %v6515
    %v7555 = vunpack.c.l.b16 %v6516
    %v7556 = vunpack.c.h.b16 %v6516
    %v7557 = vunpack.c.l.b16 %v6517
    %v7558 = vunpack.c.h.b16 %v6517
    %v7559 = vunpack.c.l.b16 %v6518
    %v7560 = vunpack.c.h.b16 %v6518
    %v7561 = vunpack.c.l.b16 %v6519
    %v7562 = vunpack.c.h.b16 %v6519
    %v7563 = vunpack.c.l.b16 %v6520
    %v7564 = vunpack.c.h.b16 %v6520
    %v7565 = vunpack.c.l.b16 %v6521
    %v7566 = vunpack.c.h.b16 %v6521
    %v7567 = vunpack.c.l.b16 %v6522
    %v7568 = vunpack.c.h.b16 %v6522
    %v7569 = vunpack.c.l.b16 %v6523
    %v7570 = vunpack.c.h.b16 %v6523
    %v7571 = vunpack.c.l.b16 %v6524
    %v7572 = vunpack.c.h.b16 %v6524
    %v7573 = vunpack.c.l.b16 %v6525
    %v7574 = vunpack.c.h.b16 %v6525
    %v7575 = vunpack.c.l.b16 %v6526
    %v7576 = vunpack.c.h.b16 %v6526
    %v7577 = vunpack.c.l.b16 %v6527
    %v7578 = vunpack.c.h.b16 %v6527
    %v7579 = vunpack.c.l.b16 %v6528
    %v7580 = vunpack.c.h.b16 %v6528
    %v7581 = vunpack.c.l.b16 %v6529
    %v7582 = vunpack.c.h.b16 %v6529
    %v7583 = vunpack.c.l.b16 %v6530
    %v7584 = vunpack.c.h.b16 %v6530
    %v7585 = vunpack.c.l.b16 %v6531
    %v7586 = vunpack.c.h.b16 %v6531
    %v7587 = vunpack.c.l.b16 %v6532
    %v7588 = vunpack.c.h.b16 %v6532
    %v7589 = vunpack.c.l.b16 %v6533
    %v7590 = vunpack.c.h.b16 %v6533
    %v7591 = vunpack.c.l.b16 %v6534
    %v7592 = vunpack.c.h.b16 %v6534
    %v7593 = vunpack.c.l.b16 %v6535
    %v7594 = vunpack.c.h.b16 %v6535
    %v7595 = vunpack.c.l.b16 %v6536
    %v7596 = vunpack.c.h.b16 %v6536
    %v7597 = vunpack.c.l.b16 %v6537
    %v7598 = vunpack.c.h.b16 %v6537
    %v7599 = vunpack.c.l.b16 %v6538
    %v7600 = vunpack.c.h.b16 %v6538
    %v7601 = vunpack.c.l.b16 %v6539
    %v7602 = vunpack.c.h.b16 %v6539
    %v7603 = vunpack.c.l.b16 %v6540
    %v7604 = vunpack.c.h.b16 %v6540
    %v7605 = vunpack.c.l.b16 %v6541
    %v7606 = vunpack.c.h.b16 %v6541
    %v7607 = vunpack.c.l.b16 %v6542
    %v7608 = vunpack.c.h.b16 %v6542
    %v7609 = vunpack.c.l.b16 %v6543
    %v7610 = vunpack.c.h.b16 %v6543
    %v7611 = vunpack.c.l.b16 %v6544
    %v7612 = vunpack.c.h.b16 %v6544
    %v7613 = vunpack.c.l.b16 %v6545
    %v7614 = vunpack.c.h.b16 %v6545
    %v7615 = vunpack.c.l.b16 %v6546
    %v7616 = vunpack.c.h.b16 %v6546
    %v7617 = vunpack.c.l.b16 %v6547
    %v7618 = vunpack.c.h.b16 %v6547
    %v7619 = vunpack.c.l.b16 %v6548
    %v7620 = vunpack.c.h.b16 %v6548
    %v7621 = vunpack.c.l.b16 %v6549
    %v7622 = vunpack.c.h.b16 %v6549
    %v7623 = vunpack.c.l.b16 %v6550
    %v7624 = vunpack.c.h.b16 %v6550
    %v7625 = vunpack.c.l.b16 %v6551
    %v7626 = vunpack.c.h.b16 %v6551
    %v7627 = vunpack.c.l.b16 %v6552
    %v7628 = vunpack.c.h.b16 %v6552
    %v7629 = vunpack.c.l.b16 %v6553
    %v7630 = vunpack.c.h.b16 %v6553
    %v7631 = vunpack.c.l.b16 %v6554
    %v7632 = vunpack.c.h.b16 %v6554
    %v7633 = vunpack.c.l.b16 %v6555
    %v7634 = vunpack.c.h.b16 %v6555
    %v7635 = vunpack.c.l.b16 %v6556
    %v7636 = vunpack.c.h.b16 %v6556
    %v7637 = vunpack.c.l.b16 %v6557
    %v7638 = vunpack.c.h.b16 %v6557
    %v7639 = vunpack.c.l.b16 %v6558
    %v7640 = vunpack.c.h.b16 %v6558
    %v7641 = vunpack.c.l.b16 %v6559
    %v7642 = vunpack.c.h.b16 %v6559
    %v7643 = vunpack.c.l.b16 %v6560
    %v7644 = vunpack.c.h.b16 %v6560
    %v7645 = vunpack.c.l.b16 %v6561
    %v7646 = vunpack.c.h.b16 %v6561
    %v7647 = vunpack.c.l.b16 %v6562
    %v7648 = vunpack.c.h.b16 %v6562
    %v7649 = vunpack.c.l.b16 %v6563
    %v7650 = vunpack.c.h.b16 %v6563
    %v7651 = vunpack.c.l.b16 %v6564
    %v7652 = vunpack.c.h.b16 %v6564
    %v7653 = vunpack.c.l.b16 %v6565
    %v7654 = vunpack.c.h.b16 %v6565
    %v7655 = vunpack.c.l.b16 %v6566
    %v7656 = vunpack.c.h.b16 %v6566
    %v7657 = vunpack.c.l.b16 %v6567
    %v7658 = vunpack.c.h.b16 %v6567
    %v7659 = vunpack.c.l.b16 %v6568
    %v7660 = vunpack.c.h.b16 %v6568
    %v7661 = vunpack.c.l.b16 %v6569
    %v7662 = vunpack.c.h.b16 %v6569
    %v7663 = vunpack.c.l.b16 %v6570
    %v7664 = vunpack.c.h.b16 %v6570
    %v7665 = vunpack.c.l.b16 %v6571
    %v7666 = vunpack.c.h.b16 %v6571
    %v7667 = vunpack.c.l.b16 %v6572
    %v7668 = vunpack.c.h.b16 %v6572
    %v7669 = vunpack.c.l.b16 %v6573
    %v7670 = vunpack.c.h.b16 %v6573
    %v7671 = vunpack.c.l.b16 %v6574
    %v7672 = vunpack.c.h.b16 %v6574
    %v7673 = vunpack.c.l.b16 %v6575
    %v7674 = vunpack.c.h.b16 %v6575
    %v7675 = vunpack.c.l.b16 %v6576
    %v7676 = vunpack.c.h.b16 %v6576
    %v7677 = vunpack.c.l.b16 %v6577
    %v7678 = vunpack.c.h.b16 %v6577
    %v7679 = vunpack.c.l.b16 %v6578
    %v7680 = vunpack.c.h.b16 %v6578
    %v7681 = vunpack.c.l.b16 %v6579
    %v7682 = vunpack.c.h.b16 %v6579
    %v7683 = vunpack.c.l.b16 %v6580
    %v7684 = vunpack.c.h.b16 %v6580
    %v7685 = vunpack.c.l.b16 %v6581
    %v7686 = vunpack.c.h.b16 %v6581
    %v7687 = vunpack.c.l.b16 %v6582
    %v7688 = vunpack.c.h.b16 %v6582
    %v7689 = vunpack.c.l.b16 %v6583
    %v7690 = vunpack.c.h.b16 %v6583
    %v7691 = vunpack.c.l.b16 %v6584
    %v7692 = vunpack.c.h.b16 %v6584
    %v7693 = vunpack.c.l.b16 %v6585
    %v7694 = vunpack.c.h.b16 %v6585
    %v7695 = vunpack.c.l.b16 %v6586
    %v7696 = vunpack.c.h.b16 %v6586
    %v7697 = vunpack.c.l.b16 %v6587
    %v7698 = vunpack.c.h.b16 %v6587
    %v7699 = vunpack.c.l.b16 %v6588
    %v7700 = vunpack.c.h.b16 %v6588
    %v7701 = vunpack.c.l.b16 %v6589
    %v7702 = vunpack.c.h.b16 %v6589
    %v7703 = vunpack.c.l.b16 %v6590
    %v7704 = vunpack.c.h.b16 %v6590
    %v7705 = vunpack.c.l.b16 %v6591
    %v7706 = vunpack.c.h.b16 %v6591
    %v7707 = vunpack.c.l.b16 %v6592
    %v7708 = vunpack.c.h.b16 %v6592
    %v7709 = vunpack.c.l.b16 %v6593
    %v7710 = vunpack.c.h.b16 %v6593
    %v7711 = vunpack.c.l.b16 %v6594
    %v7712 = vunpack.c.h.b16 %v6594
    %v7713 = vunpack.c.l.b16 %v6595
    %v7714 = vunpack.c.h.b16 %v6595
    %v7715 = vunpack.c.l.b16 %v6596
    %v7716 = vunpack.c.h.b16 %v6596
    %v7717 = vunpack.c.l.b16 %v6597
    %v7718 = vunpack.c.h.b16 %v6597
    %v7719 = vunpack.c.l.b16 %v6598
    %v7720 = vunpack.c.h.b16 %v6598
    %v7721 = vunpack.c.l.b16 %v6599
    %v7722 = vunpack.c.h.b16 %v6599
    %v7723 = vunpack.c.l.b16 %v6600
    %v7724 = vunpack.c.h.b16 %v6600
    %v7725 = vunpack.c.l.b16 %v6601
    %v7726 = vunpack.c.h.b16 %v6601
    %v7727 = vunpack.c.l.b16 %v6602
    %v7728 = vunpack.c.h.b16 %v6602
    %v7729 = vunpack.c.l.b16 %v6603
    %v7730 = vunpack.c.h.b16 %v6603
    %v7731 = vunpack.c.l.b16 %v6604
    %v7732 = vunpack.c.h.b16 %v6604
    %v7733 = vunpack.c.l.b16 %v6605
    %v7734 = vunpack.c.h.b16 %v6605
    %v7735 = vunpack.c.l.b16 %v6606
    %v7736 = vunpack.c.h.b16 %v6606
    %v7737 = vunpack.c.l.b16 %v6607
    %v7738 = vunpack.c.h.b16 %v6607
    %v7739 = vunpack.c.l.b16 %v6608
    %v7740 = vunpack.c.h.b16 %v6608
    %v7741 = vunpack.c.l.b16 %v6609
    %v7742 = vunpack.c.h.b16 %v6609
    %v7743 = vunpack.c.l.b16 %v6610
    %v7744 = vunpack.c.h.b16 %v6610
    %v7745 = vunpack.c.l.b16 %v6611
    %v7746 = vunpack.c.h.b16 %v6611
    %v7747 = vunpack.c.l.b16 %v6612
    %v7748 = vunpack.c.h.b16 %v6612
    %v7749 = vunpack.c.l.b16 %v6613
    %v7750 = vunpack.c.h.b16 %v6613
    %v7751 = vunpack.c.l.b16 %v6614
    %v7752 = vunpack.c.h.b16 %v6614
    %v7753 = vunpack.c.l.b16 %v6615
    %v7754 = vunpack.c.h.b16 %v6615
    %v7755 = vunpack.c.l.b16 %v6616
    %v7756 = vunpack.c.h.b16 %v6616
    %v7757 = vunpack.c.l.b16 %v6617
    %v7758 = vunpack.c.h.b16 %v6617
    %v7759 = vunpack.c.l.b16 %v6618
    %v7760 = vunpack.c.h.b16 %v6618
    %v7761 = vunpack.c.l.b16 %v6619
    %v7762 = vunpack.c.h.b16 %v6619
    %v7763 = vunpack.c.l.b16 %v6620
    %v7764 = vunpack.c.h.b16 %v6620
    %v7765 = vunpack.c.l.b16 %v6621
    %v7766 = vunpack.c.h.b16 %v6621
    %v7767 = vunpack.c.l.b16 %v6622
    %v7768 = vunpack.c.h.b16 %v6622
    %v7769 = vunpack.c.l.b16 %v6623
    %v7770 = vunpack.c.h.b16 %v6623
    %v7771 = vunpack.c.l.b16 %v6624
    %v7772 = vunpack.c.h.b16 %v6624
    %v7773 = vunpack.c.l.b16 %v6625
    %v7774 = vunpack.c.h.b16 %v6625
    %v7775 = vunpack.c.l.b16 %v6626
    %v7776 = vunpack.c.h.b16 %v6626
    %v7777 = vunpack.c.l.b16 %v6627
    %v7778 = vunpack.c.h.b16 %v6627
    %v7779 = vunpack.c.l.b16 %v6628
    %v7780 = vunpack.c.h.b16 %v6628
    %v7781 = vunpack.c.l.b16 %v6629
    %v7782 = vunpack.c.h.b16 %v6629
    %v7783 = vpack.c.b16 %v7021, %v7015
    %v7784 = vpack.c.b16 %v7022, %v7016
    %v7785 = vpack.c.b16 %v7023, %v7017
    %v7786 = vpack.c.b16 %v7024, %v7018
    %v7787 = vpack.c.b16 %v7025, %v7019
    %v7788 = vpack.c.b16 %v7026, %v7020
    %v7789 = vpack.c.b16 %v7033, %v7027
    %v7790 = vpack.c.b16 %v7034, %v7028
    %v7791 = vpack.c.b16 %v7035, %v7029
    %v7792 = vpack.c.b16 %v7036, %v7030
    %v7793 = vpack.c.b16 %v7037, %v7031
    %v7794 = vpack.c.b16 %v7038, %v7032
    %v7795 = vpack.c.b16 %v7045, %v7039
    %v7796 = vpack.c.b16 %v7046, %v7040
    %v7797 = vpack.c.b16 %v7047, %v7041
    %v7798 = vpack.c.b16 %v7048, %v7042
    %v7799 = vpack.c.b16 %v7049, %v7043
    %v7800 = vpack.c.b16 %v7050, %v7044
    %v7801 = vpack.c.b16 %v7057, %v7051
    %v7802 = vpack.c.b16 %v7058, %v7052
    %v7803 = vpack.c.b16 %v7059, %v7053
    %v7804 = vpack.c.b16 %v7060, %v7054
    %v7805 = vpack.c.b16 %v7061, %v7055
    %v7806 = vpack.c.b16 %v7062, %v7056
    %v7807 = vpack.c.b16 %v7069, %v7063
    %v7808 = vpack.c.b16 %v7070, %v7064
    %v7809 = vpack.c.b16 %v7071, %v7065
    %v7810 = vpack.c.b16 %v7072, %v7066
    %v7811 = vpack.c.b16 %v7073, %v7067
    %v7812 = vpack.c.b16 %v7074, %v7068
    %v7813 = vpack.c.b16 %v7081, %v7075
    %v7814 = vpack.c.b16 %v7082, %v7076
    %v7815 = vpack.c.b16 %v7083, %v7077
    %v7816 = vpack.c.b16 %v7084, %v7078
    %v7817 = vpack.c.b16 %v7085, %v7079
    %v7818 = vpack.c.b16 %v7086, %v7080
    %v7819 = vpack.c.b16 %v7093, %v7087
    %v7820 = vpack.c.b16 %v7094, %v7088
    %v7821 = vpack.c.b16 %v7095, %v7089
    %v7822 = vpack.c.b16 %v7096, %v7090
    %v7823 = vpack.c.b16 %v7097, %v7091
    %v7824 = vpack.c.b16 %v7098, %v7092
    %v7825 = vpack.c.b16 %v7105, %v7099
    %v7826 = vpack.c.b16 %v7106, %v7100
    %v7827 = vpack.c.b16 %v7107, %v7101
    %v7828 = vpack.c.b16 %v7108, %v7102
    %v7829 = vpack.c.b16 %v7109, %v7103
    %v7830 = vpack.c.b16 %v7110, %v7104
    %v7831 = vpack.c.b16 %v7117, %v7111
    %v7832 = vpack.c.b16 %v7118, %v7112
    %v7833 = vpack.c.b16 %v7119, %v7113
    %v7834 = vpack.c.b16 %v7120, %v7114
    %v7835 = vpack.c.b16 %v7121, %v7115
    %v7836 = vpack.c.b16 %v7122, %v7116
    %v7837 = vpack.c.b16 %v7129, %v7123
    %v7838 = vpack.c.b16 %v7130, %v7124
    %v7839 = vpack.c.b16 %v7131, %v7125
    %v7840 = vpack.c.b16 %v7132, %v7126
    %v7841 = vpack.c.b16 %v7133, %v7127
    %v7842 = vpack.c.b16 %v7134, %v7128
    %v7843 = vpack.c.b16 %v7141, %v7135
    %v7844 = vpack.c.b16 %v7142, %v7136
    %v7845 = vpack.c.b16 %v7143, %v7137
    %v7846 = vpack.c.b16 %v7144, %v7138
    %v7847 = vpack.c.b16 %v7145, %v7139
    %v7848 = vpack.c.b16 %v7146, %v7140
    %v7849 = vpack.c.b16 %v7153, %v7147
    %v7850 = vpack.c.b16 %v7154, %v7148
    %v7851 = vpack.c.b16 %v7155, %v7149
    %v7852 = vpack.c.b16 %v7156, %v7150
    %v7853 = vpack.c.b16 %v7157, %v7151
    %v7854 = vpack.c.b16 %v7158, %v7152
    %v7855 = vpack.c.b16 %v7165, %v7159
    %v7856 = vpack.c.b16 %v7166, %v7160
    %v7857 = vpack.c.b16 %v7167, %v7161
    %v7858 = vpack.c.b16 %v7168, %v7162
    %v7859 = vpack.c.b16 %v7169, %v7163
    %v7860 = vpack.c.b16 %v7170, %v7164
    %v7861 = vpack.c.b16 %v7177, %v7171
    %v7862 = vpack.c.b16 %v7178, %v7172
    %v7863 = vpack.c.b16 %v7179, %v7173
    %v7864 = vpack.c.b16 %v7180, %v7174
    %v7865 = vpack.c.b16 %v7181, %v7175
    %v7866 = vpack.c.b16 %v7182, %v7176
    %v7867 = vpack.c.b16 %v7189, %v7183
    %v7868 = vpack.c.b16 %v7190, %v7184
    %v7869 = vpack.c.b16 %v7191, %v7185
    %v7870 = vpack.c.b16 %v7192, %v7186
    %v7871 = vpack.c.b16 %v7193, %v7187
    %v7872 = vpack.c.b16 %v7194, %v7188
    %v7873 = vpack.c.b16 %v7201, %v7195
    %v7874 = vpack.c.b16 %v7202, %v7196
    %v7875 = vpack.c.b16 %v7203, %v7197
    %v7876 = vpack.c.b16 %v7204, %v7198
    %v7877 = vpack.c.b16 %v7205, %v7199
    %v7878 = vpack.c.b16 %v7206, %v7200
    %v7879 = vpack.c.b16 %v7213, %v7207
    %v7880 = vpack.c.b16 %v7214, %v7208
    %v7881 = vpack.c.b16 %v7215, %v7209
    %v7882 = vpack.c.b16 %v7216, %v7210
    %v7883 = vpack.c.b16 %v7217, %v7211
    %v7884 = vpack.c.b16 %v7218, %v7212
    %v7885 = vpack.c.b16 %v7225, %v7219
    %v7886 = vpack.c.b16 %v7226, %v7220
    %v7887 = vpack.c.b16 %v7227, %v7221
    %v7888 = vpack.c.b16 %v7228, %v7222
    %v7889 = vpack.c.b16 %v7229, %v7223
    %v7890 = vpack.c.b16 %v7230, %v7224
    %v7891 = vpack.c.b16 %v7237, %v7231
    %v7892 = vpack.c.b16 %v7238, %v7232
    %v7893 = vpack.c.b16 %v7239, %v7233
    %v7894 = vpack.c.b16 %v7240, %v7234
    %v7895 = vpack.c.b16 %v7241, %v7235
    %v7896 = vpack.c.b16 %v7242, %v7236
    %v7897 = vpack.c.b16 %v7249, %v7243
    %v7898 = vpack.c.b16 %v7250, %v7244
    %v7899 = vpack.c.b16 %v7251, %v7245
    %v7900 = vpack.c.b16 %v7252, %v7246
    %v7901 = vpack.c.b16 %v7253, %v7247
    %v7902 = vpack.c.b16 %v7254, %v7248
    %v7903 = vpack.c.b16 %v7261, %v7255
    %v7904 = vpack.c.b16 %v7262, %v7256
    %v7905 = vpack.c.b16 %v7263, %v7257
    %v7906 = vpack.c.b16 %v7264, %v7258
    %v7907 = vpack.c.b16 %v7265, %v7259
    %v7908 = vpack.c.b16 %v7266, %v7260
    %v7909 = vpack.c.b16 %v7273, %v7267
    %v7910 = vpack.c.b16 %v7274, %v7268
    %v7911 = vpack.c.b16 %v7275, %v7269
    %v7912 = vpack.c.b16 %v7276, %v7270
    %v7913 = vpack.c.b16 %v7277, %v7271
    %v7914 = vpack.c.b16 %v7278, %v7272
    %v7915 = vpack.c.b16 %v7285, %v7279
    %v7916 = vpack.c.b16 %v7286, %v7280
    %v7917 = vpack.c.b16 %v7287, %v7281
    %v7918 = vpack.c.b16 %v7288, %v7282
    %v7919 = vpack.c.b16 %v7289, %v7283
    %v7920 = vpack.c.b16 %v7290, %v7284
    %v7921 = vpack.c.b16 %v7297, %v7291
    %v7922 = vpack.c.b16 %v7298, %v7292
    %v7923 = vpack.c.b16 %v7299, %v7293
    %v7924 = vpack.c.b16 %v7300, %v7294
    %v7925 = vpack.c.b16 %v7301, %v7295
    %v7926 = vpack.c.b16 %v7302, %v7296
    %v7927 = vpack.c.b16 %v7309, %v7303
    %v7928 = vpack.c.b16 %v7310, %v7304
    %v7929 = vpack.c.b16 %v7311, %v7305
    %v7930 = vpack.c.b16 %v7312, %v7306
    %v7931 = vpack.c.b16 %v7313, %v7307
    %v7932 = vpack.c.b16 %v7314, %v7308
    %v7933 = vpack.c.b16 %v7321, %v7315
    %v7934 = vpack.c.b16 %v7322, %v7316
    %v7935 = vpack.c.b16 %v7323, %v7317
    %v7936 = vpack.c.b16 %v7324, %v7318
    %v7937 = vpack.c.b16 %v7325, %v7319
    %v7938 = vpack.c.b16 %v7326, %v7320
    %v7939 = vpack.c.b16 %v7333, %v7327
    %v7940 = vpack.c.b16 %v7334, %v7328
    %v7941 = vpack.c.b16 %v7335, %v7329
    %v7942 = vpack.c.b16 %v7336, %v7330
    %v7943 = vpack.c.b16 %v7337, %v7331
    %v7944 = vpack.c.b16 %v7338, %v7332
    %v7945 = vpack.c.b16 %v7345, %v7339
    %v7946 = vpack.c.b16 %v7346, %v7340
    %v7947 = vpack.c.b16 %v7347, %v7341
    %v7948 = vpack.c.b16 %v7348, %v7342
    %v7949 = vpack.c.b16 %v7349, %v7343
    %v7950 = vpack.c.b16 %v7350, %v7344
    %v7951 = vpack.c.b16 %v7357, %v7351
    %v7952 = vpack.c.b16 %v7358, %v7352
    %v7953 = vpack.c.b16 %v7359, %v7353
    %v7954 = vpack.c.b16 %v7360, %v7354
    %v7955 = vpack.c.b16 %v7361, %v7355
    %v7956 = vpack.c.b16 %v7362, %v7356
    %v7957 = vpack.c.b16 %v7369, %v7363
    %v7958 = vpack.c.b16 %v7370, %v7364
    %v7959 = vpack.c.b16 %v7371, %v7365
    %v7960 = vpack.c.b16 %v7372, %v7366
    %v7961 = vpack.c.b16 %v7373, %v7367
    %v7962 = vpack.c.b16 %v7374, %v7368
    %v7963 = vpack.c.b16 %v7381, %v7375
    %v7964 = vpack.c.b16 %v7382, %v7376
    %v7965 = vpack.c.b16 %v7383, %v7377
    %v7966 = vpack.c.b16 %v7384, %v7378
    %v7967 = vpack.c.b16 %v7385, %v7379
    %v7968 = vpack.c.b16 %v7386, %v7380
    %v7969 = vpack.c.b16 %v7393, %v7387
    %v7970 = vpack.c.b16 %v7394, %v7388
    %v7971 = vpack.c.b16 %v7395, %v7389
    %v7972 = vpack.c.b16 %v7396, %v7390
    %v7973 = vpack.c.b16 %v7397, %v7391
    %v7974 = vpack.c.b16 %v7398, %v7392
    %v7975 = vpack.c.b16 %v7405, %v7399
    %v7976 = vpack.c.b16 %v7406, %v7400
    %v7977 = vpack.c.b16 %v7407, %v7401
    %v7978 = vpack.c.b16 %v7408, %v7402
    %v7979 = vpack.c.b16 %v7409, %v7403
    %v7980 = vpack.c.b16 %v7410, %v7404
    %v7981 = vpack.c.b16 %v7417, %v7411
    %v7982 = vpack.c.b16 %v7418, %v7412
    %v7983 = vpack.c.b16 %v7419, %v7413
    %v7984 = vpack.c.b16 %v7420, %v7414
    %v7985 = vpack.c.b16 %v7421, %v7415
    %v7986 = vpack.c.b16 %v7422, %v7416
    %v7987 = vpack.c.b16 %v7429, %v7423
    %v7988 = vpack.c.b16 %v7430, %v7424
    %v7989 = vpack.c.b16 %v7431, %v7425
    %v7990 = vpack.c.b16 %v7432, %v7426
    %v7991 = vpack.c.b16 %v7433, %v7427
    %v7992 = vpack.c.b16 %v7434, %v7428
    %v7993 = vpack.c.b16 %v7441, %v7435
    %v7994 = vpack.c.b16 %v7442, %v7436
    %v7995 = vpack.c.b16 %v7443, %v7437
    %v7996 = vpack.c.b16 %v7444, %v7438
    %v7997 = vpack.c.b16 %v7445, %v7439
    %v7998 = vpack.c.b16 %v7446, %v7440
    %v7999 = vpack.c.b16 %v7453, %v7447
    %v8000 = vpack.c.b16 %v7454, %v7448
    %v8001 = vpack.c.b16 %v7455, %v7449
    %v8002 = vpack.c.b16 %v7456, %v7450
    %v8003 = vpack.c.b16 %v7457, %v7451
    %v8004 = vpack.c.b16 %v7458, %v7452
    %v8005 = vpack.c.b16 %v7465, %v7459
    %v8006 = vpack.c.b16 %v7466, %v7460
    %v8007 = vpack.c.b16 %v7467, %v7461
    %v8008 = vpack.c.b16 %v7468, %v7462
    %v8009 = vpack.c.b16 %v7469, %v7463
    %v8010 = vpack.c.b16 %v7470, %v7464
    %v8011 = vpack.c.b16 %v7477, %v7471
    %v8012 = vpack.c.b16 %v7478, %v7472
    %v8013 = vpack.c.b16 %v7479, %v7473
    %v8014 = vpack.c.b16 %v7480, %v7474
    %v8015 = vpack.c.b16 %v7481, %v7475
    %v8016 = vpack.c.b16 %v7482, %v7476
    %v8017 = vpack.c.b16 %v7489, %v7483
    %v8018 = vpack.c.b16 %v7490, %v7484
    %v8019 = vpack.c.b16 %v7491, %v7485
    %v8020 = vpack.c.b16 %v7492, %v7486
    %v8021 = vpack.c.b16 %v7493, %v7487
    %v8022 = vpack.c.b16 %v7494, %v7488
    %v8023 = vpack.c.b16 %v7501, %v7495
    %v8024 = vpack.c.b16 %v7502, %v7496
    %v8025 = vpack.c.b16 %v7503, %v7497
    %v8026 = vpack.c.b16 %v7504, %v7498
    %v8027 = vpack.c.b16 %v7505, %v7499
    %v8028 = vpack.c.b16 %v7506, %v7500
    %v8029 = vpack.c.b16 %v7513, %v7507
    %v8030 = vpack.c.b16 %v7514, %v7508
    %v8031 = vpack.c.b16 %v7515, %v7509
    %v8032 = vpack.c.b16 %v7516, %v7510
    %v8033 = vpack.c.b16 %v7517, %v7511
    %v8034 = vpack.c.b16 %v7518, %v7512
    %v8035 = vpack.c.b16 %v7525, %v7519
    %v8036 = vpack.c.b16 %v7526, %v7520
    %v8037 = vpack.c.b16 %v7527, %v7521
    %v8038 = vpack.c.b16 %v7528, %v7522
    %v8039 = vpack.c.b16 %v7529, %v7523
    %v8040 = vpack.c.b16 %v7530, %v7524
    %v8041 = vpack.c.b16 %v7537, %v7531
    %v8042 = vpack.c.b16 %v7538, %v7532
    %v8043 = vpack.c.b16 %v7539, %v7533
    %v8044 = vpack.c.b16 %v7540, %v7534
    %v8045 = vpack.c.b16 %v7541, %v7535
    %v8046 = vpack.c.b16 %v7542, %v7536
    %v8047 = vpack.c.b16 %v7549, %v7543
    %v8048 = vpack.c.b16 %v7550, %v7544
    %v8049 = vpack.c.b16 %v7551, %v7545
    %v8050 = vpack.c.b16 %v7552, %v7546
    %v8051 = vpack.c.b16 %v7553, %v7547
    %v8052 = vpack.c.b16 %v7554, %v7548
    %v8053 = vpack.c.b16 %v7561, %v7555
    %v8054 = vpack.c.b16 %v7562, %v7556
    %v8055 = vpack.c.b16 %v7563, %v7557
    %v8056 = vpack.c.b16 %v7564, %v7558
    %v8057 = vpack.c.b16 %v7565, %v7559
    %v8058 = vpack.c.b16 %v7566, %v7560
    %v8059 = vpack.c.b16 %v7573, %v7567
    %v8060 = vpack.c.b16 %v7574, %v7568
    %v8061 = vpack.c.b16 %v7575, %v7569
    %v8062 = vpack.c.b16 %v7576, %v7570
    %v8063 = vpack.c.b16 %v7577, %v7571
    %v8064 = vpack.c.b16 %v7578, %v7572
    %v8065 = vpack.c.b16 %v7585, %v7579
    %v8066 = vpack.c.b16 %v7586, %v7580
    %v8067 = vpack.c.b16 %v7587, %v7581
    %v8068 = vpack.c.b16 %v7588, %v7582
    %v8069 = vpack.c.b16 %v7589, %v7583
    %v8070 = vpack.c.b16 %v7590, %v7584
    %v8071 = vpack.c.b16 %v7597, %v7591
    %v8072 = vpack.c.b16 %v7598, %v7592
    %v8073 = vpack.c.b16 %v7599, %v7593
    %v8074 = vpack.c.b16 %v7600, %v7594
    %v8075 = vpack.c.b16 %v7601, %v7595
    %v8076 = vpack.c.b16 %v7602, %v7596
    %v8077 = vpack.c.b16 %v7609, %v7603
    %v8078 = vpack.c.b16 %v7610, %v7604
    %v8079 = vpack.c.b16 %v7611, %v7605
    %v8080 = vpack.c.b16 %v7612, %v7606
    %v8081 = vpack.c.b16 %v7613, %v7607
    %v8082 = vpack.c.b16 %v7614, %v7608
    %v8083 = vpack.c.b16 %v7621, %v7615
    %v8084 = vpack.c.b16 %v7622, %v7616
    %v8085 = vpack.c.b16 %v7623, %v7617
    %v8086 = vpack.c.b16 %v7624, %v7618
    %v8087 = vpack.c.b16 %v7625, %v7619
    %v8088 = vpack.c.b16 %v7626, %v7620
    %v8089 = vpack.c.b16 %v7633, %v7627
    %v8090 = vpack.c.b16 %v7634, %v7628
    %v8091 = vpack.c.b16 %v7635, %v7629
    %v8092 = vpack.c.b16 %v7636, %v7630
    %v8093 = vpack.c.b16 %v7637, %v7631
    %v8094 = vpack.c.b16 %v7638, %v7632
    %v8095 = vpack.c.b16 %v7645, %v7639
    %v8096 = vpack.c.b16 %v7646, %v7640
    %v8097 = vpack.c.b16 %v7647, %v7641
    %v8098 = vpack.c.b16 %v7648, %v7642
    %v8099 = vpack.c.b16 %v7649, %v7643
    %v8100 = vpack.c.b16 %v7650, %v7644
    %v8101 = vpack.c.b16 %v7657, %v7651
    %v8102 = vpack.c.b16 %v7658, %v7652
    %v8103 = vpack.c.b16 %v7659, %v7653
    %v8104 = vpack.c.b16 %v7660, %v7654
    %v8105 = vpack.c.b16 %v7661, %v7655
    %v8106 = vpack.c.b16 %v7662, %v7656
    %v8107 = vpack.c.b16 %v7669, %v7663
    %v8108 = vpack.c.b16 %v7670, %v7664
    %v8109 = vpack.c.b16 %v7671, %v7665
    %v8110 = vpack.c.b16 %v7672, %v7666
    %v8111 = vpack.c.b16 %v7673, %v7667
    %v8112 = vpack.c.b16 %v7674, %v7668
    %v8113 = vpack.c.b16 %v7681, %v7675
    %v8114 = vpack.c.b16 %v7682, %v7676
    %v8115 = vpack.c.b16 %v7683, %v7677
    %v8116 = vpack.c.b16 %v7684, %v7678
    %v8117 = vpack.c.b16 %v7685, %v7679
    %v8118 = vpack.c.b16 %v7686, %v7680
    %v8119 = vpack.c.b16 %v7693, %v7687
    %v8120 = vpack.c.b16 %v7694, %v7688
    %v8121 = vpack.c.b16 %v7695, %v7689
    %v8122 = vpack.c.b16 %v7696, %v7690
    %v8123 = vpack.c.b16 %v7697, %v7691
    %v8124 = vpack.c.b16 %v7698, %v7692
    %v8125 = vpack.c.b16 %v7705, %v7699
    %v8126 = vpack.c.b16 %v7706, %v7700
    %v8127 = vpack.c.b16 %v7707, %v7701
    %v8128 = vpack.c.b16 %v7708, %v7702
    %v8129 = vpack.c.b16 %v7709, %v7703
    %v8130 = vpack.c.b16 %v7710, %v7704
    %v8131 = vpack.c.b16 %v7717, %v7711
    %v8132 = vpack.c.b16 %v7718, %v7712
    %v8133 = vpack.c.b16 %v7719, %v7713
    %v8134 = vpack.c.b16 %v7720, %v7714
    %v8135 = vpack.c.b16 %v7721, %v7715
    %v8136 = vpack.c.b16 %v7722, %v7716
    %v8137 = vpack.c.b16 %v7729, %v7723
    %v8138 = vpack.c.b16 %v7730, %v7724
    %v8139 = vpack.c.b16 %v7731, %v7725
    %v8140 = vpack.c.b16 %v7732, %v7726
    %v8141 = vpack.c.b16 %v7733, %v7727
    %v8142 = vpack.c.b16 %v7734, %v7728
    %v8143 = vpack.c.b16 %v7741, %v7735
    %v8144 = vpack.c.b16 %v7742, %v7736
    %v8145 = vpack.c.b16 %v7743, %v7737
    %v8146 = vpack.c.b16 %v7744, %v7738
    %v8147 = vpack.c.b16 %v7745, %v7739
    %v8148 = vpack.c.b16 %v7746, %v7740
    %v8149 = vpack.c.b16 %v7753, %v7747
    %v8150 = vpack.c.b16 %v7754, %v7748
    %v8151 = vpack.c.b16 %v7755, %v7749
    %v8152 = vpack.c.b16 %v7756, %v7750
    %v8153 = vpack.c.b16 %v7757, %v7751
    %v8154 = vpack.c.b16 %v7758, %v7752
    %v8155 = vpack.c.b16 %v7765, %v7759
    %v8156 = vpack.c.b16 %v7766, %v7760
    %v8157 = vpack.c.b16 %v7767, %v7761
    %v8158 = vpack.c.b16 %v7768, %v7762
    %v8159 = vpack.c.b16 %v7769, %v7763
    %v8160 = vpack.c.b16 %v7770, %v7764
    %v8161 = vpack.c.b16 %v7777, %v7771
    %v8162 = vpack.c.b16 %v7778, %v7772
    %v8163 = vpack.c.b16 %v7779, %v7773
    %v8164 = vpack.c.b16 %v7780, %v7774
    %v8165 = vpack.c.b16 %v7781, %v7775
    %v8166 = vpack.c.b16 %v7782, %v7776
    %v8552 = vlaneseq
    %v8553 = vshrl.u32 %v8552, 7
    %v8554 = vsub.s32 0, %v8553
    %v8555 = vrot.slane %v6630, %v8554
    %v8556 = vlaneseq
    %v8557 = vshrl.u32 %v8556, 7
    %v8558 = vsub.s32 1, %v8557
    %v8559 = vrot.slane %v6630, %v8558
    %v8560 = vlaneseq
    %v8561 = vshrl.u32 %v8560, 7
    %v8562 = vsub.s32 2, %v8561
    %v8563 = vrot.slane %v6630, %v8562
    %v8564 = vlaneseq
    %v8565 = vshrl.u32 %v8564, 7
    %v8566 = vsub.s32 3, %v8565
    %v8567 = vrot.slane %v6630, %v8566
    %v8568 = vlaneseq
    %v8569 = vshrl.u32 %v8568, 7
    %v8570 = vsub.s32 4, %v8569
    %v8571 = vrot.slane %v6630, %v8570
    %v8572 = vlaneseq
    %v8573 = vshrl.u32 %v8572, 7
    %v8574 = vsub.s32 5, %v8573
    %v8575 = vrot.slane %v6630, %v8574
    %8582 = vmatprep.subr.bf16.mxu0 %v7784
    %8583 = vmatpush1.bf16.msra.mxu0 %v7783
    %8584 = vmatprep.subr.bf16.mxu0 %v7790
    %8585 = vmatpush1.bf16.msra.mxu0 %v7789
    %8586 = vmatprep.subr.bf16.mxu0 %v7796
    %8587 = vmatpush1.bf16.msra.mxu0 %v7795
    %8588 = vmatprep.subr.bf16.mxu0 %v7802
    %8589 = vmatpush1.bf16.msra.mxu0 %v7801
    %8590 = vmatprep.subr.bf16.mxu0 %v7808
    %8591 = vmatpush1.bf16.msra.mxu0 %v7807
    %8592 = vmatprep.subr.bf16.mxu0 %v7814
    %8593 = vmatpush1.bf16.msra.mxu0 %v7813
    %8594 = vmatprep.subr.bf16.mxu0 %v7820
    %8595 = vmatpush1.bf16.msra.mxu0 %v7819
    %8596 = vmatprep.subr.bf16.mxu0 %v7826
    %8597 = vmatpush1.bf16.msra.mxu0 %v7825
    %8598 = vmatprep.subr.bf16.mxu0 %v7832
    %8599 = vmatpush1.bf16.msra.mxu0 %v7831
    %8600 = vmatprep.subr.bf16.mxu0 %v7838
    %8601 = vmatpush1.bf16.msra.mxu0 %v7837
    %8602 = vmatprep.subr.bf16.mxu0 %v7844
    %8603 = vmatpush1.bf16.msra.mxu0 %v7843
    %8604 = vmatprep.subr.bf16.mxu0 %v7850
    %8605 = vmatpush1.bf16.msra.mxu0 %v7849
    %8606 = vmatprep.subr.bf16.mxu0 %v7856
    %8607 = vmatpush1.bf16.msra.mxu0 %v7855
    %8608 = vmatprep.subr.bf16.mxu0 %v7862
    %8609 = vmatpush1.bf16.msra.mxu0 %v7861
    %8610 = vmatprep.subr.bf16.mxu0 %v7868
    %8611 = vmatpush1.bf16.msra.mxu0 %v7867
    %8612 = vmatprep.subr.bf16.mxu0 %v7874
    %8613 = vmatpush1.bf16.msra.mxu0 %v7873
    %8614 = vmatprep.mubr.bf16.mxu0 %v6239
    %8615 = vmatmul.mubr.bf16.gmra.mrb[0].mxu0 %v6238
    %v8616 = vpop.f32.mrb[0].mxu0
    %v8617 = vadd.f32 %v8555, %v8616
    %v8618 = vpop.f32.mrb[0].mxu0
    %v8619 = vadd.f32 %v8559, %v8618
    %v8620 = vpop.f32.mrb[0].mxu0
    %v8621 = vpop.f32.mrb[0].mxu0
    %8622 = vdwg.mxu0
    %8623 = vmatprep.subr.bf16.mxu0 %v7880
    %8624 = vmatpush1.bf16.msra.mxu0 %v7879
    %8625 = vmatprep.subr.bf16.mxu0 %v7886
    %8626 = vmatpush1.bf16.msra.mxu0 %v7885
    %8627 = vmatprep.subr.bf16.mxu0 %v7892
    %8628 = vmatpush1.bf16.msra.mxu0 %v7891
    %8629 = vmatprep.subr.bf16.mxu0 %v7898
    %8630 = vmatpush1.bf16.msra.mxu0 %v7897
    %8631 = vmatprep.subr.bf16.mxu0 %v7904
    %8632 = vmatpush1.bf16.msra.mxu0 %v7903
    %8633 = vmatprep.subr.bf16.mxu0 %v7910
    %8634 = vmatpush1.bf16.msra.mxu0 %v7909
    %8635 = vmatprep.subr.bf16.mxu0 %v7916
    %8636 = vmatpush1.bf16.msra.mxu0 %v7915
    %8637 = vmatprep.subr.bf16.mxu0 %v7922
    %8638 = vmatpush1.bf16.msra.mxu0 %v7921
    %8639 = vmatprep.subr.bf16.mxu0 %v7928
    %8640 = vmatpush1.bf16.msra.mxu0 %v7927
    %8641 = vmatprep.subr.bf16.mxu0 %v7934
    %8642 = vmatpush1.bf16.msra.mxu0 %v7933
    %8643 = vmatprep.subr.bf16.mxu0 %v7940
    %8644 = vmatpush1.bf16.msra.mxu0 %v7939
    %8645 = vmatprep.subr.bf16.mxu0 %v7946
    %8646 = vmatpush1.bf16.msra.mxu0 %v7945
    %8647 = vmatprep.subr.bf16.mxu0 %v7952
    %8648 = vmatpush1.bf16.msra.mxu0 %v7951
    %8649 = vmatprep.subr.bf16.mxu0 %v7958
    %8650 = vmatpush1.bf16.msra.mxu0 %v7957
    %8651 = vmatprep.subr.bf16.mxu0 %v7964
    %8652 = vmatpush1.bf16.msra.mxu0 %v7963
    %8653 = vmatprep.subr.bf16.mxu0 %v7970
    %8654 = vmatpush1.bf16.msra.mxu0 %v7969
    %8655 = vmatprep.mubr.bf16.mxu0 %v6241
    %8656 = vmatmul.mubr.bf16.gmra.mrb[0].mxu0 %v6240
    %v8657 = vpop.f32.mrb[0].mxu0
    %v8658 = vadd.f32 %v8617, %v8657
    %v8659 = vpop.f32.mrb[0].mxu0
    %v8660 = vadd.f32 %v8619, %v8659
    %v8661 = vpop.f32.mrb[0].mxu0
    %v8662 = vpop.f32.mrb[0].mxu0
    %8663 = vdwg.mxu0
    %8664 = vmatprep.subr.bf16.mxu0 %v7976
    %8665 = vmatpush1.bf16.msra.mxu0 %v7975
    %8666 = vmatprep.subr.bf16.mxu0 %v7982
    %8667 = vmatpush1.bf16.msra.mxu0 %v7981
    %8668 = vmatprep.subr.bf16.mxu0 %v7988
    %8669 = vmatpush1.bf16.msra.mxu0 %v7987
    %8670 = vmatprep.subr.bf16.mxu0 %v7994
    %8671 = vmatpush1.bf16.msra.mxu0 %v7993
    %8672 = vmatprep.subr.bf16.mxu0 %v8000
    %8673 = vmatpush1.bf16.msra.mxu0 %v7999
    %8674 = vmatprep.subr.bf16.mxu0 %v8006
    %8675 = vmatpush1.bf16.msra.mxu0 %v8005
    %8676 = vmatprep.subr.bf16.mxu0 %v8012
    %8677 = vmatpush1.bf16.msra.mxu0 %v8011
    %8678 = vmatprep.subr.bf16.mxu0 %v8018
    %8679 = vmatpush1.bf16.msra.mxu0 %v8017
    %8680 = vmatprep.subr.bf16.mxu0 %v8024
    %8681 = vmatpush1.bf16.msra.mxu0 %v8023
    %8682 = vmatprep.subr.bf16.mxu0 %v8030
    %8683 = vmatpush1.bf16.msra.mxu0 %v8029
    %8684 = vmatprep.subr.bf16.mxu0 %v8036
    %8685 = vmatpush1.bf16.msra.mxu0 %v8035
    %8686 = vmatprep.subr.bf16.mxu0 %v8042
    %8687 = vmatpush1.bf16.msra.mxu0 %v8041
    %8688 = vmatprep.subr.bf16.mxu0 %v8048
    %8689 = vmatpush1.bf16.msra.mxu0 %v8047
    %8690 = vmatprep.subr.bf16.mxu0 %v8054
    %8691 = vmatpush1.bf16.msra.mxu0 %v8053
    %8692 = vmatprep.subr.bf16.mxu0 %v8060
    %8693 = vmatpush1.bf16.msra.mxu0 %v8059
    %8694 = vmatprep.subr.bf16.mxu0 %v8066
    %8695 = vmatpush1.bf16.msra.mxu0 %v8065
    %8696 = vmatprep.mubr.bf16.mxu0 %v6243
    %8697 = vmatmul.mubr.bf16.gmra.mrb[0].mxu0 %v6242
    %v8698 = vpop.f32.mrb[0].mxu0
    %v8699 = vadd.f32 %v8658, %v8698
    %v8700 = vpop.f32.mrb[0].mxu0
    %v8701 = vadd.f32 %v8660, %v8700
    %v8702 = vpop.f32.mrb[0].mxu0
    %v8703 = vpop.f32.mrb[0].mxu0
    %8704 = vdwg.mxu0
    %8705 = vmatprep.subr.bf16.mxu0 %v8072
    %8706 = vmatpush1.bf16.msra.mxu0 %v8071
    %8707 = vmatprep.subr.bf16.mxu0 %v8078
    %8708 = vmatpush1.bf16.msra.mxu0 %v8077
    %8709 = vmatprep.subr.bf16.mxu0 %v8084
    %8710 = vmatpush1.bf16.msra.mxu0 %v8083
    %8711 = vmatprep.subr.bf16.mxu0 %v8090
    %8712 = vmatpush1.bf16.msra.mxu0 %v8089
    %8713 = vmatprep.subr.bf16.mxu0 %v8096
    %8714 = vmatpush1.bf16.msra.mxu0 %v8095
    %8715 = vmatprep.subr.bf16.mxu0 %v8102
    %8716 = vmatpush1.bf16.msra.mxu0 %v8101
    %8717 = vmatprep.subr.bf16.mxu0 %v8108
    %8718 = vmatpush1.bf16.msra.mxu0 %v8107
    %8719 = vmatprep.subr.bf16.mxu0 %v8114
    %8720 = vmatpush1.bf16.msra.mxu0 %v8113
    %8721 = vmatprep.subr.bf16.mxu0 %v8120
    %8722 = vmatpush1.bf16.msra.mxu0 %v8119
    %8723 = vmatprep.subr.bf16.mxu0 %v8126
    %8724 = vmatpush1.bf16.msra.mxu0 %v8125
    %8725 = vmatprep.subr.bf16.mxu0 %v8132
    %8726 = vmatpush1.bf16.msra.mxu0 %v8131
    %8727 = vmatprep.subr.bf16.mxu0 %v8138
    %8728 = vmatpush1.bf16.msra.mxu0 %v8137
    %8729 = vmatprep.subr.bf16.mxu0 %v8144
    %8730 = vmatpush1.bf16.msra.mxu0 %v8143
    %8731 = vmatprep.subr.bf16.mxu0 %v8150
    %8732 = vmatpush1.bf16.msra.mxu0 %v8149
    %8733 = vmatprep.subr.bf16.mxu0 %v8156
    %8734 = vmatpush1.bf16.msra.mxu0 %v8155
    %8735 = vmatprep.subr.bf16.mxu0 %v8162
    %8736 = vmatpush1.bf16.msra.mxu0 %v8161
    %8737 = vmatprep.mubr.bf16.mxu0 %v6245
    %8738 = vmatmul.mubr.bf16.gmra.mrb[0].mxu0 %v6244
    %v8739 = vpop.f32.mrb[0].mxu0
    %v8740 = vadd.f32 %v8699, %v8739
    %v8741 = vpop.f32.mrb[0].mxu0
    %v8742 = vadd.f32 %v8701, %v8741
    %v8743 = vpop.f32.mrb[0].mxu0
    %v8744 = vpop.f32.mrb[0].mxu0
    %8745 = vdwg.mxu0
    %8746 = vmatprep.subr.bf16.mxu0 %v7786
    %8747 = vmatpush1.bf16.msra.mxu0 %v7785
    %8748 = vmatprep.subr.bf16.mxu0 %v7792
    %8749 = vmatpush1.bf16.msra.mxu0 %v7791
    %8750 = vmatprep.subr.bf16.mxu0 %v7798
    %8751 = vmatpush1.bf16.msra.mxu0 %v7797
    %8752 = vmatprep.subr.bf16.mxu0 %v7804
    %8753 = vmatpush1.bf16.msra.mxu0 %v7803
    %8754 = vmatprep.subr.bf16.mxu0 %v7810
    %8755 = vmatpush1.bf16.msra.mxu0 %v7809
    %8756 = vmatprep.subr.bf16.mxu0 %v7816
    %8757 = vmatpush1.bf16.msra.mxu0 %v7815
    %8758 = vmatprep.subr.bf16.mxu0 %v7822
    %8759 = vmatpush1.bf16.msra.mxu0 %v7821
    %8760 = vmatprep.subr.bf16.mxu0 %v7828
    %8761 = vmatpush1.bf16.msra.mxu0 %v7827
    %8762 = vmatprep.subr.bf16.mxu0 %v7834
    %8763 = vmatpush1.bf16.msra.mxu0 %v7833
    %8764 = vmatprep.subr.bf16.mxu0 %v7840
    %8765 = vmatpush1.bf16.msra.mxu0 %v7839
    %8766 = vmatprep.subr.bf16.mxu0 %v7846
    %8767 = vmatpush1.bf16.msra.mxu0 %v7845
    %8768 = vmatprep.subr.bf16.mxu0 %v7852
    %8769 = vmatpush1.bf16.msra.mxu0 %v7851
    %8770 = vmatprep.subr.bf16.mxu0 %v7858
    %8771 = vmatpush1.bf16.msra.mxu0 %v7857
    %8772 = vmatprep.subr.bf16.mxu0 %v7864
    %8773 = vmatpush1.bf16.msra.mxu0 %v7863
    %8774 = vmatprep.subr.bf16.mxu0 %v7870
    %8775 = vmatpush1.bf16.msra.mxu0 %v7869
    %8776 = vmatprep.subr.bf16.mxu0 %v7876
    %8777 = vmatpush1.bf16.msra.mxu0 %v7875
    %8778 = vmatprep.mubr.bf16.mxu0 %v6239
    %8779 = vmatmul.mubr.bf16.gmra.mrb[0].mxu0 %v6238
    %v8780 = vpop.f32.mrb[0].mxu0
    %v8781 = vadd.f32 %v8563, %v8780
    %v8782 = vpop.f32.mrb[0].mxu0
    %v8783 = vadd.f32 %v8567, %v8782
    %v8784 = vpop.f32.mrb[0].mxu0
    %v8785 = vpop.f32.mrb[0].mxu0
    %8786 = vdwg.mxu0
    %8787 = vmatprep.subr.bf16.mxu0 %v7882
    %8788 = vmatpush1.bf16.msra.mxu0 %v7881
    %8789 = vmatprep.subr.bf16.mxu0 %v7888
    %8790 = vmatpush1.bf16.msra.mxu0 %v7887
    %8791 = vmatprep.subr.bf16.mxu0 %v7894
    %8792 = vmatpush1.bf16.msra.mxu0 %v7893
    %8793 = vmatprep.subr.bf16.mxu0 %v7900
    %8794 = vmatpush1.bf16.msra.mxu0 %v7899
    %8795 = vmatprep.subr.bf16.mxu0 %v7906
    %8796 = vmatpush1.bf16.msra.mxu0 %v7905
    %8797 = vmatprep.subr.bf16.mxu0 %v7912
    %8798 = vmatpush1.bf16.msra.mxu0 %v7911
    %8799 = vmatprep.subr.bf16.mxu0 %v7918
    %8800 = vmatpush1.bf16.msra.mxu0 %v7917
    %8801 = vmatprep.subr.bf16.mxu0 %v7924
    %8802 = vmatpush1.bf16.msra.mxu0 %v7923
    %8803 = vmatprep.subr.bf16.mxu0 %v7930
    %8804 = vmatpush1.bf16.msra.mxu0 %v7929
    %8805 = vmatprep.subr.bf16.mxu0 %v7936
    %8806 = vmatpush1.bf16.msra.mxu0 %v7935
    %8807 = vmatprep.subr.bf16.mxu0 %v7942
    %8808 = vmatpush1.bf16.msra.mxu0 %v7941
    %8809 = vmatprep.subr.bf16.mxu0 %v7948
    %8810 = vmatpush1.bf16.msra.mxu0 %v7947
    %8811 = vmatprep.subr.bf16.mxu0 %v7954
    %8812 = vmatpush1.bf16.msra.mxu0 %v7953
    %8813 = vmatprep.subr.bf16.mxu0 %v7960
    %8814 = vmatpush1.bf16.msra.mxu0 %v7959
    %8815 = vmatprep.subr.bf16.mxu0 %v7966
    %8816 = vmatpush1.bf16.msra.mxu0 %v7965
    %8817 = vmatprep.subr.bf16.mxu0 %v7972
    %8818 = vmatpush1.bf16.msra.mxu0 %v7971
    %8819 = vmatprep.mubr.bf16.mxu0 %v6241
    %8820 = vmatmul.mubr.bf16.gmra.mrb[0].mxu0 %v6240
    %v8821 = vpop.f32.mrb[0].mxu0
    %v8822 = vadd.f32 %v8781, %v8821
    %v8823 = vpop.f32.mrb[0].mxu0
    %v8824 = vadd.f32 %v8783, %v8823
    %v8825 = vpop.f32.mrb[0].mxu0
    %v8826 = vpop.f32.mrb[0].mxu0
    %8827 = vdwg.mxu0
    %8828 = vmatprep.subr.bf16.mxu0 %v7978
    %8829 = vmatpush1.bf16.msra.mxu0 %v7977
    %8830 = vmatprep.subr.bf16.mxu0 %v7984
    %8831 = vmatpush1.bf16.msra.mxu0 %v7983
    %8832 = vmatprep.subr.bf16.mxu0 %v7990
    %8833 = vmatpush1.bf16.msra.mxu0 %v7989
    %8834 = vmatprep.subr.bf16.mxu0 %v7996
    %8835 = vmatpush1.bf16.msra.mxu0 %v7995
    %8836 = vmatprep.subr.bf16.mxu0 %v8002
    %8837 = vmatpush1.bf16.msra.mxu0 %v8001
    %8838 = vmatprep.subr.bf16.mxu0 %v8008
    %8839 = vmatpush1.bf16.msra.mxu0 %v8007
    %8840 = vmatprep.subr.bf16.mxu0 %v8014
    %8841 = vmatpush1.bf16.msra.mxu0 %v8013
    %8842 = vmatprep.subr.bf16.mxu0 %v8020
    %8843 = vmatpush1.bf16.msra.mxu0 %v8019
    %8844 = vmatprep.subr.bf16.mxu0 %v8026
    %8845 = vmatpush1.bf16.msra.mxu0 %v8025
    %8846 = vmatprep.subr.bf16.mxu0 %v8032
    %8847 = vmatpush1.bf16.msra.mxu0 %v8031
    %8848 = vmatprep.subr.bf16.mxu0 %v8038
    %8849 = vmatpush1.bf16.msra.mxu0 %v8037
    %8850 = vmatprep.subr.bf16.mxu0 %v8044
    %8851 = vmatpush1.bf16.msra.mxu0 %v8043
    %8852 = vmatprep.subr.bf16.mxu0 %v8050
    %8853 = vmatpush1.bf16.msra.mxu0 %v8049
    %8854 = vmatprep.subr.bf16.mxu0 %v8056
    %8855 = vmatpush1.bf16.msra.mxu0 %v8055
    %8856 = vmatprep.subr.bf16.mxu0 %v8062
    %8857 = vmatpush1.bf16.msra.mxu0 %v8061
    %8858 = vmatprep.subr.bf16.mxu0 %v8068
    %8859 = vmatpush1.bf16.msra.mxu0 %v8067
    %8860 = vmatprep.mubr.bf16.mxu0 %v6243
    %8861 = vmatmul.mubr.bf16.gmra.mrb[0].mxu0 %v6242
    %v8862 = vpop.f32.mrb[0].mxu0
    %v8863 = vadd.f32 %v8822, %v8862
    %v8864 = vpop.f32.mrb[0].mxu0
    %v8865 = vadd.f32 %v8824, %v8864
    %v8866 = vpop.f32.mrb[0].mxu0
    %v8867 = vpop.f32.mrb[0].mxu0
    %8868 = vdwg.mxu0
    %8869 = vmatprep.subr.bf16.mxu0 %v8074
    %8870 = vmatpush1.bf16.msra.mxu0 %v8073
    %8871 = vmatprep.subr.bf16.mxu0 %v8080
    %8872 = vmatpush1.bf16.msra.mxu0 %v8079
    %8873 = vmatprep.subr.bf16.mxu0 %v8086
    %8874 = vmatpush1.bf16.msra.mxu0 %v8085
    %8875 = vmatprep.subr.bf16.mxu0 %v8092
    %8876 = vmatpush1.bf16.msra.mxu0 %v8091
    %8877 = vmatprep.subr.bf16.mxu0 %v8098
    %8878 = vmatpush1.bf16.msra.mxu0 %v8097
    %8879 = vmatprep.subr.bf16.mxu0 %v8104
    %8880 = vmatpush1.bf16.msra.mxu0 %v8103
    %8881 = vmatprep.subr.bf16.mxu0 %v8110
    %8882 = vmatpush1.bf16.msra.mxu0 %v8109
    %8883 = vmatprep.subr.bf16.mxu0 %v8116
    %8884 = vmatpush1.bf16.msra.mxu0 %v8115
    %8885 = vmatprep.subr.bf16.mxu0 %v8122
    %8886 = vmatpush1.bf16.msra.mxu0 %v8121
    %8887 = vmatprep.subr.bf16.mxu0 %v8128
    %8888 = vmatpush1.bf16.msra.mxu0 %v8127
    %8889 = vmatprep.subr.bf16.mxu0 %v8134
    %8890 = vmatpush1.bf16.msra.mxu0 %v8133
    %8891 = vmatprep.subr.bf16.mxu0 %v8140
    %8892 = vmatpush1.bf16.msra.mxu0 %v8139
    %8893 = vmatprep.subr.bf16.mxu0 %v8146
    %8894 = vmatpush1.bf16.msra.mxu0 %v8145
    %8895 = vmatprep.subr.bf16.mxu0 %v8152
    %8896 = vmatpush1.bf16.msra.mxu0 %v8151
    %8897 = vmatprep.subr.bf16.mxu0 %v8158
    %8898 = vmatpush1.bf16.msra.mxu0 %v8157
    %8899 = vmatprep.subr.bf16.mxu0 %v8164
    %8900 = vmatpush1.bf16.msra.mxu0 %v8163
    %8901 = vmatprep.mubr.bf16.mxu0 %v6245
    %8902 = vmatmul.mubr.bf16.gmra.mrb[0].mxu0 %v6244
    %v8903 = vpop.f32.mrb[0].mxu0
    %v8904 = vadd.f32 %v8863, %v8903
    %v8905 = vpop.f32.mrb[0].mxu0
    %v8906 = vadd.f32 %v8865, %v8905
    %v8907 = vpop.f32.mrb[0].mxu0
    %v8908 = vpop.f32.mrb[0].mxu0
    %8909 = vdwg.mxu0
    %8910 = vmatprep.subr.bf16.mxu0 %v7788
    %8911 = vmatpush1.bf16.msra.mxu0 %v7787
    %8912 = vmatprep.subr.bf16.mxu0 %v7794
    %8913 = vmatpush1.bf16.msra.mxu0 %v7793
    %8914 = vmatprep.subr.bf16.mxu0 %v7800
    %8915 = vmatpush1.bf16.msra.mxu0 %v7799
    %8916 = vmatprep.subr.bf16.mxu0 %v7806
    %8917 = vmatpush1.bf16.msra.mxu0 %v7805
    %8918 = vmatprep.subr.bf16.mxu0 %v7812
    %8919 = vmatpush1.bf16.msra.mxu0 %v7811
    %8920 = vmatprep.subr.bf16.mxu0 %v7818
    %8921 = vmatpush1.bf16.msra.mxu0 %v7817
    %8922 = vmatprep.subr.bf16.mxu0 %v7824
    %8923 = vmatpush1.bf16.msra.mxu0 %v7823
    %8924 = vmatprep.subr.bf16.mxu0 %v7830
    %8925 = vmatpush1.bf16.msra.mxu0 %v7829
    %8926 = vmatprep.subr.bf16.mxu0 %v7836
    %8927 = vmatpush1.bf16.msra.mxu0 %v7835
    %8928 = vmatprep.subr.bf16.mxu0 %v7842
    %8929 = vmatpush1.bf16.msra.mxu0 %v7841
    %8930 = vmatprep.subr.bf16.mxu0 %v7848
    %8931 = vmatpush1.bf16.msra.mxu0 %v7847
    %8932 = vmatprep.subr.bf16.mxu0 %v7854
    %8933 = vmatpush1.bf16.msra.mxu0 %v7853
    %8934 = vmatprep.subr.bf16.mxu0 %v7860
    %8935 = vmatpush1.bf16.msra.mxu0 %v7859
    %8936 = vmatprep.subr.bf16.mxu0 %v7866
    %8937 = vmatpush1.bf16.msra.mxu0 %v7865
    %8938 = vmatprep.subr.bf16.mxu0 %v7872
    %8939 = vmatpush1.bf16.msra.mxu0 %v7871
    %8940 = vmatprep.subr.bf16.mxu0 %v7878
    %8941 = vmatpush1.bf16.msra.mxu0 %v7877
    %8942 = vmatprep.mubr.bf16.mxu0 %v6239
    %8943 = vmatmul.mubr.bf16.gmra.mrb[0].mxu0 %v6238
    %v8944 = vpop.f32.mrb[0].mxu0
    %v8945 = vadd.f32 %v8571, %v8944
    %v8946 = vpop.f32.mrb[0].mxu0
    %v8947 = vadd.f32 %v8575, %v8946
    %v8948 = vpop.f32.mrb[0].mxu0
    %v8949 = vpop.f32.mrb[0].mxu0
    %8950 = vdwg.mxu0
    %8951 = vmatprep.subr.bf16.mxu0 %v7884
    %8952 = vmatpush1.bf16.msra.mxu0 %v7883
    %8953 = vmatprep.subr.bf16.mxu0 %v7890
    %8954 = vmatpush1.bf16.msra.mxu0 %v7889
    %8955 = vmatprep.subr.bf16.mxu0 %v7896
    %8956 = vmatpush1.bf16.msra.mxu0 %v7895
    %8957 = vmatprep.subr.bf16.mxu0 %v7902
    %8958 = vmatpush1.bf16.msra.mxu0 %v7901
    %8959 = vmatprep.subr.bf16.mxu0 %v7908
    %8960 = vmatpush1.bf16.msra.mxu0 %v7907
    %8961 = vmatprep.subr.bf16.mxu0 %v7914
    %8962 = vmatpush1.bf16.msra.mxu0 %v7913
    %8963 = vmatprep.subr.bf16.mxu0 %v7920
    %8964 = vmatpush1.bf16.msra.mxu0 %v7919
    %8965 = vmatprep.subr.bf16.mxu0 %v7926
    %8966 = vmatpush1.bf16.msra.mxu0 %v7925
    %8967 = vmatprep.subr.bf16.mxu0 %v7932
    %8968 = vmatpush1.bf16.msra.mxu0 %v7931
    %8969 = vmatprep.subr.bf16.mxu0 %v7938
    %8970 = vmatpush1.bf16.msra.mxu0 %v7937
    %8971 = vmatprep.subr.bf16.mxu0 %v7944
    %8972 = vmatpush1.bf16.msra.mxu0 %v7943
    %8973 = vmatprep.subr.bf16.mxu0 %v7950
    %8974 = vmatpush1.bf16.msra.mxu0 %v7949
    %8975 = vmatprep.subr.bf16.mxu0 %v7956
    %8976 = vmatpush1.bf16.msra.mxu0 %v7955
    %8977 = vmatprep.subr.bf16.mxu0 %v7962
    %8978 = vmatpush1.bf16.msra.mxu0 %v7961
    %8979 = vmatprep.subr.bf16.mxu0 %v7968
    %8980 = vmatpush1.bf16.msra.mxu0 %v7967
    %8981 = vmatprep.subr.bf16.mxu0 %v7974
    %8982 = vmatpush1.bf16.msra.mxu0 %v7973
    %8983 = vmatprep.mubr.bf16.mxu0 %v6241
    %8984 = vmatmul.mubr.bf16.gmra.mrb[0].mxu0 %v6240
    %v8985 = vpop.f32.mrb[0].mxu0
    %v8986 = vadd.f32 %v8945, %v8985
    %v8987 = vpop.f32.mrb[0].mxu0
    %v8988 = vadd.f32 %v8947, %v8987
    %v8989 = vpop.f32.mrb[0].mxu0
    %v8990 = vpop.f32.mrb[0].mxu0
    %8991 = vdwg.mxu0
    %8992 = vmatprep.subr.bf16.mxu0 %v7980
    %8993 = vmatpush1.bf16.msra.mxu0 %v7979
    %8994 = vmatprep.subr.bf16.mxu0 %v7986
    %8995 = vmatpush1.bf16.msra.mxu0 %v7985
    %8996 = vmatprep.subr.bf16.mxu0 %v7992
    %8997 = vmatpush1.bf16.msra.mxu0 %v7991
    %8998 = vmatprep.subr.bf16.mxu0 %v7998
    %8999 = vmatpush1.bf16.msra.mxu0 %v7997
    %9000 = vmatprep.subr.bf16.mxu0 %v8004
    %9001 = vmatpush1.bf16.msra.mxu0 %v8003
    %9002 = vmatprep.subr.bf16.mxu0 %v8010
    %9003 = vmatpush1.bf16.msra.mxu0 %v8009
    %9004 = vmatprep.subr.bf16.mxu0 %v8016
    %9005 = vmatpush1.bf16.msra.mxu0 %v8015
    %9006 = vmatprep.subr.bf16.mxu0 %v8022
    %9007 = vmatpush1.bf16.msra.mxu0 %v8021
    %9008 = vmatprep.subr.bf16.mxu0 %v8028
    %9009 = vmatpush1.bf16.msra.mxu0 %v8027
    %9010 = vmatprep.subr.bf16.mxu0 %v8034
    %9011 = vmatpush1.bf16.msra.mxu0 %v8033
    %9012 = vmatprep.subr.bf16.mxu0 %v8040
    %9013 = vmatpush1.bf16.msra.mxu0 %v8039
    %9014 = vmatprep.subr.bf16.mxu0 %v8046
    %9015 = vmatpush1.bf16.msra.mxu0 %v8045
    %9016 = vmatprep.subr.bf16.mxu0 %v8052
    %9017 = vmatpush1.bf16.msra.mxu0 %v8051
    %9018 = vmatprep.subr.bf16.mxu0 %v8058
    %9019 = vmatpush1.bf16.msra.mxu0 %v8057
    %9020 = vmatprep.subr.bf16.mxu0 %v8064
    %9021 = vmatpush1.bf16.msra.mxu0 %v8063
    %9022 = vmatprep.subr.bf16.mxu0 %v8070
    %9023 = vmatpush1.bf16.msra.mxu0 %v8069
    %9024 = vmatprep.mubr.bf16.mxu0 %v6243
    %9025 = vmatmul.mubr.bf16.gmra.mrb[0].mxu0 %v6242
    %v9026 = vpop.f32.mrb[0].mxu0
    %v9027 = vadd.f32 %v8986, %v9026
    %v9028 = vpop.f32.mrb[0].mxu0
    %v9029 = vadd.f32 %v8988, %v9028
    %v9030 = vpop.f32.mrb[0].mxu0
    %v9031 = vpop.f32.mrb[0].mxu0
    %9032 = vdwg.mxu0
    %9033 = vmatprep.subr.bf16.mxu0 %v8076
    %9034 = vmatpush1.bf16.msra.mxu0 %v8075
    %9035 = vmatprep.subr.bf16.mxu0 %v8082
    %9036 = vmatpush1.bf16.msra.mxu0 %v8081
    %9037 = vmatprep.subr.bf16.mxu0 %v8088
    %9038 = vmatpush1.bf16.msra.mxu0 %v8087
    %9039 = vmatprep.subr.bf16.mxu0 %v8094
    %9040 = vmatpush1.bf16.msra.mxu0 %v8093
    %9041 = vmatprep.subr.bf16.mxu0 %v8100
    %9042 = vmatpush1.bf16.msra.mxu0 %v8099
    %9043 = vmatprep.subr.bf16.mxu0 %v8106
    %9044 = vmatpush1.bf16.msra.mxu0 %v8105
    %9045 = vmatprep.subr.bf16.mxu0 %v8112
    %9046 = vmatpush1.bf16.msra.mxu0 %v8111
    %9047 = vmatprep.subr.bf16.mxu0 %v8118
    %9048 = vmatpush1.bf16.msra.mxu0 %v8117
    %9049 = vmatprep.subr.bf16.mxu0 %v8124
    %9050 = vmatpush1.bf16.msra.mxu0 %v8123
    %9051 = vmatprep.subr.bf16.mxu0 %v8130
    %9052 = vmatpush1.bf16.msra.mxu0 %v8129
    %9053 = vmatprep.subr.bf16.mxu0 %v8136
    %9054 = vmatpush1.bf16.msra.mxu0 %v8135
    %9055 = vmatprep.subr.bf16.mxu0 %v8142
    %9056 = vmatpush1.bf16.msra.mxu0 %v8141
    %9057 = vmatprep.subr.bf16.mxu0 %v8148
    %9058 = vmatpush1.bf16.msra.mxu0 %v8147
    %9059 = vmatprep.subr.bf16.mxu0 %v8154
    %9060 = vmatpush1.bf16.msra.mxu0 %v8153
    %9061 = vmatprep.subr.bf16.mxu0 %v8160
    %9062 = vmatpush1.bf16.msra.mxu0 %v8159
    %9063 = vmatprep.subr.bf16.mxu0 %v8166
    %9064 = vmatpush1.bf16.msra.mxu0 %v8165
    %9065 = vmatprep.mubr.bf16.mxu0 %v6245
    %9066 = vmatmul.mubr.bf16.gmra.mrb[0].mxu0 %v6244
    %v9067 = vpop.f32.mrb[0].mxu0
    %v9068 = vadd.f32 %v9027, %v9067
    %v9069 = vpop.f32.mrb[0].mxu0
    %v9070 = vadd.f32 %v9029, %v9069
    %v9071 = vpop.f32.mrb[0].mxu0
    %v9072 = vpop.f32.mrb[0].mxu0
    %9073 = vdwg.mxu0
    %v9074 = vadd.f32 %v3184, %v8740
    %v9075 = vadd.f32 %v3186, %v8742
    %v9076 = vadd.f32 %v3307, %v8904
    %v9077 = vadd.f32 %v3309, %v8906
    %v9078 = vadd.f32 %v3430, %v9068
    %v9079 = vadd.f32 %v3432, %v9070
    %v9080 = vpack.c.bf16 %v9074, %v9074
    %v9081 = vpack.c.bf16 %v9075, %v9075
    %v9082 = vpack.c.bf16 %v9076, %v9076
    %v9083 = vpack.c.bf16 %v9077, %v9077
    %v9084 = vpack.c.bf16 %v9078, %v9078
    %v9085 = vpack.c.bf16 %v9079, %v9079
    %v9086 = vld [vmem:[#allocation7] sm:$0xff]
    %v9087 = vld [vmem:[#allocation7 + $0x8] sm:$0xff]
    %v9088 = vld [vmem:[#allocation7 + $0x10] sm:$0xff]
    %v9089 = vld [vmem:[#allocation7 + $0x18] sm:$0xff]
    %v9090 = vld [vmem:[#allocation7 + $0x20] sm:$0xff]
    %v9091 = vld [vmem:[#allocation7 + $0x28] sm:$0xff]
    %v9092 = vld [vmem:[#allocation7 + $0x30] sm:$0xff]
    %v9093 = vld [vmem:[#allocation7 + $0x38] sm:$0xff]
    %v9094 = vld [vmem:[#allocation7 + $0x40] sm:$0xff]
    %v9095 = vld [vmem:[#allocation7 + $0x48] sm:$0xff]
    %v9096 = vld [vmem:[#allocation7 + $0x50] sm:$0xff]
    %v9097 = vld [vmem:[#allocation7 + $0x58] sm:$0xff]
    %v9098 = vld [vmem:[#allocation7 + $0x60] sm:$0xff]
    %v9099 = vld [vmem:[#allocation7 + $0x68] sm:$0xff]
    %v9100 = vld [vmem:[#allocation7 + $0x70] sm:$0xff]
    %v9101 = vld [vmem:[#allocation7 + $0x78] sm:$0xff]
    %v9102 = vld [vmem:[#allocation7 + $0x80] sm:$0xff]
    %v9103 = vld [vmem:[#allocation7 + $0x88] sm:$0xff]
    %v9104 = vld [vmem:[#allocation7 + $0x90] sm:$0xff]
    %v9105 = vld [vmem:[#allocation7 + $0x98] sm:$0xff]
    %v9106 = vld [vmem:[#allocation7 + $0xa0] sm:$0xff]
    %v9107 = vld [vmem:[#allocation7 + $0xa8] sm:$0xff]
    %v9108 = vld [vmem:[#allocation7 + $0xb0] sm:$0xff]
    %v9109 = vld [vmem:[#allocation7 + $0xb8] sm:$0xff]
    %v9110 = vld [vmem:[#allocation7 + $0xc0] sm:$0xff]
    %v9111 = vld [vmem:[#allocation7 + $0xc8] sm:$0xff]
    %v9112 = vld [vmem:[#allocation7 + $0xd0] sm:$0xff]
    %v9113 = vld [vmem:[#allocation7 + $0xd8] sm:$0xff]
    %v9114 = vld [vmem:[#allocation7 + $0xe0] sm:$0xff]
    %v9115 = vld [vmem:[#allocation7 + $0xe8] sm:$0xff]
    %v9116 = vld [vmem:[#allocation7 + $0xf0] sm:$0xff]
    %v9117 = vld [vmem:[#allocation7 + $0xf8] sm:$0xff]
    %v9118 = vld [vmem:[#allocation7 + $0x100] sm:$0xff]
    %v9119 = vld [vmem:[#allocation7 + $0x108] sm:$0xff]
    %v9120 = vld [vmem:[#allocation7 + $0x110] sm:$0xff]
    %v9121 = vld [vmem:[#allocation7 + $0x118] sm:$0xff]
    %v9122 = vld [vmem:[#allocation7 + $0x120] sm:$0xff]
    %v9123 = vld [vmem:[#allocation7 + $0x128] sm:$0xff]
    %v9124 = vld [vmem:[#allocation7 + $0x130] sm:$0xff]
    %v9125 = vld [vmem:[#allocation7 + $0x138] sm:$0xff]
    %v9126 = vld [vmem:[#allocation7 + $0x140] sm:$0xff]
    %v9127 = vld [vmem:[#allocation7 + $0x148] sm:$0xff]
    %v9128 = vld [vmem:[#allocation7 + $0x150] sm:$0xff]
    %v9129 = vld [vmem:[#allocation7 + $0x158] sm:$0xff]
    %v9130 = vld [vmem:[#allocation7 + $0x160] sm:$0xff]
    %v9131 = vld [vmem:[#allocation7 + $0x168] sm:$0xff]
    %v9132 = vld [vmem:[#allocation7 + $0x170] sm:$0xff]
    %v9133 = vld [vmem:[#allocation7 + $0x178] sm:$0xff]
    %v9134 = vld [vmem:[#allocation7 + $0x180] sm:$0xff]
    %v9135 = vld [vmem:[#allocation7 + $0x188] sm:$0xff]
    %v9136 = vld [vmem:[#allocation7 + $0x190] sm:$0xff]
    %v9137 = vld [vmem:[#allocation7 + $0x198] sm:$0xff]
    %v9138 = vld [vmem:[#allocation7 + $0x1a0] sm:$0xff]
    %v9139 = vld [vmem:[#allocation7 + $0x1a8] sm:$0xff]
    %v9140 = vld [vmem:[#allocation7 + $0x1b0] sm:$0xff]
    %v9141 = vld [vmem:[#allocation7 + $0x1b8] sm:$0xff]
    %v9142 = vld [vmem:[#allocation7 + $0x1c0] sm:$0xff]
    %v9143 = vld [vmem:[#allocation7 + $0x1c8] sm:$0xff]
    %v9144 = vld [vmem:[#allocation7 + $0x1d0] sm:$0xff]
    %v9145 = vld [vmem:[#allocation7 + $0x1d8] sm:$0xff]
    %v9146 = vld [vmem:[#allocation7 + $0x1e0] sm:$0xff]
    %v9147 = vld [vmem:[#allocation7 + $0x1e8] sm:$0xff]
    %v9148 = vld [vmem:[#allocation7 + $0x1f0] sm:$0xff]
    %v9149 = vld [vmem:[#allocation7 + $0x1f8] sm:$0xff]
    %v9150 = vld [vmem:[#allocation7 + $0x200] sm:$0xff]
    %v9151 = vld [vmem:[#allocation7 + $0x208] sm:$0xff]
    %v9152 = vld [vmem:[#allocation7 + $0x210] sm:$0xff]
    %v9153 = vld [vmem:[#allocation7 + $0x218] sm:$0xff]
    %v9154 = vld [vmem:[#allocation7 + $0x220] sm:$0xff]
    %v9155 = vld [vmem:[#allocation7 + $0x228] sm:$0xff]
    %v9156 = vld [vmem:[#allocation7 + $0x230] sm:$0xff]
    %v9157 = vld [vmem:[#allocation7 + $0x238] sm:$0xff]
    %v9158 = vld [vmem:[#allocation7 + $0x240] sm:$0xff]
    %v9159 = vld [vmem:[#allocation7 + $0x248] sm:$0xff]
    %v9160 = vld [vmem:[#allocation7 + $0x250] sm:$0xff]
    %v9161 = vld [vmem:[#allocation7 + $0x258] sm:$0xff]
    %v9162 = vld [vmem:[#allocation7 + $0x260] sm:$0xff]
    %v9163 = vld [vmem:[#allocation7 + $0x268] sm:$0xff]
    %v9164 = vld [vmem:[#allocation7 + $0x270] sm:$0xff]
    %v9165 = vld [vmem:[#allocation7 + $0x278] sm:$0xff]
    %v9166 = vld [vmem:[#allocation7 + $0x280] sm:$0xff]
    %v9167 = vld [vmem:[#allocation7 + $0x288] sm:$0xff]
    %v9168 = vld [vmem:[#allocation7 + $0x290] sm:$0xff]
    %v9169 = vld [vmem:[#allocation7 + $0x298] sm:$0xff]
    %v9170 = vld [vmem:[#allocation7 + $0x2a0] sm:$0xff]
    %v9171 = vld [vmem:[#allocation7 + $0x2a8] sm:$0xff]
    %v9172 = vld [vmem:[#allocation7 + $0x2b0] sm:$0xff]
    %v9173 = vld [vmem:[#allocation7 + $0x2b8] sm:$0xff]
    %v9174 = vld [vmem:[#allocation7 + $0x2c0] sm:$0xff]
    %v9175 = vld [vmem:[#allocation7 + $0x2c8] sm:$0xff]
    %v9176 = vld [vmem:[#allocation7 + $0x2d0] sm:$0xff]
    %v9177 = vld [vmem:[#allocation7 + $0x2d8] sm:$0xff]
    %v9178 = vld [vmem:[#allocation7 + $0x2e0] sm:$0xff]
    %v9179 = vld [vmem:[#allocation7 + $0x2e8] sm:$0xff]
    %v9180 = vld [vmem:[#allocation7 + $0x2f0] sm:$0xff]
    %v9181 = vld [vmem:[#allocation7 + $0x2f8] sm:$0xff]
    %v9182 = vld [vmem:[#allocation7 + $0x300] sm:$0xff]
    %v9183 = vld [vmem:[#allocation7 + $0x308] sm:$0xff]
    %v9184 = vld [vmem:[#allocation7 + $0x310] sm:$0xff]
    %v9185 = vld [vmem:[#allocation7 + $0x318] sm:$0xff]
    %v9186 = vld [vmem:[#allocation7 + $0x320] sm:$0xff]
    %v9187 = vld [vmem:[#allocation7 + $0x328] sm:$0xff]
    %v9188 = vld [vmem:[#allocation7 + $0x330] sm:$0xff]
    %v9189 = vld [vmem:[#allocation7 + $0x338] sm:$0xff]
    %v9190 = vld [vmem:[#allocation7 + $0x340] sm:$0xff]
    %v9191 = vld [vmem:[#allocation7 + $0x348] sm:$0xff]
    %v9192 = vld [vmem:[#allocation7 + $0x350] sm:$0xff]
    %v9193 = vld [vmem:[#allocation7 + $0x358] sm:$0xff]
    %v9194 = vld [vmem:[#allocation7 + $0x360] sm:$0xff]
    %v9195 = vld [vmem:[#allocation7 + $0x368] sm:$0xff]
    %v9196 = vld [vmem:[#allocation7 + $0x370] sm:$0xff]
    %v9197 = vld [vmem:[#allocation7 + $0x378] sm:$0xff]
    %v9198 = vld [vmem:[#allocation7 + $0x380] sm:$0xff]
    %v9199 = vld [vmem:[#allocation7 + $0x388] sm:$0xff]
    %v9200 = vld [vmem:[#allocation7 + $0x390] sm:$0xff]
    %v9201 = vld [vmem:[#allocation7 + $0x398] sm:$0xff]
    %v9202 = vld [vmem:[#allocation7 + $0x3a0] sm:$0xff]
    %v9203 = vld [vmem:[#allocation7 + $0x3a8] sm:$0xff]
    %v9204 = vld [vmem:[#allocation7 + $0x3b0] sm:$0xff]
    %v9205 = vld [vmem:[#allocation7 + $0x3b8] sm:$0xff]
    %v9206 = vld [vmem:[#allocation7 + $0x3c0] sm:$0xff]
    %v9207 = vld [vmem:[#allocation7 + $0x3c8] sm:$0xff]
    %v9208 = vld [vmem:[#allocation7 + $0x3d0] sm:$0xff]
    %v9209 = vld [vmem:[#allocation7 + $0x3d8] sm:$0xff]
    %v9210 = vld [vmem:[#allocation7 + $0x3e0] sm:$0xff]
    %v9211 = vld [vmem:[#allocation7 + $0x3e8] sm:$0xff]
    %v9212 = vld [vmem:[#allocation7 + $0x3f0] sm:$0xff]
    %v9213 = vld [vmem:[#allocation7 + $0x3f8] sm:$0xff]
    %v9214 = vld [vmem:[#allocation7 + $0x400] sm:$0xff]
    %v9215 = vld [vmem:[#allocation7 + $0x408] sm:$0xff]
    %v9216 = vld [vmem:[#allocation7 + $0x410] sm:$0xff]
    %v9217 = vld [vmem:[#allocation7 + $0x418] sm:$0xff]
    %v9218 = vld [vmem:[#allocation7 + $0x420] sm:$0xff]
    %v9219 = vld [vmem:[#allocation7 + $0x428] sm:$0xff]
    %v9220 = vld [vmem:[#allocation7 + $0x430] sm:$0xff]
    %v9221 = vld [vmem:[#allocation7 + $0x438] sm:$0xff]
    %v9222 = vld [vmem:[#allocation7 + $0x440] sm:$0xff]
    %v9223 = vld [vmem:[#allocation7 + $0x448] sm:$0xff]
    %v9224 = vld [vmem:[#allocation7 + $0x450] sm:$0xff]
    %v9225 = vld [vmem:[#allocation7 + $0x458] sm:$0xff]
    %v9226 = vld [vmem:[#allocation7 + $0x460] sm:$0xff]
    %v9227 = vld [vmem:[#allocation7 + $0x468] sm:$0xff]
    %v9228 = vld [vmem:[#allocation7 + $0x470] sm:$0xff]
    %v9229 = vld [vmem:[#allocation7 + $0x478] sm:$0xff]
    %v9230 = vld [vmem:[#allocation7 + $0x480] sm:$0xff]
    %v9231 = vld [vmem:[#allocation7 + $0x488] sm:$0xff]
    %v9232 = vld [vmem:[#allocation7 + $0x490] sm:$0xff]
    %v9233 = vld [vmem:[#allocation7 + $0x498] sm:$0xff]
    %v9234 = vld [vmem:[#allocation7 + $0x4a0] sm:$0xff]
    %v9235 = vld [vmem:[#allocation7 + $0x4a8] sm:$0xff]
    %v9236 = vld [vmem:[#allocation7 + $0x4b0] sm:$0xff]
    %v9237 = vld [vmem:[#allocation7 + $0x4b8] sm:$0xff]
    %v9238 = vld [vmem:[#allocation7 + $0x4c0] sm:$0xff]
    %v9239 = vld [vmem:[#allocation7 + $0x4c8] sm:$0xff]
    %v9240 = vld [vmem:[#allocation7 + $0x4d0] sm:$0xff]
    %v9241 = vld [vmem:[#allocation7 + $0x4d8] sm:$0xff]
    %v9242 = vld [vmem:[#allocation7 + $0x4e0] sm:$0xff]
    %v9243 = vld [vmem:[#allocation7 + $0x4e8] sm:$0xff]
    %v9244 = vld [vmem:[#allocation7 + $0x4f0] sm:$0xff]
    %v9245 = vld [vmem:[#allocation7 + $0x4f8] sm:$0xff]
    %v9246 = vld [vmem:[#allocation7 + $0x500] sm:$0xff]
    %v9247 = vld [vmem:[#allocation7 + $0x508] sm:$0xff]
    %v9248 = vld [vmem:[#allocation7 + $0x510] sm:$0xff]
    %v9249 = vld [vmem:[#allocation7 + $0x518] sm:$0xff]
    %v9250 = vld [vmem:[#allocation7 + $0x520] sm:$0xff]
    %v9251 = vld [vmem:[#allocation7 + $0x528] sm:$0xff]
    %v9252 = vld [vmem:[#allocation7 + $0x530] sm:$0xff]
    %v9253 = vld [vmem:[#allocation7 + $0x538] sm:$0xff]
    %v9254 = vld [vmem:[#allocation7 + $0x540] sm:$0xff]
    %v9255 = vld [vmem:[#allocation7 + $0x548] sm:$0xff]
    %v9256 = vld [vmem:[#allocation7 + $0x550] sm:$0xff]
    %v9257 = vld [vmem:[#allocation7 + $0x558] sm:$0xff]
    %v9258 = vld [vmem:[#allocation7 + $0x560] sm:$0xff]
    %v9259 = vld [vmem:[#allocation7 + $0x568] sm:$0xff]
    %v9260 = vld [vmem:[#allocation7 + $0x570] sm:$0xff]
    %v9261 = vld [vmem:[#allocation7 + $0x578] sm:$0xff]
    %v9262 = vld [vmem:[#allocation7 + $0x580] sm:$0xff]
    %v9263 = vld [vmem:[#allocation7 + $0x588] sm:$0xff]
    %v9264 = vld [vmem:[#allocation7 + $0x590] sm:$0xff]
    %v9265 = vld [vmem:[#allocation7 + $0x598] sm:$0xff]
    %v9266 = vld [vmem:[#allocation7 + $0x5a0] sm:$0xff]
    %v9267 = vld [vmem:[#allocation7 + $0x5a8] sm:$0xff]
    %v9268 = vld [vmem:[#allocation7 + $0x5b0] sm:$0xff]
    %v9269 = vld [vmem:[#allocation7 + $0x5b8] sm:$0xff]
    %v9270 = vld [vmem:[#allocation7 + $0x5c0] sm:$0xff]
    %v9271 = vld [vmem:[#allocation7 + $0x5c8] sm:$0xff]
    %v9272 = vld [vmem:[#allocation7 + $0x5d0] sm:$0xff]
    %v9273 = vld [vmem:[#allocation7 + $0x5d8] sm:$0xff]
    %v9274 = vld [vmem:[#allocation7 + $0x5e0] sm:$0xff]
    %v9275 = vld [vmem:[#allocation7 + $0x5e8] sm:$0xff]
    %v9276 = vld [vmem:[#allocation7 + $0x5f0] sm:$0xff]
    %v9277 = vld [vmem:[#allocation7 + $0x5f8] sm:$0xff]
    %v9278 = vld [vmem:[#allocation7 + $0x600] sm:$0xff]
    %v9279 = vld [vmem:[#allocation7 + $0x608] sm:$0xff]
    %v9280 = vld [vmem:[#allocation7 + $0x610] sm:$0xff]
    %v9281 = vld [vmem:[#allocation7 + $0x618] sm:$0xff]
    %v9282 = vld [vmem:[#allocation7 + $0x620] sm:$0xff]
    %v9283 = vld [vmem:[#allocation7 + $0x628] sm:$0xff]
    %v9284 = vld [vmem:[#allocation7 + $0x630] sm:$0xff]
    %v9285 = vld [vmem:[#allocation7 + $0x638] sm:$0xff]
    %v9286 = vld [vmem:[#allocation7 + $0x640] sm:$0xff]
    %v9287 = vld [vmem:[#allocation7 + $0x648] sm:$0xff]
    %v9288 = vld [vmem:[#allocation7 + $0x650] sm:$0xff]
    %v9289 = vld [vmem:[#allocation7 + $0x658] sm:$0xff]
    %v9290 = vld [vmem:[#allocation7 + $0x660] sm:$0xff]
    %v9291 = vld [vmem:[#allocation7 + $0x668] sm:$0xff]
    %v9292 = vld [vmem:[#allocation7 + $0x670] sm:$0xff]
    %v9293 = vld [vmem:[#allocation7 + $0x678] sm:$0xff]
    %v9294 = vld [vmem:[#allocation7 + $0x680] sm:$0xff]
    %v9295 = vld [vmem:[#allocation7 + $0x688] sm:$0xff]
    %v9296 = vld [vmem:[#allocation7 + $0x690] sm:$0xff]
    %v9297 = vld [vmem:[#allocation7 + $0x698] sm:$0xff]
    %v9298 = vld [vmem:[#allocation7 + $0x6a0] sm:$0xff]
    %v9299 = vld [vmem:[#allocation7 + $0x6a8] sm:$0xff]
    %v9300 = vld [vmem:[#allocation7 + $0x6b0] sm:$0xff]
    %v9301 = vld [vmem:[#allocation7 + $0x6b8] sm:$0xff]
    %v9302 = vld [vmem:[#allocation7 + $0x6c0] sm:$0xff]
    %v9303 = vld [vmem:[#allocation7 + $0x6c8] sm:$0xff]
    %v9304 = vld [vmem:[#allocation7 + $0x6d0] sm:$0xff]
    %v9305 = vld [vmem:[#allocation7 + $0x6d8] sm:$0xff]
    %v9306 = vld [vmem:[#allocation7 + $0x6e0] sm:$0xff]
    %v9307 = vld [vmem:[#allocation7 + $0x6e8] sm:$0xff]
    %v9308 = vld [vmem:[#allocation7 + $0x6f0] sm:$0xff]
    %v9309 = vld [vmem:[#allocation7 + $0x6f8] sm:$0xff]
    %v9310 = vld [vmem:[#allocation7 + $0x700] sm:$0xff]
    %v9311 = vld [vmem:[#allocation7 + $0x708] sm:$0xff]
    %v9312 = vld [vmem:[#allocation7 + $0x710] sm:$0xff]
    %v9313 = vld [vmem:[#allocation7 + $0x718] sm:$0xff]
    %v9314 = vld [vmem:[#allocation7 + $0x720] sm:$0xff]
    %v9315 = vld [vmem:[#allocation7 + $0x728] sm:$0xff]
    %v9316 = vld [vmem:[#allocation7 + $0x730] sm:$0xff]
    %v9317 = vld [vmem:[#allocation7 + $0x738] sm:$0xff]
    %v9318 = vld [vmem:[#allocation7 + $0x740] sm:$0xff]
    %v9319 = vld [vmem:[#allocation7 + $0x748] sm:$0xff]
    %v9320 = vld [vmem:[#allocation7 + $0x750] sm:$0xff]
    %v9321 = vld [vmem:[#allocation7 + $0x758] sm:$0xff]
    %v9322 = vld [vmem:[#allocation7 + $0x760] sm:$0xff]
    %v9323 = vld [vmem:[#allocation7 + $0x768] sm:$0xff]
    %v9324 = vld [vmem:[#allocation7 + $0x770] sm:$0xff]
    %v9325 = vld [vmem:[#allocation7 + $0x778] sm:$0xff]
    %v9326 = vld [vmem:[#allocation7 + $0x780] sm:$0xff]
    %v9327 = vld [vmem:[#allocation7 + $0x788] sm:$0xff]
    %v9328 = vld [vmem:[#allocation7 + $0x790] sm:$0xff]
    %v9329 = vld [vmem:[#allocation7 + $0x798] sm:$0xff]
    %v9330 = vld [vmem:[#allocation7 + $0x7a0] sm:$0xff]
    %v9331 = vld [vmem:[#allocation7 + $0x7a8] sm:$0xff]
    %v9332 = vld [vmem:[#allocation7 + $0x7b0] sm:$0xff]
    %v9333 = vld [vmem:[#allocation7 + $0x7b8] sm:$0xff]
    %v9334 = vld [vmem:[#allocation7 + $0x7c0] sm:$0xff]
    %v9335 = vld [vmem:[#allocation7 + $0x7c8] sm:$0xff]
    %v9336 = vld [vmem:[#allocation7 + $0x7d0] sm:$0xff]
    %v9337 = vld [vmem:[#allocation7 + $0x7d8] sm:$0xff]
    %v9338 = vld [vmem:[#allocation7 + $0x7e0] sm:$0xff]
    %v9339 = vld [vmem:[#allocation7 + $0x7e8] sm:$0xff]
    %v9340 = vld [vmem:[#allocation7 + $0x7f0] sm:$0xff]
    %v9341 = vld [vmem:[#allocation7 + $0x7f8] sm:$0xff]
    %v9342 = vld [vmem:[#allocation7 + $0x800] sm:$0xff]
    %v9343 = vld [vmem:[#allocation7 + $0x808] sm:$0xff]
    %v9344 = vld [vmem:[#allocation7 + $0x810] sm:$0xff]
    %v9345 = vld [vmem:[#allocation7 + $0x818] sm:$0xff]
    %v9346 = vld [vmem:[#allocation7 + $0x820] sm:$0xff]
    %v9347 = vld [vmem:[#allocation7 + $0x828] sm:$0xff]
    %v9348 = vld [vmem:[#allocation7 + $0x830] sm:$0xff]
    %v9349 = vld [vmem:[#allocation7 + $0x838] sm:$0xff]
    %v9350 = vld [vmem:[#allocation7 + $0x840] sm:$0xff]
    %v9351 = vld [vmem:[#allocation7 + $0x848] sm:$0xff]
    %v9352 = vld [vmem:[#allocation7 + $0x850] sm:$0xff]
    %v9353 = vld [vmem:[#allocation7 + $0x858] sm:$0xff]
    %v9354 = vld [vmem:[#allocation7 + $0x860] sm:$0xff]
    %v9355 = vld [vmem:[#allocation7 + $0x868] sm:$0xff]
    %v9356 = vld [vmem:[#allocation7 + $0x870] sm:$0xff]
    %v9357 = vld [vmem:[#allocation7 + $0x878] sm:$0xff]
    %v9358 = vld [vmem:[#allocation7 + $0x880] sm:$0xff]
    %v9359 = vld [vmem:[#allocation7 + $0x888] sm:$0xff]
    %v9360 = vld [vmem:[#allocation7 + $0x890] sm:$0xff]
    %v9361 = vld [vmem:[#allocation7 + $0x898] sm:$0xff]
    %v9362 = vld [vmem:[#allocation7 + $0x8a0] sm:$0xff]
    %v9363 = vld [vmem:[#allocation7 + $0x8a8] sm:$0xff]
    %v9364 = vld [vmem:[#allocation7 + $0x8b0] sm:$0xff]
    %v9365 = vld [vmem:[#allocation7 + $0x8b8] sm:$0xff]
    %v9366 = vld [vmem:[#allocation7 + $0x8c0] sm:$0xff]
    %v9367 = vld [vmem:[#allocation7 + $0x8c8] sm:$0xff]
    %v9368 = vld [vmem:[#allocation7 + $0x8d0] sm:$0xff]
    %v9369 = vld [vmem:[#allocation7 + $0x8d8] sm:$0xff]
    %v9370 = vld [vmem:[#allocation7 + $0x8e0] sm:$0xff]
    %v9371 = vld [vmem:[#allocation7 + $0x8e8] sm:$0xff]
    %v9372 = vld [vmem:[#allocation7 + $0x8f0] sm:$0xff]
    %v9373 = vld [vmem:[#allocation7 + $0x8f8] sm:$0xff]
    %v9374 = vld [vmem:[%s13] sm:$0x3f]
    %v9663 = vunpack.c.l.b16 %v9086
    %v9664 = vunpack.c.h.b16 %v9086
    %v9665 = vunpack.c.l.b16 %v9087
    %v9666 = vunpack.c.h.b16 %v9087
    %v9667 = vunpack.c.l.b16 %v9088
    %v9668 = vunpack.c.h.b16 %v9088
    %v9669 = vunpack.c.l.b16 %v9089
    %v9670 = vunpack.c.h.b16 %v9089
    %v9671 = vunpack.c.l.b16 %v9090
    %v9672 = vunpack.c.h.b16 %v9090
    %v9673 = vunpack.c.l.b16 %v9091
    %v9674 = vunpack.c.h.b16 %v9091
    %v9675 = vunpack.c.l.b16 %v9092
    %v9676 = vunpack.c.h.b16 %v9092
    %v9677 = vunpack.c.l.b16 %v9093
    %v9678 = vunpack.c.h.b16 %v9093
    %v9679 = vunpack.c.l.b16 %v9094
    %v9680 = vunpack.c.h.b16 %v9094
    %v9681 = vunpack.c.l.b16 %v9095
    %v9682 = vunpack.c.h.b16 %v9095
    %v9683 = vunpack.c.l.b16 %v9096
    %v9684 = vunpack.c.h.b16 %v9096
    %v9685 = vunpack.c.l.b16 %v9097
    %v9686 = vunpack.c.h.b16 %v9097
    %v9687 = vunpack.c.l.b16 %v9098
    %v9688 = vunpack.c.h.b16 %v9098
    %v9689 = vunpack.c.l.b16 %v9099
    %v9690 = vunpack.c.h.b16 %v9099
    %v9691 = vunpack.c.l.b16 %v9100
    %v9692 = vunpack.c.h.b16 %v9100
    %v9693 = vunpack.c.l.b16 %v9101
    %v9694 = vunpack.c.h.b16 %v9101
    %v9695 = vunpack.c.l.b16 %v9102
    %v9696 = vunpack.c.h.b16 %v9102
    %v9697 = vunpack.c.l.b16 %v9103
    %v9698 = vunpack.c.h.b16 %v9103
    %v9699 = vunpack.c.l.b16 %v9104
    %v9700 = vunpack.c.h.b16 %v9104
    %v9701 = vunpack.c.l.b16 %v9105
    %v9702 = vunpack.c.h.b16 %v9105
    %v9703 = vunpack.c.l.b16 %v9106
    %v9704 = vunpack.c.h.b16 %v9106
    %v9705 = vunpack.c.l.b16 %v9107
    %v9706 = vunpack.c.h.b16 %v9107
    %v9707 = vunpack.c.l.b16 %v9108
    %v9708 = vunpack.c.h.b16 %v9108
    %v9709 = vunpack.c.l.b16 %v9109
    %v9710 = vunpack.c.h.b16 %v9109
    %v9711 = vunpack.c.l.b16 %v9110
    %v9712 = vunpack.c.h.b16 %v9110
    %v9713 = vunpack.c.l.b16 %v9111
    %v9714 = vunpack.c.h.b16 %v9111
    %v9715 = vunpack.c.l.b16 %v9112
    %v9716 = vunpack.c.h.b16 %v9112
    %v9717 = vunpack.c.l.b16 %v9113
    %v9718 = vunpack.c.h.b16 %v9113
    %v9719 = vunpack.c.l.b16 %v9114
    %v9720 = vunpack.c.h.b16 %v9114
    %v9721 = vunpack.c.l.b16 %v9115
    %v9722 = vunpack.c.h.b16 %v9115
    %v9723 = vunpack.c.l.b16 %v9116
    %v9724 = vunpack.c.h.b16 %v9116
    %v9725 = vunpack.c.l.b16 %v9117
    %v9726 = vunpack.c.h.b16 %v9117
    %v9727 = vunpack.c.l.b16 %v9118
    %v9728 = vunpack.c.h.b16 %v9118
    %v9729 = vunpack.c.l.b16 %v9119
    %v9730 = vunpack.c.h.b16 %v9119
    %v9731 = vunpack.c.l.b16 %v9120
    %v9732 = vunpack.c.h.b16 %v9120
    %v9733 = vunpack.c.l.b16 %v9121
    %v9734 = vunpack.c.h.b16 %v9121
    %v9735 = vunpack.c.l.b16 %v9122
    %v9736 = vunpack.c.h.b16 %v9122
    %v9737 = vunpack.c.l.b16 %v9123
    %v9738 = vunpack.c.h.b16 %v9123
    %v9739 = vunpack.c.l.b16 %v9124
    %v9740 = vunpack.c.h.b16 %v9124
    %v9741 = vunpack.c.l.b16 %v9125
    %v9742 = vunpack.c.h.b16 %v9125
    %v9743 = vunpack.c.l.b16 %v9126
    %v9744 = vunpack.c.h.b16 %v9126
    %v9745 = vunpack.c.l.b16 %v9127
    %v9746 = vunpack.c.h.b16 %v9127
    %v9747 = vunpack.c.l.b16 %v9128
    %v9748 = vunpack.c.h.b16 %v9128
    %v9749 = vunpack.c.l.b16 %v9129
    %v9750 = vunpack.c.h.b16 %v9129
    %v9751 = vunpack.c.l.b16 %v9130
    %v9752 = vunpack.c.h.b16 %v9130
    %v9753 = vunpack.c.l.b16 %v9131
    %v9754 = vunpack.c.h.b16 %v9131
    %v9755 = vunpack.c.l.b16 %v9132
    %v9756 = vunpack.c.h.b16 %v9132
    %v9757 = vunpack.c.l.b16 %v9133
    %v9758 = vunpack.c.h.b16 %v9133
    %v9759 = vunpack.c.l.b16 %v9134
    %v9760 = vunpack.c.h.b16 %v9134
    %v9761 = vunpack.c.l.b16 %v9135
    %v9762 = vunpack.c.h.b16 %v9135
    %v9763 = vunpack.c.l.b16 %v9136
    %v9764 = vunpack.c.h.b16 %v9136
    %v9765 = vunpack.c.l.b16 %v9137
    %v9766 = vunpack.c.h.b16 %v9137
    %v9767 = vunpack.c.l.b16 %v9138
    %v9768 = vunpack.c.h.b16 %v9138
    %v9769 = vunpack.c.l.b16 %v9139
    %v9770 = vunpack.c.h.b16 %v9139
    %v9771 = vunpack.c.l.b16 %v9140
    %v9772 = vunpack.c.h.b16 %v9140
    %v9773 = vunpack.c.l.b16 %v9141
    %v9774 = vunpack.c.h.b16 %v9141
    %v9775 = vunpack.c.l.b16 %v9142
    %v9776 = vunpack.c.h.b16 %v9142
    %v9777 = vunpack.c.l.b16 %v9143
    %v9778 = vunpack.c.h.b16 %v9143
    %v9779 = vunpack.c.l.b16 %v9144
    %v9780 = vunpack.c.h.b16 %v9144
    %v9781 = vunpack.c.l.b16 %v9145
    %v9782 = vunpack.c.h.b16 %v9145
    %v9783 = vunpack.c.l.b16 %v9146
    %v9784 = vunpack.c.h.b16 %v9146
    %v9785 = vunpack.c.l.b16 %v9147
    %v9786 = vunpack.c.h.b16 %v9147
    %v9787 = vunpack.c.l.b16 %v9148
    %v9788 = vunpack.c.h.b16 %v9148
    %v9789 = vunpack.c.l.b16 %v9149
    %v9790 = vunpack.c.h.b16 %v9149
    %v9791 = vunpack.c.l.b16 %v9150
    %v9792 = vunpack.c.h.b16 %v9150
    %v9793 = vunpack.c.l.b16 %v9151
    %v9794 = vunpack.c.h.b16 %v9151
    %v9795 = vunpack.c.l.b16 %v9152
    %v9796 = vunpack.c.h.b16 %v9152
    %v9797 = vunpack.c.l.b16 %v9153
    %v9798 = vunpack.c.h.b16 %v9153
    %v9799 = vunpack.c.l.b16 %v9154
    %v9800 = vunpack.c.h.b16 %v9154
    %v9801 = vunpack.c.l.b16 %v9155
    %v9802 = vunpack.c.h.b16 %v9155
    %v9803 = vunpack.c.l.b16 %v9156
    %v9804 = vunpack.c.h.b16 %v9156
    %v9805 = vunpack.c.l.b16 %v9157
    %v9806 = vunpack.c.h.b16 %v9157
    %v9807 = vunpack.c.l.b16 %v9158
    %v9808 = vunpack.c.h.b16 %v9158
    %v9809 = vunpack.c.l.b16 %v9159
    %v9810 = vunpack.c.h.b16 %v9159
    %v9811 = vunpack.c.l.b16 %v9160
    %v9812 = vunpack.c.h.b16 %v9160
    %v9813 = vunpack.c.l.b16 %v9161
    %v9814 = vunpack.c.h.b16 %v9161
    %v9815 = vunpack.c.l.b16 %v9162
    %v9816 = vunpack.c.h.b16 %v9162
    %v9817 = vunpack.c.l.b16 %v9163
    %v9818 = vunpack.c.h.b16 %v9163
    %v9819 = vunpack.c.l.b16 %v9164
    %v9820 = vunpack.c.h.b16 %v9164
    %v9821 = vunpack.c.l.b16 %v9165
    %v9822 = vunpack.c.h.b16 %v9165
    %v9823 = vunpack.c.l.b16 %v9166
    %v9824 = vunpack.c.h.b16 %v9166
    %v9825 = vunpack.c.l.b16 %v9167
    %v9826 = vunpack.c.h.b16 %v9167
    %v9827 = vunpack.c.l.b16 %v9168
    %v9828 = vunpack.c.h.b16 %v9168
    %v9829 = vunpack.c.l.b16 %v9169
    %v9830 = vunpack.c.h.b16 %v9169
    %v9831 = vunpack.c.l.b16 %v9170
    %v9832 = vunpack.c.h.b16 %v9170
    %v9833 = vunpack.c.l.b16 %v9171
    %v9834 = vunpack.c.h.b16 %v9171
    %v9835 = vunpack.c.l.b16 %v9172
    %v9836 = vunpack.c.h.b16 %v9172
    %v9837 = vunpack.c.l.b16 %v9173
    %v9838 = vunpack.c.h.b16 %v9173
    %v9839 = vunpack.c.l.b16 %v9174
    %v9840 = vunpack.c.h.b16 %v9174
    %v9841 = vunpack.c.l.b16 %v9175
    %v9842 = vunpack.c.h.b16 %v9175
    %v9843 = vunpack.c.l.b16 %v9176
    %v9844 = vunpack.c.h.b16 %v9176
    %v9845 = vunpack.c.l.b16 %v9177
    %v9846 = vunpack.c.h.b16 %v9177
    %v9847 = vunpack.c.l.b16 %v9178
    %v9848 = vunpack.c.h.b16 %v9178
    %v9849 = vunpack.c.l.b16 %v9179
    %v9850 = vunpack.c.h.b16 %v9179
    %v9851 = vunpack.c.l.b16 %v9180
    %v9852 = vunpack.c.h.b16 %v9180
    %v9853 = vunpack.c.l.b16 %v9181
    %v9854 = vunpack.c.h.b16 %v9181
    %v9855 = vunpack.c.l.b16 %v9182
    %v9856 = vunpack.c.h.b16 %v9182
    %v9857 = vunpack.c.l.b16 %v9183
    %v9858 = vunpack.c.h.b16 %v9183
    %v9859 = vunpack.c.l.b16 %v9184
    %v9860 = vunpack.c.h.b16 %v9184
    %v9861 = vunpack.c.l.b16 %v9185
    %v9862 = vunpack.c.h.b16 %v9185
    %v9863 = vunpack.c.l.b16 %v9186
    %v9864 = vunpack.c.h.b16 %v9186
    %v9865 = vunpack.c.l.b16 %v9187
    %v9866 = vunpack.c.h.b16 %v9187
    %v9867 = vunpack.c.l.b16 %v9188
    %v9868 = vunpack.c.h.b16 %v9188
    %v9869 = vunpack.c.l.b16 %v9189
    %v9870 = vunpack.c.h.b16 %v9189
    %v9871 = vunpack.c.l.b16 %v9190
    %v9872 = vunpack.c.h.b16 %v9190
    %v9873 = vunpack.c.l.b16 %v9191
    %v9874 = vunpack.c.h.b16 %v9191
    %v9875 = vunpack.c.l.b16 %v9192
    %v9876 = vunpack.c.h.b16 %v9192
    %v9877 = vunpack.c.l.b16 %v9193
    %v9878 = vunpack.c.h.b16 %v9193
    %v9879 = vunpack.c.l.b16 %v9194
    %v9880 = vunpack.c.h.b16 %v9194
    %v9881 = vunpack.c.l.b16 %v9195
    %v9882 = vunpack.c.h.b16 %v9195
    %v9883 = vunpack.c.l.b16 %v9196
    %v9884 = vunpack.c.h.b16 %v9196
    %v9885 = vunpack.c.l.b16 %v9197
    %v9886 = vunpack.c.h.b16 %v9197
    %v9887 = vunpack.c.l.b16 %v9198
    %v9888 = vunpack.c.h.b16 %v9198
    %v9889 = vunpack.c.l.b16 %v9199
    %v9890 = vunpack.c.h.b16 %v9199
    %v9891 = vunpack.c.l.b16 %v9200
    %v9892 = vunpack.c.h.b16 %v9200
    %v9893 = vunpack.c.l.b16 %v9201
    %v9894 = vunpack.c.h.b16 %v9201
    %v9895 = vunpack.c.l.b16 %v9202
    %v9896 = vunpack.c.h.b16 %v9202
    %v9897 = vunpack.c.l.b16 %v9203
    %v9898 = vunpack.c.h.b16 %v9203
    %v9899 = vunpack.c.l.b16 %v9204
    %v9900 = vunpack.c.h.b16 %v9204
    %v9901 = vunpack.c.l.b16 %v9205
    %v9902 = vunpack.c.h.b16 %v9205
    %v9903 = vunpack.c.l.b16 %v9206
    %v9904 = vunpack.c.h.b16 %v9206
    %v9905 = vunpack.c.l.b16 %v9207
    %v9906 = vunpack.c.h.b16 %v9207
    %v9907 = vunpack.c.l.b16 %v9208
    %v9908 = vunpack.c.h.b16 %v9208
    %v9909 = vunpack.c.l.b16 %v9209
    %v9910 = vunpack.c.h.b16 %v9209
    %v9911 = vunpack.c.l.b16 %v9210
    %v9912 = vunpack.c.h.b16 %v9210
    %v9913 = vunpack.c.l.b16 %v9211
    %v9914 = vunpack.c.h.b16 %v9211
    %v9915 = vunpack.c.l.b16 %v9212
    %v9916 = vunpack.c.h.b16 %v9212
    %v9917 = vunpack.c.l.b16 %v9213
    %v9918 = vunpack.c.h.b16 %v9213
    %v9919 = vunpack.c.l.b16 %v9214
    %v9920 = vunpack.c.h.b16 %v9214
    %v9921 = vunpack.c.l.b16 %v9215
    %v9922 = vunpack.c.h.b16 %v9215
    %v9923 = vunpack.c.l.b16 %v9216
    %v9924 = vunpack.c.h.b16 %v9216
    %v9925 = vunpack.c.l.b16 %v9217
    %v9926 = vunpack.c.h.b16 %v9217
    %v9927 = vunpack.c.l.b16 %v9218
    %v9928 = vunpack.c.h.b16 %v9218
    %v9929 = vunpack.c.l.b16 %v9219
    %v9930 = vunpack.c.h.b16 %v9219
    %v9931 = vunpack.c.l.b16 %v9220
    %v9932 = vunpack.c.h.b16 %v9220
    %v9933 = vunpack.c.l.b16 %v9221
    %v9934 = vunpack.c.h.b16 %v9221
    %v9935 = vunpack.c.l.b16 %v9222
    %v9936 = vunpack.c.h.b16 %v9222
    %v9937 = vunpack.c.l.b16 %v9223
    %v9938 = vunpack.c.h.b16 %v9223
    %v9939 = vunpack.c.l.b16 %v9224
    %v9940 = vunpack.c.h.b16 %v9224
    %v9941 = vunpack.c.l.b16 %v9225
    %v9942 = vunpack.c.h.b16 %v9225
    %v9943 = vunpack.c.l.b16 %v9226
    %v9944 = vunpack.c.h.b16 %v9226
    %v9945 = vunpack.c.l.b16 %v9227
    %v9946 = vunpack.c.h.b16 %v9227
    %v9947 = vunpack.c.l.b16 %v9228
    %v9948 = vunpack.c.h.b16 %v9228
    %v9949 = vunpack.c.l.b16 %v9229
    %v9950 = vunpack.c.h.b16 %v9229
    %v9951 = vunpack.c.l.b16 %v9230
    %v9952 = vunpack.c.h.b16 %v9230
    %v9953 = vunpack.c.l.b16 %v9231
    %v9954 = vunpack.c.h.b16 %v9231
    %v9955 = vunpack.c.l.b16 %v9232
    %v9956 = vunpack.c.h.b16 %v9232
    %v9957 = vunpack.c.l.b16 %v9233
    %v9958 = vunpack.c.h.b16 %v9233
    %v9959 = vunpack.c.l.b16 %v9234
    %v9960 = vunpack.c.h.b16 %v9234
    %v9961 = vunpack.c.l.b16 %v9235
    %v9962 = vunpack.c.h.b16 %v9235
    %v9963 = vunpack.c.l.b16 %v9236
    %v9964 = vunpack.c.h.b16 %v9236
    %v9965 = vunpack.c.l.b16 %v9237
    %v9966 = vunpack.c.h.b16 %v9237
    %v9967 = vunpack.c.l.b16 %v9238
    %v9968 = vunpack.c.h.b16 %v9238
    %v9969 = vunpack.c.l.b16 %v9239
    %v9970 = vunpack.c.h.b16 %v9239
    %v9971 = vunpack.c.l.b16 %v9240
    %v9972 = vunpack.c.h.b16 %v9240
    %v9973 = vunpack.c.l.b16 %v9241
    %v9974 = vunpack.c.h.b16 %v9241
    %v9975 = vunpack.c.l.b16 %v9242
    %v9976 = vunpack.c.h.b16 %v9242
    %v9977 = vunpack.c.l.b16 %v9243
    %v9978 = vunpack.c.h.b16 %v9243
    %v9979 = vunpack.c.l.b16 %v9244
    %v9980 = vunpack.c.h.b16 %v9244
    %v9981 = vunpack.c.l.b16 %v9245
    %v9982 = vunpack.c.h.b16 %v9245
    %v9983 = vunpack.c.l.b16 %v9246
    %v9984 = vunpack.c.h.b16 %v9246
    %v9985 = vunpack.c.l.b16 %v9247
    %v9986 = vunpack.c.h.b16 %v9247
    %v9987 = vunpack.c.l.b16 %v9248
    %v9988 = vunpack.c.h.b16 %v9248
    %v9989 = vunpack.c.l.b16 %v9249
    %v9990 = vunpack.c.h.b16 %v9249
    %v9991 = vunpack.c.l.b16 %v9250
    %v9992 = vunpack.c.h.b16 %v9250
    %v9993 = vunpack.c.l.b16 %v9251
    %v9994 = vunpack.c.h.b16 %v9251
    %v9995 = vunpack.c.l.b16 %v9252
    %v9996 = vunpack.c.h.b16 %v9252
    %v9997 = vunpack.c.l.b16 %v9253
    %v9998 = vunpack.c.h.b16 %v9253
    %v9999 = vunpack.c.l.b16 %v9254
    %v10000 = vunpack.c.h.b16 %v9254
    %v10001 = vunpack.c.l.b16 %v9255
    %v10002 = vunpack.c.h.b16 %v9255
    %v10003 = vunpack.c.l.b16 %v9256
    %v10004 = vunpack.c.h.b16 %v9256
    %v10005 = vunpack.c.l.b16 %v9257
    %v10006 = vunpack.c.h.b16 %v9257
    %v10007 = vunpack.c.l.b16 %v9258
    %v10008 = vunpack.c.h.b16 %v9258
    %v10009 = vunpack.c.l.b16 %v9259
    %v10010 = vunpack.c.h.b16 %v9259
    %v10011 = vunpack.c.l.b16 %v9260
    %v10012 = vunpack.c.h.b16 %v9260
    %v10013 = vunpack.c.l.b16 %v9261
    %v10014 = vunpack.c.h.b16 %v9261
    %v10015 = vunpack.c.l.b16 %v9262
    %v10016 = vunpack.c.h.b16 %v9262
    %v10017 = vunpack.c.l.b16 %v9263
    %v10018 = vunpack.c.h.b16 %v9263
    %v10019 = vunpack.c.l.b16 %v9264
    %v10020 = vunpack.c.h.b16 %v9264
    %v10021 = vunpack.c.l.b16 %v9265
    %v10022 = vunpack.c.h.b16 %v9265
    %v10023 = vunpack.c.l.b16 %v9266
    %v10024 = vunpack.c.h.b16 %v9266
    %v10025 = vunpack.c.l.b16 %v9267
    %v10026 = vunpack.c.h.b16 %v9267
    %v10027 = vunpack.c.l.b16 %v9268
    %v10028 = vunpack.c.h.b16 %v9268
    %v10029 = vunpack.c.l.b16 %v9269
    %v10030 = vunpack.c.h.b16 %v9269
    %v10031 = vunpack.c.l.b16 %v9270
    %v10032 = vunpack.c.h.b16 %v9270
    %v10033 = vunpack.c.l.b16 %v9271
    %v10034 = vunpack.c.h.b16 %v9271
    %v10035 = vunpack.c.l.b16 %v9272
    %v10036 = vunpack.c.h.b16 %v9272
    %v10037 = vunpack.c.l.b16 %v9273
    %v10038 = vunpack.c.h.b16 %v9273
    %v10039 = vunpack.c.l.b16 %v9274
    %v10040 = vunpack.c.h.b16 %v9274
    %v10041 = vunpack.c.l.b16 %v9275
    %v10042 = vunpack.c.h.b16 %v9275
    %v10043 = vunpack.c.l.b16 %v9276
    %v10044 = vunpack.c.h.b16 %v9276
    %v10045 = vunpack.c.l.b16 %v9277
    %v10046 = vunpack.c.h.b16 %v9277
    %v10047 = vunpack.c.l.b16 %v9278
    %v10048 = vunpack.c.h.b16 %v9278
    %v10049 = vunpack.c.l.b16 %v9279
    %v10050 = vunpack.c.h.b16 %v9279
    %v10051 = vunpack.c.l.b16 %v9280
    %v10052 = vunpack.c.h.b16 %v9280
    %v10053 = vunpack.c.l.b16 %v9281
    %v10054 = vunpack.c.h.b16 %v9281
    %v10055 = vunpack.c.l.b16 %v9282
    %v10056 = vunpack.c.h.b16 %v9282
    %v10057 = vunpack.c.l.b16 %v9283
    %v10058 = vunpack.c.h.b16 %v9283
    %v10059 = vunpack.c.l.b16 %v9284
    %v10060 = vunpack.c.h.b16 %v9284
    %v10061 = vunpack.c.l.b16 %v9285
    %v10062 = vunpack.c.h.b16 %v9285
    %v10063 = vunpack.c.l.b16 %v9286
    %v10064 = vunpack.c.h.b16 %v9286
    %v10065 = vunpack.c.l.b16 %v9287
    %v10066 = vunpack.c.h.b16 %v9287
    %v10067 = vunpack.c.l.b16 %v9288
    %v10068 = vunpack.c.h.b16 %v9288
    %v10069 = vunpack.c.l.b16 %v9289
    %v10070 = vunpack.c.h.b16 %v9289
    %v10071 = vunpack.c.l.b16 %v9290
    %v10072 = vunpack.c.h.b16 %v9290
    %v10073 = vunpack.c.l.b16 %v9291
    %v10074 = vunpack.c.h.b16 %v9291
    %v10075 = vunpack.c.l.b16 %v9292
    %v10076 = vunpack.c.h.b16 %v9292
    %v10077 = vunpack.c.l.b16 %v9293
    %v10078 = vunpack.c.h.b16 %v9293
    %v10079 = vunpack.c.l.b16 %v9294
    %v10080 = vunpack.c.h.b16 %v9294
    %v10081 = vunpack.c.l.b16 %v9295
    %v10082 = vunpack.c.h.b16 %v9295
    %v10083 = vunpack.c.l.b16 %v9296
    %v10084 = vunpack.c.h.b16 %v9296
    %v10085 = vunpack.c.l.b16 %v9297
    %v10086 = vunpack.c.h.b16 %v9297
    %v10087 = vunpack.c.l.b16 %v9298
    %v10088 = vunpack.c.h.b16 %v9298
    %v10089 = vunpack.c.l.b16 %v9299
    %v10090 = vunpack.c.h.b16 %v9299
    %v10091 = vunpack.c.l.b16 %v9300
    %v10092 = vunpack.c.h.b16 %v9300
    %v10093 = vunpack.c.l.b16 %v9301
    %v10094 = vunpack.c.h.b16 %v9301
    %v10095 = vunpack.c.l.b16 %v9302
    %v10096 = vunpack.c.h.b16 %v9302
    %v10097 = vunpack.c.l.b16 %v9303
    %v10098 = vunpack.c.h.b16 %v9303
    %v10099 = vunpack.c.l.b16 %v9304
    %v10100 = vunpack.c.h.b16 %v9304
    %v10101 = vunpack.c.l.b16 %v9305
    %v10102 = vunpack.c.h.b16 %v9305
    %v10103 = vunpack.c.l.b16 %v9306
    %v10104 = vunpack.c.h.b16 %v9306
    %v10105 = vunpack.c.l.b16 %v9307
    %v10106 = vunpack.c.h.b16 %v9307
    %v10107 = vunpack.c.l.b16 %v9308
    %v10108 = vunpack.c.h.b16 %v9308
    %v10109 = vunpack.c.l.b16 %v9309
    %v10110 = vunpack.c.h.b16 %v9309
    %v10111 = vunpack.c.l.b16 %v9310
    %v10112 = vunpack.c.h.b16 %v9310
    %v10113 = vunpack.c.l.b16 %v9311
    %v10114 = vunpack.c.h.b16 %v9311
    %v10115 = vunpack.c.l.b16 %v9312
    %v10116 = vunpack.c.h.b16 %v9312
    %v10117 = vunpack.c.l.b16 %v9313
    %v10118 = vunpack.c.h.b16 %v9313
    %v10119 = vunpack.c.l.b16 %v9314
    %v10120 = vunpack.c.h.b16 %v9314
    %v10121 = vunpack.c.l.b16 %v9315
    %v10122 = vunpack.c.h.b16 %v9315
    %v10123 = vunpack.c.l.b16 %v9316
    %v10124 = vunpack.c.h.b16 %v9316
    %v10125 = vunpack.c.l.b16 %v9317
    %v10126 = vunpack.c.h.b16 %v9317
    %v10127 = vunpack.c.l.b16 %v9318
    %v10128 = vunpack.c.h.b16 %v9318
    %v10129 = vunpack.c.l.b16 %v9319
    %v10130 = vunpack.c.h.b16 %v9319
    %v10131 = vunpack.c.l.b16 %v9320
    %v10132 = vunpack.c.h.b16 %v9320
    %v10133 = vunpack.c.l.b16 %v9321
    %v10134 = vunpack.c.h.b16 %v9321
    %v10135 = vunpack.c.l.b16 %v9322
    %v10136 = vunpack.c.h.b16 %v9322
    %v10137 = vunpack.c.l.b16 %v9323
    %v10138 = vunpack.c.h.b16 %v9323
    %v10139 = vunpack.c.l.b16 %v9324
    %v10140 = vunpack.c.h.b16 %v9324
    %v10141 = vunpack.c.l.b16 %v9325
    %v10142 = vunpack.c.h.b16 %v9325
    %v10143 = vunpack.c.l.b16 %v9326
    %v10144 = vunpack.c.h.b16 %v9326
    %v10145 = vunpack.c.l.b16 %v9327
    %v10146 = vunpack.c.h.b16 %v9327
    %v10147 = vunpack.c.l.b16 %v9328
    %v10148 = vunpack.c.h.b16 %v9328
    %v10149 = vunpack.c.l.b16 %v9329
    %v10150 = vunpack.c.h.b16 %v9329
    %v10151 = vunpack.c.l.b16 %v9330
    %v10152 = vunpack.c.h.b16 %v9330
    %v10153 = vunpack.c.l.b16 %v9331
    %v10154 = vunpack.c.h.b16 %v9331
    %v10155 = vunpack.c.l.b16 %v9332
    %v10156 = vunpack.c.h.b16 %v9332
    %v10157 = vunpack.c.l.b16 %v9333
    %v10158 = vunpack.c.h.b16 %v9333
    %v10159 = vunpack.c.l.b16 %v9334
    %v10160 = vunpack.c.h.b16 %v9334
    %v10161 = vunpack.c.l.b16 %v9335
    %v10162 = vunpack.c.h.b16 %v9335
    %v10163 = vunpack.c.l.b16 %v9336
    %v10164 = vunpack.c.h.b16 %v9336
    %v10165 = vunpack.c.l.b16 %v9337
    %v10166 = vunpack.c.h.b16 %v9337
    %v10167 = vunpack.c.l.b16 %v9338
    %v10168 = vunpack.c.h.b16 %v9338
    %v10169 = vunpack.c.l.b16 %v9339
    %v10170 = vunpack.c.h.b16 %v9339
    %v10171 = vunpack.c.l.b16 %v9340
    %v10172 = vunpack.c.h.b16 %v9340
    %v10173 = vunpack.c.l.b16 %v9341
    %v10174 = vunpack.c.h.b16 %v9341
    %v10175 = vunpack.c.l.b16 %v9342
    %v10176 = vunpack.c.h.b16 %v9342
    %v10177 = vunpack.c.l.b16 %v9343
    %v10178 = vunpack.c.h.b16 %v9343
    %v10179 = vunpack.c.l.b16 %v9344
    %v10180 = vunpack.c.h.b16 %v9344
    %v10181 = vunpack.c.l.b16 %v9345
    %v10182 = vunpack.c.h.b16 %v9345
    %v10183 = vunpack.c.l.b16 %v9346
    %v10184 = vunpack.c.h.b16 %v9346
    %v10185 = vunpack.c.l.b16 %v9347
    %v10186 = vunpack.c.h.b16 %v9347
    %v10187 = vunpack.c.l.b16 %v9348
    %v10188 = vunpack.c.h.b16 %v9348
    %v10189 = vunpack.c.l.b16 %v9349
    %v10190 = vunpack.c.h.b16 %v9349
    %v10191 = vunpack.c.l.b16 %v9350
    %v10192 = vunpack.c.h.b16 %v9350
    %v10193 = vunpack.c.l.b16 %v9351
    %v10194 = vunpack.c.h.b16 %v9351
    %v10195 = vunpack.c.l.b16 %v9352
    %v10196 = vunpack.c.h.b16 %v9352
    %v10197 = vunpack.c.l.b16 %v9353
    %v10198 = vunpack.c.h.b16 %v9353
    %v10199 = vunpack.c.l.b16 %v9354
    %v10200 = vunpack.c.h.b16 %v9354
    %v10201 = vunpack.c.l.b16 %v9355
    %v10202 = vunpack.c.h.b16 %v9355
    %v10203 = vunpack.c.l.b16 %v9356
    %v10204 = vunpack.c.h.b16 %v9356
    %v10205 = vunpack.c.l.b16 %v9357
    %v10206 = vunpack.c.h.b16 %v9357
    %v10207 = vunpack.c.l.b16 %v9358
    %v10208 = vunpack.c.h.b16 %v9358
    %v10209 = vunpack.c.l.b16 %v9359
    %v10210 = vunpack.c.h.b16 %v9359
    %v10211 = vunpack.c.l.b16 %v9360
    %v10212 = vunpack.c.h.b16 %v9360
    %v10213 = vunpack.c.l.b16 %v9361
    %v10214 = vunpack.c.h.b16 %v9361
    %v10215 = vunpack.c.l.b16 %v9362
    %v10216 = vunpack.c.h.b16 %v9362
    %v10217 = vunpack.c.l.b16 %v9363
    %v10218 = vunpack.c.h.b16 %v9363
    %v10219 = vunpack.c.l.b16 %v9364
    %v10220 = vunpack.c.h.b16 %v9364
    %v10221 = vunpack.c.l.b16 %v9365
    %v10222 = vunpack.c.h.b16 %v9365
    %v10223 = vunpack.c.l.b16 %v9366
    %v10224 = vunpack.c.h.b16 %v9366
    %v10225 = vunpack.c.l.b16 %v9367
    %v10226 = vunpack.c.h.b16 %v9367
    %v10227 = vunpack.c.l.b16 %v9368
    %v10228 = vunpack.c.h.b16 %v9368
    %v10229 = vunpack.c.l.b16 %v9369
    %v10230 = vunpack.c.h.b16 %v9369
    %v10231 = vunpack.c.l.b16 %v9370
    %v10232 = vunpack.c.h.b16 %v9370
    %v10233 = vunpack.c.l.b16 %v9371
    %v10234 = vunpack.c.h.b16 %v9371
    %v10235 = vunpack.c.l.b16 %v9372
    %v10236 = vunpack.c.h.b16 %v9372
    %v10237 = vunpack.c.l.b16 %v9373
    %v10238 = vunpack.c.h.b16 %v9373
    %v10239 = vpack.c.b16 %v9669, %v9663
    %v10240 = vpack.c.b16 %v9670, %v9664
    %v10241 = vpack.c.b16 %v9671, %v9665
    %v10242 = vpack.c.b16 %v9672, %v9666
    %v10243 = vpack.c.b16 %v9673, %v9667
    %v10244 = vpack.c.b16 %v9674, %v9668
    %v10245 = vpack.c.b16 %v9681, %v9675
    %v10246 = vpack.c.b16 %v9682, %v9676
    %v10247 = vpack.c.b16 %v9683, %v9677
    %v10248 = vpack.c.b16 %v9684, %v9678
    %v10249 = vpack.c.b16 %v9685, %v9679
    %v10250 = vpack.c.b16 %v9686, %v9680
    %v10251 = vpack.c.b16 %v9693, %v9687
    %v10252 = vpack.c.b16 %v9694, %v9688
    %v10253 = vpack.c.b16 %v9695, %v9689
    %v10254 = vpack.c.b16 %v9696, %v9690
    %v10255 = vpack.c.b16 %v9697, %v9691
    %v10256 = vpack.c.b16 %v9698, %v9692
    %v10257 = vpack.c.b16 %v9705, %v9699
    %v10258 = vpack.c.b16 %v9706, %v9700
    %v10259 = vpack.c.b16 %v9707, %v9701
    %v10260 = vpack.c.b16 %v9708, %v9702
    %v10261 = vpack.c.b16 %v9709, %v9703
    %v10262 = vpack.c.b16 %v9710, %v9704
    %v10263 = vpack.c.b16 %v9717, %v9711
    %v10264 = vpack.c.b16 %v9718, %v9712
    %v10265 = vpack.c.b16 %v9719, %v9713
    %v10266 = vpack.c.b16 %v9720, %v9714
    %v10267 = vpack.c.b16 %v9721, %v9715
    %v10268 = vpack.c.b16 %v9722, %v9716
    %v10269 = vpack.c.b16 %v9729, %v9723
    %v10270 = vpack.c.b16 %v9730, %v9724
    %v10271 = vpack.c.b16 %v9731, %v9725
    %v10272 = vpack.c.b16 %v9732, %v9726
    %v10273 = vpack.c.b16 %v9733, %v9727
    %v10274 = vpack.c.b16 %v9734, %v9728
    %v10275 = vpack.c.b16 %v9741, %v9735
    %v10276 = vpack.c.b16 %v9742, %v9736
    %v10277 = vpack.c.b16 %v9743, %v9737
    %v10278 = vpack.c.b16 %v9744, %v9738
    %v10279 = vpack.c.b16 %v9745, %v9739
    %v10280 = vpack.c.b16 %v9746, %v9740
    %v10281 = vpack.c.b16 %v9753, %v9747
    %v10282 = vpack.c.b16 %v9754, %v9748
    %v10283 = vpack.c.b16 %v9755, %v9749
    %v10284 = vpack.c.b16 %v9756, %v9750
    %v10285 = vpack.c.b16 %v9757, %v9751
    %v10286 = vpack.c.b16 %v9758, %v9752
    %v10287 = vpack.c.b16 %v9765, %v9759
    %v10288 = vpack.c.b16 %v9766, %v9760
    %v10289 = vpack.c.b16 %v9767, %v9761
    %v10290 = vpack.c.b16 %v9768, %v9762
    %v10291 = vpack.c.b16 %v9769, %v9763
    %v10292 = vpack.c.b16 %v9770, %v9764
    %v10293 = vpack.c.b16 %v9777, %v9771
    %v10294 = vpack.c.b16 %v9778, %v9772
    %v10295 = vpack.c.b16 %v9779, %v9773
    %v10296 = vpack.c.b16 %v9780, %v9774
    %v10297 = vpack.c.b16 %v9781, %v9775
    %v10298 = vpack.c.b16 %v9782, %v9776
    %v10299 = vpack.c.b16 %v9789, %v9783
    %v10300 = vpack.c.b16 %v9790, %v9784
    %v10301 = vpack.c.b16 %v9791, %v9785
    %v10302 = vpack.c.b16 %v9792, %v9786
    %v10303 = vpack.c.b16 %v9793, %v9787
    %v10304 = vpack.c.b16 %v9794, %v9788
    %v10305 = vpack.c.b16 %v9801, %v9795
    %v10306 = vpack.c.b16 %v9802, %v9796
    %v10307 = vpack.c.b16 %v9803, %v9797
    %v10308 = vpack.c.b16 %v9804, %v9798
    %v10309 = vpack.c.b16 %v9805, %v9799
    %v10310 = vpack.c.b16 %v9806, %v9800
    %v10311 = vpack.c.b16 %v9813, %v9807
    %v10312 = vpack.c.b16 %v9814, %v9808
    %v10313 = vpack.c.b16 %v9815, %v9809
    %v10314 = vpack.c.b16 %v9816, %v9810
    %v10315 = vpack.c.b16 %v9817, %v9811
    %v10316 = vpack.c.b16 %v9818, %v9812
    %v10317 = vpack.c.b16 %v9825, %v9819
    %v10318 = vpack.c.b16 %v9826, %v9820
    %v10319 = vpack.c.b16 %v9827, %v9821
    %v10320 = vpack.c.b16 %v9828, %v9822
    %v10321 = vpack.c.b16 %v9829, %v9823
    %v10322 = vpack.c.b16 %v9830, %v9824
    %v10323 = vpack.c.b16 %v9837, %v9831
    %v10324 = vpack.c.b16 %v9838, %v9832
    %v10325 = vpack.c.b16 %v9839, %v9833
    %v10326 = vpack.c.b16 %v9840, %v9834
    %v10327 = vpack.c.b16 %v9841, %v9835
    %v10328 = vpack.c.b16 %v9842, %v9836
    %v10329 = vpack.c.b16 %v9849, %v9843
    %v10330 = vpack.c.b16 %v9850, %v9844
    %v10331 = vpack.c.b16 %v9851, %v9845
    %v10332 = vpack.c.b16 %v9852, %v9846
    %v10333 = vpack.c.b16 %v9853, %v9847
    %v10334 = vpack.c.b16 %v9854, %v9848
    %v10335 = vpack.c.b16 %v9861, %v9855
    %v10336 = vpack.c.b16 %v9862, %v9856
    %v10337 = vpack.c.b16 %v9863, %v9857
    %v10338 = vpack.c.b16 %v9864, %v9858
    %v10339 = vpack.c.b16 %v9865, %v9859
    %v10340 = vpack.c.b16 %v9866, %v9860
    %v10341 = vpack.c.b16 %v9873, %v9867
    %v10342 = vpack.c.b16 %v9874, %v9868
    %v10343 = vpack.c.b16 %v9875, %v9869
    %v10344 = vpack.c.b16 %v9876, %v9870
    %v10345 = vpack.c.b16 %v9877, %v9871
    %v10346 = vpack.c.b16 %v9878, %v9872
    %v10347 = vpack.c.b16 %v9885, %v9879
    %v10348 = vpack.c.b16 %v9886, %v9880
    %v10349 = vpack.c.b16 %v9887, %v9881
    %v10350 = vpack.c.b16 %v9888, %v9882
    %v10351 = vpack.c.b16 %v9889, %v9883
    %v10352 = vpack.c.b16 %v9890, %v9884
    %v10353 = vpack.c.b16 %v9897, %v9891
    %v10354 = vpack.c.b16 %v9898, %v9892
    %v10355 = vpack.c.b16 %v9899, %v9893
    %v10356 = vpack.c.b16 %v9900, %v9894
    %v10357 = vpack.c.b16 %v9901, %v9895
    %v10358 = vpack.c.b16 %v9902, %v9896
    %v10359 = vpack.c.b16 %v9909, %v9903
    %v10360 = vpack.c.b16 %v9910, %v9904
    %v10361 = vpack.c.b16 %v9911, %v9905
    %v10362 = vpack.c.b16 %v9912, %v9906
    %v10363 = vpack.c.b16 %v9913, %v9907
    %v10364 = vpack.c.b16 %v9914, %v9908
    %v10365 = vpack.c.b16 %v9921, %v9915
    %v10366 = vpack.c.b16 %v9922, %v9916
    %v10367 = vpack.c.b16 %v9923, %v9917
    %v10368 = vpack.c.b16 %v9924, %v9918
    %v10369 = vpack.c.b16 %v9925, %v9919
    %v10370 = vpack.c.b16 %v9926, %v9920
    %v10371 = vpack.c.b16 %v9933, %v9927
    %v10372 = vpack.c.b16 %v9934, %v9928
    %v10373 = vpack.c.b16 %v9935, %v9929
    %v10374 = vpack.c.b16 %v9936, %v9930
    %v10375 = vpack.c.b16 %v9937, %v9931
    %v10376 = vpack.c.b16 %v9938, %v9932
    %v10377 = vpack.c.b16 %v9945, %v9939
    %v10378 = vpack.c.b16 %v9946, %v9940
    %v10379 = vpack.c.b16 %v9947, %v9941
    %v10380 = vpack.c.b16 %v9948, %v9942
    %v10381 = vpack.c.b16 %v9949, %v9943
    %v10382 = vpack.c.b16 %v9950, %v9944
    %v10383 = vpack.c.b16 %v9957, %v9951
    %v10384 = vpack.c.b16 %v9958, %v9952
    %v10385 = vpack.c.b16 %v9959, %v9953
    %v10386 = vpack.c.b16 %v9960, %v9954
    %v10387 = vpack.c.b16 %v9961, %v9955
    %v10388 = vpack.c.b16 %v9962, %v9956
    %v10389 = vpack.c.b16 %v9969, %v9963
    %v10390 = vpack.c.b16 %v9970, %v9964
    %v10391 = vpack.c.b16 %v9971, %v9965
    %v10392 = vpack.c.b16 %v9972, %v9966
    %v10393 = vpack.c.b16 %v9973, %v9967
    %v10394 = vpack.c.b16 %v9974, %v9968
    %v10395 = vpack.c.b16 %v9981, %v9975
    %v10396 = vpack.c.b16 %v9982, %v9976
    %v10397 = vpack.c.b16 %v9983, %v9977
    %v10398 = vpack.c.b16 %v9984, %v9978
    %v10399 = vpack.c.b16 %v9985, %v9979
    %v10400 = vpack.c.b16 %v9986, %v9980
    %v10401 = vpack.c.b16 %v9993, %v9987
    %v10402 = vpack.c.b16 %v9994, %v9988
    %v10403 = vpack.c.b16 %v9995, %v9989
    %v10404 = vpack.c.b16 %v9996, %v9990
    %v10405 = vpack.c.b16 %v9997, %v9991
    %v10406 = vpack.c.b16 %v9998, %v9992
    %v10407 = vpack.c.b16 %v10005, %v9999
    %v10408 = vpack.c.b16 %v10006, %v10000
    %v10409 = vpack.c.b16 %v10007, %v10001
    %v10410 = vpack.c.b16 %v10008, %v10002
    %v10411 = vpack.c.b16 %v10009, %v10003
    %v10412 = vpack.c.b16 %v10010, %v10004
    %v10413 = vpack.c.b16 %v10017, %v10011
    %v10414 = vpack.c.b16 %v10018, %v10012
    %v10415 = vpack.c.b16 %v10019, %v10013
    %v10416 = vpack.c.b16 %v10020, %v10014
    %v10417 = vpack.c.b16 %v10021, %v10015
    %v10418 = vpack.c.b16 %v10022, %v10016
    %v10419 = vpack.c.b16 %v10029, %v10023
    %v10420 = vpack.c.b16 %v10030, %v10024
    %v10421 = vpack.c.b16 %v10031, %v10025
    %v10422 = vpack.c.b16 %v10032, %v10026
    %v10423 = vpack.c.b16 %v10033, %v10027
    %v10424 = vpack.c.b16 %v10034, %v10028
    %v10425 = vpack.c.b16 %v10041, %v10035
    %v10426 = vpack.c.b16 %v10042, %v10036
    %v10427 = vpack.c.b16 %v10043, %v10037
    %v10428 = vpack.c.b16 %v10044, %v10038
    %v10429 = vpack.c.b16 %v10045, %v10039
    %v10430 = vpack.c.b16 %v10046, %v10040
    %v10431 = vpack.c.b16 %v10053, %v10047
    %v10432 = vpack.c.b16 %v10054, %v10048
    %v10433 = vpack.c.b16 %v10055, %v10049
    %v10434 = vpack.c.b16 %v10056, %v10050
    %v10435 = vpack.c.b16 %v10057, %v10051
    %v10436 = vpack.c.b16 %v10058, %v10052
    %v10437 = vpack.c.b16 %v10065, %v10059
    %v10438 = vpack.c.b16 %v10066, %v10060
    %v10439 = vpack.c.b16 %v10067, %v10061
    %v10440 = vpack.c.b16 %v10068, %v10062
    %v10441 = vpack.c.b16 %v10069, %v10063
    %v10442 = vpack.c.b16 %v10070, %v10064
    %v10443 = vpack.c.b16 %v10077, %v10071
    %v10444 = vpack.c.b16 %v10078, %v10072
    %v10445 = vpack.c.b16 %v10079, %v10073
    %v10446 = vpack.c.b16 %v10080, %v10074
    %v10447 = vpack.c.b16 %v10081, %v10075
    %v10448 = vpack.c.b16 %v10082, %v10076
    %v10449 = vpack.c.b16 %v10089, %v10083
    %v10450 = vpack.c.b16 %v10090, %v10084
    %v10451 = vpack.c.b16 %v10091, %v10085
    %v10452 = vpack.c.b16 %v10092, %v10086
    %v10453 = vpack.c.b16 %v10093, %v10087
    %v10454 = vpack.c.b16 %v10094, %v10088
    %v10455 = vpack.c.b16 %v10101, %v10095
    %v10456 = vpack.c.b16 %v10102, %v10096
    %v10457 = vpack.c.b16 %v10103, %v10097
    %v10458 = vpack.c.b16 %v10104, %v10098
    %v10459 = vpack.c.b16 %v10105, %v10099
    %v10460 = vpack.c.b16 %v10106, %v10100
    %v10461 = vpack.c.b16 %v10113, %v10107
    %v10462 = vpack.c.b16 %v10114, %v10108
    %v10463 = vpack.c.b16 %v10115, %v10109
    %v10464 = vpack.c.b16 %v10116, %v10110
    %v10465 = vpack.c.b16 %v10117, %v10111
    %v10466 = vpack.c.b16 %v10118, %v10112
    %v10467 = vpack.c.b16 %v10125, %v10119
    %v10468 = vpack.c.b16 %v10126, %v10120
    %v10469 = vpack.c.b16 %v10127, %v10121
    %v10470 = vpack.c.b16 %v10128, %v10122
    %v10471 = vpack.c.b16 %v10129, %v10123
    %v10472 = vpack.c.b16 %v10130, %v10124
    %v10473 = vpack.c.b16 %v10137, %v10131
    %v10474 = vpack.c.b16 %v10138, %v10132
    %v10475 = vpack.c.b16 %v10139, %v10133
    %v10476 = vpack.c.b16 %v10140, %v10134
    %v10477 = vpack.c.b16 %v10141, %v10135
    %v10478 = vpack.c.b16 %v10142, %v10136
    %v10479 = vpack.c.b16 %v10149, %v10143
    %v10480 = vpack.c.b16 %v10150, %v10144
    %v10481 = vpack.c.b16 %v10151, %v10145
    %v10482 = vpack.c.b16 %v10152, %v10146
    %v10483 = vpack.c.b16 %v10153, %v10147
    %v10484 = vpack.c.b16 %v10154, %v10148
    %v10485 = vpack.c.b16 %v10161, %v10155
    %v10486 = vpack.c.b16 %v10162, %v10156
    %v10487 = vpack.c.b16 %v10163, %v10157
    %v10488 = vpack.c.b16 %v10164, %v10158
    %v10489 = vpack.c.b16 %v10165, %v10159
    %v10490 = vpack.c.b16 %v10166, %v10160
    %v10491 = vpack.c.b16 %v10173, %v10167
    %v10492 = vpack.c.b16 %v10174, %v10168
    %v10493 = vpack.c.b16 %v10175, %v10169
    %v10494 = vpack.c.b16 %v10176, %v10170
    %v10495 = vpack.c.b16 %v10177, %v10171
    %v10496 = vpack.c.b16 %v10178, %v10172
    %v10497 = vpack.c.b16 %v10185, %v10179
    %v10498 = vpack.c.b16 %v10186, %v10180
    %v10499 = vpack.c.b16 %v10187, %v10181
    %v10500 = vpack.c.b16 %v10188, %v10182
    %v10501 = vpack.c.b16 %v10189, %v10183
    %v10502 = vpack.c.b16 %v10190, %v10184
    %v10503 = vpack.c.b16 %v10197, %v10191
    %v10504 = vpack.c.b16 %v10198, %v10192
    %v10505 = vpack.c.b16 %v10199, %v10193
    %v10506 = vpack.c.b16 %v10200, %v10194
    %v10507 = vpack.c.b16 %v10201, %v10195
    %v10508 = vpack.c.b16 %v10202, %v10196
    %v10509 = vpack.c.b16 %v10209, %v10203
    %v10510 = vpack.c.b16 %v10210, %v10204
    %v10511 = vpack.c.b16 %v10211, %v10205
    %v10512 = vpack.c.b16 %v10212, %v10206
    %v10513 = vpack.c.b16 %v10213, %v10207
    %v10514 = vpack.c.b16 %v10214, %v10208
    %v10515 = vpack.c.b16 %v10221, %v10215
    %v10516 = vpack.c.b16 %v10222, %v10216
    %v10517 = vpack.c.b16 %v10223, %v10217
    %v10518 = vpack.c.b16 %v10224, %v10218
    %v10519 = vpack.c.b16 %v10225, %v10219
    %v10520 = vpack.c.b16 %v10226, %v10220
    %v10521 = vpack.c.b16 %v10233, %v10227
    %v10522 = vpack.c.b16 %v10234, %v10228
    %v10523 = vpack.c.b16 %v10235, %v10229
    %v10524 = vpack.c.b16 %v10236, %v10230
    %v10525 = vpack.c.b16 %v10237, %v10231
    %v10526 = vpack.c.b16 %v10238, %v10232
    %v10816 = vlaneseq
    %v10817 = vshrl.u32 %v10816, 7
    %v10818 = vsub.s32 0, %v10817
    %v10819 = vrot.slane %v9374, %v10818
    %v10820 = vlaneseq
    %v10821 = vshrl.u32 %v10820, 7
    %v10822 = vsub.s32 1, %v10821
    %v10823 = vrot.slane %v9374, %v10822
    %v10824 = vlaneseq
    %v10825 = vshrl.u32 %v10824, 7
    %v10826 = vsub.s32 2, %v10825
    %v10827 = vrot.slane %v9374, %v10826
    %v10828 = vlaneseq
    %v10829 = vshrl.u32 %v10828, 7
    %v10830 = vsub.s32 3, %v10829
    %v10831 = vrot.slane %v9374, %v10830
    %v10832 = vlaneseq
    %v10833 = vshrl.u32 %v10832, 7
    %v10834 = vsub.s32 4, %v10833
    %v10835 = vrot.slane %v9374, %v10834
    %v10836 = vlaneseq
    %v10837 = vshrl.u32 %v10836, 7
    %v10838 = vsub.s32 5, %v10837
    %v10839 = vrot.slane %v9374, %v10838
    %10846 = vmatprep.subr.bf16.mxu0 %v10240
    %10847 = vmatpush1.bf16.msra.mxu0 %v10239
    %10848 = vmatprep.subr.bf16.mxu0 %v10246
    %10849 = vmatpush1.bf16.msra.mxu0 %v10245
    %10850 = vmatprep.subr.bf16.mxu0 %v10252
    %10851 = vmatpush1.bf16.msra.mxu0 %v10251
    %10852 = vmatprep.subr.bf16.mxu0 %v10258
    %10853 = vmatpush1.bf16.msra.mxu0 %v10257
    %10854 = vmatprep.subr.bf16.mxu0 %v10264
    %10855 = vmatpush1.bf16.msra.mxu0 %v10263
    %10856 = vmatprep.subr.bf16.mxu0 %v10270
    %10857 = vmatpush1.bf16.msra.mxu0 %v10269
    %10858 = vmatprep.subr.bf16.mxu0 %v10276
    %10859 = vmatpush1.bf16.msra.mxu0 %v10275
    %10860 = vmatprep.subr.bf16.mxu0 %v10282
    %10861 = vmatpush1.bf16.msra.mxu0 %v10281
    %10862 = vmatprep.subr.bf16.mxu0 %v10288
    %10863 = vmatpush1.bf16.msra.mxu0 %v10287
    %10864 = vmatprep.subr.bf16.mxu0 %v10294
    %10865 = vmatpush1.bf16.msra.mxu0 %v10293
    %10866 = vmatprep.subr.bf16.mxu0 %v10300
    %10867 = vmatpush1.bf16.msra.mxu0 %v10299
    %10868 = vmatprep.subr.bf16.mxu0 %v10306
    %10869 = vmatpush1.bf16.msra.mxu0 %v10305
    %10870 = vmatprep.subr.bf16.mxu0 %v10312
    %10871 = vmatpush1.bf16.msra.mxu0 %v10311
    %10872 = vmatprep.subr.bf16.mxu0 %v10318
    %10873 = vmatpush1.bf16.msra.mxu0 %v10317
    %10874 = vmatprep.subr.bf16.mxu0 %v10324
    %10875 = vmatpush1.bf16.msra.mxu0 %v10323
    %10876 = vmatprep.subr.bf16.mxu0 %v10330
    %10877 = vmatpush1.bf16.msra.mxu0 %v10329
    %10878 = vmatprep.mubr.bf16.mxu0 %v9081
    %10879 = vmatmul.mubr.bf16.gmra.mrb[0].mxu0 %v9080
    %v10880 = vpop.f32.mrb[0].mxu0
    %v10881 = vadd.f32 %v10819, %v10880
    %v10882 = vpop.f32.mrb[0].mxu0
    %v10883 = vadd.f32 %v10823, %v10882
    %v10884 = vpop.f32.mrb[0].mxu0
    %v10885 = vpop.f32.mrb[0].mxu0
    %10886 = vdwg.mxu0
    %10887 = vmatprep.subr.bf16.mxu0 %v10336
    %10888 = vmatpush1.bf16.msra.mxu0 %v10335
    %10889 = vmatprep.subr.bf16.mxu0 %v10342
    %10890 = vmatpush1.bf16.msra.mxu0 %v10341
    %10891 = vmatprep.subr.bf16.mxu0 %v10348
    %10892 = vmatpush1.bf16.msra.mxu0 %v10347
    %10893 = vmatprep.subr.bf16.mxu0 %v10354
    %10894 = vmatpush1.bf16.msra.mxu0 %v10353
    %10895 = vmatprep.subr.bf16.mxu0 %v10360
    %10896 = vmatpush1.bf16.msra.mxu0 %v10359
    %10897 = vmatprep.subr.bf16.mxu0 %v10366
    %10898 = vmatpush1.bf16.msra.mxu0 %v10365
    %10899 = vmatprep.subr.bf16.mxu0 %v10372
    %10900 = vmatpush1.bf16.msra.mxu0 %v10371
    %10901 = vmatprep.subr.bf16.mxu0 %v10378
    %10902 = vmatpush1.bf16.msra.mxu0 %v10377
    %10903 = vmatprep.subr.bf16.mxu0 %v10384
    %10904 = vmatpush1.bf16.msra.mxu0 %v10383
    %10905 = vmatprep.subr.bf16.mxu0 %v10390
    %10906 = vmatpush1.bf16.msra.mxu0 %v10389
    %10907 = vmatprep.subr.bf16.mxu0 %v10396
    %10908 = vmatpush1.bf16.msra.mxu0 %v10395
    %10909 = vmatprep.subr.bf16.mxu0 %v10402
    %10910 = vmatpush1.bf16.msra.mxu0 %v10401
    %10911 = vmatprep.subr.bf16.mxu0 %v10408
    %10912 = vmatpush1.bf16.msra.mxu0 %v10407
    %10913 = vmatprep.subr.bf16.mxu0 %v10414
    %10914 = vmatpush1.bf16.msra.mxu0 %v10413
    %10915 = vmatprep.subr.bf16.mxu0 %v10420
    %10916 = vmatpush1.bf16.msra.mxu0 %v10419
    %10917 = vmatprep.subr.bf16.mxu0 %v10426
    %10918 = vmatpush1.bf16.msra.mxu0 %v10425
    %10919 = vmatprep.mubr.bf16.mxu0 %v9083
    %10920 = vmatmul.mubr.bf16.gmra.mrb[0].mxu0 %v9082
    %v10921 = vpop.f32.mrb[0].mxu0
    %v10922 = vadd.f32 %v10881, %v10921
    %v10923 = vpop.f32.mrb[0].mxu0
    %v10924 = vadd.f32 %v10883, %v10923
    %v10925 = vpop.f32.mrb[0].mxu0
    %v10926 = vpop.f32.mrb[0].mxu0
    %10927 = vdwg.mxu0
    %10928 = vmatprep.subr.bf16.mxu0 %v10432
    %10929 = vmatpush1.bf16.msra.mxu0 %v10431
    %10930 = vmatprep.subr.bf16.mxu0 %v10438
    %10931 = vmatpush1.bf16.msra.mxu0 %v10437
    %10932 = vmatprep.subr.bf16.mxu0 %v10444
    %10933 = vmatpush1.bf16.msra.mxu0 %v10443
    %10934 = vmatprep.subr.bf16.mxu0 %v10450
    %10935 = vmatpush1.bf16.msra.mxu0 %v10449
    %10936 = vmatprep.subr.bf16.mxu0 %v10456
    %10937 = vmatpush1.bf16.msra.mxu0 %v10455
    %10938 = vmatprep.subr.bf16.mxu0 %v10462
    %10939 = vmatpush1.bf16.msra.mxu0 %v10461
    %10940 = vmatprep.subr.bf16.mxu0 %v10468
    %10941 = vmatpush1.bf16.msra.mxu0 %v10467
    %10942 = vmatprep.subr.bf16.mxu0 %v10474
    %10943 = vmatpush1.bf16.msra.mxu0 %v10473
    %10944 = vmatprep.subr.bf16.mxu0 %v10480
    %10945 = vmatpush1.bf16.msra.mxu0 %v10479
    %10946 = vmatprep.subr.bf16.mxu0 %v10486
    %10947 = vmatpush1.bf16.msra.mxu0 %v10485
    %10948 = vmatprep.subr.bf16.mxu0 %v10492
    %10949 = vmatpush1.bf16.msra.mxu0 %v10491
    %10950 = vmatprep.subr.bf16.mxu0 %v10498
    %10951 = vmatpush1.bf16.msra.mxu0 %v10497
    %10952 = vmatprep.subr.bf16.mxu0 %v10504
    %10953 = vmatpush1.bf16.msra.mxu0 %v10503
    %10954 = vmatprep.subr.bf16.mxu0 %v10510
    %10955 = vmatpush1.bf16.msra.mxu0 %v10509
    %10956 = vmatprep.subr.bf16.mxu0 %v10516
    %10957 = vmatpush1.bf16.msra.mxu0 %v10515
    %10958 = vmatprep.subr.bf16.mxu0 %v10522
    %10959 = vmatpush1.bf16.msra.mxu0 %v10521
    %10960 = vmatprep.mubr.bf16.mxu0 %v9085
    %10961 = vmatmul.mubr.bf16.gmra.mrb[0].mxu0 %v9084
    %v10962 = vpop.f32.mrb[0].mxu0
    %v10963 = vadd.f32 %v10922, %v10962
    %v10964 = vpop.f32.mrb[0].mxu0
    %v10965 = vadd.f32 %v10924, %v10964
    %v10966 = vpop.f32.mrb[0].mxu0
    %v10967 = vpop.f32.mrb[0].mxu0
    %10968 = vdwg.mxu0
    %10969 = vmatprep.subr.bf16.mxu0 %v10242
    %10970 = vmatpush1.bf16.msra.mxu0 %v10241
    %10971 = vmatprep.subr.bf16.mxu0 %v10248
    %10972 = vmatpush1.bf16.msra.mxu0 %v10247
    %10973 = vmatprep.subr.bf16.mxu0 %v10254
    %10974 = vmatpush1.bf16.msra.mxu0 %v10253
    %10975 = vmatprep.subr.bf16.mxu0 %v10260
    %10976 = vmatpush1.bf16.msra.mxu0 %v10259
    %10977 = vmatprep.subr.bf16.mxu0 %v10266
    %10978 = vmatpush1.bf16.msra.mxu0 %v10265
    %10979 = vmatprep.subr.bf16.mxu0 %v10272
    %10980 = vmatpush1.bf16.msra.mxu0 %v10271
    %10981 = vmatprep.subr.bf16.mxu0 %v10278
    %10982 = vmatpush1.bf16.msra.mxu0 %v10277
    %10983 = vmatprep.subr.bf16.mxu0 %v10284
    %10984 = vmatpush1.bf16.msra.mxu0 %v10283
    %10985 = vmatprep.subr.bf16.mxu0 %v10290
    %10986 = vmatpush1.bf16.msra.mxu0 %v10289
    %10987 = vmatprep.subr.bf16.mxu0 %v10296
    %10988 = vmatpush1.bf16.msra.mxu0 %v10295
    %10989 = vmatprep.subr.bf16.mxu0 %v10302
    %10990 = vmatpush1.bf16.msra.mxu0 %v10301
    %10991 = vmatprep.subr.bf16.mxu0 %v10308
    %10992 = vmatpush1.bf16.msra.mxu0 %v10307
    %10993 = vmatprep.subr.bf16.mxu0 %v10314
    %10994 = vmatpush1.bf16.msra.mxu0 %v10313
    %10995 = vmatprep.subr.bf16.mxu0 %v10320
    %10996 = vmatpush1.bf16.msra.mxu0 %v10319
    %10997 = vmatprep.subr.bf16.mxu0 %v10326
    %10998 = vmatpush1.bf16.msra.mxu0 %v10325
    %10999 = vmatprep.subr.bf16.mxu0 %v10332
    %11000 = vmatpush1.bf16.msra.mxu0 %v10331
    %11001 = vmatprep.mubr.bf16.mxu0 %v9081
    %11002 = vmatmul.mubr.bf16.gmra.mrb[0].mxu0 %v9080
    %v11003 = vpop.f32.mrb[0].mxu0
    %v11004 = vadd.f32 %v10827, %v11003
    %v11005 = vpop.f32.mrb[0].mxu0
    %v11006 = vadd.f32 %v10831, %v11005
    %v11007 = vpop.f32.mrb[0].mxu0
    %v11008 = vpop.f32.mrb[0].mxu0
    %11009 = vdwg.mxu0
    %11010 = vmatprep.subr.bf16.mxu0 %v10338
    %11011 = vmatpush1.bf16.msra.mxu0 %v10337
    %11012 = vmatprep.subr.bf16.mxu0 %v10344
    %11013 = vmatpush1.bf16.msra.mxu0 %v10343
    %11014 = vmatprep.subr.bf16.mxu0 %v10350
    %11015 = vmatpush1.bf16.msra.mxu0 %v10349
    %11016 = vmatprep.subr.bf16.mxu0 %v10356
    %11017 = vmatpush1.bf16.msra.mxu0 %v10355
    %11018 = vmatprep.subr.bf16.mxu0 %v10362
    %11019 = vmatpush1.bf16.msra.mxu0 %v10361
    %11020 = vmatprep.subr.bf16.mxu0 %v10368
    %11021 = vmatpush1.bf16.msra.mxu0 %v10367
    %11022 = vmatprep.subr.bf16.mxu0 %v10374
    %11023 = vmatpush1.bf16.msra.mxu0 %v10373
    %11024 = vmatprep.subr.bf16.mxu0 %v10380
    %11025 = vmatpush1.bf16.msra.mxu0 %v10379
    %11026 = vmatprep.subr.bf16.mxu0 %v10386
    %11027 = vmatpush1.bf16.msra.mxu0 %v10385
    %11028 = vmatprep.subr.bf16.mxu0 %v10392
    %11029 = vmatpush1.bf16.msra.mxu0 %v10391
    %11030 = vmatprep.subr.bf16.mxu0 %v10398
    %11031 = vmatpush1.bf16.msra.mxu0 %v10397
    %11032 = vmatprep.subr.bf16.mxu0 %v10404
    %11033 = vmatpush1.bf16.msra.mxu0 %v10403
    %11034 = vmatprep.subr.bf16.mxu0 %v10410
    %11035 = vmatpush1.bf16.msra.mxu0 %v10409
    %11036 = vmatprep.subr.bf16.mxu0 %v10416
    %11037 = vmatpush1.bf16.msra.mxu0 %v10415
    %11038 = vmatprep.subr.bf16.mxu0 %v10422
    %11039 = vmatpush1.bf16.msra.mxu0 %v10421
    %11040 = vmatprep.subr.bf16.mxu0 %v10428
    %11041 = vmatpush1.bf16.msra.mxu0 %v10427
    %11042 = vmatprep.mubr.bf16.mxu0 %v9083
    %11043 = vmatmul.mubr.bf16.gmra.mrb[0].mxu0 %v9082
    %v11044 = vpop.f32.mrb[0].mxu0
    %v11045 = vadd.f32 %v11004, %v11044
    %v11046 = vpop.f32.mrb[0].mxu0
    %v11047 = vadd.f32 %v11006, %v11046
    %v11048 = vpop.f32.mrb[0].mxu0
    %v11049 = vpop.f32.mrb[0].mxu0
    %11050 = vdwg.mxu0
    %11051 = vmatprep.subr.bf16.mxu0 %v10434
    %11052 = vmatpush1.bf16.msra.mxu0 %v10433
    %11053 = vmatprep.subr.bf16.mxu0 %v10440
    %11054 = vmatpush1.bf16.msra.mxu0 %v10439
    %11055 = vmatprep.subr.bf16.mxu0 %v10446
    %11056 = vmatpush1.bf16.msra.mxu0 %v10445
    %11057 = vmatprep.subr.bf16.mxu0 %v10452
    %11058 = vmatpush1.bf16.msra.mxu0 %v10451
    %11059 = vmatprep.subr.bf16.mxu0 %v10458
    %11060 = vmatpush1.bf16.msra.mxu0 %v10457
    %11061 = vmatprep.subr.bf16.mxu0 %v10464
    %11062 = vmatpush1.bf16.msra.mxu0 %v10463
    %11063 = vmatprep.subr.bf16.mxu0 %v10470
    %11064 = vmatpush1.bf16.msra.mxu0 %v10469
    %11065 = vmatprep.subr.bf16.mxu0 %v10476
    %11066 = vmatpush1.bf16.msra.mxu0 %v10475
    %11067 = vmatprep.subr.bf16.mxu0 %v10482
    %11068 = vmatpush1.bf16.msra.mxu0 %v10481
    %11069 = vmatprep.subr.bf16.mxu0 %v10488
    %11070 = vmatpush1.bf16.msra.mxu0 %v10487
    %11071 = vmatprep.subr.bf16.mxu0 %v10494
    %11072 = vmatpush1.bf16.msra.mxu0 %v10493
    %11073 = vmatprep.subr.bf16.mxu0 %v10500
    %11074 = vmatpush1.bf16.msra.mxu0 %v10499
    %11075 = vmatprep.subr.bf16.mxu0 %v10506
    %11076 = vmatpush1.bf16.msra.mxu0 %v10505
    %11077 = vmatprep.subr.bf16.mxu0 %v10512
    %11078 = vmatpush1.bf16.msra.mxu0 %v10511
    %11079 = vmatprep.subr.bf16.mxu0 %v10518
    %11080 = vmatpush1.bf16.msra.mxu0 %v10517
    %11081 = vmatprep.subr.bf16.mxu0 %v10524
    %11082 = vmatpush1.bf16.msra.mxu0 %v10523
    %11083 = vmatprep.mubr.bf16.mxu0 %v9085
    %11084 = vmatmul.mubr.bf16.gmra.mrb[0].mxu0 %v9084
    %v11085 = vpop.f32.mrb[0].mxu0
    %v11086 = vadd.f32 %v11045, %v11085
    %v11087 = vpop.f32.mrb[0].mxu0
    %v11088 = vadd.f32 %v11047, %v11087
    %v11089 = vpop.f32.mrb[0].mxu0
    %v11090 = vpop.f32.mrb[0].mxu0
    %11091 = vdwg.mxu0
    %11092 = vmatprep.subr.bf16.mxu0 %v10244
    %11093 = vmatpush1.bf16.msra.mxu0 %v10243
    %11094 = vmatprep.subr.bf16.mxu0 %v10250
    %11095 = vmatpush1.bf16.msra.mxu0 %v10249
    %11096 = vmatprep.subr.bf16.mxu0 %v10256
    %11097 = vmatpush1.bf16.msra.mxu0 %v10255
    %11098 = vmatprep.subr.bf16.mxu0 %v10262
    %11099 = vmatpush1.bf16.msra.mxu0 %v10261
    %11100 = vmatprep.subr.bf16.mxu0 %v10268
    %11101 = vmatpush1.bf16.msra.mxu0 %v10267
    %11102 = vmatprep.subr.bf16.mxu0 %v10274
    %11103 = vmatpush1.bf16.msra.mxu0 %v10273
    %11104 = vmatprep.subr.bf16.mxu0 %v10280
    %11105 = vmatpush1.bf16.msra.mxu0 %v10279
    %11106 = vmatprep.subr.bf16.mxu0 %v10286
    %11107 = vmatpush1.bf16.msra.mxu0 %v10285
    %11108 = vmatprep.subr.bf16.mxu0 %v10292
    %11109 = vmatpush1.bf16.msra.mxu0 %v10291
    %11110 = vmatprep.subr.bf16.mxu0 %v10298
    %11111 = vmatpush1.bf16.msra.mxu0 %v10297
    %11112 = vmatprep.subr.bf16.mxu0 %v10304
    %11113 = vmatpush1.bf16.msra.mxu0 %v10303
    %11114 = vmatprep.subr.bf16.mxu0 %v10310
    %11115 = vmatpush1.bf16.msra.mxu0 %v10309
    %11116 = vmatprep.subr.bf16.mxu0 %v10316
    %11117 = vmatpush1.bf16.msra.mxu0 %v10315
    %11118 = vmatprep.subr.bf16.mxu0 %v10322
    %11119 = vmatpush1.bf16.msra.mxu0 %v10321
    %11120 = vmatprep.subr.bf16.mxu0 %v10328
    %11121 = vmatpush1.bf16.msra.mxu0 %v10327
    %11122 = vmatprep.subr.bf16.mxu0 %v10334
    %11123 = vmatpush1.bf16.msra.mxu0 %v10333
    %11124 = vmatprep.mubr.bf16.mxu0 %v9081
    %11125 = vmatmul.mubr.bf16.gmra.mrb[0].mxu0 %v9080
    %v11126 = vpop.f32.mrb[0].mxu0
    %v11127 = vadd.f32 %v10835, %v11126
    %v11128 = vpop.f32.mrb[0].mxu0
    %v11129 = vadd.f32 %v10839, %v11128
    %v11130 = vpop.f32.mrb[0].mxu0
    %v11131 = vpop.f32.mrb[0].mxu0
    %11132 = vdwg.mxu0
    %11133 = vmatprep.subr.bf16.mxu0 %v10340
    %11134 = vmatpush1.bf16.msra.mxu0 %v10339
    %11135 = vmatprep.subr.bf16.mxu0 %v10346
    %11136 = vmatpush1.bf16.msra.mxu0 %v10345
    %11137 = vmatprep.subr.bf16.mxu0 %v10352
    %11138 = vmatpush1.bf16.msra.mxu0 %v10351
    %11139 = vmatprep.subr.bf16.mxu0 %v10358
    %11140 = vmatpush1.bf16.msra.mxu0 %v10357
    %11141 = vmatprep.subr.bf16.mxu0 %v10364
    %11142 = vmatpush1.bf16.msra.mxu0 %v10363
    %11143 = vmatprep.subr.bf16.mxu0 %v10370
    %11144 = vmatpush1.bf16.msra.mxu0 %v10369
    %11145 = vmatprep.subr.bf16.mxu0 %v10376
    %11146 = vmatpush1.bf16.msra.mxu0 %v10375
    %11147 = vmatprep.subr.bf16.mxu0 %v10382
    %11148 = vmatpush1.bf16.msra.mxu0 %v10381
    %11149 = vmatprep.subr.bf16.mxu0 %v10388
    %11150 = vmatpush1.bf16.msra.mxu0 %v10387
    %11151 = vmatprep.subr.bf16.mxu0 %v10394
    %11152 = vmatpush1.bf16.msra.mxu0 %v10393
    %11153 = vmatprep.subr.bf16.mxu0 %v10400
    %11154 = vmatpush1.bf16.msra.mxu0 %v10399
    %11155 = vmatprep.subr.bf16.mxu0 %v10406
    %11156 = vmatpush1.bf16.msra.mxu0 %v10405
    %11157 = vmatprep.subr.bf16.mxu0 %v10412
    %11158 = vmatpush1.bf16.msra.mxu0 %v10411
    %11159 = vmatprep.subr.bf16.mxu0 %v10418
    %11160 = vmatpush1.bf16.msra.mxu0 %v10417
    %11161 = vmatprep.subr.bf16.mxu0 %v10424
    %11162 = vmatpush1.bf16.msra.mxu0 %v10423
    %11163 = vmatprep.subr.bf16.mxu0 %v10430
    %11164 = vmatpush1.bf16.msra.mxu0 %v10429
    %11165 = vmatprep.mubr.bf16.mxu0 %v9083
    %11166 = vmatmul.mubr.bf16.gmra.mrb[0].mxu0 %v9082
    %v11167 = vpop.f32.mrb[0].mxu0
    %v11168 = vadd.f32 %v11127, %v11167
    %v11169 = vpop.f32.mrb[0].mxu0
    %v11170 = vadd.f32 %v11129, %v11169
    %v11171 = vpop.f32.mrb[0].mxu0
    %v11172 = vpop.f32.mrb[0].mxu0
    %11173 = vdwg.mxu0
    %11174 = vmatprep.subr.bf16.mxu0 %v10436
    %11175 = vmatpush1.bf16.msra.mxu0 %v10435
    %11176 = vmatprep.subr.bf16.mxu0 %v10442
    %11177 = vmatpush1.bf16.msra.mxu0 %v10441
    %11178 = vmatprep.subr.bf16.mxu0 %v10448
    %11179 = vmatpush1.bf16.msra.mxu0 %v10447
    %11180 = vmatprep.subr.bf16.mxu0 %v10454
    %11181 = vmatpush1.bf16.msra.mxu0 %v10453
    %11182 = vmatprep.subr.bf16.mxu0 %v10460
    %11183 = vmatpush1.bf16.msra.mxu0 %v10459
    %11184 = vmatprep.subr.bf16.mxu0 %v10466
    %11185 = vmatpush1.bf16.msra.mxu0 %v10465
    %11186 = vmatprep.subr.bf16.mxu0 %v10472
    %11187 = vmatpush1.bf16.msra.mxu0 %v10471
    %11188 = vmatprep.subr.bf16.mxu0 %v10478
    %11189 = vmatpush1.bf16.msra.mxu0 %v10477
    %11190 = vmatprep.subr.bf16.mxu0 %v10484
    %11191 = vmatpush1.bf16.msra.mxu0 %v10483
    %11192 = vmatprep.subr.bf16.mxu0 %v10490
    %11193 = vmatpush1.bf16.msra.mxu0 %v10489
    %11194 = vmatprep.subr.bf16.mxu0 %v10496
    %11195 = vmatpush1.bf16.msra.mxu0 %v10495
    %11196 = vmatprep.subr.bf16.mxu0 %v10502
    %11197 = vmatpush1.bf16.msra.mxu0 %v10501
    %11198 = vmatprep.subr.bf16.mxu0 %v10508
    %11199 = vmatpush1.bf16.msra.mxu0 %v10507
    %11200 = vmatprep.subr.bf16.mxu0 %v10514
    %11201 = vmatpush1.bf16.msra.mxu0 %v10513
    %11202 = vmatprep.subr.bf16.mxu0 %v10520
    %11203 = vmatpush1.bf16.msra.mxu0 %v10519
    %11204 = vmatprep.subr.bf16.mxu0 %v10526
    %11205 = vmatpush1.bf16.msra.mxu0 %v10525
    %11206 = vmatprep.mubr.bf16.mxu0 %v9085
    %11207 = vmatmul.mubr.bf16.gmra.mrb[0].mxu0 %v9084
    %v11208 = vpop.f32.mrb[0].mxu0
    %v11209 = vadd.f32 %v11168, %v11208
    %v11210 = vpop.f32.mrb[0].mxu0
    %v11211 = vadd.f32 %v11170, %v11210
    %v11212 = vpop.f32.mrb[0].mxu0
    %v11213 = vpop.f32.mrb[0].mxu0
    %11214 = vdwg.mxu0
    %v11215 = vld [vmem:[#allocation9] sm:$0x1]
    %v11216 = vld [vmem:[#allocation10] sm:$0x1]
    %v11217 = vld [vmem:[#allocation12] sm:$0x1]
    %vm11218 = vcmask 73728
    %v11219 = vsel %vm11218, %v11215, 0.0
    %11220 = vadd.xlane.f32.xlu0 %v11219
    %v11221 = vpop.xlane.xlu0 %11220
    %v11222 = vrcp.pop 10.0
    %v11223 = vmul.f32 %v11221, %v11222
    %v11224 = vsub.f32 %v11215, %v11223
    %v11225 = vmul.f32 %v11224, %v11224
    %v11226 = vsel %vm11218, %v11225, 0.0
    %11227 = vadd.xlane.f32.xlu0 %v11226
    %v11228 = vpop.xlane.xlu0 %11227
    %v11229 = vmul.f32 %v11228, %v11222
    %v11230 = vadd.f32 %v11229, 1e-05
    %v11231 = vrsqrt.pop %v11230
    %v11232 = vmul.f32 %v11224, %v11231
    %v11233 = vmul.f32 %v11232, %v11216
    %v11234 = vadd.f32 %v11233, %v11217
    %v11235 = vpack.c.bf16 %v11234, %v11234
    %v11236 = vld [vmem:[#allocation13] sm:$0xff]
    %v11237 = vld [vmem:[#allocation13 + $0x8] sm:$0xff]
    %v11238 = vld [vmem:[#allocation13 + $0x10] sm:$0xff]
    %v11239 = vld [vmem:[#allocation13 + $0x18] sm:$0x11]
    %v11240 = vld [vmem:[#allocation13 + $0x20] sm:$0x11]
    %v11241 = vld [vmem:[#allocation13 + $0x28] sm:$0x11]
    %v11242 = vld [vmem:[%s18] sm:$0x3f]
    %v11249 = vunpack.c.l.b16 %v11236
    %v11250 = vunpack.c.h.b16 %v11236
    %v11251 = vunpack.c.l.b16 %v11237
    %v11252 = vunpack.c.h.b16 %v11237
    %v11253 = vunpack.c.l.b16 %v11238
    %v11254 = vunpack.c.h.b16 %v11238
    %v11255 = vunpack.c.l.b16 %v11239
    %v11256 = vunpack.c.h.b16 %v11239
    %v11257 = vunpack.c.l.b16 %v11240
    %v11258 = vunpack.c.h.b16 %v11240
    %v11259 = vunpack.c.l.b16 %v11241
    %v11260 = vunpack.c.h.b16 %v11241
    %v11261 = vpack.c.b16 %v11255, %v11249
    %v11262 = vpack.c.b16 %v11256, %v11250
    %v11263 = vpack.c.b16 %v11257, %v11251
    %v11264 = vpack.c.b16 %v11258, %v11252
    %v11265 = vpack.c.b16 %v11259, %v11253
    %v11266 = vpack.c.b16 %v11260, %v11254
    %v11268 = vlaneseq
    %v11269 = vshrl.u32 %v11268, 7
    %v11270 = vsub.s32 0, %v11269
    %v11271 = vrot.slane %v11242, %v11270
    %v11272 = vlaneseq
    %v11273 = vshrl.u32 %v11272, 7
    %v11274 = vsub.s32 1, %v11273
    %v11275 = vrot.slane %v11242, %v11274
    %v11276 = vlaneseq
    %v11277 = vshrl.u32 %v11276, 7
    %v11278 = vsub.s32 2, %v11277
    %v11279 = vrot.slane %v11242, %v11278
    %v11280 = vlaneseq
    %v11281 = vshrl.u32 %v11280, 7
    %v11282 = vsub.s32 3, %v11281
    %v11283 = vrot.slane %v11242, %v11282
    %v11284 = vlaneseq
    %v11285 = vshrl.u32 %v11284, 7
    %v11286 = vsub.s32 4, %v11285
    %v11287 = vrot.slane %v11242, %v11286
    %v11288 = vlaneseq
    %v11289 = vshrl.u32 %v11288, 7
    %v11290 = vsub.s32 5, %v11289
    %v11291 = vrot.slane %v11242, %v11290
    %vm11298 = vcmask 80896
    %v11300 = vsel %vm11298, %v11235, 0
    %vm11302 = vcmask 1044480
    %v11304 = vsel %vm11302, %v11261, 0
    %v11307 = vsel %vm11302, %v11262, 0
    %v11310 = vsel %vm11302, %v11263, 0
    %v11313 = vsel %vm11302, %v11264, 0
    %v11316 = vsel %vm11302, %v11265, 0
    %v11319 = vsel %vm11302, %v11266, 0
    %11321 = vmatprep.subr.bf16.mxu0 %v11307
    %11322 = vmatpush1.bf16.msra.mxu0 %v11304
    %11323 = vmatprep.subr.bf16.mxu0 0
    %11324 = vmatpush1.bf16.msra.mxu0 0
    %11325 = vmatprep.subr.bf16.mxu0 0
    %11326 = vmatpush1.bf16.msra.mxu0 0
    %11327 = vmatprep.subr.bf16.mxu0 0
    %11328 = vmatpush1.bf16.msra.mxu0 0
    %11329 = vmatprep.subr.bf16.mxu0 0
    %11330 = vmatpush1.bf16.msra.mxu0 0
    %11331 = vmatprep.subr.bf16.mxu0 0
    %11332 = vmatpush1.bf16.msra.mxu0 0
    %11333 = vmatprep.subr.bf16.mxu0 0
    %11334 = vmatpush1.bf16.msra.mxu0 0
    %11335 = vmatprep.subr.bf16.mxu0 0
    %11336 = vmatpush1.bf16.msra.mxu0 0
    %11337 = vmatprep.subr.bf16.mxu0 0
    %11338 = vmatpush1.bf16.msra.mxu0 0
    %11339 = vmatprep.subr.bf16.mxu0 0
    %11340 = vmatpush1.bf16.msra.mxu0 0
    %11341 = vmatprep.subr.bf16.mxu0 0
    %11342 = vmatpush1.bf16.msra.mxu0 0
    %11343 = vmatprep.subr.bf16.mxu0 0
    %11344 = vmatpush1.bf16.msra.mxu0 0
    %11345 = vmatprep.subr.bf16.mxu0 0
    %11346 = vmatpush1.bf16.msra.mxu0 0
    %11347 = vmatprep.subr.bf16.mxu0 0
    %11348 = vmatpush1.bf16.msra.mxu0 0
    %11349 = vmatprep.subr.bf16.mxu0 0
    %11350 = vmatpush1.bf16.msra.mxu0 0
    %11351 = vmatprep.subr.bf16.mxu0 0
    %11352 = vmatpush1.bf16.msra.mxu0 0
    %11353 = vmatprep.mubr.bf16.mxu0 0
    %11354 = vmatmul.mubr.bf16.gmra.mrb[0].mxu0 %v11300
    %v11355 = vpop.f32.mrb[0].mxu0
    %v11356 = vadd.f32 %v11271, %v11355
    %v11357 = vpop.f32.mrb[0].mxu0
    %v11358 = vadd.f32 %v11275, %v11357
    %v11359 = vpop.f32.mrb[0].mxu0
    %v11360 = vpop.f32.mrb[0].mxu0
    %11361 = vdwg.mxu0
    %11362 = vmatprep.subr.bf16.mxu0 %v11313
    %11363 = vmatpush1.bf16.msra.mxu0 %v11310
    %11364 = vmatprep.subr.bf16.mxu0 0
    %11365 = vmatpush1.bf16.msra.mxu0 0
    %11366 = vmatprep.subr.bf16.mxu0 0
    %11367 = vmatpush1.bf16.msra.mxu0 0
    %11368 = vmatprep.subr.bf16.mxu0 0
    %11369 = vmatpush1.bf16.msra.mxu0 0
    %11370 = vmatprep.subr.bf16.mxu0 0
    %11371 = vmatpush1.bf16.msra.mxu0 0
    %11372 = vmatprep.subr.bf16.mxu0 0
    %11373 = vmatpush1.bf16.msra.mxu0 0
    %11374 = vmatprep.subr.bf16.mxu0 0
    %11375 = vmatpush1.bf16.msra.mxu0 0
    %11376 = vmatprep.subr.bf16.mxu0 0
    %11377 = vmatpush1.bf16.msra.mxu0 0
    %11378 = vmatprep.subr.bf16.mxu0 0
    %11379 = vmatpush1.bf16.msra.mxu0 0
    %11380 = vmatprep.subr.bf16.mxu0 0
    %11381 = vmatpush1.bf16.msra.mxu0 0
    %11382 = vmatprep.subr.bf16.mxu0 0
    %11383 = vmatpush1.bf16.msra.mxu0 0
    %11384 = vmatprep.subr.bf16.mxu0 0
    %11385 = vmatpush1.bf16.msra.mxu0 0
    %11386 = vmatprep.subr.bf16.mxu0 0
    %11387 = vmatpush1.bf16.msra.mxu0 0
    %11388 = vmatprep.subr.bf16.mxu0 0
    %11389 = vmatpush1.bf16.msra.mxu0 0
    %11390 = vmatprep.subr.bf16.mxu0 0
    %11391 = vmatpush1.bf16.msra.mxu0 0
    %11392 = vmatprep.subr.bf16.mxu0 0
    %11393 = vmatpush1.bf16.msra.mxu0 0
    %11394 = vmatprep.mubr.bf16.mxu0 0
    %11395 = vmatmul.mubr.bf16.gmra.mrb[0].mxu0 %v11300
    %v11396 = vpop.f32.mrb[0].mxu0
    %v11397 = vadd.f32 %v11279, %v11396
    %v11398 = vpop.f32.mrb[0].mxu0
    %v11399 = vadd.f32 %v11283, %v11398
    %v11400 = vpop.f32.mrb[0].mxu0
    %v11401 = vpop.f32.mrb[0].mxu0
    %11402 = vdwg.mxu0
    %11403 = vmatprep.subr.bf16.mxu0 %v11319
    %11404 = vmatpush1.bf16.msra.mxu0 %v11316
    %11405 = vmatprep.subr.bf16.mxu0 0
    %11406 = vmatpush1.bf16.msra.mxu0 0
    %11407 = vmatprep.subr.bf16.mxu0 0
    %11408 = vmatpush1.bf16.msra.mxu0 0
    %11409 = vmatprep.subr.bf16.mxu0 0
    %11410 = vmatpush1.bf16.msra.mxu0 0
    %11411 = vmatprep.subr.bf16.mxu0 0
    %11412 = vmatpush1.bf16.msra.mxu0 0
    %11413 = vmatprep.subr.bf16.mxu0 0
    %11414 = vmatpush1.bf16.msra.mxu0 0
    %11415 = vmatprep.subr.bf16.mxu0 0
    %11416 = vmatpush1.bf16.msra.mxu0 0
    %11417 = vmatprep.subr.bf16.mxu0 0
    %11418 = vmatpush1.bf16.msra.mxu0 0
    %11419 = vmatprep.subr.bf16.mxu0 0
    %11420 = vmatpush1.bf16.msra.mxu0 0
    %11421 = vmatprep.subr.bf16.mxu0 0
    %11422 = vmatpush1.bf16.msra.mxu0 0
    %11423 = vmatprep.subr.bf16.mxu0 0
    %11424 = vmatpush1.bf16.msra.mxu0 0
    %11425 = vmatprep.subr.bf16.mxu0 0
    %11426 = vmatpush1.bf16.msra.mxu0 0
    %11427 = vmatprep.subr.bf16.mxu0 0
    %11428 = vmatpush1.bf16.msra.mxu0 0
    %11429 = vmatprep.subr.bf16.mxu0 0
    %11430 = vmatpush1.bf16.msra.mxu0 0
    %11431 = vmatprep.subr.bf16.mxu0 0
    %11432 = vmatpush1.bf16.msra.mxu0 0
    %11433 = vmatprep.subr.bf16.mxu0 0
    %11434 = vmatpush1.bf16.msra.mxu0 0
    %11435 = vmatprep.mubr.bf16.mxu0 0
    %11436 = vmatmul.mubr.bf16.gmra.mrb[0].mxu0 %v11300
    %v11437 = vpop.f32.mrb[0].mxu0
    %v11438 = vadd.f32 %v11287, %v11437
    %v11439 = vpop.f32.mrb[0].mxu0
    %v11440 = vadd.f32 %v11291, %v11439
    %v11441 = vpop.f32.mrb[0].mxu0
    %v11442 = vpop.f32.mrb[0].mxu0
    %11443 = vdwg.mxu0
    %v11444 = vxor.u32 %v11356, 2147483648
    %v11445 = vxor.u32 %v11358, 2147483648
    %v11446 = vxor.u32 %v11397, 2147483648
    %v11447 = vxor.u32 %v11399, 2147483648
    %v11448 = vxor.u32 %v11438, 2147483648
    %v11449 = vxor.u32 %v11440, 2147483648
    %v11450 = vmul.f32 %v11444, 1.442695
    %v11451 = vpow.pop %v11450
    %v11452 = vmul.f32 %v11445, 1.442695
    %v11453 = vpow.pop %v11452
    %v11454 = vmul.f32 %v11446, 1.442695
    %v11455 = vpow.pop %v11454
    %v11456 = vmul.f32 %v11447, 1.442695
    %v11457 = vpow.pop %v11456
    %v11458 = vmul.f32 %v11448, 1.442695
    %v11459 = vpow.pop %v11458
    %v11460 = vmul.f32 %v11449, 1.442695
    %v11461 = vpow.pop %v11460
    %v11462 = vadd.f32 %v11451, 1.0
    %v11463 = vadd.f32 %v11453, 1.0
    %v11464 = vadd.f32 %v11455, 1.0
    %v11465 = vadd.f32 %v11457, 1.0
    %v11466 = vadd.f32 %v11459, 1.0
    %v11467 = vadd.f32 %v11461, 1.0
    %v11468 = vrcp.pop %v11462
    %v11469 = vmul.f32 1.0, %v11468
    %v11470 = vrcp.pop %v11463
    %v11471 = vmul.f32 1.0, %v11470
    %v11472 = vrcp.pop %v11464
    %v11473 = vmul.f32 1.0, %v11472
    %v11474 = vrcp.pop %v11465
    %v11475 = vmul.f32 1.0, %v11474
    %v11476 = vrcp.pop %v11466
    %v11477 = vmul.f32 1.0, %v11476
    %v11478 = vrcp.pop %v11467
    %v11479 = vmul.f32 1.0, %v11478
    %v11480 = vmul.f32 %v11356, %v11469
    %v11481 = vmul.f32 %v11358, %v11471
    %v11482 = vmul.f32 %v11397, %v11473
    %v11483 = vmul.f32 %v11399, %v11475
    %v11484 = vmul.f32 %v11438, %v11477
    %v11485 = vmul.f32 %v11440, %v11479
    %v11486 = vpack.c.bf16 %v11480, %v11480
    %v11487 = vpack.c.bf16 %v11481, %v11481
    %v11488 = vpack.c.bf16 %v11482, %v11482
    %v11489 = vpack.c.bf16 %v11483, %v11483
    %v11490 = vpack.c.bf16 %v11484, %v11484
    %v11491 = vpack.c.bf16 %v11485, %v11485
    %v11492 = vld [vmem:[#allocation15] sm:$0xff]
    %v11493 = vld [vmem:[#allocation15 + $0x8] sm:$0xff]
    %v11494 = vld [vmem:[#allocation15 + $0x10] sm:$0xff]
    %v11495 = vld [vmem:[#allocation15 + $0x18] sm:$0xff]
    %v11496 = vld [vmem:[#allocation15 + $0x20] sm:$0xff]
    %v11497 = vld [vmem:[#allocation15 + $0x28] sm:$0xff]
    %v11498 = vld [vmem:[#allocation15 + $0x30] sm:$0xff]
    %v11499 = vld [vmem:[#allocation15 + $0x38] sm:$0xff]
    %v11500 = vld [vmem:[#allocation15 + $0x40] sm:$0xff]
    %v11501 = vld [vmem:[#allocation15 + $0x48] sm:$0xff]
    %v11502 = vld [vmem:[#allocation15 + $0x50] sm:$0xff]
    %v11503 = vld [vmem:[#allocation15 + $0x58] sm:$0xff]
    %v11504 = vld [vmem:[#allocation15 + $0x60] sm:$0xff]
    %v11505 = vld [vmem:[#allocation15 + $0x68] sm:$0xff]
    %v11506 = vld [vmem:[#allocation15 + $0x70] sm:$0xff]
    %v11507 = vld [vmem:[#allocation15 + $0x78] sm:$0xff]
    %v11508 = vld [vmem:[#allocation15 + $0x80] sm:$0xff]
    %v11509 = vld [vmem:[#allocation15 + $0x88] sm:$0xff]
    %v11510 = vld [vmem:[#allocation15 + $0x90] sm:$0xff]
    %v11511 = vld [vmem:[#allocation15 + $0x98] sm:$0xff]
    %v11512 = vld [vmem:[#allocation15 + $0xa0] sm:$0xff]
    %v11513 = vld [vmem:[#allocation15 + $0xa8] sm:$0xff]
    %v11514 = vld [vmem:[#allocation15 + $0xb0] sm:$0xff]
    %v11515 = vld [vmem:[#allocation15 + $0xb8] sm:$0xff]
    %v11516 = vld [vmem:[#allocation15 + $0xc0] sm:$0xff]
    %v11517 = vld [vmem:[#allocation15 + $0xc8] sm:$0xff]
    %v11518 = vld [vmem:[#allocation15 + $0xd0] sm:$0xff]
    %v11519 = vld [vmem:[#allocation15 + $0xd8] sm:$0xff]
    %v11520 = vld [vmem:[#allocation15 + $0xe0] sm:$0xff]
    %v11521 = vld [vmem:[#allocation15 + $0xe8] sm:$0xff]
    %v11522 = vld [vmem:[#allocation15 + $0xf0] sm:$0xff]
    %v11523 = vld [vmem:[#allocation15 + $0xf8] sm:$0xff]
    %v11524 = vld [vmem:[#allocation15 + $0x100] sm:$0xff]
    %v11525 = vld [vmem:[#allocation15 + $0x108] sm:$0xff]
    %v11526 = vld [vmem:[#allocation15 + $0x110] sm:$0xff]
    %v11527 = vld [vmem:[#allocation15 + $0x118] sm:$0xff]
    %v11528 = vld [vmem:[#allocation15 + $0x120] sm:$0xff]
    %v11529 = vld [vmem:[#allocation15 + $0x128] sm:$0xff]
    %v11530 = vld [vmem:[#allocation15 + $0x130] sm:$0xff]
    %v11531 = vld [vmem:[#allocation15 + $0x138] sm:$0xff]
    %v11532 = vld [vmem:[#allocation15 + $0x140] sm:$0xff]
    %v11533 = vld [vmem:[#allocation15 + $0x148] sm:$0xff]
    %v11534 = vld [vmem:[#allocation15 + $0x150] sm:$0xff]
    %v11535 = vld [vmem:[#allocation15 + $0x158] sm:$0xff]
    %v11536 = vld [vmem:[#allocation15 + $0x160] sm:$0xff]
    %v11537 = vld [vmem:[#allocation15 + $0x168] sm:$0xff]
    %v11538 = vld [vmem:[#allocation15 + $0x170] sm:$0xff]
    %v11539 = vld [vmem:[#allocation15 + $0x178] sm:$0xff]
    %v11540 = vld [vmem:[#allocation15 + $0x180] sm:$0xff]
    %v11541 = vld [vmem:[#allocation15 + $0x188] sm:$0xff]
    %v11542 = vld [vmem:[#allocation15 + $0x190] sm:$0xff]
    %v11543 = vld [vmem:[#allocation15 + $0x198] sm:$0xff]
    %v11544 = vld [vmem:[#allocation15 + $0x1a0] sm:$0xff]
    %v11545 = vld [vmem:[#allocation15 + $0x1a8] sm:$0xff]
    %v11546 = vld [vmem:[#allocation15 + $0x1b0] sm:$0xff]
    %v11547 = vld [vmem:[#allocation15 + $0x1b8] sm:$0xff]
    %v11548 = vld [vmem:[#allocation15 + $0x1c0] sm:$0xff]
    %v11549 = vld [vmem:[#allocation15 + $0x1c8] sm:$0xff]
    %v11550 = vld [vmem:[#allocation15 + $0x1d0] sm:$0xff]
    %v11551 = vld [vmem:[#allocation15 + $0x1d8] sm:$0xff]
    %v11552 = vld [vmem:[#allocation15 + $0x1e0] sm:$0xff]
    %v11553 = vld [vmem:[#allocation15 + $0x1e8] sm:$0xff]
    %v11554 = vld [vmem:[#allocation15 + $0x1f0] sm:$0xff]
    %v11555 = vld [vmem:[#allocation15 + $0x1f8] sm:$0xff]
    %v11556 = vld [vmem:[#allocation15 + $0x200] sm:$0xff]
    %v11557 = vld [vmem:[#allocation15 + $0x208] sm:$0xff]
    %v11558 = vld [vmem:[#allocation15 + $0x210] sm:$0xff]
    %v11559 = vld [vmem:[#allocation15 + $0x218] sm:$0xff]
    %v11560 = vld [vmem:[#allocation15 + $0x220] sm:$0xff]
    %v11561 = vld [vmem:[#allocation15 + $0x228] sm:$0xff]
    %v11562 = vld [vmem:[#allocation15 + $0x230] sm:$0xff]
    %v11563 = vld [vmem:[#allocation15 + $0x238] sm:$0xff]
    %v11564 = vld [vmem:[#allocation15 + $0x240] sm:$0xff]
    %v11565 = vld [vmem:[#allocation15 + $0x248] sm:$0xff]
    %v11566 = vld [vmem:[#allocation15 + $0x250] sm:$0xff]
    %v11567 = vld [vmem:[#allocation15 + $0x258] sm:$0xff]
    %v11568 = vld [vmem:[#allocation15 + $0x260] sm:$0xff]
    %v11569 = vld [vmem:[#allocation15 + $0x268] sm:$0xff]
    %v11570 = vld [vmem:[#allocation15 + $0x270] sm:$0xff]
    %v11571 = vld [vmem:[#allocation15 + $0x278] sm:$0xff]
    %v11572 = vld [vmem:[#allocation15 + $0x280] sm:$0xff]
    %v11573 = vld [vmem:[#allocation15 + $0x288] sm:$0xff]
    %v11574 = vld [vmem:[#allocation15 + $0x290] sm:$0xff]
    %v11575 = vld [vmem:[#allocation15 + $0x298] sm:$0xff]
    %v11576 = vld [vmem:[#allocation15 + $0x2a0] sm:$0xff]
    %v11577 = vld [vmem:[#allocation15 + $0x2a8] sm:$0xff]
    %v11578 = vld [vmem:[#allocation15 + $0x2b0] sm:$0xff]
    %v11579 = vld [vmem:[#allocation15 + $0x2b8] sm:$0xff]
    %v11580 = vld [vmem:[#allocation15 + $0x2c0] sm:$0xff]
    %v11581 = vld [vmem:[#allocation15 + $0x2c8] sm:$0xff]
    %v11582 = vld [vmem:[#allocation15 + $0x2d0] sm:$0xff]
    %v11583 = vld [vmem:[#allocation15 + $0x2d8] sm:$0xff]
    %v11584 = vld [vmem:[#allocation15 + $0x2e0] sm:$0xff]
    %v11585 = vld [vmem:[#allocation15 + $0x2e8] sm:$0xff]
    %v11586 = vld [vmem:[#allocation15 + $0x2f0] sm:$0xff]
    %v11587 = vld [vmem:[#allocation15 + $0x2f8] sm:$0xff]
    %v11588 = vld [vmem:[#allocation15 + $0x300] sm:$0xff]
    %v11589 = vld [vmem:[#allocation15 + $0x308] sm:$0xff]
    %v11590 = vld [vmem:[#allocation15 + $0x310] sm:$0xff]
    %v11591 = vld [vmem:[#allocation15 + $0x318] sm:$0xff]
    %v11592 = vld [vmem:[#allocation15 + $0x320] sm:$0xff]
    %v11593 = vld [vmem:[#allocation15 + $0x328] sm:$0xff]
    %v11594 = vld [vmem:[#allocation15 + $0x330] sm:$0xff]
    %v11595 = vld [vmem:[#allocation15 + $0x338] sm:$0xff]
    %v11596 = vld [vmem:[#allocation15 + $0x340] sm:$0xff]
    %v11597 = vld [vmem:[#allocation15 + $0x348] sm:$0xff]
    %v11598 = vld [vmem:[#allocation15 + $0x350] sm:$0xff]
    %v11599 = vld [vmem:[#allocation15 + $0x358] sm:$0xff]
    %v11600 = vld [vmem:[#allocation15 + $0x360] sm:$0xff]
    %v11601 = vld [vmem:[#allocation15 + $0x368] sm:$0xff]
    %v11602 = vld [vmem:[#allocation15 + $0x370] sm:$0xff]
    %v11603 = vld [vmem:[#allocation15 + $0x378] sm:$0xff]
    %v11604 = vld [vmem:[#allocation15 + $0x380] sm:$0xff]
    %v11605 = vld [vmem:[#allocation15 + $0x388] sm:$0xff]
    %v11606 = vld [vmem:[#allocation15 + $0x390] sm:$0xff]
    %v11607 = vld [vmem:[#allocation15 + $0x398] sm:$0xff]
    %v11608 = vld [vmem:[#allocation15 + $0x3a0] sm:$0xff]
    %v11609 = vld [vmem:[#allocation15 + $0x3a8] sm:$0xff]
    %v11610 = vld [vmem:[#allocation15 + $0x3b0] sm:$0xff]
    %v11611 = vld [vmem:[#allocation15 + $0x3b8] sm:$0xff]
    %v11612 = vld [vmem:[#allocation15 + $0x3c0] sm:$0xff]
    %v11613 = vld [vmem:[#allocation15 + $0x3c8] sm:$0xff]
    %v11614 = vld [vmem:[#allocation15 + $0x3d0] sm:$0xff]
    %v11615 = vld [vmem:[#allocation15 + $0x3d8] sm:$0xff]
    %v11616 = vld [vmem:[#allocation15 + $0x3e0] sm:$0xff]
    %v11617 = vld [vmem:[#allocation15 + $0x3e8] sm:$0xff]
    %v11618 = vld [vmem:[#allocation15 + $0x3f0] sm:$0xff]
    %v11619 = vld [vmem:[#allocation15 + $0x3f8] sm:$0xff]
    %v11620 = vld [vmem:[#allocation15 + $0x400] sm:$0xff]
    %v11621 = vld [vmem:[#allocation15 + $0x408] sm:$0xff]
    %v11622 = vld [vmem:[#allocation15 + $0x410] sm:$0xff]
    %v11623 = vld [vmem:[#allocation15 + $0x418] sm:$0xff]
    %v11624 = vld [vmem:[#allocation15 + $0x420] sm:$0xff]
    %v11625 = vld [vmem:[#allocation15 + $0x428] sm:$0xff]
    %v11626 = vld [vmem:[#allocation15 + $0x430] sm:$0xff]
    %v11627 = vld [vmem:[#allocation15 + $0x438] sm:$0xff]
    %v11628 = vld [vmem:[#allocation15 + $0x440] sm:$0xff]
    %v11629 = vld [vmem:[#allocation15 + $0x448] sm:$0xff]
    %v11630 = vld [vmem:[#allocation15 + $0x450] sm:$0xff]
    %v11631 = vld [vmem:[#allocation15 + $0x458] sm:$0xff]
    %v11632 = vld [vmem:[#allocation15 + $0x460] sm:$0xff]
    %v11633 = vld [vmem:[#allocation15 + $0x468] sm:$0xff]
    %v11634 = vld [vmem:[#allocation15 + $0x470] sm:$0xff]
    %v11635 = vld [vmem:[#allocation15 + $0x478] sm:$0xff]
    %v11636 = vld [vmem:[#allocation15 + $0x480] sm:$0xff]
    %v11637 = vld [vmem:[#allocation15 + $0x488] sm:$0xff]
    %v11638 = vld [vmem:[#allocation15 + $0x490] sm:$0xff]
    %v11639 = vld [vmem:[#allocation15 + $0x498] sm:$0xff]
    %v11640 = vld [vmem:[#allocation15 + $0x4a0] sm:$0xff]
    %v11641 = vld [vmem:[#allocation15 + $0x4a8] sm:$0xff]
    %v11642 = vld [vmem:[#allocation15 + $0x4b0] sm:$0xff]
    %v11643 = vld [vmem:[#allocation15 + $0x4b8] sm:$0xff]
    %v11644 = vld [vmem:[#allocation15 + $0x4c0] sm:$0xff]
    %v11645 = vld [vmem:[#allocation15 + $0x4c8] sm:$0xff]
    %v11646 = vld [vmem:[#allocation15 + $0x4d0] sm:$0xff]
    %v11647 = vld [vmem:[#allocation15 + $0x4d8] sm:$0xff]
    %v11648 = vld [vmem:[#allocation15 + $0x4e0] sm:$0xff]
    %v11649 = vld [vmem:[#allocation15 + $0x4e8] sm:$0xff]
    %v11650 = vld [vmem:[#allocation15 + $0x4f0] sm:$0xff]
    %v11651 = vld [vmem:[#allocation15 + $0x4f8] sm:$0xff]
    %v11652 = vld [vmem:[#allocation15 + $0x500] sm:$0xff]
    %v11653 = vld [vmem:[#allocation15 + $0x508] sm:$0xff]
    %v11654 = vld [vmem:[#allocation15 + $0x510] sm:$0xff]
    %v11655 = vld [vmem:[#allocation15 + $0x518] sm:$0xff]
    %v11656 = vld [vmem:[#allocation15 + $0x520] sm:$0xff]
    %v11657 = vld [vmem:[#allocation15 + $0x528] sm:$0xff]
    %v11658 = vld [vmem:[#allocation15 + $0x530] sm:$0xff]
    %v11659 = vld [vmem:[#allocation15 + $0x538] sm:$0xff]
    %v11660 = vld [vmem:[#allocation15 + $0x540] sm:$0xff]
    %v11661 = vld [vmem:[#allocation15 + $0x548] sm:$0xff]
    %v11662 = vld [vmem:[#allocation15 + $0x550] sm:$0xff]
    %v11663 = vld [vmem:[#allocation15 + $0x558] sm:$0xff]
    %v11664 = vld [vmem:[#allocation15 + $0x560] sm:$0xff]
    %v11665 = vld [vmem:[#allocation15 + $0x568] sm:$0xff]
    %v11666 = vld [vmem:[#allocation15 + $0x570] sm:$0xff]
    %v11667 = vld [vmem:[#allocation15 + $0x578] sm:$0xff]
    %v11668 = vld [vmem:[#allocation15 + $0x580] sm:$0xff]
    %v11669 = vld [vmem:[#allocation15 + $0x588] sm:$0xff]
    %v11670 = vld [vmem:[#allocation15 + $0x590] sm:$0xff]
    %v11671 = vld [vmem:[#allocation15 + $0x598] sm:$0xff]
    %v11672 = vld [vmem:[#allocation15 + $0x5a0] sm:$0xff]
    %v11673 = vld [vmem:[#allocation15 + $0x5a8] sm:$0xff]
    %v11674 = vld [vmem:[#allocation15 + $0x5b0] sm:$0xff]
    %v11675 = vld [vmem:[#allocation15 + $0x5b8] sm:$0xff]
    %v11676 = vld [vmem:[#allocation15 + $0x5c0] sm:$0xff]
    %v11677 = vld [vmem:[#allocation15 + $0x5c8] sm:$0xff]
    %v11678 = vld [vmem:[#allocation15 + $0x5d0] sm:$0xff]
    %v11679 = vld [vmem:[#allocation15 + $0x5d8] sm:$0xff]
    %v11680 = vld [vmem:[#allocation15 + $0x5e0] sm:$0xff]
    %v11681 = vld [vmem:[#allocation15 + $0x5e8] sm:$0xff]
    %v11682 = vld [vmem:[#allocation15 + $0x5f0] sm:$0xff]
    %v11683 = vld [vmem:[#allocation15 + $0x5f8] sm:$0xff]
    %v11684 = vld [vmem:[#allocation15 + $0x600] sm:$0xff]
    %v11685 = vld [vmem:[#allocation15 + $0x608] sm:$0xff]
    %v11686 = vld [vmem:[#allocation15 + $0x610] sm:$0xff]
    %v11687 = vld [vmem:[#allocation15 + $0x618] sm:$0xff]
    %v11688 = vld [vmem:[#allocation15 + $0x620] sm:$0xff]
    %v11689 = vld [vmem:[#allocation15 + $0x628] sm:$0xff]
    %v11690 = vld [vmem:[#allocation15 + $0x630] sm:$0xff]
    %v11691 = vld [vmem:[#allocation15 + $0x638] sm:$0xff]
    %v11692 = vld [vmem:[#allocation15 + $0x640] sm:$0xff]
    %v11693 = vld [vmem:[#allocation15 + $0x648] sm:$0xff]
    %v11694 = vld [vmem:[#allocation15 + $0x650] sm:$0xff]
    %v11695 = vld [vmem:[#allocation15 + $0x658] sm:$0xff]
    %v11696 = vld [vmem:[#allocation15 + $0x660] sm:$0xff]
    %v11697 = vld [vmem:[#allocation15 + $0x668] sm:$0xff]
    %v11698 = vld [vmem:[#allocation15 + $0x670] sm:$0xff]
    %v11699 = vld [vmem:[#allocation15 + $0x678] sm:$0xff]
    %v11700 = vld [vmem:[#allocation15 + $0x680] sm:$0xff]
    %v11701 = vld [vmem:[#allocation15 + $0x688] sm:$0xff]
    %v11702 = vld [vmem:[#allocation15 + $0x690] sm:$0xff]
    %v11703 = vld [vmem:[#allocation15 + $0x698] sm:$0xff]
    %v11704 = vld [vmem:[#allocation15 + $0x6a0] sm:$0xff]
    %v11705 = vld [vmem:[#allocation15 + $0x6a8] sm:$0xff]
    %v11706 = vld [vmem:[#allocation15 + $0x6b0] sm:$0xff]
    %v11707 = vld [vmem:[#allocation15 + $0x6b8] sm:$0xff]
    %v11708 = vld [vmem:[#allocation15 + $0x6c0] sm:$0xff]
    %v11709 = vld [vmem:[#allocation15 + $0x6c8] sm:$0xff]
    %v11710 = vld [vmem:[#allocation15 + $0x6d0] sm:$0xff]
    %v11711 = vld [vmem:[#allocation15 + $0x6d8] sm:$0xff]
    %v11712 = vld [vmem:[#allocation15 + $0x6e0] sm:$0xff]
    %v11713 = vld [vmem:[#allocation15 + $0x6e8] sm:$0xff]
    %v11714 = vld [vmem:[#allocation15 + $0x6f0] sm:$0xff]
    %v11715 = vld [vmem:[#allocation15 + $0x6f8] sm:$0xff]
    %v11716 = vld [vmem:[#allocation15 + $0x700] sm:$0xff]
    %v11717 = vld [vmem:[#allocation15 + $0x708] sm:$0xff]
    %v11718 = vld [vmem:[#allocation15 + $0x710] sm:$0xff]
    %v11719 = vld [vmem:[#allocation15 + $0x718] sm:$0xff]
    %v11720 = vld [vmem:[#allocation15 + $0x720] sm:$0xff]
    %v11721 = vld [vmem:[#allocation15 + $0x728] sm:$0xff]
    %v11722 = vld [vmem:[#allocation15 + $0x730] sm:$0xff]
    %v11723 = vld [vmem:[#allocation15 + $0x738] sm:$0xff]
    %v11724 = vld [vmem:[#allocation15 + $0x740] sm:$0xff]
    %v11725 = vld [vmem:[#allocation15 + $0x748] sm:$0xff]
    %v11726 = vld [vmem:[#allocation15 + $0x750] sm:$0xff]
    %v11727 = vld [vmem:[#allocation15 + $0x758] sm:$0xff]
    %v11728 = vld [vmem:[#allocation15 + $0x760] sm:$0xff]
    %v11729 = vld [vmem:[#allocation15 + $0x768] sm:$0xff]
    %v11730 = vld [vmem:[#allocation15 + $0x770] sm:$0xff]
    %v11731 = vld [vmem:[#allocation15 + $0x778] sm:$0xff]
    %v11732 = vld [vmem:[#allocation15 + $0x780] sm:$0xff]
    %v11733 = vld [vmem:[#allocation15 + $0x788] sm:$0xff]
    %v11734 = vld [vmem:[#allocation15 + $0x790] sm:$0xff]
    %v11735 = vld [vmem:[#allocation15 + $0x798] sm:$0xff]
    %v11736 = vld [vmem:[#allocation15 + $0x7a0] sm:$0xff]
    %v11737 = vld [vmem:[#allocation15 + $0x7a8] sm:$0xff]
    %v11738 = vld [vmem:[#allocation15 + $0x7b0] sm:$0xff]
    %v11739 = vld [vmem:[#allocation15 + $0x7b8] sm:$0xff]
    %v11740 = vld [vmem:[#allocation15 + $0x7c0] sm:$0xff]
    %v11741 = vld [vmem:[#allocation15 + $0x7c8] sm:$0xff]
    %v11742 = vld [vmem:[#allocation15 + $0x7d0] sm:$0xff]
    %v11743 = vld [vmem:[#allocation15 + $0x7d8] sm:$0xff]
    %v11744 = vld [vmem:[#allocation15 + $0x7e0] sm:$0xff]
    %v11745 = vld [vmem:[#allocation15 + $0x7e8] sm:$0xff]
    %v11746 = vld [vmem:[#allocation15 + $0x7f0] sm:$0xff]
    %v11747 = vld [vmem:[#allocation15 + $0x7f8] sm:$0xff]
    %v11748 = vld [vmem:[#allocation15 + $0x800] sm:$0xff]
    %v11749 = vld [vmem:[#allocation15 + $0x808] sm:$0xff]
    %v11750 = vld [vmem:[#allocation15 + $0x810] sm:$0xff]
    %v11751 = vld [vmem:[#allocation15 + $0x818] sm:$0xff]
    %v11752 = vld [vmem:[#allocation15 + $0x820] sm:$0xff]
    %v11753 = vld [vmem:[#allocation15 + $0x828] sm:$0xff]
    %v11754 = vld [vmem:[#allocation15 + $0x830] sm:$0xff]
    %v11755 = vld [vmem:[#allocation15 + $0x838] sm:$0xff]
    %v11756 = vld [vmem:[#allocation15 + $0x840] sm:$0xff]
    %v11757 = vld [vmem:[#allocation15 + $0x848] sm:$0xff]
    %v11758 = vld [vmem:[#allocation15 + $0x850] sm:$0xff]
    %v11759 = vld [vmem:[#allocation15 + $0x858] sm:$0xff]
    %v11760 = vld [vmem:[#allocation15 + $0x860] sm:$0xff]
    %v11761 = vld [vmem:[#allocation15 + $0x868] sm:$0xff]
    %v11762 = vld [vmem:[#allocation15 + $0x870] sm:$0xff]
    %v11763 = vld [vmem:[#allocation15 + $0x878] sm:$0xff]
    %v11764 = vld [vmem:[#allocation15 + $0x880] sm:$0xff]
    %v11765 = vld [vmem:[#allocation15 + $0x888] sm:$0xff]
    %v11766 = vld [vmem:[#allocation15 + $0x890] sm:$0xff]
    %v11767 = vld [vmem:[#allocation15 + $0x898] sm:$0xff]
    %v11768 = vld [vmem:[#allocation15 + $0x8a0] sm:$0xff]
    %v11769 = vld [vmem:[#allocation15 + $0x8a8] sm:$0xff]
    %v11770 = vld [vmem:[#allocation15 + $0x8b0] sm:$0xff]
    %v11771 = vld [vmem:[#allocation15 + $0x8b8] sm:$0xff]
    %v11772 = vld [vmem:[#allocation15 + $0x8c0] sm:$0xff]
    %v11773 = vld [vmem:[#allocation15 + $0x8c8] sm:$0xff]
    %v11774 = vld [vmem:[#allocation15 + $0x8d0] sm:$0xff]
    %v11775 = vld [vmem:[#allocation15 + $0x8d8] sm:$0xff]
    %v11776 = vld [vmem:[#allocation15 + $0x8e0] sm:$0xff]
    %v11777 = vld [vmem:[#allocation15 + $0x8e8] sm:$0xff]
    %v11778 = vld [vmem:[#allocation15 + $0x8f0] sm:$0xff]
    %v11779 = vld [vmem:[#allocation15 + $0x8f8] sm:$0xff]
    %v11780 = vld [vmem:[%s20] sm:$0x3f]
    %v12069 = vunpack.c.l.b16 %v11492
    %v12070 = vunpack.c.h.b16 %v11492
    %v12071 = vunpack.c.l.b16 %v11493
    %v12072 = vunpack.c.h.b16 %v11493
    %v12073 = vunpack.c.l.b16 %v11494
    %v12074 = vunpack.c.h.b16 %v11494
    %v12075 = vunpack.c.l.b16 %v11495
    %v12076 = vunpack.c.h.b16 %v11495
    %v12077 = vunpack.c.l.b16 %v11496
    %v12078 = vunpack.c.h.b16 %v11496
    %v12079 = vunpack.c.l.b16 %v11497
    %v12080 = vunpack.c.h.b16 %v11497
    %v12081 = vunpack.c.l.b16 %v11498
    %v12082 = vunpack.c.h.b16 %v11498
    %v12083 = vunpack.c.l.b16 %v11499
    %v12084 = vunpack.c.h.b16 %v11499
    %v12085 = vunpack.c.l.b16 %v11500
    %v12086 = vunpack.c.h.b16 %v11500
    %v12087 = vunpack.c.l.b16 %v11501
    %v12088 = vunpack.c.h.b16 %v11501
    %v12089 = vunpack.c.l.b16 %v11502
    %v12090 = vunpack.c.h.b16 %v11502
    %v12091 = vunpack.c.l.b16 %v11503
    %v12092 = vunpack.c.h.b16 %v11503
    %v12093 = vunpack.c.l.b16 %v11504
    %v12094 = vunpack.c.h.b16 %v11504
    %v12095 = vunpack.c.l.b16 %v11505
    %v12096 = vunpack.c.h.b16 %v11505
    %v12097 = vunpack.c.l.b16 %v11506
    %v12098 = vunpack.c.h.b16 %v11506
    %v12099 = vunpack.c.l.b16 %v11507
    %v12100 = vunpack.c.h.b16 %v11507
    %v12101 = vunpack.c.l.b16 %v11508
    %v12102 = vunpack.c.h.b16 %v11508
    %v12103 = vunpack.c.l.b16 %v11509
    %v12104 = vunpack.c.h.b16 %v11509
    %v12105 = vunpack.c.l.b16 %v11510
    %v12106 = vunpack.c.h.b16 %v11510
    %v12107 = vunpack.c.l.b16 %v11511
    %v12108 = vunpack.c.h.b16 %v11511
    %v12109 = vunpack.c.l.b16 %v11512
    %v12110 = vunpack.c.h.b16 %v11512
    %v12111 = vunpack.c.l.b16 %v11513
    %v12112 = vunpack.c.h.b16 %v11513
    %v12113 = vunpack.c.l.b16 %v11514
    %v12114 = vunpack.c.h.b16 %v11514
    %v12115 = vunpack.c.l.b16 %v11515
    %v12116 = vunpack.c.h.b16 %v11515
    %v12117 = vunpack.c.l.b16 %v11516
    %v12118 = vunpack.c.h.b16 %v11516
    %v12119 = vunpack.c.l.b16 %v11517
    %v12120 = vunpack.c.h.b16 %v11517
    %v12121 = vunpack.c.l.b16 %v11518
    %v12122 = vunpack.c.h.b16 %v11518
    %v12123 = vunpack.c.l.b16 %v11519
    %v12124 = vunpack.c.h.b16 %v11519
    %v12125 = vunpack.c.l.b16 %v11520
    %v12126 = vunpack.c.h.b16 %v11520
    %v12127 = vunpack.c.l.b16 %v11521
    %v12128 = vunpack.c.h.b16 %v11521
    %v12129 = vunpack.c.l.b16 %v11522
    %v12130 = vunpack.c.h.b16 %v11522
    %v12131 = vunpack.c.l.b16 %v11523
    %v12132 = vunpack.c.h.b16 %v11523
    %v12133 = vunpack.c.l.b16 %v11524
    %v12134 = vunpack.c.h.b16 %v11524
    %v12135 = vunpack.c.l.b16 %v11525
    %v12136 = vunpack.c.h.b16 %v11525
    %v12137 = vunpack.c.l.b16 %v11526
    %v12138 = vunpack.c.h.b16 %v11526
    %v12139 = vunpack.c.l.b16 %v11527
    %v12140 = vunpack.c.h.b16 %v11527
    %v12141 = vunpack.c.l.b16 %v11528
    %v12142 = vunpack.c.h.b16 %v11528
    %v12143 = vunpack.c.l.b16 %v11529
    %v12144 = vunpack.c.h.b16 %v11529
    %v12145 = vunpack.c.l.b16 %v11530
    %v12146 = vunpack.c.h.b16 %v11530
    %v12147 = vunpack.c.l.b16 %v11531
    %v12148 = vunpack.c.h.b16 %v11531
    %v12149 = vunpack.c.l.b16 %v11532
    %v12150 = vunpack.c.h.b16 %v11532
    %v12151 = vunpack.c.l.b16 %v11533
    %v12152 = vunpack.c.h.b16 %v11533
    %v12153 = vunpack.c.l.b16 %v11534
    %v12154 = vunpack.c.h.b16 %v11534
    %v12155 = vunpack.c.l.b16 %v11535
    %v12156 = vunpack.c.h.b16 %v11535
    %v12157 = vunpack.c.l.b16 %v11536
    %v12158 = vunpack.c.h.b16 %v11536
    %v12159 = vunpack.c.l.b16 %v11537
    %v12160 = vunpack.c.h.b16 %v11537
    %v12161 = vunpack.c.l.b16 %v11538
    %v12162 = vunpack.c.h.b16 %v11538
    %v12163 = vunpack.c.l.b16 %v11539
    %v12164 = vunpack.c.h.b16 %v11539
    %v12165 = vunpack.c.l.b16 %v11540
    %v12166 = vunpack.c.h.b16 %v11540
    %v12167 = vunpack.c.l.b16 %v11541
    %v12168 = vunpack.c.h.b16 %v11541
    %v12169 = vunpack.c.l.b16 %v11542
    %v12170 = vunpack.c.h.b16 %v11542
    %v12171 = vunpack.c.l.b16 %v11543
    %v12172 = vunpack.c.h.b16 %v11543
    %v12173 = vunpack.c.l.b16 %v11544
    %v12174 = vunpack.c.h.b16 %v11544
    %v12175 = vunpack.c.l.b16 %v11545
    %v12176 = vunpack.c.h.b16 %v11545
    %v12177 = vunpack.c.l.b16 %v11546
    %v12178 = vunpack.c.h.b16 %v11546
    %v12179 = vunpack.c.l.b16 %v11547
    %v12180 = vunpack.c.h.b16 %v11547
    %v12181 = vunpack.c.l.b16 %v11548
    %v12182 = vunpack.c.h.b16 %v11548
    %v12183 = vunpack.c.l.b16 %v11549
    %v12184 = vunpack.c.h.b16 %v11549
    %v12185 = vunpack.c.l.b16 %v11550
    %v12186 = vunpack.c.h.b16 %v11550
    %v12187 = vunpack.c.l.b16 %v11551
    %v12188 = vunpack.c.h.b16 %v11551
    %v12189 = vunpack.c.l.b16 %v11552
    %v12190 = vunpack.c.h.b16 %v11552
    %v12191 = vunpack.c.l.b16 %v11553
    %v12192 = vunpack.c.h.b16 %v11553
    %v12193 = vunpack.c.l.b16 %v11554
    %v12194 = vunpack.c.h.b16 %v11554
    %v12195 = vunpack.c.l.b16 %v11555
    %v12196 = vunpack.c.h.b16 %v11555
    %v12197 = vunpack.c.l.b16 %v11556
    %v12198 = vunpack.c.h.b16 %v11556
    %v12199 = vunpack.c.l.b16 %v11557
    %v12200 = vunpack.c.h.b16 %v11557
    %v12201 = vunpack.c.l.b16 %v11558
    %v12202 = vunpack.c.h.b16 %v11558
    %v12203 = vunpack.c.l.b16 %v11559
    %v12204 = vunpack.c.h.b16 %v11559
    %v12205 = vunpack.c.l.b16 %v11560
    %v12206 = vunpack.c.h.b16 %v11560
    %v12207 = vunpack.c.l.b16 %v11561
    %v12208 = vunpack.c.h.b16 %v11561
    %v12209 = vunpack.c.l.b16 %v11562
    %v12210 = vunpack.c.h.b16 %v11562
    %v12211 = vunpack.c.l.b16 %v11563
    %v12212 = vunpack.c.h.b16 %v11563
    %v12213 = vunpack.c.l.b16 %v11564
    %v12214 = vunpack.c.h.b16 %v11564
    %v12215 = vunpack.c.l.b16 %v11565
    %v12216 = vunpack.c.h.b16 %v11565
    %v12217 = vunpack.c.l.b16 %v11566
    %v12218 = vunpack.c.h.b16 %v11566
    %v12219 = vunpack.c.l.b16 %v11567
    %v12220 = vunpack.c.h.b16 %v11567
    %v12221 = vunpack.c.l.b16 %v11568
    %v12222 = vunpack.c.h.b16 %v11568
    %v12223 = vunpack.c.l.b16 %v11569
    %v12224 = vunpack.c.h.b16 %v11569
    %v12225 = vunpack.c.l.b16 %v11570
    %v12226 = vunpack.c.h.b16 %v11570
    %v12227 = vunpack.c.l.b16 %v11571
    %v12228 = vunpack.c.h.b16 %v11571
    %v12229 = vunpack.c.l.b16 %v11572
    %v12230 = vunpack.c.h.b16 %v11572
    %v12231 = vunpack.c.l.b16 %v11573
    %v12232 = vunpack.c.h.b16 %v11573
    %v12233 = vunpack.c.l.b16 %v11574
    %v12234 = vunpack.c.h.b16 %v11574
    %v12235 = vunpack.c.l.b16 %v11575
    %v12236 = vunpack.c.h.b16 %v11575
    %v12237 = vunpack.c.l.b16 %v11576
    %v12238 = vunpack.c.h.b16 %v11576
    %v12239 = vunpack.c.l.b16 %v11577
    %v12240 = vunpack.c.h.b16 %v11577
    %v12241 = vunpack.c.l.b16 %v11578
    %v12242 = vunpack.c.h.b16 %v11578
    %v12243 = vunpack.c.l.b16 %v11579
    %v12244 = vunpack.c.h.b16 %v11579
    %v12245 = vunpack.c.l.b16 %v11580
    %v12246 = vunpack.c.h.b16 %v11580
    %v12247 = vunpack.c.l.b16 %v11581
    %v12248 = vunpack.c.h.b16 %v11581
    %v12249 = vunpack.c.l.b16 %v11582
    %v12250 = vunpack.c.h.b16 %v11582
    %v12251 = vunpack.c.l.b16 %v11583
    %v12252 = vunpack.c.h.b16 %v11583
    %v12253 = vunpack.c.l.b16 %v11584
    %v12254 = vunpack.c.h.b16 %v11584
    %v12255 = vunpack.c.l.b16 %v11585
    %v12256 = vunpack.c.h.b16 %v11585
    %v12257 = vunpack.c.l.b16 %v11586
    %v12258 = vunpack.c.h.b16 %v11586
    %v12259 = vunpack.c.l.b16 %v11587
    %v12260 = vunpack.c.h.b16 %v11587
    %v12261 = vunpack.c.l.b16 %v11588
    %v12262 = vunpack.c.h.b16 %v11588
    %v12263 = vunpack.c.l.b16 %v11589
    %v12264 = vunpack.c.h.b16 %v11589
    %v12265 = vunpack.c.l.b16 %v11590
    %v12266 = vunpack.c.h.b16 %v11590
    %v12267 = vunpack.c.l.b16 %v11591
    %v12268 = vunpack.c.h.b16 %v11591
    %v12269 = vunpack.c.l.b16 %v11592
    %v12270 = vunpack.c.h.b16 %v11592
    %v12271 = vunpack.c.l.b16 %v11593
    %v12272 = vunpack.c.h.b16 %v11593
    %v12273 = vunpack.c.l.b16 %v11594
    %v12274 = vunpack.c.h.b16 %v11594
    %v12275 = vunpack.c.l.b16 %v11595
    %v12276 = vunpack.c.h.b16 %v11595
    %v12277 = vunpack.c.l.b16 %v11596
    %v12278 = vunpack.c.h.b16 %v11596
    %v12279 = vunpack.c.l.b16 %v11597
    %v12280 = vunpack.c.h.b16 %v11597
    %v12281 = vunpack.c.l.b16 %v11598
    %v12282 = vunpack.c.h.b16 %v11598
    %v12283 = vunpack.c.l.b16 %v11599
    %v12284 = vunpack.c.h.b16 %v11599
    %v12285 = vunpack.c.l.b16 %v11600
    %v12286 = vunpack.c.h.b16 %v11600
    %v12287 = vunpack.c.l.b16 %v11601
    %v12288 = vunpack.c.h.b16 %v11601
    %v12289 = vunpack.c.l.b16 %v11602
    %v12290 = vunpack.c.h.b16 %v11602
    %v12291 = vunpack.c.l.b16 %v11603
    %v12292 = vunpack.c.h.b16 %v11603
    %v12293 = vunpack.c.l.b16 %v11604
    %v12294 = vunpack.c.h.b16 %v11604
    %v12295 = vunpack.c.l.b16 %v11605
    %v12296 = vunpack.c.h.b16 %v11605
    %v12297 = vunpack.c.l.b16 %v11606
    %v12298 = vunpack.c.h.b16 %v11606
    %v12299 = vunpack.c.l.b16 %v11607
    %v12300 = vunpack.c.h.b16 %v11607
    %v12301 = vunpack.c.l.b16 %v11608
    %v12302 = vunpack.c.h.b16 %v11608
    %v12303 = vunpack.c.l.b16 %v11609
    %v12304 = vunpack.c.h.b16 %v11609
    %v12305 = vunpack.c.l.b16 %v11610
    %v12306 = vunpack.c.h.b16 %v11610
    %v12307 = vunpack.c.l.b16 %v11611
    %v12308 = vunpack.c.h.b16 %v11611
    %v12309 = vunpack.c.l.b16 %v11612
    %v12310 = vunpack.c.h.b16 %v11612
    %v12311 = vunpack.c.l.b16 %v11613
    %v12312 = vunpack.c.h.b16 %v11613
    %v12313 = vunpack.c.l.b16 %v11614
    %v12314 = vunpack.c.h.b16 %v11614
    %v12315 = vunpack.c.l.b16 %v11615
    %v12316 = vunpack.c.h.b16 %v11615
    %v12317 = vunpack.c.l.b16 %v11616
    %v12318 = vunpack.c.h.b16 %v11616
    %v12319 = vunpack.c.l.b16 %v11617
    %v12320 = vunpack.c.h.b16 %v11617
    %v12321 = vunpack.c.l.b16 %v11618
    %v12322 = vunpack.c.h.b16 %v11618
    %v12323 = vunpack.c.l.b16 %v11619
    %v12324 = vunpack.c.h.b16 %v11619
    %v12325 = vunpack.c.l.b16 %v11620
    %v12326 = vunpack.c.h.b16 %v11620
    %v12327 = vunpack.c.l.b16 %v11621
    %v12328 = vunpack.c.h.b16 %v11621
    %v12329 = vunpack.c.l.b16 %v11622
    %v12330 = vunpack.c.h.b16 %v11622
    %v12331 = vunpack.c.l.b16 %v11623
    %v12332 = vunpack.c.h.b16 %v11623
    %v12333 = vunpack.c.l.b16 %v11624
    %v12334 = vunpack.c.h.b16 %v11624
    %v12335 = vunpack.c.l.b16 %v11625
    %v12336 = vunpack.c.h.b16 %v11625
    %v12337 = vunpack.c.l.b16 %v11626
    %v12338 = vunpack.c.h.b16 %v11626
    %v12339 = vunpack.c.l.b16 %v11627
    %v12340 = vunpack.c.h.b16 %v11627
    %v12341 = vunpack.c.l.b16 %v11628
    %v12342 = vunpack.c.h.b16 %v11628
    %v12343 = vunpack.c.l.b16 %v11629
    %v12344 = vunpack.c.h.b16 %v11629
    %v12345 = vunpack.c.l.b16 %v11630
    %v12346 = vunpack.c.h.b16 %v11630
    %v12347 = vunpack.c.l.b16 %v11631
    %v12348 = vunpack.c.h.b16 %v11631
    %v12349 = vunpack.c.l.b16 %v11632
    %v12350 = vunpack.c.h.b16 %v11632
    %v12351 = vunpack.c.l.b16 %v11633
    %v12352 = vunpack.c.h.b16 %v11633
    %v12353 = vunpack.c.l.b16 %v11634
    %v12354 = vunpack.c.h.b16 %v11634
    %v12355 = vunpack.c.l.b16 %v11635
    %v12356 = vunpack.c.h.b16 %v11635
    %v12357 = vunpack.c.l.b16 %v11636
    %v12358 = vunpack.c.h.b16 %v11636
    %v12359 = vunpack.c.l.b16 %v11637
    %v12360 = vunpack.c.h.b16 %v11637
    %v12361 = vunpack.c.l.b16 %v11638
    %v12362 = vunpack.c.h.b16 %v11638
    %v12363 = vunpack.c.l.b16 %v11639
    %v12364 = vunpack.c.h.b16 %v11639
    %v12365 = vunpack.c.l.b16 %v11640
    %v12366 = vunpack.c.h.b16 %v11640
    %v12367 = vunpack.c.l.b16 %v11641
    %v12368 = vunpack.c.h.b16 %v11641
    %v12369 = vunpack.c.l.b16 %v11642
    %v12370 = vunpack.c.h.b16 %v11642
    %v12371 = vunpack.c.l.b16 %v11643
    %v12372 = vunpack.c.h.b16 %v11643
    %v12373 = vunpack.c.l.b16 %v11644
    %v12374 = vunpack.c.h.b16 %v11644
    %v12375 = vunpack.c.l.b16 %v11645
    %v12376 = vunpack.c.h.b16 %v11645
    %v12377 = vunpack.c.l.b16 %v11646
    %v12378 = vunpack.c.h.b16 %v11646
    %v12379 = vunpack.c.l.b16 %v11647
    %v12380 = vunpack.c.h.b16 %v11647
    %v12381 = vunpack.c.l.b16 %v11648
    %v12382 = vunpack.c.h.b16 %v11648
    %v12383 = vunpack.c.l.b16 %v11649
    %v12384 = vunpack.c.h.b16 %v11649
    %v12385 = vunpack.c.l.b16 %v11650
    %v12386 = vunpack.c.h.b16 %v11650
    %v12387 = vunpack.c.l.b16 %v11651
    %v12388 = vunpack.c.h.b16 %v11651
    %v12389 = vunpack.c.l.b16 %v11652
    %v12390 = vunpack.c.h.b16 %v11652
    %v12391 = vunpack.c.l.b16 %v11653
    %v12392 = vunpack.c.h.b16 %v11653
    %v12393 = vunpack.c.l.b16 %v11654
    %v12394 = vunpack.c.h.b16 %v11654
    %v12395 = vunpack.c.l.b16 %v11655
    %v12396 = vunpack.c.h.b16 %v11655
    %v12397 = vunpack.c.l.b16 %v11656
    %v12398 = vunpack.c.h.b16 %v11656
    %v12399 = vunpack.c.l.b16 %v11657
    %v12400 = vunpack.c.h.b16 %v11657
    %v12401 = vunpack.c.l.b16 %v11658
    %v12402 = vunpack.c.h.b16 %v11658
    %v12403 = vunpack.c.l.b16 %v11659
    %v12404 = vunpack.c.h.b16 %v11659
    %v12405 = vunpack.c.l.b16 %v11660
    %v12406 = vunpack.c.h.b16 %v11660
    %v12407 = vunpack.c.l.b16 %v11661
    %v12408 = vunpack.c.h.b16 %v11661
    %v12409 = vunpack.c.l.b16 %v11662
    %v12410 = vunpack.c.h.b16 %v11662
    %v12411 = vunpack.c.l.b16 %v11663
    %v12412 = vunpack.c.h.b16 %v11663
    %v12413 = vunpack.c.l.b16 %v11664
    %v12414 = vunpack.c.h.b16 %v11664
    %v12415 = vunpack.c.l.b16 %v11665
    %v12416 = vunpack.c.h.b16 %v11665
    %v12417 = vunpack.c.l.b16 %v11666
    %v12418 = vunpack.c.h.b16 %v11666
    %v12419 = vunpack.c.l.b16 %v11667
    %v12420 = vunpack.c.h.b16 %v11667
    %v12421 = vunpack.c.l.b16 %v11668
    %v12422 = vunpack.c.h.b16 %v11668
    %v12423 = vunpack.c.l.b16 %v11669
    %v12424 = vunpack.c.h.b16 %v11669
    %v12425 = vunpack.c.l.b16 %v11670
    %v12426 = vunpack.c.h.b16 %v11670
    %v12427 = vunpack.c.l.b16 %v11671
    %v12428 = vunpack.c.h.b16 %v11671
    %v12429 = vunpack.c.l.b16 %v11672
    %v12430 = vunpack.c.h.b16 %v11672
    %v12431 = vunpack.c.l.b16 %v11673
    %v12432 = vunpack.c.h.b16 %v11673
    %v12433 = vunpack.c.l.b16 %v11674
    %v12434 = vunpack.c.h.b16 %v11674
    %v12435 = vunpack.c.l.b16 %v11675
    %v12436 = vunpack.c.h.b16 %v11675
    %v12437 = vunpack.c.l.b16 %v11676
    %v12438 = vunpack.c.h.b16 %v11676
    %v12439 = vunpack.c.l.b16 %v11677
    %v12440 = vunpack.c.h.b16 %v11677
    %v12441 = vunpack.c.l.b16 %v11678
    %v12442 = vunpack.c.h.b16 %v11678
    %v12443 = vunpack.c.l.b16 %v11679
    %v12444 = vunpack.c.h.b16 %v11679
    %v12445 = vunpack.c.l.b16 %v11680
    %v12446 = vunpack.c.h.b16 %v11680
    %v12447 = vunpack.c.l.b16 %v11681
    %v12448 = vunpack.c.h.b16 %v11681
    %v12449 = vunpack.c.l.b16 %v11682
    %v12450 = vunpack.c.h.b16 %v11682
    %v12451 = vunpack.c.l.b16 %v11683
    %v12452 = vunpack.c.h.b16 %v11683
    %v12453 = vunpack.c.l.b16 %v11684
    %v12454 = vunpack.c.h.b16 %v11684
    %v12455 = vunpack.c.l.b16 %v11685
    %v12456 = vunpack.c.h.b16 %v11685
    %v12457 = vunpack.c.l.b16 %v11686
    %v12458 = vunpack.c.h.b16 %v11686
    %v12459 = vunpack.c.l.b16 %v11687
    %v12460 = vunpack.c.h.b16 %v11687
    %v12461 = vunpack.c.l.b16 %v11688
    %v12462 = vunpack.c.h.b16 %v11688
    %v12463 = vunpack.c.l.b16 %v11689
    %v12464 = vunpack.c.h.b16 %v11689
    %v12465 = vunpack.c.l.b16 %v11690
    %v12466 = vunpack.c.h.b16 %v11690
    %v12467 = vunpack.c.l.b16 %v11691
    %v12468 = vunpack.c.h.b16 %v11691
    %v12469 = vunpack.c.l.b16 %v11692
    %v12470 = vunpack.c.h.b16 %v11692
    %v12471 = vunpack.c.l.b16 %v11693
    %v12472 = vunpack.c.h.b16 %v11693
    %v12473 = vunpack.c.l.b16 %v11694
    %v12474 = vunpack.c.h.b16 %v11694
    %v12475 = vunpack.c.l.b16 %v11695
    %v12476 = vunpack.c.h.b16 %v11695
    %v12477 = vunpack.c.l.b16 %v11696
    %v12478 = vunpack.c.h.b16 %v11696
    %v12479 = vunpack.c.l.b16 %v11697
    %v12480 = vunpack.c.h.b16 %v11697
    %v12481 = vunpack.c.l.b16 %v11698
    %v12482 = vunpack.c.h.b16 %v11698
    %v12483 = vunpack.c.l.b16 %v11699
    %v12484 = vunpack.c.h.b16 %v11699
    %v12485 = vunpack.c.l.b16 %v11700
    %v12486 = vunpack.c.h.b16 %v11700
    %v12487 = vunpack.c.l.b16 %v11701
    %v12488 = vunpack.c.h.b16 %v11701
    %v12489 = vunpack.c.l.b16 %v11702
    %v12490 = vunpack.c.h.b16 %v11702
    %v12491 = vunpack.c.l.b16 %v11703
    %v12492 = vunpack.c.h.b16 %v11703
    %v12493 = vunpack.c.l.b16 %v11704
    %v12494 = vunpack.c.h.b16 %v11704
    %v12495 = vunpack.c.l.b16 %v11705
    %v12496 = vunpack.c.h.b16 %v11705
    %v12497 = vunpack.c.l.b16 %v11706
    %v12498 = vunpack.c.h.b16 %v11706
    %v12499 = vunpack.c.l.b16 %v11707
    %v12500 = vunpack.c.h.b16 %v11707
    %v12501 = vunpack.c.l.b16 %v11708
    %v12502 = vunpack.c.h.b16 %v11708
    %v12503 = vunpack.c.l.b16 %v11709
    %v12504 = vunpack.c.h.b16 %v11709
    %v12505 = vunpack.c.l.b16 %v11710
    %v12506 = vunpack.c.h.b16 %v11710
    %v12507 = vunpack.c.l.b16 %v11711
    %v12508 = vunpack.c.h.b16 %v11711
    %v12509 = vunpack.c.l.b16 %v11712
    %v12510 = vunpack.c.h.b16 %v11712
    %v12511 = vunpack.c.l.b16 %v11713
    %v12512 = vunpack.c.h.b16 %v11713
    %v12513 = vunpack.c.l.b16 %v11714
    %v12514 = vunpack.c.h.b16 %v11714
    %v12515 = vunpack.c.l.b16 %v11715
    %v12516 = vunpack.c.h.b16 %v11715
    %v12517 = vunpack.c.l.b16 %v11716
    %v12518 = vunpack.c.h.b16 %v11716
    %v12519 = vunpack.c.l.b16 %v11717
    %v12520 = vunpack.c.h.b16 %v11717
    %v12521 = vunpack.c.l.b16 %v11718
    %v12522 = vunpack.c.h.b16 %v11718
    %v12523 = vunpack.c.l.b16 %v11719
    %v12524 = vunpack.c.h.b16 %v11719
    %v12525 = vunpack.c.l.b16 %v11720
    %v12526 = vunpack.c.h.b16 %v11720
    %v12527 = vunpack.c.l.b16 %v11721
    %v12528 = vunpack.c.h.b16 %v11721
    %v12529 = vunpack.c.l.b16 %v11722
    %v12530 = vunpack.c.h.b16 %v11722
    %v12531 = vunpack.c.l.b16 %v11723
    %v12532 = vunpack.c.h.b16 %v11723
    %v12533 = vunpack.c.l.b16 %v11724
    %v12534 = vunpack.c.h.b16 %v11724
    %v12535 = vunpack.c.l.b16 %v11725
    %v12536 = vunpack.c.h.b16 %v11725
    %v12537 = vunpack.c.l.b16 %v11726
    %v12538 = vunpack.c.h.b16 %v11726
    %v12539 = vunpack.c.l.b16 %v11727
    %v12540 = vunpack.c.h.b16 %v11727
    %v12541 = vunpack.c.l.b16 %v11728
    %v12542 = vunpack.c.h.b16 %v11728
    %v12543 = vunpack.c.l.b16 %v11729
    %v12544 = vunpack.c.h.b16 %v11729
    %v12545 = vunpack.c.l.b16 %v11730
    %v12546 = vunpack.c.h.b16 %v11730
    %v12547 = vunpack.c.l.b16 %v11731
    %v12548 = vunpack.c.h.b16 %v11731
    %v12549 = vunpack.c.l.b16 %v11732
    %v12550 = vunpack.c.h.b16 %v11732
    %v12551 = vunpack.c.l.b16 %v11733
    %v12552 = vunpack.c.h.b16 %v11733
    %v12553 = vunpack.c.l.b16 %v11734
    %v12554 = vunpack.c.h.b16 %v11734
    %v12555 = vunpack.c.l.b16 %v11735
    %v12556 = vunpack.c.h.b16 %v11735
    %v12557 = vunpack.c.l.b16 %v11736
    %v12558 = vunpack.c.h.b16 %v11736
    %v12559 = vunpack.c.l.b16 %v11737
    %v12560 = vunpack.c.h.b16 %v11737
    %v12561 = vunpack.c.l.b16 %v11738
    %v12562 = vunpack.c.h.b16 %v11738
    %v12563 = vunpack.c.l.b16 %v11739
    %v12564 = vunpack.c.h.b16 %v11739
    %v12565 = vunpack.c.l.b16 %v11740
    %v12566 = vunpack.c.h.b16 %v11740
    %v12567 = vunpack.c.l.b16 %v11741
    %v12568 = vunpack.c.h.b16 %v11741
    %v12569 = vunpack.c.l.b16 %v11742
    %v12570 = vunpack.c.h.b16 %v11742
    %v12571 = vunpack.c.l.b16 %v11743
    %v12572 = vunpack.c.h.b16 %v11743
    %v12573 = vunpack.c.l.b16 %v11744
    %v12574 = vunpack.c.h.b16 %v11744
    %v12575 = vunpack.c.l.b16 %v11745
    %v12576 = vunpack.c.h.b16 %v11745
    %v12577 = vunpack.c.l.b16 %v11746
    %v12578 = vunpack.c.h.b16 %v11746
    %v12579 = vunpack.c.l.b16 %v11747
    %v12580 = vunpack.c.h.b16 %v11747
    %v12581 = vunpack.c.l.b16 %v11748
    %v12582 = vunpack.c.h.b16 %v11748
    %v12583 = vunpack.c.l.b16 %v11749
    %v12584 = vunpack.c.h.b16 %v11749
    %v12585 = vunpack.c.l.b16 %v11750
    %v12586 = vunpack.c.h.b16 %v11750
    %v12587 = vunpack.c.l.b16 %v11751
    %v12588 = vunpack.c.h.b16 %v11751
    %v12589 = vunpack.c.l.b16 %v11752
    %v12590 = vunpack.c.h.b16 %v11752
    %v12591 = vunpack.c.l.b16 %v11753
    %v12592 = vunpack.c.h.b16 %v11753
    %v12593 = vunpack.c.l.b16 %v11754
    %v12594 = vunpack.c.h.b16 %v11754
    %v12595 = vunpack.c.l.b16 %v11755
    %v12596 = vunpack.c.h.b16 %v11755
    %v12597 = vunpack.c.l.b16 %v11756
    %v12598 = vunpack.c.h.b16 %v11756
    %v12599 = vunpack.c.l.b16 %v11757
    %v12600 = vunpack.c.h.b16 %v11757
    %v12601 = vunpack.c.l.b16 %v11758
    %v12602 = vunpack.c.h.b16 %v11758
    %v12603 = vunpack.c.l.b16 %v11759
    %v12604 = vunpack.c.h.b16 %v11759
    %v12605 = vunpack.c.l.b16 %v11760
    %v12606 = vunpack.c.h.b16 %v11760
    %v12607 = vunpack.c.l.b16 %v11761
    %v12608 = vunpack.c.h.b16 %v11761
    %v12609 = vunpack.c.l.b16 %v11762
    %v12610 = vunpack.c.h.b16 %v11762
    %v12611 = vunpack.c.l.b16 %v11763
    %v12612 = vunpack.c.h.b16 %v11763
    %v12613 = vunpack.c.l.b16 %v11764
    %v12614 = vunpack.c.h.b16 %v11764
    %v12615 = vunpack.c.l.b16 %v11765
    %v12616 = vunpack.c.h.b16 %v11765
    %v12617 = vunpack.c.l.b16 %v11766
    %v12618 = vunpack.c.h.b16 %v11766
    %v12619 = vunpack.c.l.b16 %v11767
    %v12620 = vunpack.c.h.b16 %v11767
    %v12621 = vunpack.c.l.b16 %v11768
    %v12622 = vunpack.c.h.b16 %v11768
    %v12623 = vunpack.c.l.b16 %v11769
    %v12624 = vunpack.c.h.b16 %v11769
    %v12625 = vunpack.c.l.b16 %v11770
    %v12626 = vunpack.c.h.b16 %v11770
    %v12627 = vunpack.c.l.b16 %v11771
    %v12628 = vunpack.c.h.b16 %v11771
    %v12629 = vunpack.c.l.b16 %v11772
    %v12630 = vunpack.c.h.b16 %v11772
    %v12631 = vunpack.c.l.b16 %v11773
    %v12632 = vunpack.c.h.b16 %v11773
    %v12633 = vunpack.c.l.b16 %v11774
    %v12634 = vunpack.c.h.b16 %v11774
    %v12635 = vunpack.c.l.b16 %v11775
    %v12636 = vunpack.c.h.b16 %v11775
    %v12637 = vunpack.c.l.b16 %v11776
    %v12638 = vunpack.c.h.b16 %v11776
    %v12639 = vunpack.c.l.b16 %v11777
    %v12640 = vunpack.c.h.b16 %v11777
    %v12641 = vunpack.c.l.b16 %v11778
    %v12642 = vunpack.c.h.b16 %v11778
    %v12643 = vunpack.c.l.b16 %v11779
    %v12644 = vunpack.c.h.b16 %v11779
    %v12645 = vpack.c.b16 %v12075, %v12069
    %v12646 = vpack.c.b16 %v12076, %v12070
    %v12647 = vpack.c.b16 %v12077, %v12071
    %v12648 = vpack.c.b16 %v12078, %v12072
    %v12649 = vpack.c.b16 %v12079, %v12073
    %v12650 = vpack.c.b16 %v12080, %v12074
    %v12651 = vpack.c.b16 %v12087, %v12081
    %v12652 = vpack.c.b16 %v12088, %v12082
    %v12653 = vpack.c.b16 %v12089, %v12083
    %v12654 = vpack.c.b16 %v12090, %v12084
    %v12655 = vpack.c.b16 %v12091, %v12085
    %v12656 = vpack.c.b16 %v12092, %v12086
    %v12657 = vpack.c.b16 %v12099, %v12093
    %v12658 = vpack.c.b16 %v12100, %v12094
    %v12659 = vpack.c.b16 %v12101, %v12095
    %v12660 = vpack.c.b16 %v12102, %v12096
    %v12661 = vpack.c.b16 %v12103, %v12097
    %v12662 = vpack.c.b16 %v12104, %v12098
    %v12663 = vpack.c.b16 %v12111, %v12105
    %v12664 = vpack.c.b16 %v12112, %v12106
    %v12665 = vpack.c.b16 %v12113, %v12107
    %v12666 = vpack.c.b16 %v12114, %v12108
    %v12667 = vpack.c.b16 %v12115, %v12109
    %v12668 = vpack.c.b16 %v12116, %v12110
    %v12669 = vpack.c.b16 %v12123, %v12117
    %v12670 = vpack.c.b16 %v12124, %v12118
    %v12671 = vpack.c.b16 %v12125, %v12119
    %v12672 = vpack.c.b16 %v12126, %v12120
    %v12673 = vpack.c.b16 %v12127, %v12121
    %v12674 = vpack.c.b16 %v12128, %v12122
    %v12675 = vpack.c.b16 %v12135, %v12129
    %v12676 = vpack.c.b16 %v12136, %v12130
    %v12677 = vpack.c.b16 %v12137, %v12131
    %v12678 = vpack.c.b16 %v12138, %v12132
    %v12679 = vpack.c.b16 %v12139, %v12133
    %v12680 = vpack.c.b16 %v12140, %v12134
    %v12681 = vpack.c.b16 %v12147, %v12141
    %v12682 = vpack.c.b16 %v12148, %v12142
    %v12683 = vpack.c.b16 %v12149, %v12143
    %v12684 = vpack.c.b16 %v12150, %v12144
    %v12685 = vpack.c.b16 %v12151, %v12145
    %v12686 = vpack.c.b16 %v12152, %v12146
    %v12687 = vpack.c.b16 %v12159, %v12153
    %v12688 = vpack.c.b16 %v12160, %v12154
    %v12689 = vpack.c.b16 %v12161, %v12155
    %v12690 = vpack.c.b16 %v12162, %v12156
    %v12691 = vpack.c.b16 %v12163, %v12157
    %v12692 = vpack.c.b16 %v12164, %v12158
    %v12693 = vpack.c.b16 %v12171, %v12165
    %v12694 = vpack.c.b16 %v12172, %v12166
    %v12695 = vpack.c.b16 %v12173, %v12167
    %v12696 = vpack.c.b16 %v12174, %v12168
    %v12697 = vpack.c.b16 %v12175, %v12169
    %v12698 = vpack.c.b16 %v12176, %v12170
    %v12699 = vpack.c.b16 %v12183, %v12177
    %v12700 = vpack.c.b16 %v12184, %v12178
    %v12701 = vpack.c.b16 %v12185, %v12179
    %v12702 = vpack.c.b16 %v12186, %v12180
    %v12703 = vpack.c.b16 %v12187, %v12181
    %v12704 = vpack.c.b16 %v12188, %v12182
    %v12705 = vpack.c.b16 %v12195, %v12189
    %v12706 = vpack.c.b16 %v12196, %v12190
    %v12707 = vpack.c.b16 %v12197, %v12191
    %v12708 = vpack.c.b16 %v12198, %v12192
    %v12709 = vpack.c.b16 %v12199, %v12193
    %v12710 = vpack.c.b16 %v12200, %v12194
    %v12711 = vpack.c.b16 %v12207, %v12201
    %v12712 = vpack.c.b16 %v12208, %v12202
    %v12713 = vpack.c.b16 %v12209, %v12203
    %v12714 = vpack.c.b16 %v12210, %v12204
    %v12715 = vpack.c.b16 %v12211, %v12205
    %v12716 = vpack.c.b16 %v12212, %v12206
    %v12717 = vpack.c.b16 %v12219, %v12213
    %v12718 = vpack.c.b16 %v12220, %v12214
    %v12719 = vpack.c.b16 %v12221, %v12215
    %v12720 = vpack.c.b16 %v12222, %v12216
    %v12721 = vpack.c.b16 %v12223, %v12217
    %v12722 = vpack.c.b16 %v12224, %v12218
    %v12723 = vpack.c.b16 %v12231, %v12225
    %v12724 = vpack.c.b16 %v12232, %v12226
    %v12725 = vpack.c.b16 %v12233, %v12227
    %v12726 = vpack.c.b16 %v12234, %v12228
    %v12727 = vpack.c.b16 %v12235, %v12229
    %v12728 = vpack.c.b16 %v12236, %v12230
    %v12729 = vpack.c.b16 %v12243, %v12237
    %v12730 = vpack.c.b16 %v12244, %v12238
    %v12731 = vpack.c.b16 %v12245, %v12239
    %v12732 = vpack.c.b16 %v12246, %v12240
    %v12733 = vpack.c.b16 %v12247, %v12241
    %v12734 = vpack.c.b16 %v12248, %v12242
    %v12735 = vpack.c.b16 %v12255, %v12249
    %v12736 = vpack.c.b16 %v12256, %v12250
    %v12737 = vpack.c.b16 %v12257, %v12251
    %v12738 = vpack.c.b16 %v12258, %v12252
    %v12739 = vpack.c.b16 %v12259, %v12253
    %v12740 = vpack.c.b16 %v12260, %v12254
    %v12741 = vpack.c.b16 %v12267, %v12261
    %v12742 = vpack.c.b16 %v12268, %v12262
    %v12743 = vpack.c.b16 %v12269, %v12263
    %v12744 = vpack.c.b16 %v12270, %v12264
    %v12745 = vpack.c.b16 %v12271, %v12265
    %v12746 = vpack.c.b16 %v12272, %v12266
    %v12747 = vpack.c.b16 %v12279, %v12273
    %v12748 = vpack.c.b16 %v12280, %v12274
    %v12749 = vpack.c.b16 %v12281, %v12275
    %v12750 = vpack.c.b16 %v12282, %v12276
    %v12751 = vpack.c.b16 %v12283, %v12277
    %v12752 = vpack.c.b16 %v12284, %v12278
    %v12753 = vpack.c.b16 %v12291, %v12285
    %v12754 = vpack.c.b16 %v12292, %v12286
    %v12755 = vpack.c.b16 %v12293, %v12287
    %v12756 = vpack.c.b16 %v12294, %v12288
    %v12757 = vpack.c.b16 %v12295, %v12289
    %v12758 = vpack.c.b16 %v12296, %v12290
    %v12759 = vpack.c.b16 %v12303, %v12297
    %v12760 = vpack.c.b16 %v12304, %v12298
    %v12761 = vpack.c.b16 %v12305, %v12299
    %v12762 = vpack.c.b16 %v12306, %v12300
    %v12763 = vpack.c.b16 %v12307, %v12301
    %v12764 = vpack.c.b16 %v12308, %v12302
    %v12765 = vpack.c.b16 %v12315, %v12309
    %v12766 = vpack.c.b16 %v12316, %v12310
    %v12767 = vpack.c.b16 %v12317, %v12311
    %v12768 = vpack.c.b16 %v12318, %v12312
    %v12769 = vpack.c.b16 %v12319, %v12313
    %v12770 = vpack.c.b16 %v12320, %v12314
    %v12771 = vpack.c.b16 %v12327, %v12321
    %v12772 = vpack.c.b16 %v12328, %v12322
    %v12773 = vpack.c.b16 %v12329, %v12323
    %v12774 = vpack.c.b16 %v12330, %v12324
    %v12775 = vpack.c.b16 %v12331, %v12325
    %v12776 = vpack.c.b16 %v12332, %v12326
    %v12777 = vpack.c.b16 %v12339, %v12333
    %v12778 = vpack.c.b16 %v12340, %v12334
    %v12779 = vpack.c.b16 %v12341, %v12335
    %v12780 = vpack.c.b16 %v12342, %v12336
    %v12781 = vpack.c.b16 %v12343, %v12337
    %v12782 = vpack.c.b16 %v12344, %v12338
    %v12783 = vpack.c.b16 %v12351, %v12345
    %v12784 = vpack.c.b16 %v12352, %v12346
    %v12785 = vpack.c.b16 %v12353, %v12347
    %v12786 = vpack.c.b16 %v12354, %v12348
    %v12787 = vpack.c.b16 %v12355, %v12349
    %v12788 = vpack.c.b16 %v12356, %v12350
    %v12789 = vpack.c.b16 %v12363, %v12357
    %v12790 = vpack.c.b16 %v12364, %v12358
    %v12791 = vpack.c.b16 %v12365, %v12359
    %v12792 = vpack.c.b16 %v12366, %v12360
    %v12793 = vpack.c.b16 %v12367, %v12361
    %v12794 = vpack.c.b16 %v12368, %v12362
    %v12795 = vpack.c.b16 %v12375, %v12369
    %v12796 = vpack.c.b16 %v12376, %v12370
    %v12797 = vpack.c.b16 %v12377, %v12371
    %v12798 = vpack.c.b16 %v12378, %v12372
    %v12799 = vpack.c.b16 %v12379, %v12373
    %v12800 = vpack.c.b16 %v12380, %v12374
    %v12801 = vpack.c.b16 %v12387, %v12381
    %v12802 = vpack.c.b16 %v12388, %v12382
    %v12803 = vpack.c.b16 %v12389, %v12383
    %v12804 = vpack.c.b16 %v12390, %v12384
    %v12805 = vpack.c.b16 %v12391, %v12385
    %v12806 = vpack.c.b16 %v12392, %v12386
    %v12807 = vpack.c.b16 %v12399, %v12393
    %v12808 = vpack.c.b16 %v12400, %v12394
    %v12809 = vpack.c.b16 %v12401, %v12395
    %v12810 = vpack.c.b16 %v12402, %v12396
    %v12811 = vpack.c.b16 %v12403, %v12397
    %v12812 = vpack.c.b16 %v12404, %v12398
    %v12813 = vpack.c.b16 %v12411, %v12405
    %v12814 = vpack.c.b16 %v12412, %v12406
    %v12815 = vpack.c.b16 %v12413, %v12407
    %v12816 = vpack.c.b16 %v12414, %v12408
    %v12817 = vpack.c.b16 %v12415, %v12409
    %v12818 = vpack.c.b16 %v12416, %v12410
    %v12819 = vpack.c.b16 %v12423, %v12417
    %v12820 = vpack.c.b16 %v12424, %v12418
    %v12821 = vpack.c.b16 %v12425, %v12419
    %v12822 = vpack.c.b16 %v12426, %v12420
    %v12823 = vpack.c.b16 %v12427, %v12421
    %v12824 = vpack.c.b16 %v12428, %v12422
    %v12825 = vpack.c.b16 %v12435, %v12429
    %v12826 = vpack.c.b16 %v12436, %v12430
    %v12827 = vpack.c.b16 %v12437, %v12431
    %v12828 = vpack.c.b16 %v12438, %v12432
    %v12829 = vpack.c.b16 %v12439, %v12433
    %v12830 = vpack.c.b16 %v12440, %v12434
    %v12831 = vpack.c.b16 %v12447, %v12441
    %v12832 = vpack.c.b16 %v12448, %v12442
    %v12833 = vpack.c.b16 %v12449, %v12443
    %v12834 = vpack.c.b16 %v12450, %v12444
    %v12835 = vpack.c.b16 %v12451, %v12445
    %v12836 = vpack.c.b16 %v12452, %v12446
    %v12837 = vpack.c.b16 %v12459, %v12453
    %v12838 = vpack.c.b16 %v12460, %v12454
    %v12839 = vpack.c.b16 %v12461, %v12455
    %v12840 = vpack.c.b16 %v12462, %v12456
    %v12841 = vpack.c.b16 %v12463, %v12457
    %v12842 = vpack.c.b16 %v12464, %v12458
    %v12843 = vpack.c.b16 %v12471, %v12465
    %v12844 = vpack.c.b16 %v12472, %v12466
    %v12845 = vpack.c.b16 %v12473, %v12467
    %v12846 = vpack.c.b16 %v12474, %v12468
    %v12847 = vpack.c.b16 %v12475, %v12469
    %v12848 = vpack.c.b16 %v12476, %v12470
    %v12849 = vpack.c.b16 %v12483, %v12477
    %v12850 = vpack.c.b16 %v12484, %v12478
    %v12851 = vpack.c.b16 %v12485, %v12479
    %v12852 = vpack.c.b16 %v12486, %v12480
    %v12853 = vpack.c.b16 %v12487, %v12481
    %v12854 = vpack.c.b16 %v12488, %v12482
    %v12855 = vpack.c.b16 %v12495, %v12489
    %v12856 = vpack.c.b16 %v12496, %v12490
    %v12857 = vpack.c.b16 %v12497, %v12491
    %v12858 = vpack.c.b16 %v12498, %v12492
    %v12859 = vpack.c.b16 %v12499, %v12493
    %v12860 = vpack.c.b16 %v12500, %v12494
    %v12861 = vpack.c.b16 %v12507, %v12501
    %v12862 = vpack.c.b16 %v12508, %v12502
    %v12863 = vpack.c.b16 %v12509, %v12503
    %v12864 = vpack.c.b16 %v12510, %v12504
    %v12865 = vpack.c.b16 %v12511, %v12505
    %v12866 = vpack.c.b16 %v12512, %v12506
    %v12867 = vpack.c.b16 %v12519, %v12513
    %v12868 = vpack.c.b16 %v12520, %v12514
    %v12869 = vpack.c.b16 %v12521, %v12515
    %v12870 = vpack.c.b16 %v12522, %v12516
    %v12871 = vpack.c.b16 %v12523, %v12517
    %v12872 = vpack.c.b16 %v12524, %v12518
    %v12873 = vpack.c.b16 %v12531, %v12525
    %v12874 = vpack.c.b16 %v12532, %v12526
    %v12875 = vpack.c.b16 %v12533, %v12527
    %v12876 = vpack.c.b16 %v12534, %v12528
    %v12877 = vpack.c.b16 %v12535, %v12529
    %v12878 = vpack.c.b16 %v12536, %v12530
    %v12879 = vpack.c.b16 %v12543, %v12537
    %v12880 = vpack.c.b16 %v12544, %v12538
    %v12881 = vpack.c.b16 %v12545, %v12539
    %v12882 = vpack.c.b16 %v12546, %v12540
    %v12883 = vpack.c.b16 %v12547, %v12541
    %v12884 = vpack.c.b16 %v12548, %v12542
    %v12885 = vpack.c.b16 %v12555, %v12549
    %v12886 = vpack.c.b16 %v12556, %v12550
    %v12887 = vpack.c.b16 %v12557, %v12551
    %v12888 = vpack.c.b16 %v12558, %v12552
    %v12889 = vpack.c.b16 %v12559, %v12553
    %v12890 = vpack.c.b16 %v12560, %v12554
    %v12891 = vpack.c.b16 %v12567, %v12561
    %v12892 = vpack.c.b16 %v12568, %v12562
    %v12893 = vpack.c.b16 %v12569, %v12563
    %v12894 = vpack.c.b16 %v12570, %v12564
    %v12895 = vpack.c.b16 %v12571, %v12565
    %v12896 = vpack.c.b16 %v12572, %v12566
    %v12897 = vpack.c.b16 %v12579, %v12573
    %v12898 = vpack.c.b16 %v12580, %v12574
    %v12899 = vpack.c.b16 %v12581, %v12575
    %v12900 = vpack.c.b16 %v12582, %v12576
    %v12901 = vpack.c.b16 %v12583, %v12577
    %v12902 = vpack.c.b16 %v12584, %v12578
    %v12903 = vpack.c.b16 %v12591, %v12585
    %v12904 = vpack.c.b16 %v12592, %v12586
    %v12905 = vpack.c.b16 %v12593, %v12587
    %v12906 = vpack.c.b16 %v12594, %v12588
    %v12907 = vpack.c.b16 %v12595, %v12589
    %v12908 = vpack.c.b16 %v12596, %v12590
    %v12909 = vpack.c.b16 %v12603, %v12597
    %v12910 = vpack.c.b16 %v12604, %v12598
    %v12911 = vpack.c.b16 %v12605, %v12599
    %v12912 = vpack.c.b16 %v12606, %v12600
    %v12913 = vpack.c.b16 %v12607, %v12601
    %v12914 = vpack.c.b16 %v12608, %v12602
    %v12915 = vpack.c.b16 %v12615, %v12609
    %v12916 = vpack.c.b16 %v12616, %v12610
    %v12917 = vpack.c.b16 %v12617, %v12611
    %v12918 = vpack.c.b16 %v12618, %v12612
    %v12919 = vpack.c.b16 %v12619, %v12613
    %v12920 = vpack.c.b16 %v12620, %v12614
    %v12921 = vpack.c.b16 %v12627, %v12621
    %v12922 = vpack.c.b16 %v12628, %v12622
    %v12923 = vpack.c.b16 %v12629, %v12623
    %v12924 = vpack.c.b16 %v12630, %v12624
    %v12925 = vpack.c.b16 %v12631, %v12625
    %v12926 = vpack.c.b16 %v12632, %v12626
    %v12927 = vpack.c.b16 %v12639, %v12633
    %v12928 = vpack.c.b16 %v12640, %v12634
    %v12929 = vpack.c.b16 %v12641, %v12635
    %v12930 = vpack.c.b16 %v12642, %v12636
    %v12931 = vpack.c.b16 %v12643, %v12637
    %v12932 = vpack.c.b16 %v12644, %v12638
    %v13222 = vlaneseq
    %v13223 = vshrl.u32 %v13222, 7
    %v13224 = vsub.s32 0, %v13223
    %v13225 = vrot.slane %v11780, %v13224
    %v13226 = vlaneseq
    %v13227 = vshrl.u32 %v13226, 7
    %v13228 = vsub.s32 1, %v13227
    %v13229 = vrot.slane %v11780, %v13228
    %v13230 = vlaneseq
    %v13231 = vshrl.u32 %v13230, 7
    %v13232 = vsub.s32 2, %v13231
    %v13233 = vrot.slane %v11780, %v13232
    %v13234 = vlaneseq
    %v13235 = vshrl.u32 %v13234, 7
    %v13236 = vsub.s32 3, %v13235
    %v13237 = vrot.slane %v11780, %v13236
    %v13238 = vlaneseq
    %v13239 = vshrl.u32 %v13238, 7
    %v13240 = vsub.s32 4, %v13239
    %v13241 = vrot.slane %v11780, %v13240
    %v13242 = vlaneseq
    %v13243 = vshrl.u32 %v13242, 7
    %v13244 = vsub.s32 5, %v13243
    %v13245 = vrot.slane %v11780, %v13244
    %13252 = vmatprep.subr.bf16.mxu0 %v12646
    %13253 = vmatpush1.bf16.msra.mxu0 %v12645
    %13254 = vmatprep.subr.bf16.mxu0 %v12652
    %13255 = vmatpush1.bf16.msra.mxu0 %v12651
    %13256 = vmatprep.subr.bf16.mxu0 %v12658
    %13257 = vmatpush1.bf16.msra.mxu0 %v12657
    %13258 = vmatprep.subr.bf16.mxu0 %v12664
    %13259 = vmatpush1.bf16.msra.mxu0 %v12663
    %13260 = vmatprep.subr.bf16.mxu0 %v12670
    %13261 = vmatpush1.bf16.msra.mxu0 %v12669
    %13262 = vmatprep.subr.bf16.mxu0 %v12676
    %13263 = vmatpush1.bf16.msra.mxu0 %v12675
    %13264 = vmatprep.subr.bf16.mxu0 %v12682
    %13265 = vmatpush1.bf16.msra.mxu0 %v12681
    %13266 = vmatprep.subr.bf16.mxu0 %v12688
    %13267 = vmatpush1.bf16.msra.mxu0 %v12687
    %13268 = vmatprep.subr.bf16.mxu0 %v12694
    %13269 = vmatpush1.bf16.msra.mxu0 %v12693
    %13270 = vmatprep.subr.bf16.mxu0 %v12700
    %13271 = vmatpush1.bf16.msra.mxu0 %v12699
    %13272 = vmatprep.subr.bf16.mxu0 %v12706
    %13273 = vmatpush1.bf16.msra.mxu0 %v12705
    %13274 = vmatprep.subr.bf16.mxu0 %v12712
    %13275 = vmatpush1.bf16.msra.mxu0 %v12711
    %13276 = vmatprep.subr.bf16.mxu0 %v12718
    %13277 = vmatpush1.bf16.msra.mxu0 %v12717
    %13278 = vmatprep.subr.bf16.mxu0 %v12724
    %13279 = vmatpush1.bf16.msra.mxu0 %v12723
    %13280 = vmatprep.subr.bf16.mxu0 %v12730
    %13281 = vmatpush1.bf16.msra.mxu0 %v12729
    %13282 = vmatprep.subr.bf16.mxu0 %v12736
    %13283 = vmatpush1.bf16.msra.mxu0 %v12735
    %13284 = vmatprep.mubr.bf16.mxu0 %v11487
    %13285 = vmatmul.mubr.bf16.gmra.mrb[0].mxu0 %v11486
    %v13286 = vpop.f32.mrb[0].mxu0
    %v13287 = vadd.f32 %v13225, %v13286
    %v13288 = vpop.f32.mrb[0].mxu0
    %v13289 = vadd.f32 %v13229, %v13288
    %v13290 = vpop.f32.mrb[0].mxu0
    %v13291 = vpop.f32.mrb[0].mxu0
    %13292 = vdwg.mxu0
    %13293 = vmatprep.subr.bf16.mxu0 %v12742
    %13294 = vmatpush1.bf16.msra.mxu0 %v12741
    %13295 = vmatprep.subr.bf16.mxu0 %v12748
    %13296 = vmatpush1.bf16.msra.mxu0 %v12747
    %13297 = vmatprep.subr.bf16.mxu0 %v12754
    %13298 = vmatpush1.bf16.msra.mxu0 %v12753
    %13299 = vmatprep.subr.bf16.mxu0 %v12760
    %13300 = vmatpush1.bf16.msra.mxu0 %v12759
    %13301 = vmatprep.subr.bf16.mxu0 %v12766
    %13302 = vmatpush1.bf16.msra.mxu0 %v12765
    %13303 = vmatprep.subr.bf16.mxu0 %v12772
    %13304 = vmatpush1.bf16.msra.mxu0 %v12771
    %13305 = vmatprep.subr.bf16.mxu0 %v12778
    %13306 = vmatpush1.bf16.msra.mxu0 %v12777
    %13307 = vmatprep.subr.bf16.mxu0 %v12784
    %13308 = vmatpush1.bf16.msra.mxu0 %v12783
    %13309 = vmatprep.subr.bf16.mxu0 %v12790
    %13310 = vmatpush1.bf16.msra.mxu0 %v12789
    %13311 = vmatprep.subr.bf16.mxu0 %v12796
    %13312 = vmatpush1.bf16.msra.mxu0 %v12795
    %13313 = vmatprep.subr.bf16.mxu0 %v12802
    %13314 = vmatpush1.bf16.msra.mxu0 %v12801
    %13315 = vmatprep.subr.bf16.mxu0 %v12808
    %13316 = vmatpush1.bf16.msra.mxu0 %v12807
    %13317 = vmatprep.subr.bf16.mxu0 %v12814
    %13318 = vmatpush1.bf16.msra.mxu0 %v12813
    %13319 = vmatprep.subr.bf16.mxu0 %v12820
    %13320 = vmatpush1.bf16.msra.mxu0 %v12819
    %13321 = vmatprep.subr.bf16.mxu0 %v12826
    %13322 = vmatpush1.bf16.msra.mxu0 %v12825
    %13323 = vmatprep.subr.bf16.mxu0 %v12832
    %13324 = vmatpush1.bf16.msra.mxu0 %v12831
    %13325 = vmatprep.mubr.bf16.mxu0 %v11489
    %13326 = vmatmul.mubr.bf16.gmra.mrb[0].mxu0 %v11488
    %v13327 = vpop.f32.mrb[0].mxu0
    %v13328 = vadd.f32 %v13287, %v13327
    %v13329 = vpop.f32.mrb[0].mxu0
    %v13330 = vadd.f32 %v13289, %v13329
    %v13331 = vpop.f32.mrb[0].mxu0
    %v13332 = vpop.f32.mrb[0].mxu0
    %13333 = vdwg.mxu0
    %13334 = vmatprep.subr.bf16.mxu0 %v12838
    %13335 = vmatpush1.bf16.msra.mxu0 %v12837
    %13336 = vmatprep.subr.bf16.mxu0 %v12844
    %13337 = vmatpush1.bf16.msra.mxu0 %v12843
    %13338 = vmatprep.subr.bf16.mxu0 %v12850
    %13339 = vmatpush1.bf16.msra.mxu0 %v12849
    %13340 = vmatprep.subr.bf16.mxu0 %v12856
    %13341 = vmatpush1.bf16.msra.mxu0 %v12855
    %13342 = vmatprep.subr.bf16.mxu0 %v12862
    %13343 = vmatpush1.bf16.msra.mxu0 %v12861
    %13344 = vmatprep.subr.bf16.mxu0 %v12868
    %13345 = vmatpush1.bf16.msra.mxu0 %v12867
    %13346 = vmatprep.subr.bf16.mxu0 %v12874
    %13347 = vmatpush1.bf16.msra.mxu0 %v12873
    %13348 = vmatprep.subr.bf16.mxu0 %v12880
    %13349 = vmatpush1.bf16.msra.mxu0 %v12879
    %13350 = vmatprep.subr.bf16.mxu0 %v12886
    %13351 = vmatpush1.bf16.msra.mxu0 %v12885
    %13352 = vmatprep.subr.bf16.mxu0 %v12892
    %13353 = vmatpush1.bf16.msra.mxu0 %v12891
    %13354 = vmatprep.subr.bf16.mxu0 %v12898
    %13355 = vmatpush1.bf16.msra.mxu0 %v12897
    %13356 = vmatprep.subr.bf16.mxu0 %v12904
    %13357 = vmatpush1.bf16.msra.mxu0 %v12903
    %13358 = vmatprep.subr.bf16.mxu0 %v12910
    %13359 = vmatpush1.bf16.msra.mxu0 %v12909
    %13360 = vmatprep.subr.bf16.mxu0 %v12916
    %13361 = vmatpush1.bf16.msra.mxu0 %v12915
    %13362 = vmatprep.subr.bf16.mxu0 %v12922
    %13363 = vmatpush1.bf16.msra.mxu0 %v12921
    %13364 = vmatprep.subr.bf16.mxu0 %v12928
    %13365 = vmatpush1.bf16.msra.mxu0 %v12927
    %13366 = vmatprep.mubr.bf16.mxu0 %v11491
    %13367 = vmatmul.mubr.bf16.gmra.mrb[0].mxu0 %v11490
    %v13368 = vpop.f32.mrb[0].mxu0
    %v13369 = vadd.f32 %v13328, %v13368
    %v13370 = vpop.f32.mrb[0].mxu0
    %v13371 = vadd.f32 %v13330, %v13370
    %v13372 = vpop.f32.mrb[0].mxu0
    %v13373 = vpop.f32.mrb[0].mxu0
    %13374 = vdwg.mxu0
    %13375 = vmatprep.subr.bf16.mxu0 %v12648
    %13376 = vmatpush1.bf16.msra.mxu0 %v12647
    %13377 = vmatprep.subr.bf16.mxu0 %v12654
    %13378 = vmatpush1.bf16.msra.mxu0 %v12653
    %13379 = vmatprep.subr.bf16.mxu0 %v12660
    %13380 = vmatpush1.bf16.msra.mxu0 %v12659
    %13381 = vmatprep.subr.bf16.mxu0 %v12666
    %13382 = vmatpush1.bf16.msra.mxu0 %v12665
    %13383 = vmatprep.subr.bf16.mxu0 %v12672
    %13384 = vmatpush1.bf16.msra.mxu0 %v12671
    %13385 = vmatprep.subr.bf16.mxu0 %v12678
    %13386 = vmatpush1.bf16.msra.mxu0 %v12677
    %13387 = vmatprep.subr.bf16.mxu0 %v12684
    %13388 = vmatpush1.bf16.msra.mxu0 %v12683
    %13389 = vmatprep.subr.bf16.mxu0 %v12690
    %13390 = vmatpush1.bf16.msra.mxu0 %v12689
    %13391 = vmatprep.subr.bf16.mxu0 %v12696
    %13392 = vmatpush1.bf16.msra.mxu0 %v12695
    %13393 = vmatprep.subr.bf16.mxu0 %v12702
    %13394 = vmatpush1.bf16.msra.mxu0 %v12701
    %13395 = vmatprep.subr.bf16.mxu0 %v12708
    %13396 = vmatpush1.bf16.msra.mxu0 %v12707
    %13397 = vmatprep.subr.bf16.mxu0 %v12714
    %13398 = vmatpush1.bf16.msra.mxu0 %v12713
    %13399 = vmatprep.subr.bf16.mxu0 %v12720
    %13400 = vmatpush1.bf16.msra.mxu0 %v12719
    %13401 = vmatprep.subr.bf16.mxu0 %v12726
    %13402 = vmatpush1.bf16.msra.mxu0 %v12725
    %13403 = vmatprep.subr.bf16.mxu0 %v12732
    %13404 = vmatpush1.bf16.msra.mxu0 %v12731
    %13405 = vmatprep.subr.bf16.mxu0 %v12738
    %13406 = vmatpush1.bf16.msra.mxu0 %v12737
    %13407 = vmatprep.mubr.bf16.mxu0 %v11487
    %13408 = vmatmul.mubr.bf16.gmra.mrb[0].mxu0 %v11486
    %v13409 = vpop.f32.mrb[0].mxu0
    %v13410 = vadd.f32 %v13233, %v13409
    %v13411 = vpop.f32.mrb[0].mxu0
    %v13412 = vadd.f32 %v13237, %v13411
    %v13413 = vpop.f32.mrb[0].mxu0
    %v13414 = vpop.f32.mrb[0].mxu0
    %13415 = vdwg.mxu0
    %13416 = vmatprep.subr.bf16.mxu0 %v12744
    %13417 = vmatpush1.bf16.msra.mxu0 %v12743
    %13418 = vmatprep.subr.bf16.mxu0 %v12750
    %13419 = vmatpush1.bf16.msra.mxu0 %v12749
    %13420 = vmatprep.subr.bf16.mxu0 %v12756
    %13421 = vmatpush1.bf16.msra.mxu0 %v12755
    %13422 = vmatprep.subr.bf16.mxu0 %v12762
    %13423 = vmatpush1.bf16.msra.mxu0 %v12761
    %13424 = vmatprep.subr.bf16.mxu0 %v12768
    %13425 = vmatpush1.bf16.msra.mxu0 %v12767
    %13426 = vmatprep.subr.bf16.mxu0 %v12774
    %13427 = vmatpush1.bf16.msra.mxu0 %v12773
    %13428 = vmatprep.subr.bf16.mxu0 %v12780
    %13429 = vmatpush1.bf16.msra.mxu0 %v12779
    %13430 = vmatprep.subr.bf16.mxu0 %v12786
    %13431 = vmatpush1.bf16.msra.mxu0 %v12785
    %13432 = vmatprep.subr.bf16.mxu0 %v12792
    %13433 = vmatpush1.bf16.msra.mxu0 %v12791
    %13434 = vmatprep.subr.bf16.mxu0 %v12798
    %13435 = vmatpush1.bf16.msra.mxu0 %v12797
    %13436 = vmatprep.subr.bf16.mxu0 %v12804
    %13437 = vmatpush1.bf16.msra.mxu0 %v12803
    %13438 = vmatprep.subr.bf16.mxu0 %v12810
    %13439 = vmatpush1.bf16.msra.mxu0 %v12809
    %13440 = vmatprep.subr.bf16.mxu0 %v12816
    %13441 = vmatpush1.bf16.msra.mxu0 %v12815
    %13442 = vmatprep.subr.bf16.mxu0 %v12822
    %13443 = vmatpush1.bf16.msra.mxu0 %v12821
    %13444 = vmatprep.subr.bf16.mxu0 %v12828
    %13445 = vmatpush1.bf16.msra.mxu0 %v12827
    %13446 = vmatprep.subr.bf16.mxu0 %v12834
    %13447 = vmatpush1.bf16.msra.mxu0 %v12833
    %13448 = vmatprep.mubr.bf16.mxu0 %v11489
    %13449 = vmatmul.mubr.bf16.gmra.mrb[0].mxu0 %v11488
    %v13450 = vpop.f32.mrb[0].mxu0
    %v13451 = vadd.f32 %v13410, %v13450
    %v13452 = vpop.f32.mrb[0].mxu0
    %v13453 = vadd.f32 %v13412, %v13452
    %v13454 = vpop.f32.mrb[0].mxu0
    %v13455 = vpop.f32.mrb[0].mxu0
    %13456 = vdwg.mxu0
    %13457 = vmatprep.subr.bf16.mxu0 %v12840
    %13458 = vmatpush1.bf16.msra.mxu0 %v12839
    %13459 = vmatprep.subr.bf16.mxu0 %v12846
    %13460 = vmatpush1.bf16.msra.mxu0 %v12845
    %13461 = vmatprep.subr.bf16.mxu0 %v12852
    %13462 = vmatpush1.bf16.msra.mxu0 %v12851
    %13463 = vmatprep.subr.bf16.mxu0 %v12858
    %13464 = vmatpush1.bf16.msra.mxu0 %v12857
    %13465 = vmatprep.subr.bf16.mxu0 %v12864
    %13466 = vmatpush1.bf16.msra.mxu0 %v12863
    %13467 = vmatprep.subr.bf16.mxu0 %v12870
    %13468 = vmatpush1.bf16.msra.mxu0 %v12869
    %13469 = vmatprep.subr.bf16.mxu0 %v12876
    %13470 = vmatpush1.bf16.msra.mxu0 %v12875
    %13471 = vmatprep.subr.bf16.mxu0 %v12882
    %13472 = vmatpush1.bf16.msra.mxu0 %v12881
    %13473 = vmatprep.subr.bf16.mxu0 %v12888
    %13474 = vmatpush1.bf16.msra.mxu0 %v12887
    %13475 = vmatprep.subr.bf16.mxu0 %v12894
    %13476 = vmatpush1.bf16.msra.mxu0 %v12893
    %13477 = vmatprep.subr.bf16.mxu0 %v12900
    %13478 = vmatpush1.bf16.msra.mxu0 %v12899
    %13479 = vmatprep.subr.bf16.mxu0 %v12906
    %13480 = vmatpush1.bf16.msra.mxu0 %v12905
    %13481 = vmatprep.subr.bf16.mxu0 %v12912
    %13482 = vmatpush1.bf16.msra.mxu0 %v12911
    %13483 = vmatprep.subr.bf16.mxu0 %v12918
    %13484 = vmatpush1.bf16.msra.mxu0 %v12917
    %13485 = vmatprep.subr.bf16.mxu0 %v12924
    %13486 = vmatpush1.bf16.msra.mxu0 %v12923
    %13487 = vmatprep.subr.bf16.mxu0 %v12930
    %13488 = vmatpush1.bf16.msra.mxu0 %v12929
    %13489 = vmatprep.mubr.bf16.mxu0 %v11491
    %13490 = vmatmul.mubr.bf16.gmra.mrb[0].mxu0 %v11490
    %v13491 = vpop.f32.mrb[0].mxu0
    %v13492 = vadd.f32 %v13451, %v13491
    %v13493 = vpop.f32.mrb[0].mxu0
    %v13494 = vadd.f32 %v13453, %v13493
    %v13495 = vpop.f32.mrb[0].mxu0
    %v13496 = vpop.f32.mrb[0].mxu0
    %13497 = vdwg.mxu0
    %13498 = vmatprep.subr.bf16.mxu0 %v12650
    %13499 = vmatpush1.bf16.msra.mxu0 %v12649
    %13500 = vmatprep.subr.bf16.mxu0 %v12656
    %13501 = vmatpush1.bf16.msra.mxu0 %v12655
    %13502 = vmatprep.subr.bf16.mxu0 %v12662
    %13503 = vmatpush1.bf16.msra.mxu0 %v12661
    %13504 = vmatprep.subr.bf16.mxu0 %v12668
    %13505 = vmatpush1.bf16.msra.mxu0 %v12667
    %13506 = vmatprep.subr.bf16.mxu0 %v12674
    %13507 = vmatpush1.bf16.msra.mxu0 %v12673
    %13508 = vmatprep.subr.bf16.mxu0 %v12680
    %13509 = vmatpush1.bf16.msra.mxu0 %v12679
    %13510 = vmatprep.subr.bf16.mxu0 %v12686
    %13511 = vmatpush1.bf16.msra.mxu0 %v12685
    %13512 = vmatprep.subr.bf16.mxu0 %v12692
    %13513 = vmatpush1.bf16.msra.mxu0 %v12691
    %13514 = vmatprep.subr.bf16.mxu0 %v12698
    %13515 = vmatpush1.bf16.msra.mxu0 %v12697
    %13516 = vmatprep.subr.bf16.mxu0 %v12704
    %13517 = vmatpush1.bf16.msra.mxu0 %v12703
    %13518 = vmatprep.subr.bf16.mxu0 %v12710
    %13519 = vmatpush1.bf16.msra.mxu0 %v12709
    %13520 = vmatprep.subr.bf16.mxu0 %v12716
    %13521 = vmatpush1.bf16.msra.mxu0 %v12715
    %13522 = vmatprep.subr.bf16.mxu0 %v12722
    %13523 = vmatpush1.bf16.msra.mxu0 %v12721
    %13524 = vmatprep.subr.bf16.mxu0 %v12728
    %13525 = vmatpush1.bf16.msra.mxu0 %v12727
    %13526 = vmatprep.subr.bf16.mxu0 %v12734
    %13527 = vmatpush1.bf16.msra.mxu0 %v12733
    %13528 = vmatprep.subr.bf16.mxu0 %v12740
    %13529 = vmatpush1.bf16.msra.mxu0 %v12739
    %13530 = vmatprep.mubr.bf16.mxu0 %v11487
    %13531 = vmatmul.mubr.bf16.gmra.mrb[0].mxu0 %v11486
    %v13532 = vpop.f32.mrb[0].mxu0
    %v13533 = vadd.f32 %v13241, %v13532
    %v13534 = vpop.f32.mrb[0].mxu0
    %v13535 = vadd.f32 %v13245, %v13534
    %v13536 = vpop.f32.mrb[0].mxu0
    %v13537 = vpop.f32.mrb[0].mxu0
    %13538 = vdwg.mxu0
    %13539 = vmatprep.subr.bf16.mxu0 %v12746
    %13540 = vmatpush1.bf16.msra.mxu0 %v12745
    %13541 = vmatprep.subr.bf16.mxu0 %v12752
    %13542 = vmatpush1.bf16.msra.mxu0 %v12751
    %13543 = vmatprep.subr.bf16.mxu0 %v12758
    %13544 = vmatpush1.bf16.msra.mxu0 %v12757
    %13545 = vmatprep.subr.bf16.mxu0 %v12764
    %13546 = vmatpush1.bf16.msra.mxu0 %v12763
    %13547 = vmatprep.subr.bf16.mxu0 %v12770
    %13548 = vmatpush1.bf16.msra.mxu0 %v12769
    %13549 = vmatprep.subr.bf16.mxu0 %v12776
    %13550 = vmatpush1.bf16.msra.mxu0 %v12775
    %13551 = vmatprep.subr.bf16.mxu0 %v12782
    %13552 = vmatpush1.bf16.msra.mxu0 %v12781
    %13553 = vmatprep.subr.bf16.mxu0 %v12788
    %13554 = vmatpush1.bf16.msra.mxu0 %v12787
    %13555 = vmatprep.subr.bf16.mxu0 %v12794
    %13556 = vmatpush1.bf16.msra.mxu0 %v12793
    %13557 = vmatprep.subr.bf16.mxu0 %v12800
    %13558 = vmatpush1.bf16.msra.mxu0 %v12799
    %13559 = vmatprep.subr.bf16.mxu0 %v12806
    %13560 = vmatpush1.bf16.msra.mxu0 %v12805
    %13561 = vmatprep.subr.bf16.mxu0 %v12812
    %13562 = vmatpush1.bf16.msra.mxu0 %v12811
    %13563 = vmatprep.subr.bf16.mxu0 %v12818
    %13564 = vmatpush1.bf16.msra.mxu0 %v12817
    %13565 = vmatprep.subr.bf16.mxu0 %v12824
    %13566 = vmatpush1.bf16.msra.mxu0 %v12823
    %13567 = vmatprep.subr.bf16.mxu0 %v12830
    %13568 = vmatpush1.bf16.msra.mxu0 %v12829
    %13569 = vmatprep.subr.bf16.mxu0 %v12836
    %13570 = vmatpush1.bf16.msra.mxu0 %v12835
    %13571 = vmatprep.mubr.bf16.mxu0 %v11489
    %13572 = vmatmul.mubr.bf16.gmra.mrb[0].mxu0 %v11488
    %v13573 = vpop.f32.mrb[0].mxu0
    %v13574 = vadd.f32 %v13533, %v13573
    %v13575 = vpop.f32.mrb[0].mxu0
    %v13576 = vadd.f32 %v13535, %v13575
    %v13577 = vpop.f32.mrb[0].mxu0
    %v13578 = vpop.f32.mrb[0].mxu0
    %13579 = vdwg.mxu0
    %13580 = vmatprep.subr.bf16.mxu0 %v12842
    %13581 = vmatpush1.bf16.msra.mxu0 %v12841
    %13582 = vmatprep.subr.bf16.mxu0 %v12848
    %13583 = vmatpush1.bf16.msra.mxu0 %v12847
    %13584 = vmatprep.subr.bf16.mxu0 %v12854
    %13585 = vmatpush1.bf16.msra.mxu0 %v12853
    %13586 = vmatprep.subr.bf16.mxu0 %v12860
    %13587 = vmatpush1.bf16.msra.mxu0 %v12859
    %13588 = vmatprep.subr.bf16.mxu0 %v12866
    %13589 = vmatpush1.bf16.msra.mxu0 %v12865
    %13590 = vmatprep.subr.bf16.mxu0 %v12872
    %13591 = vmatpush1.bf16.msra.mxu0 %v12871
    %13592 = vmatprep.subr.bf16.mxu0 %v12878
    %13593 = vmatpush1.bf16.msra.mxu0 %v12877
    %13594 = vmatprep.subr.bf16.mxu0 %v12884
    %13595 = vmatpush1.bf16.msra.mxu0 %v12883
    %13596 = vmatprep.subr.bf16.mxu0 %v12890
    %13597 = vmatpush1.bf16.msra.mxu0 %v12889
    %13598 = vmatprep.subr.bf16.mxu0 %v12896
    %13599 = vmatpush1.bf16.msra.mxu0 %v12895
    %13600 = vmatprep.subr.bf16.mxu0 %v12902
    %13601 = vmatpush1.bf16.msra.mxu0 %v12901
    %13602 = vmatprep.subr.bf16.mxu0 %v12908
    %13603 = vmatpush1.bf16.msra.mxu0 %v12907
    %13604 = vmatprep.subr.bf16.mxu0 %v12914
    %13605 = vmatpush1.bf16.msra.mxu0 %v12913
    %13606 = vmatprep.subr.bf16.mxu0 %v12920
    %13607 = vmatpush1.bf16.msra.mxu0 %v12919
    %13608 = vmatprep.subr.bf16.mxu0 %v12926
    %13609 = vmatpush1.bf16.msra.mxu0 %v12925
    %13610 = vmatprep.subr.bf16.mxu0 %v12932
    %13611 = vmatpush1.bf16.msra.mxu0 %v12931
    %13612 = vmatprep.mubr.bf16.mxu0 %v11491
    %13613 = vmatmul.mubr.bf16.gmra.mrb[0].mxu0 %v11490
    %v13614 = vpop.f32.mrb[0].mxu0
    %v13615 = vadd.f32 %v13574, %v13614
    %v13616 = vpop.f32.mrb[0].mxu0
    %v13617 = vadd.f32 %v13576, %v13616
    %v13618 = vpop.f32.mrb[0].mxu0
    %v13619 = vpop.f32.mrb[0].mxu0
    %13620 = vdwg.mxu0
    %v13621 = vld [vmem:[%s0] sm:$0xff]
    %v13622 = vld [vmem:[%s0 + $0x8] sm:$0xff]
    %v13623 = vld [vmem:[%s1] sm:$0xff]
    %v13624 = vld [vmem:[%s1 + $0x8] sm:$0xff]
    %v13625 = vld [vmem:[%s1 + $0x10] sm:$0xff]
    %v13626 = vld [vmem:[%s1 + $0x18] sm:$0xff]
    %v13627 = vld [vmem:[%s1 + $0x20] sm:$0xff]
    %v13628 = vld [vmem:[%s1 + $0x28] sm:$0xff]
    %v13629 = vld [vmem:[%s1 + $0x30] sm:$0xff]
    %v13630 = vld [vmem:[%s1 + $0x38] sm:$0xff]
    %v13631 = vld [vmem:[%s1 + $0x40] sm:$0xff]
    %v13632 = vld [vmem:[%s1 + $0x48] sm:$0xff]
    %v13633 = vld [vmem:[%s1 + $0x50] sm:$0xff]
    %v13634 = vld [vmem:[%s1 + $0x58] sm:$0xff]
    %vm13635 = vcmp.eq.s32.totalorder %v13621, 5
    %vm13636 = vcmp.eq.s32.totalorder %v13622, 5
    %v13637 = vsel %vm13635, 1, 0
    %v13638 = vsel %vm13636, 1, 0
    %13639 = vset.pattern.permute.xlu0 0
    %13640 = vperm.xlu0 %13639, %v13637
    %v13641 = vpop.permute.xlu0 %13640
    %13642 = vset.pattern.permute.xlu0 0
    %13643 = vperm.xlu0 %13642, %v13638
    %v13644 = vpop.permute.xlu0 %13643
    %vm13645 = vcmp.eq.s32.totalorder %v13641, 1
    %vm13646 = vcmp.eq.s32.totalorder %v13644, 1
    %v13647 = vlaneseq
    %v13648 = vshrl.u32 %v13647, 7
    %v13649 = vsub.s32 0, %v13648
    %v13650 = vrot.slane %v10963, %v13649
    %v13651 = vlaneseq
    %v13652 = vshrl.u32 %v13651, 7
    %v13653 = vsub.s32 0, %v13652
    %v13654 = vrot.slane %v10965, %v13653
    %v13655 = vlaneseq
    %v13656 = vshrl.u32 %v13655, 7
    %v13657 = vsub.s32 0, %v13656
    %v13658 = vrot.slane %v11086, %v13657
    %v13659 = vlaneseq
    %v13660 = vshrl.u32 %v13659, 7
    %v13661 = vsub.s32 0, %v13660
    %v13662 = vrot.slane %v11088, %v13661
    %v13663 = vlaneseq
    %v13664 = vshrl.u32 %v13663, 7
    %v13665 = vsub.s32 0, %v13664
    %v13666 = vrot.slane %v11209, %v13665
    %v13667 = vlaneseq
    %v13668 = vshrl.u32 %v13667, 7
    %v13669 = vsub.s32 0, %v13668
    %v13670 = vrot.slane %v11211, %v13669
    %v13671 = vsel %vm13645, %v13650, %v13623
    %v13672 = vsel %vm13645, %v13654, %v13624
    %v13673 = vsel %vm13645, %v13658, %v13625
    %v13674 = vsel %vm13645, %v13662, %v13626
    %v13675 = vsel %vm13645, %v13666, %v13627
    %v13676 = vsel %vm13645, %v13670, %v13628
    %v13677 = vsel %vm13646, %v13650, %v13629
    %v13678 = vsel %vm13646, %v13654, %v13630
    %v13679 = vsel %vm13646, %v13658, %v13631
    %v13680 = vsel %vm13646, %v13662, %v13632
    %v13681 = vsel %vm13646, %v13666, %v13633
    %v13682 = vsel %vm13646, %v13670, %v13634
    %vm13683 = vcmp.eq.s32.totalorder %v13621, 7
    %vm13684 = vcmp.eq.s32.totalorder %v13622, 7
    %v13685 = vsel %vm13683, 1, 0
    %v13686 = vsel %vm13684, 1, 0
    %13687 = vset.pattern.permute.xlu0 0
    %13688 = vperm.xlu0 %13687, %v13685
    %v13689 = vpop.permute.xlu0 %13688
    %13690 = vset.pattern.permute.xlu0 0
    %13691 = vperm.xlu0 %13690, %v13686
    %v13692 = vpop.permute.xlu0 %13691
    %vm13693 = vcmp.eq.s32.totalorder %v13689, 1
    %vm13694 = vcmp.eq.s32.totalorder %v13692, 1
    %v13695 = vlaneseq
    %v13696 = vshrl.u32 %v13695, 7
    %v13697 = vsub.s32 0, %v13696
    %v13698 = vrot.slane %v13369, %v13697
    %v13699 = vlaneseq
    %v13700 = vshrl.u32 %v13699, 7
    %v13701 = vsub.s32 0, %v13700
    %v13702 = vrot.slane %v13371, %v13701
    %v13703 = vlaneseq
    %v13704 = vshrl.u32 %v13703, 7
    %v13705 = vsub.s32 0, %v13704
    %v13706 = vrot.slane %v13492, %v13705
    %v13707 = vlaneseq
    %v13708 = vshrl.u32 %v13707, 7
    %v13709 = vsub.s32 0, %v13708
    %v13710 = vrot.slane %v13494, %v13709
    %v13711 = vlaneseq
    %v13712 = vshrl.u32 %v13711, 7
    %v13713 = vsub.s32 0, %v13712
    %v13714 = vrot.slane %v13615, %v13713
    %v13715 = vlaneseq
    %v13716 = vshrl.u32 %v13715, 7
    %v13717 = vsub.s32 0, %v13716
    %v13718 = vrot.slane %v13617, %v13717
    %v13719 = vsel %vm13693, %v13698, %v13671
    %v13720 = vsel %vm13693, %v13702, %v13672
    %v13721 = vsel %vm13693, %v13706, %v13673
    %v13722 = vsel %vm13693, %v13710, %v13674
    %v13723 = vsel %vm13693, %v13714, %v13675
    %v13724 = vsel %vm13693, %v13718, %v13676
    %v13725 = vsel %vm13694, %v13698, %v13677
    %v13726 = vsel %vm13694, %v13702, %v13678
    %v13727 = vsel %vm13694, %v13706, %v13679
    %v13728 = vsel %vm13694, %v13710, %v13680
    %v13729 = vsel %vm13694, %v13714, %v13681
    %v13730 = vsel %vm13694, %v13718, %v13682
    %13731 = vst [vmem:[%s21] sm:$0xff] %v13719
    %13732 = vst [vmem:[%s21 + $0x8] sm:$0xff] %v13720
    %13733 = vst [vmem:[%s21 + $0x10] sm:$0xff] %v13721
    %13734 = vst [vmem:[%s21 + $0x18] sm:$0xff] %v13722
    %13735 = vst [vmem:[%s21 + $0x20] sm:$0xff] %v13723
    %13736 = vst [vmem:[%s21 + $0x28] sm:$0xff] %v13724
    %13737 = vst [vmem:[%s21 + $0x30] sm:$0xff] %v13725
    %13738 = vst [vmem:[%s21 + $0x38] sm:$0xff] %v13726
    %13739 = vst [vmem:[%s21 + $0x40] sm:$0xff] %v13727
    %13740 = vst [vmem:[%s21 + $0x48] sm:$0xff] %v13728
    %13741 = vst [vmem:[%s21 + $0x50] sm:$0xff] %v13729
    %13742 = vst [vmem:[%s21 + $0x58] sm:$0xff] %v13730
    // Predicated region
    $region122: #{embedding_manager_forward.1} parent=1 // pred_check
      _
    $region123: #{embedding_manager_forward.1} parent=1 // pred_check_branch
      %13744 = sbr.rel (0) target = $region125
    $region124: #{embedding_manager_forward.1} parent=1 // pred_region
      _
    $region125: #{embedding_manager_forward.1} parent=1 // pred_fallthru
      _
    // Predicated region
    $region126: #{embedding_manager_forward.1} parent=1 // pred_check
      _
    $region127: #{embedding_manager_forward.1} parent=1 // pred_check_branch
      %13746 = sbr.rel (0) target = $region129
    $region128: #{embedding_manager_forward.1} parent=1 // pred_region
      _
    $region129: #{embedding_manager_forward.1} parent=1 // pred_fallthru
      _
    %13747 = vsyncpa [#allocation3], 1
    %13748 = vsyncpa [#allocation5], 1
    %13749 = vsyncpa [#allocation8], 1
    %13750 = vsyncpa [#allocation11], 1
    %13751 = vsyncpa [#allocation14], 1

</llo_original>
